<compile_context>
chip_gen: v5e
topology: v5e:2x2
jax: 0.10.0
libtpu: 0.0.40
codegen_flags: <defaults>
</compile_context>

<pallas_src>
import jax
import jax.numpy as jnp
from jax import lax
from jax.experimental import pallas as pl
from jax.experimental.pallas import tpu as pltpu


# ============================================================================
# Kernel 1: fused conv stack  (conv+BN+ReLU+pool) x 3
# ============================================================================
def conv_stack_kernel(x_ref, w1_ref, s1_ref, w2_ref, s2_ref, w3_ref, s3_ref,
                      o_ref, pad1_ref, pad2_ref, pad3_ref, xcol_ref):
    """One batch element per grid step.  Per-image layout: (W, H, C)."""

    def conv3x3_bn_relu(pad_ref, x_val, w_ref, s_ref):
        # x_val: (Ww, Hh, C); pad_ref: (Ww+2, Hh+2, C); w_ref: (9C, Cout); s_ref: (1, Cout)
        Ww, Hh, C = x_val.shape
        Cout = w_ref.shape[1]
        K = 9 * C
        M = Ww * Hh

        # in-kernel zero padding into a VMEM scratch (no jnp.pad HBM pass)
        pad_ref[...] = jnp.zeros_like(pad_ref)
        pad_ref[1:Ww + 1, 1:Hh + 1, :] = x_val

        # im2col staging: (M, 9C) in VMEM, then a single MXU GEMM with K = 9C.
        for dh in range(3):
            for dw in range(3):
                tap = 3 * dh + dw
                slab = pad_ref[dw:dw + Ww, dh:dh + Hh, :]            # (Ww, Hh, C)
                xcol_ref[0:M, tap * C:(tap + 1) * C] = slab.reshape(M, C)

        y = jnp.dot(xcol_ref[0:M, 0:K], w_ref[...],
                    preferred_element_type=jnp.float32)              # (M, Cout)
        # BN scale is folded into w; only a per-channel shift + ReLU left on the VPU.
        y = jnp.maximum(y + s_ref[...], 0.0)
        return y.reshape(Ww, Hh, Cout)

    def maxpool_w(y, k):
        # pool along the leading (freq) axis: reshape only touches leading dims.
        Ww, Hh, C = y.shape
        yr = y.reshape(Ww // k, k, Hh, C)
        m = yr[:, 0]
        for i in range(1, k):
            m = jnp.maximum(m, yr[:, i])
        return m

    y = x_ref[0]                                                     # (W, H, Cin)
    y = maxpool_w(conv3x3_bn_relu(pad1_ref, y, w1_ref, s1_ref), 5)
    y = maxpool_w(conv3x3_bn_relu(pad2_ref, y, w2_ref, s2_ref), 2)
    y = maxpool_w(conv3x3_bn_relu(pad3_ref, y, w3_ref, s3_ref), 2)
    # TODO(synk): nn.Dropout is identity in eval mode (deterministic forward).
    o_ref[0] = y                                                     # (W/20, H, F)


def conv_stack(x_whc, w1, s1, w2, s2, w3, s3):
    """x_whc: (N, W, H, Cin); w*: (9*Cin_layer, F); s*: (1, F).  Returns (N, W/20, H, F)."""
    N, W, H, Cin = x_whc.shape
    F = w1.shape[1]
    assert W % 20 == 0, "frequency axis must be divisible by 5*2*2"
    W1, W2, W3 = W // 5, W // 10, W // 20

    flops = 2 * N * (H * W * (9 * Cin) * F
                     + H * W1 * (9 * F) * F
                     + H * W2 * (9 * F) * F)
    bytes_accessed = 4 * (x_whc.size + w1.size + w2.size + w3.size
                          + s1.size + s2.size + s3.size + N * W3 * H * F)

    return pl.pallas_call(
        conv_stack_kernel,
        out_shape=jax.ShapeDtypeStruct((N, W3, H, F), jnp.float32),
        grid=(N,),
        in_specs=[
            pl.BlockSpec((1, W, H, Cin), lambda n: (n, 0, 0, 0)),
            pl.BlockSpec((9 * Cin, F), lambda n: (0, 0)),
            pl.BlockSpec((1, F), lambda n: (0, 0)),
            pl.BlockSpec((9 * F, F), lambda n: (0, 0)),
            pl.BlockSpec((1, F), lambda n: (0, 0)),
            pl.BlockSpec((9 * F, F), lambda n: (0, 0)),
            pl.BlockSpec((1, F), lambda n: (0, 0)),
        ],
        out_specs=pl.BlockSpec((1, W3, H, F), lambda n: (n, 0, 0, 0)),
        scratch_shapes=[
            pltpu.VMEM((W + 2, H + 2, Cin), jnp.float32),       # padded layer-1 input
            pltpu.VMEM((W1 + 2, H + 2, F), jnp.float32),        # padded layer-2 input
            pltpu.VMEM((W2 + 2, H + 2, F), jnp.float32),        # padded layer-3 input
            pltpu.VMEM((W * H, 9 * max(Cin, F)), jnp.float32),  # shared im2col staging
        ],
        compiler_params=pltpu.CompilerParams(dimension_semantics=("parallel",)),
        cost_estimate=pl.CostEstimate(flops=flops, transcendentals=0,
                                      bytes_accessed=bytes_accessed),
    )(x_whc, w1, s1, w2, s2, w3, s3)


# ============================================================================
# Kernel 2: bidirectional GRU + linear1 + linear2 + sigmoid (fully VMEM resident)
# ============================================================================
def gru_head_kernel(x_ref,
                    wih_f_ref, whh_f_ref, bih_f_ref, bhh_f_ref,
                    wih_b_ref, whh_b_ref, bih_b_ref, bhh_b_ref,
                    w1f_ref, w1b_ref, b1_ref, w2_ref, b2_ref,
                    o_ref, hfwd_ref):
    # x_ref: (T, N, I); o_ref: (T, N, classes); hfwd_ref: (T, N, Hd) VMEM scratch
    T, N, _ = x_ref.shape
    Hd = whh_f_ref.shape[0]

    def gru_cell(x_t, h, wih, whh, bih, bhh):
        gi = jnp.dot(x_t, wih, preferred_element_type=jnp.float32) + bih   # (N, 3Hd)
        gh = jnp.dot(h, whh, preferred_element_type=jnp.float32) + bhh     # (N, 3Hd)
        r = jax.nn.sigmoid(gi[:, 0:Hd] + gh[:, 0:Hd])
        z = jax.nn.sigmoid(gi[:, Hd:2 * Hd] + gh[:, Hd:2 * Hd])
        n = jnp.tanh(gi[:, 2 * Hd:3 * Hd] + r * gh[:, 2 * Hd:3 * Hd])
        return (1.0 - z) * n + z * h

    wih_f, whh_f = wih_f_ref[...], whh_f_ref[...]
    bih_f, bhh_f = bih_f_ref[...], bhh_f_ref[...]
    wih_b, whh_b = wih_b_ref[...], whh_b_ref[...]
    bih_b, bhh_b = bih_b_ref[...], bhh_b_ref[...]
    w1f, w1b, b1 = w1f_ref[...], w1b_ref[...], b1_ref[...]
    w2, b2 = w2_ref[...], b2_ref[...]

    h0 = jnp.zeros((N, Hd), jnp.float32)

    def fwd_body(t, h):
        h = gru_cell(x_ref[t], h, wih_f, whh_f, bih_f, bhh_f)
        hfwd_ref[t] = h
        return h

    lax.fori_loop(0, T, fwd_body, h0)

    def bwd_body(s, h):
        t = T - 1 - s
        h = gru_cell(x_ref[t], h, wih_b, whh_b, bih_b, bhh_b)
        z1 = (jnp.dot(hfwd_ref[t], w1f, preferred_element_type=jnp.float32)
              + jnp.dot(h, w1b, preferred_element_type=jnp.float32) + b1)
        z2 = jnp.dot(z1, w2, preferred_element_type=jnp.float32) + b2
        o_ref[t] = jax.nn.sigmoid(z2)
        return h

    lax.fori_loop(0, T, bwd_body, h0)


def gru_head(xs_tni, gru_fwd, gru_bwd, w1, b1, w2, b2):
    T, N, _ = xs_tni.shape
    Hd = gru_fwd[1].shape[0]
    n_cls = w2.shape[1]
    w1f, w1b = w1[:Hd, :], w1[Hd:, :]          # split linear1 so no in-kernel concat
    return pl.pallas_call(
        gru_head_kernel,
        out_shape=jax.ShapeDtypeStruct((T, N, n_cls), jnp.float32),
        scratch_shapes=[pltpu.VMEM((T, N, Hd), jnp.float32)],
    )(xs_tni, *gru_fwd, *gru_bwd, w1f, w1b, b1, w2, b2)


# ============================================================================
# Parameter fusion / full forward (plain JAX glue)
# ============================================================================
def fuse_conv_bn(w_oihw, bias, gamma, beta, run_mean, run_var, eps=1e-5):
    """Fold BN (running stats) scale into the conv weights; return (9*I, O) taps + shift."""
    O, I, KH, KW = w_oihw.shape
    w_taps = jnp.transpose(w_oihw, (2, 3, 1, 0)).reshape(KH * KW * I, O)  # [(3dh+dw)*I + i, o]
    scale = gamma / jnp.sqrt(run_var + eps)
    w_fused = w_taps * scale[None, :]
    shift = (bias - run_mean) * scale + beta
    return w_fused, shift[None, :]


def sed_crnn_forward(x_nchw, conv_params, gru_fwd, gru_bwd, w1, b1, w2, b2):
    """x_nchw: (N, in_filters, time, freq) -> (N, time, classes) like the PyTorch module."""
    N, Cin, H, W = x_nchw.shape
    # single small layout transpose: NCHW -> (N, W, H, C); no other HBM layout passes.
    x_whc = jnp.transpose(x_nchw, (0, 3, 2, 1))
    feats = conv_stack(x_whc, *conv_params)                     # (N, W/20, H, F)
    W3, Fc = feats.shape[1], feats.shape[3]
    # PyTorch permute(0,2,1,3)+reshape: feature index = c*W3 + w, laid out time-major.
    xs = jnp.transpose(feats, (2, 0, 3, 1)).reshape(H, N, Fc * W3)   # (T, N, I)
    out_tnc = gru_head(xs, gru_fwd, gru_bwd, w1, b1, w2, b2)    # (T, N, classes)
    return jnp.transpose(out_tnc, (1, 0, 2))                    # (N, T, classes)


# ============================================================================
# Pure-JAX reference (correctness check)
# ============================================================================
def ref_forward(x_nchw, conv_raw, gru_fwd, gru_bwd, w1, b1, w2, b2, eps=1e-5):
    def block(x, w, b, g, be, rm, rv, k):
        y = lax.conv_general_dilated(x, w, (1, 1), ((1, 1), (1, 1)),
                                     dimension_numbers=("NCHW", "OIHW", "NCHW"))
        y = y + b[None, :, None, None]
        y = (y - rm[None, :, None, None]) / jnp.sqrt(rv[None, :, None, None] + eps)
        y = y * g[None, :, None, None] + be[None, :, None, None]
        y = jnp.maximum(y, 0.0)
        n_, c_, h_, w_ = y.shape
        return y.reshape(n_, c_, h_, w_ // k, k).max(axis=-1)

    x = block(x_nchw, *conv_raw[0], 5)
    x = block(x, *conv_raw[1], 2)
    x = block(x, *conv_raw[2], 2)
    n_, c_, h_, w_ = x.shape
    x = jnp.transpose(x, (0, 2, 1, 3)).reshape(n_, h_, c_ * w_)       # (N, T, I)

    Hd = gru_fwd[1].shape[0]

    def gru_dir(xs, wih, whh, bih, bhh, reverse):
        def cell(h, x_t):
            gi = x_t @ wih + bih
            gh = h @ whh + bhh
            r = jax.nn.sigmoid(gi[:, :Hd] + gh[:, :Hd])
            z = jax.nn.sigmoid(gi[:, Hd:2 * Hd] + gh[:, Hd:2 * Hd])
            nn_ = jnp.tanh(gi[:, 2 * Hd:] + r * gh[:, 2 * Hd:])
            h = (1.0 - z) * nn_ + z * h
            return h, h
        xs_t = jnp.swapaxes(xs, 0, 1)                                  # (T, N, I)
        h0 = jnp.zeros((xs.shape[0], Hd), xs.dtype)
        _, hs = lax.scan(cell, h0, xs_t, reverse=reverse)
        return jnp.swapaxes(hs, 0, 1)                                  # (N, T, Hd)

    hf = gru_dir(x, *gru_fwd, reverse=False)
    hb = gru_dir(x, *gru_bwd, reverse=True)
    rec = jnp.concatenate([hf, hb], axis=-1)
    y = rec @ w1 + b1
    y = y @ w2 + b2
    return jax.nn.sigmoid(y)


if __name__ == "__main__":
    # Small shapes consistent with the module: the (1,5)/(1,2)/(1,2) freq pools and the
    # GRU input size 3*cnn_filters force freq = 60.
    N, IN_FILTERS, CNN_FILTERS = 2, 4, 8
    TIME, FREQ = 16, 60
    RNN_HID, CLASSES = 32, 10
    DROPOUT_RATE = 0.1     # unused: dropout is identity in the inference forward

    key = jax.random.PRNGKey(0)
    ks = iter(jax.random.split(key, 40))

    def nrm(shape, s=0.1):
        return s * jax.random.normal(next(ks), shape, jnp.float32)

    x = jax.random.normal(next(ks), (N, IN_FILTERS, TIME, FREQ), jnp.float32)

    conv_raw = []
    cin = IN_FILTERS
    for _ in range(3):
        w = nrm((CNN_FILTERS, cin, 3, 3))
        b = nrm((CNN_FILTERS,))
        g = 1.0 + nrm((CNN_FILTERS,))
        be = nrm((CNN_FILTERS,))
        rm = nrm((CNN_FILTERS,))
        rv = jax.random.uniform(next(ks), (CNN_FILTERS,), jnp.float32, 0.5, 1.5)
        conv_raw.append((w, b, g, be, rm, rv))
        cin = CNN_FILTERS

    gru_in = 3 * CNN_FILTERS

    def gru_params():
        return (nrm((gru_in, 3 * RNN_HID)), nrm((RNN_HID, 3 * RNN_HID)),
                nrm((1, 3 * RNN_HID)), nrm((1, 3 * RNN_HID)))

    gru_fwd = gru_params()
    gru_bwd = gru_params()
    w1 = nrm((2 * RNN_HID, RNN_HID)); b1 = nrm((1, RNN_HID))
    w2 = nrm((RNN_HID, CLASSES)); b2 = nrm((1, CLASSES))

    conv_params = []
    for (w, b, g, be, rm, rv) in conv_raw:
        wf, sf = fuse_conv_bn(w, b, g, be, rm, rv)
        conv_params.extend([wf, sf])
    conv_params = tuple(conv_params)

    fwd = jax.jit(sed_crnn_forward)
    out = fwd(x, conv_params, gru_fwd, gru_bwd, w1, b1, w2, b2)
    out = jax.block_until_ready(out)
    assert out.shape == (N, TIME, CLASSES), out.shape

    with jax.default_matmul_precision("highest"):
        ref = ref_forward(x, conv_raw, gru_fwd, gru_bwd, w1, b1, w2, b2)
    err = float(jnp.max(jnp.abs(out - ref)))
    assert err < 5e-3, f"max abs err = {err}"
    print("KERNEL_OK")
</pallas_src>

<mosaic_0001>
module attributes {stable_mosaic.version = 11 : i64} {
  func.func @conv_stack_kernel(%arg0: i32, %arg1: memref<1x60x16x4xf32, #tpu.memory_space<vmem>>, %arg2: memref<36x8xf32, #tpu.memory_space<vmem>>, %arg3: memref<1x8xf32, #tpu.memory_space<vmem>>, %arg4: memref<72x8xf32, #tpu.memory_space<vmem>>, %arg5: memref<1x8xf32, #tpu.memory_space<vmem>>, %arg6: memref<72x8xf32, #tpu.memory_space<vmem>>, %arg7: memref<1x8xf32, #tpu.memory_space<vmem>>, %arg8: memref<1x3x16x8xf32, #tpu.memory_space<vmem>>, %arg9: memref<62x18x4xf32, #tpu.memory_space<vmem>>, %arg10: memref<14x18x8xf32, #tpu.memory_space<vmem>>, %arg11: memref<8x18x8xf32, #tpu.memory_space<vmem>>, %arg12: memref<960x72xf32, #tpu.memory_space<vmem>>) attributes {dimension_semantics = [#tpu.dimension_semantics<parallel>], iteration_bounds = array<i64: 2>, scalar_prefetch = 0 : i64, scratch_operands = 4 : i64, tpu.core_type = #tpu.core_type<tc>, window_params = [{transform_indices = @transform_0, window_bounds = array<i64: 1, 60, 16, 4>}, {pipeline_mode = #tpu.pipeline_mode<synchronous>, transform_indices = @transform_1, window_bounds = array<i64: 36, 8>}, {pipeline_mode = #tpu.pipeline_mode<synchronous>, transform_indices = @transform_2, window_bounds = array<i64: 1, 8>}, {pipeline_mode = #tpu.pipeline_mode<synchronous>, transform_indices = @transform_3, window_bounds = array<i64: 72, 8>}, {pipeline_mode = #tpu.pipeline_mode<synchronous>, transform_indices = @transform_4, window_bounds = array<i64: 1, 8>}, {pipeline_mode = #tpu.pipeline_mode<synchronous>, transform_indices = @transform_5, window_bounds = array<i64: 72, 8>}, {pipeline_mode = #tpu.pipeline_mode<synchronous>, transform_indices = @transform_6, window_bounds = array<i64: 1, 8>}, {transform_indices = @transform_7, window_bounds = array<i64: 1, 3, 16, 8>}]} {
    %c0 = arith.constant 0 : index
    %c0_0 = arith.constant 0 : index
    %c0_1 = arith.constant 0 : index
    %c0_2 = arith.constant 0 : index
    %0 = vector.load %arg1[%c0, %c0_0, %c0_1, %c0_2] : memref<1x60x16x4xf32, #tpu.memory_space<vmem>>, vector<1x60x16x4xf32>
    %1 = vector.shape_cast %0 : vector<1x60x16x4xf32> to vector<60x16x4xf32>
    %cst = arith.constant 0.000000e+00 : f32
    %2 = vector.broadcast %cst : f32 to vector<62x18x4xf32>
    %c0_3 = arith.constant 0 : index
    %c0_4 = arith.constant 0 : index
    %c0_5 = arith.constant 0 : index
    %3 = vector.load %arg9[%c0_3, %c0_4, %c0_5] : memref<62x18x4xf32, #tpu.memory_space<vmem>>, vector<62x18x4xf32>
    tpu.vector_store %arg9[%c0_3, %c0_4, %c0_5], %2 {strides = array<i32>} : memref<62x18x4xf32, #tpu.memory_space<vmem>>, vector<62x18x4xf32>,
    %c1 = arith.constant 1 : index
    %c1_6 = arith.constant 1 : index
    %c0_7 = arith.constant 0 : index
    %4 = vector.load %arg9[%c1, %c1_6, %c0_7] : memref<62x18x4xf32, #tpu.memory_space<vmem>>, vector<60x16x4xf32>
    tpu.vector_store %arg9[%c1, %c1_6, %c0_7], %1 {strides = array<i32>} : memref<62x18x4xf32, #tpu.memory_space<vmem>>, vector<60x16x4xf32>,
    %c0_8 = arith.constant 0 : index
    %c0_9 = arith.constant 0 : index
    %c0_10 = arith.constant 0 : index
    %5 = vector.load %arg9[%c0_8, %c0_9, %c0_10] : memref<62x18x4xf32, #tpu.memory_space<vmem>>, vector<60x16x4xf32>
    %6 = vector.shape_cast %5 : vector<60x16x4xf32> to vector<960x4xf32>
    %c0_11 = arith.constant 0 : index
    %c0_12 = arith.constant 0 : index
    %7 = vector.load %arg12[%c0_11, %c0_12] : memref<960x72xf32, #tpu.memory_space<vmem>>, vector<960x4xf32>
    tpu.vector_store %arg12[%c0_11, %c0_12], %6 {strides = array<i32>} : memref<960x72xf32, #tpu.memory_space<vmem>>, vector<960x4xf32>,
    %c1_13 = arith.constant 1 : index
    %c0_14 = arith.constant 0 : index
    %c0_15 = arith.constant 0 : index
    %8 = vector.load %arg9[%c1_13, %c0_14, %c0_15] : memref<62x18x4xf32, #tpu.memory_space<vmem>>, vector<60x16x4xf32>
    %9 = vector.shape_cast %8 : vector<60x16x4xf32> to vector<960x4xf32>
    %c0_16 = arith.constant 0 : index
    %c4 = arith.constant 4 : index
    %10 = vector.load %arg12[%c0_16, %c4] : memref<960x72xf32, #tpu.memory_space<vmem>>, vector<960x4xf32>
    tpu.vector_store %arg12[%c0_16, %c4], %9 {strides = array<i32>} : memref<960x72xf32, #tpu.memory_space<vmem>>, vector<960x4xf32>,
    %c2 = arith.constant 2 : index
    %c0_17 = arith.constant 0 : index
    %c0_18 = arith.constant 0 : index
    %11 = vector.load %arg9[%c2, %c0_17, %c0_18] : memref<62x18x4xf32, #tpu.memory_space<vmem>>, vector<60x16x4xf32>
    %12 = vector.shape_cast %11 : vector<60x16x4xf32> to vector<960x4xf32>
    %c0_19 = arith.constant 0 : index
    %c8 = arith.constant 8 : index
    %13 = vector.load %arg12[%c0_19, %c8] : memref<960x72xf32, #tpu.memory_space<vmem>>, vector<960x4xf32>
    tpu.vector_store %arg12[%c0_19, %c8], %12 {strides = array<i32>} : memref<960x72xf32, #tpu.memory_space<vmem>>, vector<960x4xf32>,
    %c0_20 = arith.constant 0 : index
    %c1_21 = arith.constant 1 : index
    %c0_22 = arith.constant 0 : index
    %14 = vector.load %arg9[%c0_20, %c1_21, %c0_22] : memref<62x18x4xf32, #tpu.memory_space<vmem>>, vector<60x16x4xf32>
    %15 = vector.shape_cast %14 : vector<60x16x4xf32> to vector<960x4xf32>
    %c0_23 = arith.constant 0 : index
    %c12 = arith.constant 12 : index
    %16 = vector.load %arg12[%c0_23, %c12] : memref<960x72xf32, #tpu.memory_space<vmem>>, vector<960x4xf32>
    tpu.vector_store %arg12[%c0_23, %c12], %15 {strides = array<i32>} : memref<960x72xf32, #tpu.memory_space<vmem>>, vector<960x4xf32>,
    %c1_24 = arith.constant 1 : index
    %c1_25 = arith.constant 1 : index
    %c0_26 = arith.constant 0 : index
    %17 = vector.load %arg9[%c1_24, %c1_25, %c0_26] : memref<62x18x4xf32, #tpu.memory_space<vmem>>, vector<60x16x4xf32>
    %18 = vector.shape_cast %17 : vector<60x16x4xf32> to vector<960x4xf32>
    %c0_27 = arith.constant 0 : index
    %c16 = arith.constant 16 : index
    %19 = vector.load %arg12[%c0_27, %c16] : memref<960x72xf32, #tpu.memory_space<vmem>>, vector<960x4xf32>
    tpu.vector_store %arg12[%c0_27, %c16], %18 {strides = array<i32>} : memref<960x72xf32, #tpu.memory_space<vmem>>, vector<960x4xf32>,
    %c2_28 = arith.constant 2 : index
    %c1_29 = arith.constant 1 : index
    %c0_30 = arith.constant 0 : index
    %20 = vector.load %arg9[%c2_28, %c1_29, %c0_30] : memref<62x18x4xf32, #tpu.memory_space<vmem>>, vector<60x16x4xf32>
    %21 = vector.shape_cast %20 : vector<60x16x4xf32> to vector<960x4xf32>
    %c0_31 = arith.constant 0 : index
    %c20 = arith.constant 20 : index
    %22 = vector.load %arg12[%c0_31, %c20] : memref<960x72xf32, #tpu.memory_space<vmem>>, vector<960x4xf32>
    tpu.vector_store %arg12[%c0_31, %c20], %21 {strides = array<i32>} : memref<960x72xf32, #tpu.memory_space<vmem>>, vector<960x4xf32>,
    %c0_32 = arith.constant 0 : index
    %c2_33 = arith.constant 2 : index
    %c0_34 = arith.constant 0 : index
    %23 = vector.load %arg9[%c0_32, %c2_33, %c0_34] : memref<62x18x4xf32, #tpu.memory_space<vmem>>, vector<60x16x4xf32>
    %24 = vector.shape_cast %23 : vector<60x16x4xf32> to vector<960x4xf32>
    %c0_35 = arith.constant 0 : index
    %c24 = arith.constant 24 : index
    %25 = vector.load %arg12[%c0_35, %c24] : memref<960x72xf32, #tpu.memory_space<vmem>>, vector<960x4xf32>
    tpu.vector_store %arg12[%c0_35, %c24], %24 {strides = array<i32>} : memref<960x72xf32, #tpu.memory_space<vmem>>, vector<960x4xf32>,
    %c1_36 = arith.constant 1 : index
    %c2_37 = arith.constant 2 : index
    %c0_38 = arith.constant 0 : index
    %26 = vector.load %arg9[%c1_36, %c2_37, %c0_38] : memref<62x18x4xf32, #tpu.memory_space<vmem>>, vector<60x16x4xf32>
    %27 = vector.shape_cast %26 : vector<60x16x4xf32> to vector<960x4xf32>
    %c0_39 = arith.constant 0 : index
    %c28 = arith.constant 28 : index
    %28 = vector.load %arg12[%c0_39, %c28] : memref<960x72xf32, #tpu.memory_space<vmem>>, vector<960x4xf32>
    tpu.vector_store %arg12[%c0_39, %c28], %27 {strides = array<i32>} : memref<960x72xf32, #tpu.memory_space<vmem>>, vector<960x4xf32>,
    %c2_40 = arith.constant 2 : index
    %c2_41 = arith.constant 2 : index
    %c0_42 = arith.constant 0 : index
    %29 = vector.load %arg9[%c2_40, %c2_41, %c0_42] : memref<62x18x4xf32, #tpu.memory_space<vmem>>, vector<60x16x4xf32>
    %30 = vector.shape_cast %29 : vector<60x16x4xf32> to vector<960x4xf32>
    %c0_43 = arith.constant 0 : index
    %c32 = arith.constant 32 : index
    %31 = vector.load %arg12[%c0_43, %c32] : memref<960x72xf32, #tpu.memory_space<vmem>>, vector<960x4xf32>
    tpu.vector_store %arg12[%c0_43, %c32], %30 {strides = array<i32>} : memref<960x72xf32, #tpu.memory_space<vmem>>, vector<960x4xf32>,
    %c0_44 = arith.constant 0 : index
    %c0_45 = arith.constant 0 : index
    %32 = vector.load %arg12[%c0_44, %c0_45] : memref<960x72xf32, #tpu.memory_space<vmem>>, vector<960x36xf32>
    %c0_46 = arith.constant 0 : index
    %c0_47 = arith.constant 0 : index
    %33 = vector.load %arg2[%c0_46, %c0_47] : memref<36x8xf32, #tpu.memory_space<vmem>>, vector<36x8xf32>
    %cst_48 = arith.constant dense<0.000000e+00> : vector<960x8xf32>
    %34 = tpu.matmul %32, %33, %cst_48 {dimension_numbers = #tpu.dot_dimension_numbers<[1], [0], [0], [1], [0, 0, 1, 1], [], []>} : vector<960x36xf32>, vector<36x8xf32>, vector<960x8xf32> -> vector<960x8xf32>
    %c0_49 = arith.constant 0 : index
    %c0_50 = arith.constant 0 : index
    %35 = vector.load %arg3[%c0_49, %c0_50] : memref<1x8xf32, #tpu.memory_space<vmem>>, vector<1x8xf32>
    %36 = vector.broadcast %35 : vector<1x8xf32> to vector<960x8xf32>
    %37 = arith.addf %34, %36 : vector<960x8xf32>
    %cst_51 = arith.constant 0.000000e+00 : f32
    %38 = vector.broadcast %cst_51 : f32 to vector<960x8xf32>
    %39 = arith.maximumf %37, %38 : vector<960x8xf32>
    %40 = vector.shape_cast %39 : vector<960x8xf32> to vector<60x16x8xf32>
    %41 = vector.shape_cast %40 : vector<60x16x8xf32> to vector<12x5x16x8xf32>
    %42 = vector.extract_strided_slice %41 {offsets = [0, 0, 0, 0], sizes = [12, 1, 16, 8], strides = [1, 1, 1, 1]} : vector<12x5x16x8xf32> to vector<12x1x16x8xf32>
    %43 = vector.shape_cast %42 : vector<12x1x16x8xf32> to vector<12x16x8xf32>
    %44 = vector.extract_strided_slice %41 {offsets = [0, 1, 0, 0], sizes = [12, 1, 16, 8], strides = [1, 1, 1, 1]} : vector<12x5x16x8xf32> to vector<12x1x16x8xf32>
    %45 = vector.shape_cast %44 : vector<12x1x16x8xf32> to vector<12x16x8xf32>
    %46 = arith.maximumf %43, %45 : vector<12x16x8xf32>
    %47 = vector.extract_strided_slice %41 {offsets = [0, 2, 0, 0], sizes = [12, 1, 16, 8], strides = [1, 1, 1, 1]} : vector<12x5x16x8xf32> to vector<12x1x16x8xf32>
    %48 = vector.shape_cast %47 : vector<12x1x16x8xf32> to vector<12x16x8xf32>
    %49 = arith.maximumf %46, %48 : vector<12x16x8xf32>
    %50 = vector.extract_strided_slice %41 {offsets = [0, 3, 0, 0], sizes = [12, 1, 16, 8], strides = [1, 1, 1, 1]} : vector<12x5x16x8xf32> to vector<12x1x16x8xf32>
    %51 = vector.shape_cast %50 : vector<12x1x16x8xf32> to vector<12x16x8xf32>
    %52 = arith.maximumf %49, %51 : vector<12x16x8xf32>
    %53 = vector.extract_strided_slice %41 {offsets = [0, 4, 0, 0], sizes = [12, 1, 16, 8], strides = [1, 1, 1, 1]} : vector<12x5x16x8xf32> to vector<12x1x16x8xf32>
    %54 = vector.shape_cast %53 : vector<12x1x16x8xf32> to vector<12x16x8xf32>
    %55 = arith.maximumf %52, %54 : vector<12x16x8xf32>
    %cst_52 = arith.constant 0.000000e+00 : f32
    %56 = vector.broadcast %cst_52 : f32 to vector<14x18x8xf32>
    %c0_53 = arith.constant 0 : index
    %c0_54 = arith.constant 0 : index
    %c0_55 = arith.constant 0 : index
    %57 = vector.load %arg10[%c0_53, %c0_54, %c0_55] : memref<14x18x8xf32, #tpu.memory_space<vmem>>, vector<14x18x8xf32>
    tpu.vector_store %arg10[%c0_53, %c0_54, %c0_55], %56 {strides = array<i32>} : memref<14x18x8xf32, #tpu.memory_space<vmem>>, vector<14x18x8xf32>,
    %c1_56 = arith.constant 1 : index
    %c1_57 = arith.constant 1 : index
    %c0_58 = arith.constant 0 : index
    %58 = vector.load %arg10[%c1_56, %c1_57, %c0_58] : memref<14x18x8xf32, #tpu.memory_space<vmem>>, vector<12x16x8xf32>
    tpu.vector_store %arg10[%c1_56, %c1_57, %c0_58], %55 {strides = array<i32>} : memref<14x18x8xf32, #tpu.memory_space<vmem>>, vector<12x16x8xf32>,
    %c0_59 = arith.constant 0 : index
    %c0_60 = arith.constant 0 : index
    %c0_61 = arith.constant 0 : index
    %59 = vector.load %arg10[%c0_59, %c0_60, %c0_61] : memref<14x18x8xf32, #tpu.memory_space<vmem>>, vector<12x16x8xf32>
    %60 = vector.shape_cast %59 : vector<12x16x8xf32> to vector<192x8xf32>
    %c0_62 = arith.constant 0 : index
    %c0_63 = arith.constant 0 : index
    %61 = vector.load %arg12[%c0_62, %c0_63] : memref<960x72xf32, #tpu.memory_space<vmem>>, vector<192x8xf32>
    tpu.vector_store %arg12[%c0_62, %c0_63], %60 {strides = array<i32>} : memref<960x72xf32, #tpu.memory_space<vmem>>, vector<192x8xf32>,
    %c1_64 = arith.constant 1 : index
    %c0_65 = arith.constant 0 : index
    %c0_66 = arith.constant 0 : index
    %62 = vector.load %arg10[%c1_64, %c0_65, %c0_66] : memref<14x18x8xf32, #tpu.memory_space<vmem>>, vector<12x16x8xf32>
    %63 = vector.shape_cast %62 : vector<12x16x8xf32> to vector<192x8xf32>
    %c0_67 = arith.constant 0 : index
    %c8_68 = arith.constant 8 : index
    %64 = vector.load %arg12[%c0_67, %c8_68] : memref<960x72xf32, #tpu.memory_space<vmem>>, vector<192x8xf32>
    tpu.vector_store %arg12[%c0_67, %c8_68], %63 {strides = array<i32>} : memref<960x72xf32, #tpu.memory_space<vmem>>, vector<192x8xf32>,
    %c2_69 = arith.constant 2 : index
    %c0_70 = arith.constant 0 : index
    %c0_71 = arith.constant 0 : index
    %65 = vector.load %arg10[%c2_69, %c0_70, %c0_71] : memref<14x18x8xf32, #tpu.memory_space<vmem>>, vector<12x16x8xf32>
    %66 = vector.shape_cast %65 : vector<12x16x8xf32> to vector<192x8xf32>
    %c0_72 = arith.constant 0 : index
    %c16_73 = arith.constant 16 : index
    %67 = vector.load %arg12[%c0_72, %c16_73] : memref<960x72xf32, #tpu.memory_space<vmem>>, vector<192x8xf32>
    tpu.vector_store %arg12[%c0_72, %c16_73], %66 {strides = array<i32>} : memref<960x72xf32, #tpu.memory_space<vmem>>, vector<192x8xf32>,
    %c0_74 = arith.constant 0 : index
    %c1_75 = arith.constant 1 : index
    %c0_76 = arith.constant 0 : index
    %68 = vector.load %arg10[%c0_74, %c1_75, %c0_76] : memref<14x18x8xf32, #tpu.memory_space<vmem>>, vector<12x16x8xf32>
    %69 = vector.shape_cast %68 : vector<12x16x8xf32> to vector<192x8xf32>
    %c0_77 = arith.constant 0 : index
    %c24_78 = arith.constant 24 : index
    %70 = vector.load %arg12[%c0_77, %c24_78] : memref<960x72xf32, #tpu.memory_space<vmem>>, vector<192x8xf32>
    tpu.vector_store %arg12[%c0_77, %c24_78], %69 {strides = array<i32>} : memref<960x72xf32, #tpu.memory_space<vmem>>, vector<192x8xf32>,
    %c1_79 = arith.constant 1 : index
    %c1_80 = arith.constant 1 : index
    %c0_81 = arith.constant 0 : index
    %71 = vector.load %arg10[%c1_79, %c1_80, %c0_81] : memref<14x18x8xf32, #tpu.memory_space<vmem>>, vector<12x16x8xf32>
    %72 = vector.shape_cast %71 : vector<12x16x8xf32> to vector<192x8xf32>
    %c0_82 = arith.constant 0 : index
    %c32_83 = arith.constant 32 : index
    %73 = vector.load %arg12[%c0_82, %c32_83] : memref<960x72xf32, #tpu.memory_space<vmem>>, vector<192x8xf32>
    tpu.vector_store %arg12[%c0_82, %c32_83], %72 {strides = array<i32>} : memref<960x72xf32, #tpu.memory_space<vmem>>, vector<192x8xf32>,
    %c2_84 = arith.constant 2 : index
    %c1_85 = arith.constant 1 : index
    %c0_86 = arith.constant 0 : index
    %74 = vector.load %arg10[%c2_84, %c1_85, %c0_86] : memref<14x18x8xf32, #tpu.memory_space<vmem>>, vector<12x16x8xf32>
    %75 = vector.shape_cast %74 : vector<12x16x8xf32> to vector<192x8xf32>
    %c0_87 = arith.constant 0 : index
    %c40 = arith.constant 40 : index
    %76 = vector.load %arg12[%c0_87, %c40] : memref<960x72xf32, #tpu.memory_space<vmem>>, vector<192x8xf32>
    tpu.vector_store %arg12[%c0_87, %c40], %75 {strides = array<i32>} : memref<960x72xf32, #tpu.memory_space<vmem>>, vector<192x8xf32>,
    %c0_88 = arith.constant 0 : index
    %c2_89 = arith.constant 2 : index
    %c0_90 = arith.constant 0 : index
    %77 = vector.load %arg10[%c0_88, %c2_89, %c0_90] : memref<14x18x8xf32, #tpu.memory_space<vmem>>, vector<12x16x8xf32>
    %78 = vector.shape_cast %77 : vector<12x16x8xf32> to vector<192x8xf32>
    %c0_91 = arith.constant 0 : index
    %c48 = arith.constant 48 : index
    %79 = vector.load %arg12[%c0_91, %c48] : memref<960x72xf32, #tpu.memory_space<vmem>>, vector<192x8xf32>
    tpu.vector_store %arg12[%c0_91, %c48], %78 {strides = array<i32>} : memref<960x72xf32, #tpu.memory_space<vmem>>, vector<192x8xf32>,
    %c1_92 = arith.constant 1 : index
    %c2_93 = arith.constant 2 : index
    %c0_94 = arith.constant 0 : index
    %80 = vector.load %arg10[%c1_92, %c2_93, %c0_94] : memref<14x18x8xf32, #tpu.memory_space<vmem>>, vector<12x16x8xf32>
    %81 = vector.shape_cast %80 : vector<12x16x8xf32> to vector<192x8xf32>
    %c0_95 = arith.constant 0 : index
    %c56 = arith.constant 56 : index
    %82 = vector.load %arg12[%c0_95, %c56] : memref<960x72xf32, #tpu.memory_space<vmem>>, vector<192x8xf32>
    tpu.vector_store %arg12[%c0_95, %c56], %81 {strides = array<i32>} : memref<960x72xf32, #tpu.memory_space<vmem>>, vector<192x8xf32>,
    %c2_96 = arith.constant 2 : index
    %c2_97 = arith.constant 2 : index
    %c0_98 = arith.constant 0 : index
    %83 = vector.load %arg10[%c2_96, %c2_97, %c0_98] : memref<14x18x8xf32, #tpu.memory_space<vmem>>, vector<12x16x8xf32>
    %84 = vector.shape_cast %83 : vector<12x16x8xf32> to vector<192x8xf32>
    %c0_99 = arith.constant 0 : index
    %c64 = arith.constant 64 : index
    %85 = vector.load %arg12[%c0_99, %c64] : memref<960x72xf32, #tpu.memory_space<vmem>>, vector<192x8xf32>
    tpu.vector_store %arg12[%c0_99, %c64], %84 {strides = array<i32>} : memref<960x72xf32, #tpu.memory_space<vmem>>, vector<192x8xf32>,
    %c0_100 = arith.constant 0 : index
    %c0_101 = arith.constant 0 : index
    %86 = vector.load %arg12[%c0_100, %c0_101] : memref<960x72xf32, #tpu.memory_space<vmem>>, vector<192x72xf32>
    %c0_102 = arith.constant 0 : index
    %c0_103 = arith.constant 0 : index
    %87 = vector.load %arg4[%c0_102, %c0_103] : memref<72x8xf32, #tpu.memory_space<vmem>>, vector<72x8xf32>
    %cst_104 = arith.constant dense<0.000000e+00> : vector<192x8xf32>
    %88 = tpu.matmul %86, %87, %cst_104 {dimension_numbers = #tpu.dot_dimension_numbers<[1], [0], [0], [1], [0, 0, 1, 1], [], []>} : vector<192x72xf32>, vector<72x8xf32>, vector<192x8xf32> -> vector<192x8xf32>
    %c0_105 = arith.constant 0 : index
    %c0_106 = arith.constant 0 : index
    %89 = vector.load %arg5[%c0_105, %c0_106] : memref<1x8xf32, #tpu.memory_space<vmem>>, vector<1x8xf32>
    %90 = vector.broadcast %89 : vector<1x8xf32> to vector<192x8xf32>
    %91 = arith.addf %88, %90 : vector<192x8xf32>
    %cst_107 = arith.constant 0.000000e+00 : f32
    %92 = vector.broadcast %cst_107 : f32 to vector<192x8xf32>
    %93 = arith.maximumf %91, %92 : vector<192x8xf32>
    %94 = vector.shape_cast %93 : vector<192x8xf32> to vector<12x16x8xf32>
    %95 = vector.shape_cast %94 : vector<12x16x8xf32> to vector<6x2x16x8xf32>
    %96 = vector.extract_strided_slice %95 {offsets = [0, 0, 0, 0], sizes = [6, 1, 16, 8], strides = [1, 1, 1, 1]} : vector<6x2x16x8xf32> to vector<6x1x16x8xf32>
    %97 = vector.shape_cast %96 : vector<6x1x16x8xf32> to vector<6x16x8xf32>
    %98 = vector.extract_strided_slice %95 {offsets = [0, 1, 0, 0], sizes = [6, 1, 16, 8], strides = [1, 1, 1, 1]} : vector<6x2x16x8xf32> to vector<6x1x16x8xf32>
    %99 = vector.shape_cast %98 : vector<6x1x16x8xf32> to vector<6x16x8xf32>
    %100 = arith.maximumf %97, %99 : vector<6x16x8xf32>
    %cst_108 = arith.constant 0.000000e+00 : f32
    %101 = vector.broadcast %cst_108 : f32 to vector<8x18x8xf32>
    %c0_109 = arith.constant 0 : index
    %c0_110 = arith.constant 0 : index
    %c0_111 = arith.constant 0 : index
    %102 = vector.load %arg11[%c0_109, %c0_110, %c0_111] : memref<8x18x8xf32, #tpu.memory_space<vmem>>, vector<8x18x8xf32>
    tpu.vector_store %arg11[%c0_109, %c0_110, %c0_111], %101 {strides = array<i32>} : memref<8x18x8xf32, #tpu.memory_space<vmem>>, vector<8x18x8xf32>,
    %c1_112 = arith.constant 1 : index
    %c1_113 = arith.constant 1 : index
    %c0_114 = arith.constant 0 : index
    %103 = vector.load %arg11[%c1_112, %c1_113, %c0_114] : memref<8x18x8xf32, #tpu.memory_space<vmem>>, vector<6x16x8xf32>
    tpu.vector_store %arg11[%c1_112, %c1_113, %c0_114], %100 {strides = array<i32>} : memref<8x18x8xf32, #tpu.memory_space<vmem>>, vector<6x16x8xf32>,
    %c0_115 = arith.constant 0 : index
    %c0_116 = arith.constant 0 : index
    %c0_117 = arith.constant 0 : index
    %104 = vector.load %arg11[%c0_115, %c0_116, %c0_117] : memref<8x18x8xf32, #tpu.memory_space<vmem>>, vector<6x16x8xf32>
    %105 = vector.shape_cast %104 : vector<6x16x8xf32> to vector<96x8xf32>
    %c0_118 = arith.constant 0 : index
    %c0_119 = arith.constant 0 : index
    %106 = vector.load %arg12[%c0_118, %c0_119] : memref<960x72xf32, #tpu.memory_space<vmem>>, vector<96x8xf32>
    tpu.vector_store %arg12[%c0_118, %c0_119], %105 {strides = array<i32>} : memref<960x72xf32, #tpu.memory_space<vmem>>, vector<96x8xf32>,
    %c1_120 = arith.constant 1 : index
    %c0_121 = arith.constant 0 : index
    %c0_122 = arith.constant 0 : index
    %107 = vector.load %arg11[%c1_120, %c0_121, %c0_122] : memref<8x18x8xf32, #tpu.memory_space<vmem>>, vector<6x16x8xf32>
    %108 = vector.shape_cast %107 : vector<6x16x8xf32> to vector<96x8xf32>
    %c0_123 = arith.constant 0 : index
    %c8_124 = arith.constant 8 : index
    %109 = vector.load %arg12[%c0_123, %c8_124] : memref<960x72xf32, #tpu.memory_space<vmem>>, vector<96x8xf32>
    tpu.vector_store %arg12[%c0_123, %c8_124], %108 {strides = array<i32>} : memref<960x72xf32, #tpu.memory_space<vmem>>, vector<96x8xf32>,
    %c2_125 = arith.constant 2 : index
    %c0_126 = arith.constant 0 : index
    %c0_127 = arith.constant 0 : index
    %110 = vector.load %arg11[%c2_125, %c0_126, %c0_127] : memref<8x18x8xf32, #tpu.memory_space<vmem>>, vector<6x16x8xf32>
    %111 = vector.shape_cast %110 : vector<6x16x8xf32> to vector<96x8xf32>
    %c0_128 = arith.constant 0 : index
    %c16_129 = arith.constant 16 : index
    %112 = vector.load %arg12[%c0_128, %c16_129] : memref<960x72xf32, #tpu.memory_space<vmem>>, vector<96x8xf32>
    tpu.vector_store %arg12[%c0_128, %c16_129], %111 {strides = array<i32>} : memref<960x72xf32, #tpu.memory_space<vmem>>, vector<96x8xf32>,
    %c0_130 = arith.constant 0 : index
    %c1_131 = arith.constant 1 : index
    %c0_132 = arith.constant 0 : index
    %113 = vector.load %arg11[%c0_130, %c1_131, %c0_132] : memref<8x18x8xf32, #tpu.memory_space<vmem>>, vector<6x16x8xf32>
    %114 = vector.shape_cast %113 : vector<6x16x8xf32> to vector<96x8xf32>
    %c0_133 = arith.constant 0 : index
    %c24_134 = arith.constant 24 : index
    %115 = vector.load %arg12[%c0_133, %c24_134] : memref<960x72xf32, #tpu.memory_space<vmem>>, vector<96x8xf32>
    tpu.vector_store %arg12[%c0_133, %c24_134], %114 {strides = array<i32>} : memref<960x72xf32, #tpu.memory_space<vmem>>, vector<96x8xf32>,
    %c1_135 = arith.constant 1 : index
    %c1_136 = arith.constant 1 : index
    %c0_137 = arith.constant 0 : index
    %116 = vector.load %arg11[%c1_135, %c1_136, %c0_137] : memref<8x18x8xf32, #tpu.memory_space<vmem>>, vector<6x16x8xf32>
    %117 = vector.shape_cast %116 : vector<6x16x8xf32> to vector<96x8xf32>
    %c0_138 = arith.constant 0 : index
    %c32_139 = arith.constant 32 : index
    %118 = vector.load %arg12[%c0_138, %c32_139] : memref<960x72xf32, #tpu.memory_space<vmem>>, vector<96x8xf32>
    tpu.vector_store %arg12[%c0_138, %c32_139], %117 {strides = array<i32>} : memref<960x72xf32, #tpu.memory_space<vmem>>, vector<96x8xf32>,
    %c2_140 = arith.constant 2 : index
    %c1_141 = arith.constant 1 : index
    %c0_142 = arith.constant 0 : index
    %119 = vector.load %arg11[%c2_140, %c1_141, %c0_142] : memref<8x18x8xf32, #tpu.memory_space<vmem>>, vector<6x16x8xf32>
    %120 = vector.shape_cast %119 : vector<6x16x8xf32> to vector<96x8xf32>
    %c0_143 = arith.constant 0 : index
    %c40_144 = arith.constant 40 : index
    %121 = vector.load %arg12[%c0_143, %c40_144] : memref<960x72xf32, #tpu.memory_space<vmem>>, vector<96x8xf32>
    tpu.vector_store %arg12[%c0_143, %c40_144], %120 {strides = array<i32>} : memref<960x72xf32, #tpu.memory_space<vmem>>, vector<96x8xf32>,
    %c0_145 = arith.constant 0 : index
    %c2_146 = arith.constant 2 : index
    %c0_147 = arith.constant 0 : index
    %122 = vector.load %arg11[%c0_145, %c2_146, %c0_147] : memref<8x18x8xf32, #tpu.memory_space<vmem>>, vector<6x16x8xf32>
    %123 = vector.shape_cast %122 : vector<6x16x8xf32> to vector<96x8xf32>
    %c0_148 = arith.constant 0 : index
    %c48_149 = arith.constant 48 : index
    %124 = vector.load %arg12[%c0_148, %c48_149] : memref<960x72xf32, #tpu.memory_space<vmem>>, vector<96x8xf32>
    tpu.vector_store %arg12[%c0_148, %c48_149], %123 {strides = array<i32>} : memref<960x72xf32, #tpu.memory_space<vmem>>, vector<96x8xf32>,
    %c1_150 = arith.constant 1 : index
    %c2_151 = arith.constant 2 : index
    %c0_152 = arith.constant 0 : index
    %125 = vector.load %arg11[%c1_150, %c2_151, %c0_152] : memref<8x18x8xf32, #tpu.memory_space<vmem>>, vector<6x16x8xf32>
    %126 = vector.shape_cast %125 : vector<6x16x8xf32> to vector<96x8xf32>
    %c0_153 = arith.constant 0 : index
    %c56_154 = arith.constant 56 : index
    %127 = vector.load %arg12[%c0_153, %c56_154] : memref<960x72xf32, #tpu.memory_space<vmem>>, vector<96x8xf32>
    tpu.vector_store %arg12[%c0_153, %c56_154], %126 {strides = array<i32>} : memref<960x72xf32, #tpu.memory_space<vmem>>, vector<96x8xf32>,
    %c2_155 = arith.constant 2 : index
    %c2_156 = arith.constant 2 : index
    %c0_157 = arith.constant 0 : index
    %128 = vector.load %arg11[%c2_155, %c2_156, %c0_157] : memref<8x18x8xf32, #tpu.memory_space<vmem>>, vector<6x16x8xf32>
    %129 = vector.shape_cast %128 : vector<6x16x8xf32> to vector<96x8xf32>
    %c0_158 = arith.constant 0 : index
    %c64_159 = arith.constant 64 : index
    %130 = vector.load %arg12[%c0_158, %c64_159] : memref<960x72xf32, #tpu.memory_space<vmem>>, vector<96x8xf32>
    tpu.vector_store %arg12[%c0_158, %c64_159], %129 {strides = array<i32>} : memref<960x72xf32, #tpu.memory_space<vmem>>, vector<96x8xf32>,
    %c0_160 = arith.constant 0 : index
    %c0_161 = arith.constant 0 : index
    %131 = vector.load %arg12[%c0_160, %c0_161] : memref<960x72xf32, #tpu.memory_space<vmem>>, vector<96x72xf32>
    %c0_162 = arith.constant 0 : index
    %c0_163 = arith.constant 0 : index
    %132 = vector.load %arg6[%c0_162, %c0_163] : memref<72x8xf32, #tpu.memory_space<vmem>>, vector<72x8xf32>
    %cst_164 = arith.constant dense<0.000000e+00> : vector<96x8xf32>
    %133 = tpu.matmul %131, %132, %cst_164 {dimension_numbers = #tpu.dot_dimension_numbers<[1], [0], [0], [1], [0, 0, 1, 1], [], []>} : vector<96x72xf32>, vector<72x8xf32>, vector<96x8xf32> -> vector<96x8xf32>
    %c0_165 = arith.constant 0 : index
    %c0_166 = arith.constant 0 : index
    %134 = vector.load %arg7[%c0_165, %c0_166] : memref<1x8xf32, #tpu.memory_space<vmem>>, vector<1x8xf32>
    %135 = vector.broadcast %134 : vector<1x8xf32> to vector<96x8xf32>
    %136 = arith.addf %133, %135 : vector<96x8xf32>
    %cst_167 = arith.constant 0.000000e+00 : f32
    %137 = vector.broadcast %cst_167 : f32 to vector<96x8xf32>
    %138 = arith.maximumf %136, %137 : vector<96x8xf32>
    %139 = vector.shape_cast %138 : vector<96x8xf32> to vector<6x16x8xf32>
    %140 = vector.shape_cast %139 : vector<6x16x8xf32> to vector<3x2x16x8xf32>
    %141 = vector.extract_strided_slice %140 {offsets = [0, 0, 0, 0], sizes = [3, 1, 16, 8], strides = [1, 1, 1, 1]} : vector<3x2x16x8xf32> to vector<3x1x16x8xf32>
    %142 = vector.shape_cast %141 : vector<3x1x16x8xf32> to vector<3x16x8xf32>
    %143 = vector.extract_strided_slice %140 {offsets = [0, 1, 0, 0], sizes = [3, 1, 16, 8], strides = [1, 1, 1, 1]} : vector<3x2x16x8xf32> to vector<3x1x16x8xf32>
    %144 = vector.shape_cast %143 : vector<3x1x16x8xf32> to vector<3x16x8xf32>
    %145 = arith.maximumf %142, %144 : vector<3x16x8xf32>
    %c0_168 = arith.constant 0 : index
    %c0_169 = arith.constant 0 : index
    %c0_170 = arith.constant 0 : index
    %c0_171 = arith.constant 0 : index
    %146 = vector.load %arg8[%c0_168, %c0_169, %c0_170, %c0_171] : memref<1x3x16x8xf32, #tpu.memory_space<vmem>>, vector<1x3x16x8xf32>
    %147 = vector.shape_cast %146 : vector<1x3x16x8xf32> to vector<3x16x8xf32>
    %148 = vector.shape_cast %145 : vector<3x16x8xf32> to vector<1x3x16x8xf32>
    tpu.vector_store %arg8[%c0_168, %c0_169, %c0_170, %c0_171], %148 {strides = array<i32>} : memref<1x3x16x8xf32, #tpu.memory_space<vmem>>, vector<1x3x16x8xf32>,
    return
  }
  func.func @transform_0(%arg0: i32) -> (i32, i32, i32, i32) {
    %c0_i32 = arith.constant 0 : i32
    %c0_i32_0 = arith.constant 0 : i32
    %c0_i32_1 = arith.constant 0 : i32
    %c0_i32_2 = arith.constant 0 : i32
    return %arg0, %c0_i32, %c0_i32_0, %c0_i32_1 : i32, i32, i32, i32
  }
  func.func @transform_1(%arg0: i32) -> (i32, i32) {
    %c0_i32 = arith.constant 0 : i32
    %c0_i32_0 = arith.constant 0 : i32
    %c0_i32_1 = arith.constant 0 : i32
    return %c0_i32, %c0_i32_0 : i32, i32
  }
  func.func @transform_2(%arg0: i32) -> (i32, i32) {
    %c0_i32 = arith.constant 0 : i32
    %c0_i32_0 = arith.constant 0 : i32
    %c0_i32_1 = arith.constant 0 : i32
    return %c0_i32, %c0_i32_0 : i32, i32
  }
  func.func @transform_3(%arg0: i32) -> (i32, i32) {
    %c0_i32 = arith.constant 0 : i32
    %c0_i32_0 = arith.constant 0 : i32
    %c0_i32_1 = arith.constant 0 : i32
    return %c0_i32, %c0_i32_0 : i32, i32
  }
  func.func @transform_4(%arg0: i32) -> (i32, i32) {
    %c0_i32 = arith.constant 0 : i32
    %c0_i32_0 = arith.constant 0 : i32
    %c0_i32_1 = arith.constant 0 : i32
    return %c0_i32, %c0_i32_0 : i32, i32
  }
  func.func @transform_5(%arg0: i32) -> (i32, i32) {
    %c0_i32 = arith.constant 0 : i32
    %c0_i32_0 = arith.constant 0 : i32
    %c0_i32_1 = arith.constant 0 : i32
    return %c0_i32, %c0_i32_0 : i32, i32
  }
  func.func @transform_6(%arg0: i32) -> (i32, i32) {
    %c0_i32 = arith.constant 0 : i32
    %c0_i32_0 = arith.constant 0 : i32
    %c0_i32_1 = arith.constant 0 : i32
    return %c0_i32, %c0_i32_0 : i32, i32
  }
  func.func @transform_7(%arg0: i32) -> (i32, i32, i32, i32) {
    %c0_i32 = arith.constant 0 : i32
    %c0_i32_0 = arith.constant 0 : i32
    %c0_i32_1 = arith.constant 0 : i32
    %c0_i32_2 = arith.constant 0 : i32
    return %arg0, %c0_i32, %c0_i32_0, %c0_i32_1 : i32, i32, i32, i32
  }
}

module attributes {stable_mosaic.version = 11 : i64} {
  func.func @gru_head_kernel(%arg0: memref<16x2x24xf32, #tpu.memory_space<vmem>>, %arg1: memref<24x96xf32, #tpu.memory_space<vmem>>, %arg2: memref<32x96xf32, #tpu.memory_space<vmem>>, %arg3: memref<1x96xf32, #tpu.memory_space<vmem>>, %arg4: memref<1x96xf32, #tpu.memory_space<vmem>>, %arg5: memref<24x96xf32, #tpu.memory_space<vmem>>, %arg6: memref<32x96xf32, #tpu.memory_space<vmem>>, %arg7: memref<1x96xf32, #tpu.memory_space<vmem>>, %arg8: memref<1x96xf32, #tpu.memory_space<vmem>>, %arg9: memref<32x32xf32, #tpu.memory_space<vmem>>, %arg10: memref<32x32xf32, #tpu.memory_space<vmem>>, %arg11: memref<1x32xf32, #tpu.memory_space<vmem>>, %arg12: memref<32x10xf32, #tpu.memory_space<vmem>>, %arg13: memref<1x10xf32, #tpu.memory_space<vmem>>, %arg14: memref<16x2x10xf32, #tpu.memory_space<vmem>>, %arg15: memref<16x2x32xf32, #tpu.memory_space<vmem>>) attributes {dimension_semantics = [], scalar_prefetch = 0 : i64, scratch_operands = 1 : i64, tpu.core_type = #tpu.core_type<tc>} {
    %c0 = arith.constant 0 : index
    %c0_0 = arith.constant 0 : index
    %0 = vector.load %arg1[%c0, %c0_0] : memref<24x96xf32, #tpu.memory_space<vmem>>, vector<24x96xf32>
    %c0_1 = arith.constant 0 : index
    %c0_2 = arith.constant 0 : index
    %1 = vector.load %arg2[%c0_1, %c0_2] : memref<32x96xf32, #tpu.memory_space<vmem>>, vector<32x96xf32>
    %c0_3 = arith.constant 0 : index
    %c0_4 = arith.constant 0 : index
    %2 = vector.load %arg3[%c0_3, %c0_4] : memref<1x96xf32, #tpu.memory_space<vmem>>, vector<1x96xf32>
    %c0_5 = arith.constant 0 : index
    %c0_6 = arith.constant 0 : index
    %3 = vector.load %arg4[%c0_5, %c0_6] : memref<1x96xf32, #tpu.memory_space<vmem>>, vector<1x96xf32>
    %c0_7 = arith.constant 0 : index
    %c0_8 = arith.constant 0 : index
    %4 = vector.load %arg5[%c0_7, %c0_8] : memref<24x96xf32, #tpu.memory_space<vmem>>, vector<24x96xf32>
    %c0_9 = arith.constant 0 : index
    %c0_10 = arith.constant 0 : index
    %5 = vector.load %arg6[%c0_9, %c0_10] : memref<32x96xf32, #tpu.memory_space<vmem>>, vector<32x96xf32>
    %c0_11 = arith.constant 0 : index
    %c0_12 = arith.constant 0 : index
    %6 = vector.load %arg7[%c0_11, %c0_12] : memref<1x96xf32, #tpu.memory_space<vmem>>, vector<1x96xf32>
    %c0_13 = arith.constant 0 : index
    %c0_14 = arith.constant 0 : index
    %7 = vector.load %arg8[%c0_13, %c0_14] : memref<1x96xf32, #tpu.memory_space<vmem>>, vector<1x96xf32>
    %c0_15 = arith.constant 0 : index
    %c0_16 = arith.constant 0 : index
    %8 = vector.load %arg9[%c0_15, %c0_16] : memref<32x32xf32, #tpu.memory_space<vmem>>, vector<32x32xf32>
    %c0_17 = arith.constant 0 : index
    %c0_18 = arith.constant 0 : index
    %9 = vector.load %arg10[%c0_17, %c0_18] : memref<32x32xf32, #tpu.memory_space<vmem>>, vector<32x32xf32>
    %c0_19 = arith.constant 0 : index
    %c0_20 = arith.constant 0 : index
    %10 = vector.load %arg11[%c0_19, %c0_20] : memref<1x32xf32, #tpu.memory_space<vmem>>, vector<1x32xf32>
    %c0_21 = arith.constant 0 : index
    %c0_22 = arith.constant 0 : index
    %11 = vector.load %arg12[%c0_21, %c0_22] : memref<32x10xf32, #tpu.memory_space<vmem>>, vector<32x10xf32>
    %c0_23 = arith.constant 0 : index
    %c0_24 = arith.constant 0 : index
    %12 = vector.load %arg13[%c0_23, %c0_24] : memref<1x10xf32, #tpu.memory_space<vmem>>, vector<1x10xf32>
    %cst = arith.constant 0.000000e+00 : f32
    %13 = vector.broadcast %cst : f32 to vector<2x32xf32>
    %c0_i32 = arith.constant 0 : i32
    %c16_i32 = arith.constant 16 : i32
    %14 = arith.addi %c0_i32, %c16_i32 : i32
    %c1_i32 = arith.constant 1 : i32
    %15 = scf.for %arg16 = %c0_i32 to %14 step %c1_i32 iter_args(%arg17 = %13) -> (vector<2x32xf32>)  : i32 {
      %18 = arith.index_cast %arg16 : i32 to index
      %c0_30 = arith.constant 0 : index
      %c0_31 = arith.constant 0 : index
      %19 = vector.load %arg0[%18, %c0_30, %c0_31] : memref<16x2x24xf32, #tpu.memory_space<vmem>>, vector<1x2x24xf32>
      %20 = vector.shape_cast %19 : vector<1x2x24xf32> to vector<2x24xf32>
      %cst_32 = arith.constant dense<0.000000e+00> : vector<2x96xf32>
      %21 = tpu.matmul %20, %0, %cst_32 {dimension_numbers = #tpu.dot_dimension_numbers<[1], [0], [0], [1], [0, 0, 1, 1], [], []>} : vector<2x24xf32>, vector<24x96xf32>, vector<2x96xf32> -> vector<2x96xf32>
      %22 = vector.broadcast %2 : vector<1x96xf32> to vector<2x96xf32>
      %23 = arith.addf %21, %22 : vector<2x96xf32>
      %cst_33 = arith.constant dense<0.000000e+00> : vector<2x96xf32>
      %24 = tpu.matmul %arg17, %1, %cst_33 {dimension_numbers = #tpu.dot_dimension_numbers<[1], [0], [0], [1], [0, 0, 1, 1], [], []>} : vector<2x32xf32>, vector<32x96xf32>, vector<2x96xf32> -> vector<2x96xf32>
      %25 = vector.broadcast %3 : vector<1x96xf32> to vector<2x96xf32>
      %26 = arith.addf %24, %25 : vector<2x96xf32>
      %27 = vector.extract_strided_slice %23 {offsets = [0, 0], sizes = [2, 32], strides = [1, 1]} : vector<2x96xf32> to vector<2x32xf32>
      %28 = vector.extract_strided_slice %26 {offsets = [0, 0], sizes = [2, 32], strides = [1, 1]} : vector<2x96xf32> to vector<2x32xf32>
      %29 = arith.addf %27, %28 : vector<2x32xf32>
      %30 = arith.negf %29 : vector<2x32xf32>
      %31 = math.exp %30 : vector<2x32xf32>
      %cst_34 = arith.constant 1.000000e+00 : f32
      %32 = vector.broadcast %cst_34 : f32 to vector<2x32xf32>
      %33 = arith.addf %32, %31 : vector<2x32xf32>
      %34 = arith.divf %32, %33 : vector<2x32xf32>
      %35 = vector.extract_strided_slice %23 {offsets = [0, 32], sizes = [2, 32], strides = [1, 1]} : vector<2x96xf32> to vector<2x32xf32>
      %36 = vector.extract_strided_slice %26 {offsets = [0, 32], sizes = [2, 32], strides = [1, 1]} : vector<2x96xf32> to vector<2x32xf32>
      %37 = arith.addf %35, %36 : vector<2x32xf32>
      %38 = arith.negf %37 : vector<2x32xf32>
      %39 = math.exp %38 : vector<2x32xf32>
      %cst_35 = arith.constant 1.000000e+00 : f32
      %40 = vector.broadcast %cst_35 : f32 to vector<2x32xf32>
      %41 = arith.addf %40, %39 : vector<2x32xf32>
      %42 = arith.divf %40, %41 : vector<2x32xf32>
      %43 = vector.extract_strided_slice %23 {offsets = [0, 64], sizes = [2, 32], strides = [1, 1]} : vector<2x96xf32> to vector<2x32xf32>
      %44 = vector.extract_strided_slice %26 {offsets = [0, 64], sizes = [2, 32], strides = [1, 1]} : vector<2x96xf32> to vector<2x32xf32>
      %45 = arith.mulf %34, %44 : vector<2x32xf32>
      %46 = arith.addf %43, %45 : vector<2x32xf32>
      %47 = math.tanh %46 : vector<2x32xf32>
      %cst_36 = arith.constant 1.000000e+00 : f32
      %48 = vector.broadcast %cst_36 : f32 to vector<2x32xf32>
      %49 = arith.subf %48, %42 : vector<2x32xf32>
      %50 = arith.mulf %49, %47 : vector<2x32xf32>
      %51 = arith.mulf %42, %arg17 : vector<2x32xf32>
      %52 = arith.addf %50, %51 : vector<2x32xf32>
      %53 = arith.index_cast %arg16 : i32 to index
      %c0_37 = arith.constant 0 : index
      %c0_38 = arith.constant 0 : index
      %54 = vector.load %arg15[%53, %c0_37, %c0_38] : memref<16x2x32xf32, #tpu.memory_space<vmem>>, vector<1x2x32xf32>
      %55 = vector.shape_cast %54 : vector<1x2x32xf32> to vector<2x32xf32>
      %56 = vector.shape_cast %52 : vector<2x32xf32> to vector<1x2x32xf32>
      tpu.vector_store %arg15[%53, %c0_37, %c0_38], %56 {strides = array<i32>} : memref<16x2x32xf32, #tpu.memory_space<vmem>>, vector<1x2x32xf32>,
      scf.yield %52 : vector<2x32xf32>
    }
    %c16_i32_25 = arith.constant 16 : i32
    %c0_i32_26 = arith.constant 0 : i32
    %c16_i32_27 = arith.constant 16 : i32
    %16 = arith.addi %c0_i32_26, %c16_i32_27 : i32
    %c1_i32_28 = arith.constant 1 : i32
    %17 = scf.for %arg16 = %c0_i32_26 to %16 step %c1_i32_28 iter_args(%arg17 = %13) -> (vector<2x32xf32>)  : i32 {
      %c15_i32 = arith.constant 15 : i32
      %18 = arith.subi %c15_i32, %arg16 : i32
      %19 = arith.index_cast %18 : i32 to index
      %c0_30 = arith.constant 0 : index
      %c0_31 = arith.constant 0 : index
      %20 = vector.load %arg0[%19, %c0_30, %c0_31] : memref<16x2x24xf32, #tpu.memory_space<vmem>>, vector<1x2x24xf32>
      %21 = vector.shape_cast %20 : vector<1x2x24xf32> to vector<2x24xf32>
      %cst_32 = arith.constant dense<0.000000e+00> : vector<2x96xf32>
      %22 = tpu.matmul %21, %4, %cst_32 {dimension_numbers = #tpu.dot_dimension_numbers<[1], [0], [0], [1], [0, 0, 1, 1], [], []>} : vector<2x24xf32>, vector<24x96xf32>, vector<2x96xf32> -> vector<2x96xf32>
      %23 = vector.broadcast %6 : vector<1x96xf32> to vector<2x96xf32>
      %24 = arith.addf %22, %23 : vector<2x96xf32>
      %cst_33 = arith.constant dense<0.000000e+00> : vector<2x96xf32>
      %25 = tpu.matmul %arg17, %5, %cst_33 {dimension_numbers = #tpu.dot_dimension_numbers<[1], [0], [0], [1], [0, 0, 1, 1], [], []>} : vector<2x32xf32>, vector<32x96xf32>, vector<2x96xf32> -> vector<2x96xf32>
      %26 = vector.broadcast %7 : vector<1x96xf32> to vector<2x96xf32>
      %27 = arith.addf %25, %26 : vector<2x96xf32>
      %28 = vector.extract_strided_slice %24 {offsets = [0, 0], sizes = [2, 32], strides = [1, 1]} : vector<2x96xf32> to vector<2x32xf32>
      %29 = vector.extract_strided_slice %27 {offsets = [0, 0], sizes = [2, 32], strides = [1, 1]} : vector<2x96xf32> to vector<2x32xf32>
      %30 = arith.addf %28, %29 : vector<2x32xf32>
      %31 = arith.negf %30 : vector<2x32xf32>
      %32 = math.exp %31 : vector<2x32xf32>
      %cst_34 = arith.constant 1.000000e+00 : f32
      %33 = vector.broadcast %cst_34 : f32 to vector<2x32xf32>
      %34 = arith.addf %33, %32 : vector<2x32xf32>
      %35 = arith.divf %33, %34 : vector<2x32xf32>
      %36 = vector.extract_strided_slice %24 {offsets = [0, 32], sizes = [2, 32], strides = [1, 1]} : vector<2x96xf32> to vector<2x32xf32>
      %37 = vector.extract_strided_slice %27 {offsets = [0, 32], sizes = [2, 32], strides = [1, 1]} : vector<2x96xf32> to vector<2x32xf32>
      %38 = arith.addf %36, %37 : vector<2x32xf32>
      %39 = arith.negf %38 : vector<2x32xf32>
      %40 = math.exp %39 : vector<2x32xf32>
      %cst_35 = arith.constant 1.000000e+00 : f32
      %41 = vector.broadcast %cst_35 : f32 to vector<2x32xf32>
      %42 = arith.addf %41, %40 : vector<2x32xf32>
      %43 = arith.divf %41, %42 : vector<2x32xf32>
      %44 = vector.extract_strided_slice %24 {offsets = [0, 64], sizes = [2, 32], strides = [1, 1]} : vector<2x96xf32> to vector<2x32xf32>
      %45 = vector.extract_strided_slice %27 {offsets = [0, 64], sizes = [2, 32], strides = [1, 1]} : vector<2x96xf32> to vector<2x32xf32>
      %46 = arith.mulf %35, %45 : vector<2x32xf32>
      %47 = arith.addf %44, %46 : vector<2x32xf32>
      %48 = math.tanh %47 : vector<2x32xf32>
      %cst_36 = arith.constant 1.000000e+00 : f32
      %49 = vector.broadcast %cst_36 : f32 to vector<2x32xf32>
      %50 = arith.subf %49, %43 : vector<2x32xf32>
      %51 = arith.mulf %50, %48 : vector<2x32xf32>
      %52 = arith.mulf %43, %arg17 : vector<2x32xf32>
      %53 = arith.addf %51, %52 : vector<2x32xf32>
      %54 = arith.index_cast %18 : i32 to index
      %c0_37 = arith.constant 0 : index
      %c0_38 = arith.constant 0 : index
      %55 = vector.load %arg15[%54, %c0_37, %c0_38] : memref<16x2x32xf32, #tpu.memory_space<vmem>>, vector<1x2x32xf32>
      %56 = vector.shape_cast %55 : vector<1x2x32xf32> to vector<2x32xf32>
      %cst_39 = arith.constant dense<0.000000e+00> : vector<2x32xf32>
      %57 = tpu.matmul %56, %8, %cst_39 {dimension_numbers = #tpu.dot_dimension_numbers<[1], [0], [0], [1], [0, 0, 1, 1], [], []>} : vector<2x32xf32>, vector<32x32xf32>, vector<2x32xf32> -> vector<2x32xf32>
      %cst_40 = arith.constant dense<0.000000e+00> : vector<2x32xf32>
      %58 = tpu.matmul %53, %9, %cst_40 {dimension_numbers = #tpu.dot_dimension_numbers<[1], [0], [0], [1], [0, 0, 1, 1], [], []>} : vector<2x32xf32>, vector<32x32xf32>, vector<2x32xf32> -> vector<2x32xf32>
      %59 = arith.addf %57, %58 : vector<2x32xf32>
      %60 = vector.broadcast %10 : vector<1x32xf32> to vector<2x32xf32>
      %61 = arith.addf %59, %60 : vector<2x32xf32>
      %cst_41 = arith.constant dense<0.000000e+00> : vector<2x10xf32>
      %62 = tpu.matmul %61, %11, %cst_41 {dimension_numbers = #tpu.dot_dimension_numbers<[1], [0], [0], [1], [0, 0, 1, 1], [], []>} : vector<2x32xf32>, vector<32x10xf32>, vector<2x10xf32> -> vector<2x10xf32>
      %63 = vector.broadcast %12 : vector<1x10xf32> to vector<2x10xf32>
      %64 = arith.addf %62, %63 : vector<2x10xf32>
      %65 = arith.negf %64 : vector<2x10xf32>
      %66 = math.exp %65 : vector<2x10xf32>
      %cst_42 = arith.constant 1.000000e+00 : f32
      %67 = vector.broadcast %cst_42 : f32 to vector<2x10xf32>
      %68 = arith.addf %67, %66 : vector<2x10xf32>
      %69 = arith.divf %67, %68 : vector<2x10xf32>
      %70 = arith.index_cast %18 : i32 to index
      %c0_43 = arith.constant 0 : index
      %c0_44 = arith.constant 0 : index
      %71 = vector.load %arg14[%70, %c0_43, %c0_44] : memref<16x2x10xf32, #tpu.memory_space<vmem>>, vector<1x2x10xf32>
      %72 = vector.shape_cast %71 : vector<1x2x10xf32> to vector<2x10xf32>
      %73 = vector.shape_cast %69 : vector<2x10xf32> to vector<1x2x10xf32>
      tpu.vector_store %arg14[%70, %c0_43, %c0_44], %73 {strides = array<i32>} : memref<16x2x10xf32, #tpu.memory_space<vmem>>, vector<1x2x10xf32>,
      scf.yield %53 : vector<2x32xf32>
    }
    %c16_i32_29 = arith.constant 16 : i32
    return
  }
}

</mosaic_0001>

<llo_original>
// kernel: sed_crnn_forward.3
$region0: #{sed_crnn_forward.3}
  #allocation0 [shape = 'u32[]', space=smem, size = 0x4, offset = 0x4, fixed_abs, tag = 'smem constant byte address 0x4 - core index']
  #allocation1 [shape = 'u32[72,128]{1,0:T(1,128)}', space=vmem, size = 0x9000, scoped, tag = 'internal scratch']
  #allocation2 [shape = 'f32[16,2,32]{2,1,0:T(2,128)}', space=vmem, size = 0x4000, scoped, tag = 'scratch operand']
  %s0 = inlined_call_operand.vmem [shape: f32[16,2,24], index: 0, kind: input, shape index: {}]
  %s1 = inlined_call_operand.vmem [shape: f32[24,96], index: 1, kind: input, shape index: {}]
  %s2 = inlined_call_operand.vmem [shape: f32[32,96], index: 2, kind: input, shape index: {}]
  %s3 = inlined_call_operand.vmem [shape: f32[1,96], index: 3, kind: input, shape index: {}]
  %s4 = inlined_call_operand.vmem [shape: f32[1,96], index: 4, kind: input, shape index: {}]
  %s5 = inlined_call_operand.vmem [shape: f32[24,96], index: 5, kind: input, shape index: {}]
  %s6 = inlined_call_operand.vmem [shape: f32[32,96], index: 6, kind: input, shape index: {}]
  %s7 = inlined_call_operand.vmem [shape: f32[1,96], index: 7, kind: input, shape index: {}]
  %s8 = inlined_call_operand.vmem [shape: f32[1,96], index: 8, kind: input, shape index: {}]
  %s9 = inlined_call_operand.vmem [shape: f32[32,32], index: 9, kind: input, shape index: {}]
  %s10 = inlined_call_operand.vmem [shape: f32[32,32], index: 10, kind: input, shape index: {}]
  %s11 = inlined_call_operand.vmem [shape: f32[1,32], index: 11, kind: input, shape index: {}]
  %s12 = inlined_call_operand.vmem [shape: f32[32,10], index: 12, kind: input, shape index: {}]
  %s13 = inlined_call_operand.vmem [shape: f32[1,10], index: 13, kind: input, shape index: {}]
  %s14 = inlined_call_operand.vmem [shape: f32[16,2,10], index: 14, kind: output, shape index: {}]
  %s15 = sld [smem:[#allocation0]]
  $region80: #{sed_crnn_forward.3} parent=0
    _
  %s17 = ssub.s32 1, %s15
  %s18 = scalar_select 0, %s17, %s15
  // Predicated region
  $region2: #{sed_crnn_forward.3} parent=0 // pred_check
    _
  $region3: #{sed_crnn_forward.3} parent=0 // pred_check_branch
    %20 = sbr.rel (0) target = $region5
  $region4: #{sed_crnn_forward.3} parent=0 // pred_region
    _
  $region5: #{sed_crnn_forward.3} parent=0 // pred_fallthru
    _
  // Predicated region
  $region6: #{sed_crnn_forward.3} parent=0 // pred_check
    _
  $region7: #{sed_crnn_forward.3} parent=0 // pred_check_branch
    %22 = sbr.rel (0) target = $region9
  $region8: #{sed_crnn_forward.3} parent=0 // pred_region
    _
  $region9: #{sed_crnn_forward.3} parent=0 // pred_fallthru
    _
  // Predicated region
  $region10: #{sed_crnn_forward.3} parent=0 // pred_check
    _
  $region11: #{sed_crnn_forward.3} parent=0 // pred_check_branch
    %24 = sbr.rel (0) target = $region13
  $region12: #{sed_crnn_forward.3} parent=0 // pred_region
    _
  $region13: #{sed_crnn_forward.3} parent=0 // pred_fallthru
    _
  // Predicated region
  $region14: #{sed_crnn_forward.3} parent=0 // pred_check
    _
  $region15: #{sed_crnn_forward.3} parent=0 // pred_check_branch
    %26 = sbr.rel (0) target = $region17
  $region16: #{sed_crnn_forward.3} parent=0 // pred_region
    _
  $region17: #{sed_crnn_forward.3} parent=0 // pred_fallthru
    _
  // Predicated region
  $region18: #{sed_crnn_forward.3} parent=0 // pred_check
    _
  $region19: #{sed_crnn_forward.3} parent=0 // pred_check_branch
    %28 = sbr.rel (0) target = $region21
  $region20: #{sed_crnn_forward.3} parent=0 // pred_region
    _
  $region21: #{sed_crnn_forward.3} parent=0 // pred_fallthru
    _
  // Predicated region
  $region22: #{sed_crnn_forward.3} parent=0 // pred_check
    _
  $region23: #{sed_crnn_forward.3} parent=0 // pred_check_branch
    %30 = sbr.rel (0) target = $region25
  $region24: #{sed_crnn_forward.3} parent=0 // pred_region
    _
  $region25: #{sed_crnn_forward.3} parent=0 // pred_fallthru
    _
  // Predicated region
  $region26: #{sed_crnn_forward.3} parent=0 // pred_check
    _
  $region27: #{sed_crnn_forward.3} parent=0 // pred_check_branch
    %32 = sbr.rel (0) target = $region29
  $region28: #{sed_crnn_forward.3} parent=0 // pred_region
    _
  $region29: #{sed_crnn_forward.3} parent=0 // pred_fallthru
    _
  // Predicated region
  $region30: #{sed_crnn_forward.3} parent=0 // pred_check
    _
  $region31: #{sed_crnn_forward.3} parent=0 // pred_check_branch
    %34 = sbr.rel (0) target = $region33
  $region32: #{sed_crnn_forward.3} parent=0 // pred_region
    _
  $region33: #{sed_crnn_forward.3} parent=0 // pred_fallthru
    _
  // Predicated region
  $region34: #{sed_crnn_forward.3} parent=0 // pred_check
    _
  $region35: #{sed_crnn_forward.3} parent=0 // pred_check_branch
    %36 = sbr.rel (0) target = $region37
  $region36: #{sed_crnn_forward.3} parent=0 // pred_region
    _
  $region37: #{sed_crnn_forward.3} parent=0 // pred_fallthru
    _
  // Predicated region
  $region38: #{sed_crnn_forward.3} parent=0 // pred_check
    _
  $region39: #{sed_crnn_forward.3} parent=0 // pred_check_branch
    %38 = sbr.rel (0) target = $region41
  $region40: #{sed_crnn_forward.3} parent=0 // pred_region
    _
  $region41: #{sed_crnn_forward.3} parent=0 // pred_fallthru
    _
  // Predicated region
  $region42: #{sed_crnn_forward.3} parent=0 // pred_check
    _
  $region43: #{sed_crnn_forward.3} parent=0 // pred_check_branch
    %40 = sbr.rel (0) target = $region45
  $region44: #{sed_crnn_forward.3} parent=0 // pred_region
    _
  $region45: #{sed_crnn_forward.3} parent=0 // pred_fallthru
    _
  // Predicated region
  $region46: #{sed_crnn_forward.3} parent=0 // pred_check
    _
  $region47: #{sed_crnn_forward.3} parent=0 // pred_check_branch
    %42 = sbr.rel (0) target = $region49
  $region48: #{sed_crnn_forward.3} parent=0 // pred_region
    _
  $region49: #{sed_crnn_forward.3} parent=0 // pred_fallthru
    _
  // Predicated region
  $region50: #{sed_crnn_forward.3} parent=0 // pred_check
    _
  $region51: #{sed_crnn_forward.3} parent=0 // pred_check_branch
    %44 = sbr.rel (0) target = $region53
  $region52: #{sed_crnn_forward.3} parent=0 // pred_region
    _
  $region53: #{sed_crnn_forward.3} parent=0 // pred_fallthru
    _
  // Predicated region
  $region54: #{sed_crnn_forward.3} parent=0 // pred_check
    _
  $region55: #{sed_crnn_forward.3} parent=0 // pred_check_branch
    %46 = sbr.rel (0) target = $region57
  $region56: #{sed_crnn_forward.3} parent=0 // pred_region
    _
  $region57: #{sed_crnn_forward.3} parent=0 // pred_fallthru
    _
  %v47 = vld [vmem:[%s1] sm:$0xff]
  %v48 = vld [vmem:[%s1 + $0x8] sm:$0xff]
  %v49 = vld [vmem:[%s1 + $0x10] sm:$0xff]
  %v50 = vld [vmem:[%s2] sm:$0xff]
  %v51 = vld [vmem:[%s2 + $0x8] sm:$0xff]
  %v52 = vld [vmem:[%s2 + $0x10] sm:$0xff]
  %v53 = vld [vmem:[%s2 + $0x18] sm:$0xff]
  %v54 = vld [vmem:[%s3] sm:$0x1]
  %v55 = vld [vmem:[%s4] sm:$0x1]
  %v56 = vld [vmem:[%s5] sm:$0xff]
  %v57 = vld [vmem:[%s5 + $0x8] sm:$0xff]
  %v58 = vld [vmem:[%s5 + $0x10] sm:$0xff]
  %v59 = vld [vmem:[%s6] sm:$0xff]
  %v60 = vld [vmem:[%s6 + $0x8] sm:$0xff]
  %v61 = vld [vmem:[%s6 + $0x10] sm:$0xff]
  %v62 = vld [vmem:[%s6 + $0x18] sm:$0xff]
  %v63 = vld [vmem:[%s7] sm:$0x1]
  %v64 = vld [vmem:[%s8] sm:$0x1]
  %v65 = vld [vmem:[%s9] sm:$0xff]
  %v66 = vld [vmem:[%s9 + $0x8] sm:$0xff]
  %v67 = vld [vmem:[%s9 + $0x10] sm:$0xff]
  %v68 = vld [vmem:[%s9 + $0x18] sm:$0xff]
  %v69 = vld [vmem:[%s10] sm:$0xff]
  %v70 = vld [vmem:[%s10 + $0x8] sm:$0xff]
  %v71 = vld [vmem:[%s10 + $0x10] sm:$0xff]
  %v72 = vld [vmem:[%s10 + $0x18] sm:$0xff]
  %v73 = vld [vmem:[%s11] sm:$0x1]
  %v74 = vld [vmem:[%s12] sm:$0xff]
  %v75 = vld [vmem:[%s12 + $0x8] sm:$0xff]
  %v76 = vld [vmem:[%s12 + $0x10] sm:$0xff]
  %v77 = vld [vmem:[%s12 + $0x18] sm:$0xff]
  %v78 = vld [vmem:[%s13] sm:$0x1]
  loop: start=0, step=1, limit=16
  $region58: #{sed_crnn_forward.3} parent=0 // loop_pre_header
    _
  $region59: #{sed_crnn_forward.3} parent=0 // loop_header
    %s80 = sphi 0, %s84
    %p81 = scmp.ge.s32.totalorder %s80, 16
    %v85 = vphi 0.0, %v183
  $region60: #{sed_crnn_forward.3} parent=0 // loop_header_branch
    %83 = sbr.rel (%p81) target = $region64
  $region61: #{sed_crnn_forward.3} parent=0 // loop_body
    %s86 = smul.u32 %s80, 2
    %s87 = scalar_lea.vmem %s0, %s86
    %v88 = vld [vmem:[%s87] sm:$0x3]
    %v90 = vperm.slane %v54, 0
    %vm92 = vcmask 195584
    %v94 = vsel %vm92, %v88, 0
    %96 = vmatpush.msra.mxu0 0.0
    %97 = vmatpush.msra.mxu0 0.0
    %98 = vmatpush.msra.mxu0 0.0
    %99 = vmatpush.msra.mxu0 0.0
    %100 = vmatpush.msra.mxu0 0.0
    %101 = vmatpush.msra.mxu0 0.0
    %102 = vmatpush.msra.mxu0 0.0
    %103 = vmatpush.msra.mxu0 0.0
    %104 = vmatpush.msra.mxu0 0.0
    %105 = vmatpush.msra.mxu0 0.0
    %106 = vmatpush.msra.mxu0 0.0
    %107 = vmatpush.msra.mxu0 0.0
    %108 = vmatpush.msra.mxu0 0.0
    %109 = vmatpush.msra.mxu0 %v49
    %110 = vmatpush.msra.mxu0 %v48
    %111 = vmatpush.msra.mxu0 %v47
    %112 = vmatmul.f32.gmra.mxu0 %v94
    %v113 = vpop.f32.mrf.mxu0
    %v114 = vadd.f32 %v90, %v113
    %115 = vdwg.mxu0
    %v117 = vperm.slane %v55, 0
    %120 = vrot.lane.b32.xlu0 %v85, 96
    %v121 = vpop.permute.xlu0 %120
    %vm122 = vcmask 261120
    %v123 = vsel %vm122, %v121, 0
    %125 = vmatpush.msra.mxu0 0.0
    %126 = vmatpush.msra.mxu0 0.0
    %127 = vmatpush.msra.mxu0 0.0
    %128 = vmatpush.msra.mxu0 0.0
    %129 = vmatpush.msra.mxu0 0.0
    %130 = vmatpush.msra.mxu0 0.0
    %131 = vmatpush.msra.mxu0 0.0
    %132 = vmatpush.msra.mxu0 0.0
    %133 = vmatpush.msra.mxu0 0.0
    %134 = vmatpush.msra.mxu0 0.0
    %135 = vmatpush.msra.mxu0 0.0
    %136 = vmatpush.msra.mxu0 0.0
    %137 = vmatpush.msra.mxu0 %v53
    %138 = vmatpush.msra.mxu0 %v52
    %139 = vmatpush.msra.mxu0 %v51
    %140 = vmatpush.msra.mxu0 %v50
    %141 = vmatmul.f32.gmra.mxu0 %v123
    %v142 = vpop.f32.mrf.mxu0
    %v143 = vadd.f32 %v117, %v142
    %144 = vdwg.mxu0
    %v145 = vadd.f32 %v114, %v143
    %v146 = vxor.u32 %v145, 2147483648
    %v147 = vmul.f32 %v146, 1.442695
    %v148 = vpow.pop %v147
    %v149 = vadd.f32 %v148, 1.0
    %v150 = vrcp.pop %v149
    %v151 = vmul.f32 %v149, %v150
    %v152 = vsub.f32 1.0, %v151
    %v153 = vmul.f32 %v150, %v152
    %v154 = vadd.f32 %v150, %v153
    %vm155 = vweird.f32 %v149
    %vm156 = vweird.f32 %v150
    %vm157 = vmor %vm155, %vm156
    %v158 = vsel %vm157, %v150, %v154
    %v159 = vand.u32 2147483647, %v149
    %vm160 = vcmp.eq.f32.partialorder %v159, 8.507059e+37
    %v161 = vand.u32 %v149, 2147483648
    %v162 = vor.u32 1.1754944e-38, %v161
    %v163 = vsel %vm160, %v162, %v158
    %v164 = vmul.f32 1.0, %v163
    %166 = vrot.lane.b32.xlu0 %v143, 64
    %v167 = vpop.permute.xlu0 %166
    %v169 = vmul.f32 %v164, %v167
    %171 = vrot.lane.b32.xlu0 %v169, 64
    %v172 = vpop.permute.xlu0 %171
    %v174 = vadd.f32 %v114, %v172
    %v175 = vtanh.pop %v174
    %v176 = vsub.f32 1.0, %v164
    %178 = vrot.lane.b32.xlu0 %v175, 96
    %v179 = vpop.permute.xlu0 %178
    %v181 = vmul.f32 %v176, %v179
    %v182 = vmul.f32 %v164, %v85
    %v183 = vadd.f32 %v181, %v182
    %185 = vrot.lane.b32.xlu0 %v183, 96
    %v186 = vpop.permute.xlu0 %185
    %s188 = scalar_lea.vmem [#allocation2], %s86
    %vm189 = vcmask 254976
    %190 = vst.msk [vmem:[%s188] sm:$0x3] %vm189, %v186
  $region62: #{sed_crnn_forward.3} parent=0 // loop_footer
    %s84 = sadd.s32 1, %s80
  $region63: #{sed_crnn_forward.3} parent=0 // loop_footer_branch
    %79 = sbr.rel target = $region59
  $region64: #{sed_crnn_forward.3} parent=0 // loop_exit
    _
  loop: start=0, step=1, limit=16
  $region65: #{sed_crnn_forward.3} parent=0 // loop_pre_header
    _
  $region66: #{sed_crnn_forward.3} parent=0 // loop_header
    %s192 = sphi 0, %s196
    %p193 = scmp.ge.s32.totalorder %s192, 16
    %v197 = vphi 0.0, %v296
  $region67: #{sed_crnn_forward.3} parent=0 // loop_header_branch
    %195 = sbr.rel (%p193) target = $region71
  $region68: #{sed_crnn_forward.3} parent=0 // loop_body
    %s198 = ssub.s32 15, %s192
    %s199 = smul.u32 %s198, 2
    %s200 = scalar_lea.vmem %s0, %s199
    %v201 = vld [vmem:[%s200] sm:$0x3]
    %v203 = vperm.slane %v63, 0
    %vm205 = vcmask 195584
    %v207 = vsel %vm205, %v201, 0
    %209 = vmatpush.msra.mxu0 0.0
    %210 = vmatpush.msra.mxu0 0.0
    %211 = vmatpush.msra.mxu0 0.0
    %212 = vmatpush.msra.mxu0 0.0
    %213 = vmatpush.msra.mxu0 0.0
    %214 = vmatpush.msra.mxu0 0.0
    %215 = vmatpush.msra.mxu0 0.0
    %216 = vmatpush.msra.mxu0 0.0
    %217 = vmatpush.msra.mxu0 0.0
    %218 = vmatpush.msra.mxu0 0.0
    %219 = vmatpush.msra.mxu0 0.0
    %220 = vmatpush.msra.mxu0 0.0
    %221 = vmatpush.msra.mxu0 0.0
    %222 = vmatpush.msra.mxu0 %v58
    %223 = vmatpush.msra.mxu0 %v57
    %224 = vmatpush.msra.mxu0 %v56
    %225 = vmatmul.f32.gmra.mxu0 %v207
    %v226 = vpop.f32.mrf.mxu0
    %v227 = vadd.f32 %v203, %v226
    %228 = vdwg.mxu0
    %v230 = vperm.slane %v64, 0
    %233 = vrot.lane.b32.xlu0 %v197, 96
    %v234 = vpop.permute.xlu0 %233
    %vm235 = vcmask 261120
    %v236 = vsel %vm235, %v234, 0
    %238 = vmatpush.msra.mxu0 0.0
    %239 = vmatpush.msra.mxu0 0.0
    %240 = vmatpush.msra.mxu0 0.0
    %241 = vmatpush.msra.mxu0 0.0
    %242 = vmatpush.msra.mxu0 0.0
    %243 = vmatpush.msra.mxu0 0.0
    %244 = vmatpush.msra.mxu0 0.0
    %245 = vmatpush.msra.mxu0 0.0
    %246 = vmatpush.msra.mxu0 0.0
    %247 = vmatpush.msra.mxu0 0.0
    %248 = vmatpush.msra.mxu0 0.0
    %249 = vmatpush.msra.mxu0 0.0
    %250 = vmatpush.msra.mxu0 %v62
    %251 = vmatpush.msra.mxu0 %v61
    %252 = vmatpush.msra.mxu0 %v60
    %253 = vmatpush.msra.mxu0 %v59
    %254 = vmatmul.f32.gmra.mxu0 %v236
    %v255 = vpop.f32.mrf.mxu0
    %v256 = vadd.f32 %v230, %v255
    %257 = vdwg.mxu0
    %v258 = vadd.f32 %v227, %v256
    %v259 = vxor.u32 %v258, 2147483648
    %v260 = vmul.f32 %v259, 1.442695
    %v261 = vpow.pop %v260
    %v262 = vadd.f32 %v261, 1.0
    %v263 = vrcp.pop %v262
    %v264 = vmul.f32 %v262, %v263
    %v265 = vsub.f32 1.0, %v264
    %v266 = vmul.f32 %v263, %v265
    %v267 = vadd.f32 %v263, %v266
    %vm268 = vweird.f32 %v262
    %vm269 = vweird.f32 %v263
    %vm270 = vmor %vm268, %vm269
    %v271 = vsel %vm270, %v263, %v267
    %v272 = vand.u32 2147483647, %v262
    %vm273 = vcmp.eq.f32.partialorder %v272, 8.507059e+37
    %v274 = vand.u32 %v262, 2147483648
    %v275 = vor.u32 1.1754944e-38, %v274
    %v276 = vsel %vm273, %v275, %v271
    %v277 = vmul.f32 1.0, %v276
    %279 = vrot.lane.b32.xlu0 %v256, 64
    %v280 = vpop.permute.xlu0 %279
    %v282 = vmul.f32 %v277, %v280
    %284 = vrot.lane.b32.xlu0 %v282, 64
    %v285 = vpop.permute.xlu0 %284
    %v287 = vadd.f32 %v227, %v285
    %v288 = vtanh.pop %v287
    %v289 = vsub.f32 1.0, %v277
    %291 = vrot.lane.b32.xlu0 %v288, 96
    %v292 = vpop.permute.xlu0 %291
    %v294 = vmul.f32 %v289, %v292
    %v295 = vmul.f32 %v277, %v197
    %v296 = vadd.f32 %v294, %v295
    %s297 = scalar_lea.vmem [#allocation2], %s199
    %v298 = vld [vmem:[%s297] sm:$0x3]
    %300 = vrot.lane.b32.xlu0 %v296, 96
    %v301 = vpop.permute.xlu0 %300
    %v302 = vsel %vm235, %v301, 0
    %304 = vmatpush.msra.mxu0 0.0
    %305 = vmatpush.msra.mxu0 0.0
    %306 = vmatpush.msra.mxu0 0.0
    %307 = vmatpush.msra.mxu0 0.0
    %308 = vmatpush.msra.mxu0 0.0
    %309 = vmatpush.msra.mxu0 0.0
    %310 = vmatpush.msra.mxu0 0.0
    %311 = vmatpush.msra.mxu0 0.0
    %312 = vmatpush.msra.mxu0 0.0
    %313 = vmatpush.msra.mxu0 0.0
    %314 = vmatpush.msra.mxu0 0.0
    %315 = vmatpush.msra.mxu0 0.0
    %316 = vmatpush.msra.mxu0 %v72
    %317 = vmatpush.msra.mxu0 %v71
    %318 = vmatpush.msra.mxu0 %v70
    %319 = vmatpush.msra.mxu0 %v69
    %320 = vmatmul.f32.gmra.mxu0 %v302
    %v321 = vpop.f32.mrf.mxu0
    %v322 = vadd.f32 0.0, %v321
    %323 = vdwg.mxu0
    %v325 = vsel %vm235, %v298, 0
    %327 = vmatpush.msra.mxu0 0.0
    %328 = vmatpush.msra.mxu0 0.0
    %329 = vmatpush.msra.mxu0 0.0
    %330 = vmatpush.msra.mxu0 0.0
    %331 = vmatpush.msra.mxu0 0.0
    %332 = vmatpush.msra.mxu0 0.0
    %333 = vmatpush.msra.mxu0 0.0
    %334 = vmatpush.msra.mxu0 0.0
    %335 = vmatpush.msra.mxu0 0.0
    %336 = vmatpush.msra.mxu0 0.0
    %337 = vmatpush.msra.mxu0 0.0
    %338 = vmatpush.msra.mxu0 0.0
    %339 = vmatpush.msra.mxu0 %v68
    %340 = vmatpush.msra.mxu0 %v67
    %341 = vmatpush.msra.mxu0 %v66
    %342 = vmatpush.msra.mxu0 %v65
    %343 = vmatmul.f32.gmra.mxu0 %v325
    %v344 = vpop.f32.mrf.mxu0
    %v345 = vadd.f32 %v322, %v344
    %346 = vdwg.mxu0
    %v348 = vperm.slane %v73, 0
    %v350 = vadd.f32 %v345, %v348
    %v352 = vperm.slane %v78, 0
    %v355 = vsel %vm235, %v350, 0
    %357 = vmatpush.msra.mxu0 0.0
    %358 = vmatpush.msra.mxu0 0.0
    %359 = vmatpush.msra.mxu0 0.0
    %360 = vmatpush.msra.mxu0 0.0
    %361 = vmatpush.msra.mxu0 0.0
    %362 = vmatpush.msra.mxu0 0.0
    %363 = vmatpush.msra.mxu0 0.0
    %364 = vmatpush.msra.mxu0 0.0
    %365 = vmatpush.msra.mxu0 0.0
    %366 = vmatpush.msra.mxu0 0.0
    %367 = vmatpush.msra.mxu0 0.0
    %368 = vmatpush.msra.mxu0 0.0
    %369 = vmatpush.msra.mxu0 %v77
    %370 = vmatpush.msra.mxu0 %v76
    %371 = vmatpush.msra.mxu0 %v75
    %372 = vmatpush.msra.mxu0 %v74
    %373 = vmatmul.f32.gmra.mxu0 %v355
    %v374 = vpop.f32.mrf.mxu0
    %v375 = vadd.f32 %v352, %v374
    %376 = vdwg.mxu0
    %v377 = vxor.u32 %v375, 2147483648
    %v378 = vmul.f32 %v377, 1.442695
    %v379 = vpow.pop %v378
    %v380 = vadd.f32 %v379, 1.0
    %v381 = vrcp.pop %v380
    %v382 = vmul.f32 %v380, %v381
    %v383 = vsub.f32 1.0, %v382
    %v384 = vmul.f32 %v381, %v383
    %v385 = vadd.f32 %v381, %v384
    %vm386 = vweird.f32 %v380
    %vm387 = vweird.f32 %v381
    %vm388 = vmor %vm386, %vm387
    %v389 = vsel %vm388, %v381, %v385
    %v390 = vand.u32 2147483647, %v380
    %vm391 = vcmp.eq.f32.partialorder %v390, 8.507059e+37
    %v392 = vand.u32 %v380, 2147483648
    %v393 = vor.u32 1.1754944e-38, %v392
    %v394 = vsel %vm391, %v393, %v389
    %v395 = vmul.f32 1.0, %v394
    %s396 = scalar_lea.vmem %s14, %s199
    %vm397 = vcmask 74752
    %398 = vst.msk [vmem:[%s396] sm:$0x3] %vm397, %v395
  $region69: #{sed_crnn_forward.3} parent=0 // loop_footer
    %s196 = sadd.s32 1, %s192
  $region70: #{sed_crnn_forward.3} parent=0 // loop_footer_branch
    %191 = sbr.rel target = $region66
  $region71: #{sed_crnn_forward.3} parent=0 // loop_exit
    _
  // Predicated region
  $region72: #{sed_crnn_forward.3} parent=0 // pred_check
    _
  $region73: #{sed_crnn_forward.3} parent=0 // pred_check_branch
    %400 = sbr.rel (0) target = $region75
  $region74: #{sed_crnn_forward.3} parent=0 // pred_region
    _
  $region75: #{sed_crnn_forward.3} parent=0 // pred_fallthru
    _
  // Predicated region
  $region76: #{sed_crnn_forward.3} parent=0 // pred_check
    _
  $region77: #{sed_crnn_forward.3} parent=0 // pred_check_branch
    %402 = sbr.rel (0) target = $region79
  $region78: #{sed_crnn_forward.3} parent=0 // pred_region
    _
  $region79: #{sed_crnn_forward.3} parent=0 // pred_fallthru
    _

// kernel: sed_crnn_forward.2
$region0: #{sed_crnn_forward.2}
  #allocation0 [shape = 'u32[]', space=smem, size = 0x4, offset = 0x4, fixed_abs, tag = 'smem constant byte address 0x4 - core index']
  #allocation1 [shape = 'u32[72,128]{1,0:T(1,128)}', space=vmem, size = 0x9000, scoped, tag = 'internal scratch']
  #allocation2 [shape = 'f32[62,18,4]{2,1,0:T(8,128)}', space=vmem, size = 0xba000, scoped, tag = 'scratch operand']
  #allocation3 [shape = 'f32[14,18,8]{2,1,0:T(8,128)}', space=vmem, size = 0x2a000, scoped, tag = 'scratch operand']
  #allocation4 [shape = 'f32[8,18,8]{2,1,0:T(8,128)}', space=vmem, size = 0x18000, scoped, tag = 'scratch operand']
  #allocation5 [shape = 'f32[960,72]{1,0:T(8,128)}', space=vmem, size = 0x78000, scoped, tag = 'scratch operand']
  %s0 = inlined_call_operand.vmem [shape: f32[2,60,16,4], index: 0, kind: input, shape index: {}]
  %s1 = inlined_call_operand.vmem [shape: f32[36,8], index: 1, kind: input, shape index: {}]
  %s2 = inlined_call_operand.vmem [shape: f32[1,8], index: 2, kind: input, shape index: {}]
  %s3 = inlined_call_operand.vmem [shape: f32[72,8], index: 3, kind: input, shape index: {}]
  %s4 = inlined_call_operand.vmem [shape: f32[1,8], index: 4, kind: input, shape index: {}]
  %s5 = inlined_call_operand.vmem [shape: f32[72,8], index: 5, kind: input, shape index: {}]
  %s6 = inlined_call_operand.vmem [shape: f32[1,8], index: 6, kind: input, shape index: {}]
  %s7 = inlined_call_operand.vmem [shape: f32[2,3,16,8], index: 7, kind: output, shape index: {}]
  %s8 = sld [smem:[#allocation0]]
  $region61: #{sed_crnn_forward.2} parent=0
    _
  %s10 = ssub.s32 1, %s8
  %s11 = scalar_select 0, %s10, %s8
  loop: start=0, step=1, limit=4
  $region2: #{sed_crnn_forward.2} parent=0 // loop_pre_header
    _
  $region3: #{sed_crnn_forward.2} parent=0 // loop_header
    %s13 = sphi 0, %s17
    %p14 = scmp.ge.s32.totalorder %s13, 4
    %s23 = sphi 0, %s25
    %s26 = sphi 0, %s23
    %s27 = sphi 0, %s26
    %s43 = sphi 0, %s27
    %s47 = sphi 0, %s47
    %s49 = sphi 0, %s47
    %s50 = sphi 0, %s49
    %s64 = sphi 0, %s50
    %s68 = sphi 0, %s68
    %s70 = sphi 0, %s68
    %s71 = sphi 0, %s70
    %s85 = sphi 0, %s71
    %s89 = sphi 0, %s89
    %s91 = sphi 0, %s89
    %s92 = sphi 0, %s91
    %s106 = sphi 0, %s92
    %s110 = sphi 0, %s110
    %s112 = sphi 0, %s110
    %s113 = sphi 0, %s112
    %s127 = sphi 0, %s113
    %s131 = sphi 0, %s131
    %s133 = sphi 0, %s131
    %s134 = sphi 0, %s133
    %s148 = sphi 0, %s134
    %s152 = sphi 0, %s152
    %s154 = sphi 0, %s152
    %s155 = sphi 0, %s154
    %s169 = sphi 0, %s155
    %s175 = sphi 0, %s177
    %s178 = sphi 0, %s175
    %s179 = sphi 0, %s178
    %s195 = sphi 0, %s179
  $region4: #{sed_crnn_forward.2} parent=0 // loop_header_branch
    %16 = sbr.rel (%p14) target = $region8
  $region5: #{sed_crnn_forward.2} parent=0 // loop_body
    %s18 = ssub.s32 %s13, 1
    %s19 = ssub.s32 %s13, 2
    %s20 = sadd.s32 %s13, 1
    %s21 = ssub.s32 %s13, %s20
    %p22 = scmp.eq.s32.totalorder %s21, 0
    %s24 = sadd.s32 %s23, 1
    %s25 = scalar_select %p22, %s23, %s24
    %p28 = pneg %p22
    %p29 = scmp.eq.s32.totalorder %s13, 1
    %p30 = por %p28, %p29
    %p31 = scmp.ne.s32.totalorder %s23, %s26
    %p32 = scmp.eq.s32.totalorder %s13, 0
    %p33 = por %p31, %p32
    %p34 = scmp.ne.s32.totalorder %s23, %s26
    %p35 = scmp.eq.s32.totalorder %s18, 1
    %p36 = por %p34, %p35
    %p37 = scmp.ne.s32.totalorder %s26, %s27
    %p38 = scmp.eq.s32.totalorder %s18, 0
    %p39 = por %p37, %p38
    %p40 = scmp.ne.s32.totalorder %s26, %s27
    %p41 = scmp.eq.s32.totalorder %s19, 1
    %p42 = por %p40, %p41
    %p44 = scmp.ne.s32.totalorder %s27, %s43
    %p45 = scmp.eq.s32.totalorder %s19, 0
    %p46 = por %p44, %p45
    %s48 = sadd.s32 %s47, 1
    %p51 = scmp.eq.s32.totalorder %s13, 1
    %p52 = scmp.ne.s32.totalorder %s47, %s49
    %p53 = scmp.eq.s32.totalorder %s13, 0
    %p54 = por %p52, %p53
    %p55 = scmp.ne.s32.totalorder %s47, %s49
    %p56 = scmp.eq.s32.totalorder %s18, 1
    %p57 = por %p55, %p56
    %p58 = scmp.ne.s32.totalorder %s49, %s50
    %p59 = scmp.eq.s32.totalorder %s18, 0
    %p60 = por %p58, %p59
    %p61 = scmp.ne.s32.totalorder %s49, %s50
    %p62 = scmp.eq.s32.totalorder %s19, 1
    %p63 = por %p61, %p62
    %p65 = scmp.ne.s32.totalorder %s50, %s64
    %p66 = scmp.eq.s32.totalorder %s19, 0
    %p67 = por %p65, %p66
    %s69 = sadd.s32 %s68, 1
    %p72 = scmp.eq.s32.totalorder %s13, 1
    %p73 = scmp.ne.s32.totalorder %s68, %s70
    %p74 = scmp.eq.s32.totalorder %s13, 0
    %p75 = por %p73, %p74
    %p76 = scmp.ne.s32.totalorder %s68, %s70
    %p77 = scmp.eq.s32.totalorder %s18, 1
    %p78 = por %p76, %p77
    %p79 = scmp.ne.s32.totalorder %s70, %s71
    %p80 = scmp.eq.s32.totalorder %s18, 0
    %p81 = por %p79, %p80
    %p82 = scmp.ne.s32.totalorder %s70, %s71
    %p83 = scmp.eq.s32.totalorder %s19, 1
    %p84 = por %p82, %p83
    %p86 = scmp.ne.s32.totalorder %s71, %s85
    %p87 = scmp.eq.s32.totalorder %s19, 0
    %p88 = por %p86, %p87
    %s90 = sadd.s32 %s89, 1
    %p93 = scmp.eq.s32.totalorder %s13, 1
    %p94 = scmp.ne.s32.totalorder %s89, %s91
    %p95 = scmp.eq.s32.totalorder %s13, 0
    %p96 = por %p94, %p95
    %p97 = scmp.ne.s32.totalorder %s89, %s91
    %p98 = scmp.eq.s32.totalorder %s18, 1
    %p99 = por %p97, %p98
    %p100 = scmp.ne.s32.totalorder %s91, %s92
    %p101 = scmp.eq.s32.totalorder %s18, 0
    %p102 = por %p100, %p101
    %p103 = scmp.ne.s32.totalorder %s91, %s92
    %p104 = scmp.eq.s32.totalorder %s19, 1
    %p105 = por %p103, %p104
    %p107 = scmp.ne.s32.totalorder %s92, %s106
    %p108 = scmp.eq.s32.totalorder %s19, 0
    %p109 = por %p107, %p108
    %s111 = sadd.s32 %s110, 1
    %p114 = scmp.eq.s32.totalorder %s13, 1
    %p115 = scmp.ne.s32.totalorder %s110, %s112
    %p116 = scmp.eq.s32.totalorder %s13, 0
    %p117 = por %p115, %p116
    %p118 = scmp.ne.s32.totalorder %s110, %s112
    %p119 = scmp.eq.s32.totalorder %s18, 1
    %p120 = por %p118, %p119
    %p121 = scmp.ne.s32.totalorder %s112, %s113
    %p122 = scmp.eq.s32.totalorder %s18, 0
    %p123 = por %p121, %p122
    %p124 = scmp.ne.s32.totalorder %s112, %s113
    %p125 = scmp.eq.s32.totalorder %s19, 1
    %p126 = por %p124, %p125
    %p128 = scmp.ne.s32.totalorder %s113, %s127
    %p129 = scmp.eq.s32.totalorder %s19, 0
    %p130 = por %p128, %p129
    %s132 = sadd.s32 %s131, 1
    %p135 = scmp.eq.s32.totalorder %s13, 1
    %p136 = scmp.ne.s32.totalorder %s131, %s133
    %p137 = scmp.eq.s32.totalorder %s13, 0
    %p138 = por %p136, %p137
    %p139 = scmp.ne.s32.totalorder %s131, %s133
    %p140 = scmp.eq.s32.totalorder %s18, 1
    %p141 = por %p139, %p140
    %p142 = scmp.ne.s32.totalorder %s133, %s134
    %p143 = scmp.eq.s32.totalorder %s18, 0
    %p144 = por %p142, %p143
    %p145 = scmp.ne.s32.totalorder %s133, %s134
    %p146 = scmp.eq.s32.totalorder %s19, 1
    %p147 = por %p145, %p146
    %p149 = scmp.ne.s32.totalorder %s134, %s148
    %p150 = scmp.eq.s32.totalorder %s19, 0
    %p151 = por %p149, %p150
    %s153 = sadd.s32 %s152, 1
    %p156 = scmp.eq.s32.totalorder %s13, 1
    %p157 = scmp.ne.s32.totalorder %s152, %s154
    %p158 = scmp.eq.s32.totalorder %s13, 0
    %p159 = por %p157, %p158
    %p160 = scmp.ne.s32.totalorder %s152, %s154
    %p161 = scmp.eq.s32.totalorder %s18, 1
    %p162 = por %p160, %p161
    %p163 = scmp.ne.s32.totalorder %s154, %s155
    %p164 = scmp.eq.s32.totalorder %s18, 0
    %p165 = por %p163, %p164
    %p166 = scmp.ne.s32.totalorder %s154, %s155
    %p167 = scmp.eq.s32.totalorder %s19, 1
    %p168 = por %p166, %p167
    %p170 = scmp.ne.s32.totalorder %s155, %s169
    %p171 = scmp.eq.s32.totalorder %s19, 0
    %p172 = por %p170, %p171
    %s173 = ssub.s32 %s13, %s20
    %p174 = scmp.eq.s32.totalorder %s173, 0
    %s176 = sadd.s32 %s175, 1
    %s177 = scalar_select %p174, %s175, %s176
    %p180 = pneg %p174
    %p181 = scmp.eq.s32.totalorder %s13, 1
    %p182 = por %p180, %p181
    %p183 = scmp.ne.s32.totalorder %s175, %s178
    %p184 = scmp.eq.s32.totalorder %s13, 0
    %p185 = por %p183, %p184
    %p186 = scmp.ne.s32.totalorder %s175, %s178
    %p187 = scmp.eq.s32.totalorder %s18, 1
    %p188 = por %p186, %p187
    %p189 = scmp.ne.s32.totalorder %s178, %s179
    %p190 = scmp.eq.s32.totalorder %s18, 0
    %p191 = por %p189, %p190
    %p192 = scmp.ne.s32.totalorder %s178, %s179
    %p193 = scmp.eq.s32.totalorder %s19, 1
    %p194 = por %p192, %p193
    %p196 = scmp.ne.s32.totalorder %s179, %s195
    %p197 = scmp.eq.s32.totalorder %s19, 0
    %p198 = por %p196, %p197
    %p199 = scmp.le.s32.totalorder 1, %s13
    %p200 = scmp.lt.s32.totalorder %s13, 3
    %p201 = pnand %p199, %p200
    %p202 = pneg %p201
    // Predicated region
    $region9: #{sed_crnn_forward.2} parent=5 // pred_check
      _
    $region10: #{sed_crnn_forward.2} parent=5 // pred_check_branch
      %204 = sbr.rel (%p201) target = $region12
    $region11: #{sed_crnn_forward.2} parent=5 // pred_region
      %s205 = ssub.s32 %s13, 1
      // Predicated region
      $region13: #{sed_crnn_forward.2} parent=11 // pred_check
        %p206 = pneg %p60
      $region14: #{sed_crnn_forward.2} parent=11 // pred_check_branch
        %208 = sbr.rel (%p206) target = $region16
      $region15: #{sed_crnn_forward.2} parent=11 // pred_region
        _
      $region16: #{sed_crnn_forward.2} parent=11 // pred_fallthru
        _
      // Predicated region
      $region17: #{sed_crnn_forward.2} parent=11 // pred_check
        %p209 = pneg %p81
      $region18: #{sed_crnn_forward.2} parent=11 // pred_check_branch
        %211 = sbr.rel (%p209) target = $region20
      $region19: #{sed_crnn_forward.2} parent=11 // pred_region
        _
      $region20: #{sed_crnn_forward.2} parent=11 // pred_fallthru
        _
      // Predicated region
      $region21: #{sed_crnn_forward.2} parent=11 // pred_check
        %p212 = pneg %p102
      $region22: #{sed_crnn_forward.2} parent=11 // pred_check_branch
        %214 = sbr.rel (%p212) target = $region24
      $region23: #{sed_crnn_forward.2} parent=11 // pred_region
        _
      $region24: #{sed_crnn_forward.2} parent=11 // pred_fallthru
        _
      // Predicated region
      $region25: #{sed_crnn_forward.2} parent=11 // pred_check
        %p215 = pneg %p123
      $region26: #{sed_crnn_forward.2} parent=11 // pred_check_branch
        %217 = sbr.rel (%p215) target = $region28
      $region27: #{sed_crnn_forward.2} parent=11 // pred_region
        _
      $region28: #{sed_crnn_forward.2} parent=11 // pred_fallthru
        _
      // Predicated region
      $region29: #{sed_crnn_forward.2} parent=11 // pred_check
        %p218 = pneg %p144
      $region30: #{sed_crnn_forward.2} parent=11 // pred_check_branch
        %220 = sbr.rel (%p218) target = $region32
      $region31: #{sed_crnn_forward.2} parent=11 // pred_region
        _
      $region32: #{sed_crnn_forward.2} parent=11 // pred_fallthru
        _
      // Predicated region
      $region33: #{sed_crnn_forward.2} parent=11 // pred_check
        %p221 = pneg %p165
      $region34: #{sed_crnn_forward.2} parent=11 // pred_check_branch
        %223 = sbr.rel (%p221) target = $region36
      $region35: #{sed_crnn_forward.2} parent=11 // pred_region
        _
      $region36: #{sed_crnn_forward.2} parent=11 // pred_fallthru
        _
    $region12: #{sed_crnn_forward.2} parent=5 // pred_fallthru
      _
    %p224 = scmp.lt.s32.totalorder %s13, 2
    // Predicated region
    $region37: #{sed_crnn_forward.2} parent=5 // pred_check
      %p225 = pneg %p224
    $region38: #{sed_crnn_forward.2} parent=5 // pred_check_branch
      %227 = sbr.rel (%p225) target = $region40
    $region39: #{sed_crnn_forward.2} parent=5 // pred_region
      // Predicated region
      $region41: #{sed_crnn_forward.2} parent=39 // pred_check
        %p228 = pneg %p33
      $region42: #{sed_crnn_forward.2} parent=39 // pred_check_branch
        %230 = sbr.rel (%p228) target = $region44
      $region43: #{sed_crnn_forward.2} parent=39 // pred_region
        %p231 = scmp.lt.s32.totalorder %s13, 1
        %s232 = scalar_select %p231, %s13, 1
        %s233 = smul.addr %s232, 120
        %s234 = smul.addr %s233, 8
        %s235 = scalar_lea.vmem %s0, %s234
      $region44: #{sed_crnn_forward.2} parent=39 // pred_fallthru
        _
    $region40: #{sed_crnn_forward.2} parent=5 // pred_fallthru
      _
    %p236 = scmp.le.s32.totalorder 1, %s13
    %p237 = scmp.lt.s32.totalorder %s13, 3
    %p238 = pnand %p236, %p237
    %p239 = pneg %p238
    // Predicated region
    $region45: #{sed_crnn_forward.2} parent=5 // pred_check
      _
    $region46: #{sed_crnn_forward.2} parent=5 // pred_check_branch
      %241 = sbr.rel (%p238) target = $region48
    $region47: #{sed_crnn_forward.2} parent=5 // pred_region
      %s242 = ssub.s32 %s13, 1
      %p243 = scmp.lt.s32.totalorder %s18, 1
      %s244 = scalar_select %p243, %s18, 1
      %s245 = smul.addr %s244, 120
      %s246 = smul.addr %s245, 8
      %s247 = scalar_lea.vmem %s0, %s246
      %p248 = pneg %p39
      %p249 = pneg %p36
      %p250 = pneg %p60
      %p251 = pneg %p57
      %p252 = pneg %p81
      %p253 = pneg %p78
      %p254 = pneg %p102
      %p255 = pneg %p99
      %p256 = pneg %p123
      %p257 = pneg %p120
      %p258 = pneg %p144
      %p259 = pneg %p141
      %p260 = pneg %p165
      %p261 = pneg %p162
      %p262 = pneg %p191
      %p263 = pneg %p188
      %p264 = scmp.lt.s32.totalorder %s18, 1
      %s265 = scalar_select %p264, %s18, 1
      %s266 = smul.addr %s265, 6
      %s267 = smul.addr %s266, 8
      %s268 = scalar_lea.vmem %s7, %s267
      %p269 = scmp.lt.s32.totalorder %s18, 1
      %s270 = scalar_select %p269, %s18, 1
      %s271 = smul.addr %s270, 120
      %s272 = smul.addr %s271, 8
      %s273 = scalar_lea.vmem %s0, %s272
      %p274 = scmp.lt.s32.totalorder %s18, 1
      %s275 = scalar_select %p274, %s18, 1
      %s276 = smul.addr %s275, 6
      %s277 = smul.addr %s276, 8
      %s278 = scalar_lea.vmem %s7, %s277
      %v279 = vld [vmem:[%s273] sm:$0xff]
      %v280 = vld [vmem:[%s273 + $0x8] sm:$0xff]
      %v281 = vld [vmem:[%s273 + $0x10] sm:$0xff]
      %v282 = vld [vmem:[%s273 + $0x18] sm:$0xff]
      %v283 = vld [vmem:[%s273 + $0x20] sm:$0xff]
      %v284 = vld [vmem:[%s273 + $0x28] sm:$0xff]
      %v285 = vld [vmem:[%s273 + $0x30] sm:$0xff]
      %v286 = vld [vmem:[%s273 + $0x38] sm:$0xff]
      %v287 = vld [vmem:[%s273 + $0x40] sm:$0xff]
      %v288 = vld [vmem:[%s273 + $0x48] sm:$0xff]
      %v289 = vld [vmem:[%s273 + $0x50] sm:$0xff]
      %v290 = vld [vmem:[%s273 + $0x58] sm:$0xff]
      %v291 = vld [vmem:[%s273 + $0x60] sm:$0xff]
      %v292 = vld [vmem:[%s273 + $0x68] sm:$0xff]
      %v293 = vld [vmem:[%s273 + $0x70] sm:$0xff]
      %v294 = vld [vmem:[%s273 + $0x78] sm:$0xff]
      %v295 = vld [vmem:[%s273 + $0x80] sm:$0xff]
      %v296 = vld [vmem:[%s273 + $0x88] sm:$0xff]
      %v297 = vld [vmem:[%s273 + $0x90] sm:$0xff]
      %v298 = vld [vmem:[%s273 + $0x98] sm:$0xff]
      %v299 = vld [vmem:[%s273 + $0xa0] sm:$0xff]
      %v300 = vld [vmem:[%s273 + $0xa8] sm:$0xff]
      %v301 = vld [vmem:[%s273 + $0xb0] sm:$0xff]
      %v302 = vld [vmem:[%s273 + $0xb8] sm:$0xff]
      %v303 = vld [vmem:[%s273 + $0xc0] sm:$0xff]
      %v304 = vld [vmem:[%s273 + $0xc8] sm:$0xff]
      %v305 = vld [vmem:[%s273 + $0xd0] sm:$0xff]
      %v306 = vld [vmem:[%s273 + $0xd8] sm:$0xff]
      %v307 = vld [vmem:[%s273 + $0xe0] sm:$0xff]
      %v308 = vld [vmem:[%s273 + $0xe8] sm:$0xff]
      %v309 = vld [vmem:[%s273 + $0xf0] sm:$0xff]
      %v310 = vld [vmem:[%s273 + $0xf8] sm:$0xff]
      %v311 = vld [vmem:[%s273 + $0x100] sm:$0xff]
      %v312 = vld [vmem:[%s273 + $0x108] sm:$0xff]
      %v313 = vld [vmem:[%s273 + $0x110] sm:$0xff]
      %v314 = vld [vmem:[%s273 + $0x118] sm:$0xff]
      %v315 = vld [vmem:[%s273 + $0x120] sm:$0xff]
      %v316 = vld [vmem:[%s273 + $0x128] sm:$0xff]
      %v317 = vld [vmem:[%s273 + $0x130] sm:$0xff]
      %v318 = vld [vmem:[%s273 + $0x138] sm:$0xff]
      %v319 = vld [vmem:[%s273 + $0x140] sm:$0xff]
      %v320 = vld [vmem:[%s273 + $0x148] sm:$0xff]
      %v321 = vld [vmem:[%s273 + $0x150] sm:$0xff]
      %v322 = vld [vmem:[%s273 + $0x158] sm:$0xff]
      %v323 = vld [vmem:[%s273 + $0x160] sm:$0xff]
      %v324 = vld [vmem:[%s273 + $0x168] sm:$0xff]
      %v325 = vld [vmem:[%s273 + $0x170] sm:$0xff]
      %v326 = vld [vmem:[%s273 + $0x178] sm:$0xff]
      %v327 = vld [vmem:[%s273 + $0x180] sm:$0xff]
      %v328 = vld [vmem:[%s273 + $0x188] sm:$0xff]
      %v329 = vld [vmem:[%s273 + $0x190] sm:$0xff]
      %v330 = vld [vmem:[%s273 + $0x198] sm:$0xff]
      %v331 = vld [vmem:[%s273 + $0x1a0] sm:$0xff]
      %v332 = vld [vmem:[%s273 + $0x1a8] sm:$0xff]
      %v333 = vld [vmem:[%s273 + $0x1b0] sm:$0xff]
      %v334 = vld [vmem:[%s273 + $0x1b8] sm:$0xff]
      %v335 = vld [vmem:[%s273 + $0x1c0] sm:$0xff]
      %v336 = vld [vmem:[%s273 + $0x1c8] sm:$0xff]
      %v337 = vld [vmem:[%s273 + $0x1d0] sm:$0xff]
      %v338 = vld [vmem:[%s273 + $0x1d8] sm:$0xff]
      %v339 = vld [vmem:[%s273 + $0x1e0] sm:$0xff]
      %v340 = vld [vmem:[%s273 + $0x1e8] sm:$0xff]
      %v341 = vld [vmem:[%s273 + $0x1f0] sm:$0xff]
      %v342 = vld [vmem:[%s273 + $0x1f8] sm:$0xff]
      %v343 = vld [vmem:[%s273 + $0x200] sm:$0xff]
      %v344 = vld [vmem:[%s273 + $0x208] sm:$0xff]
      %v345 = vld [vmem:[%s273 + $0x210] sm:$0xff]
      %v346 = vld [vmem:[%s273 + $0x218] sm:$0xff]
      %v347 = vld [vmem:[%s273 + $0x220] sm:$0xff]
      %v348 = vld [vmem:[%s273 + $0x228] sm:$0xff]
      %v349 = vld [vmem:[%s273 + $0x230] sm:$0xff]
      %v350 = vld [vmem:[%s273 + $0x238] sm:$0xff]
      %v351 = vld [vmem:[%s273 + $0x240] sm:$0xff]
      %v352 = vld [vmem:[%s273 + $0x248] sm:$0xff]
      %v353 = vld [vmem:[%s273 + $0x250] sm:$0xff]
      %v354 = vld [vmem:[%s273 + $0x258] sm:$0xff]
      %v355 = vld [vmem:[%s273 + $0x260] sm:$0xff]
      %v356 = vld [vmem:[%s273 + $0x268] sm:$0xff]
      %v357 = vld [vmem:[%s273 + $0x270] sm:$0xff]
      %v358 = vld [vmem:[%s273 + $0x278] sm:$0xff]
      %v359 = vld [vmem:[%s273 + $0x280] sm:$0xff]
      %v360 = vld [vmem:[%s273 + $0x288] sm:$0xff]
      %v361 = vld [vmem:[%s273 + $0x290] sm:$0xff]
      %v362 = vld [vmem:[%s273 + $0x298] sm:$0xff]
      %v363 = vld [vmem:[%s273 + $0x2a0] sm:$0xff]
      %v364 = vld [vmem:[%s273 + $0x2a8] sm:$0xff]
      %v365 = vld [vmem:[%s273 + $0x2b0] sm:$0xff]
      %v366 = vld [vmem:[%s273 + $0x2b8] sm:$0xff]
      %v367 = vld [vmem:[%s273 + $0x2c0] sm:$0xff]
      %v368 = vld [vmem:[%s273 + $0x2c8] sm:$0xff]
      %v369 = vld [vmem:[%s273 + $0x2d0] sm:$0xff]
      %v370 = vld [vmem:[%s273 + $0x2d8] sm:$0xff]
      %v371 = vld [vmem:[%s273 + $0x2e0] sm:$0xff]
      %v372 = vld [vmem:[%s273 + $0x2e8] sm:$0xff]
      %v373 = vld [vmem:[%s273 + $0x2f0] sm:$0xff]
      %v374 = vld [vmem:[%s273 + $0x2f8] sm:$0xff]
      %v375 = vld [vmem:[%s273 + $0x300] sm:$0xff]
      %v376 = vld [vmem:[%s273 + $0x308] sm:$0xff]
      %v377 = vld [vmem:[%s273 + $0x310] sm:$0xff]
      %v378 = vld [vmem:[%s273 + $0x318] sm:$0xff]
      %v379 = vld [vmem:[%s273 + $0x320] sm:$0xff]
      %v380 = vld [vmem:[%s273 + $0x328] sm:$0xff]
      %v381 = vld [vmem:[%s273 + $0x330] sm:$0xff]
      %v382 = vld [vmem:[%s273 + $0x338] sm:$0xff]
      %v383 = vld [vmem:[%s273 + $0x340] sm:$0xff]
      %v384 = vld [vmem:[%s273 + $0x348] sm:$0xff]
      %v385 = vld [vmem:[%s273 + $0x350] sm:$0xff]
      %v386 = vld [vmem:[%s273 + $0x358] sm:$0xff]
      %v387 = vld [vmem:[%s273 + $0x360] sm:$0xff]
      %v388 = vld [vmem:[%s273 + $0x368] sm:$0xff]
      %v389 = vld [vmem:[%s273 + $0x370] sm:$0xff]
      %v390 = vld [vmem:[%s273 + $0x378] sm:$0xff]
      %v391 = vld [vmem:[%s273 + $0x380] sm:$0xff]
      %v392 = vld [vmem:[%s273 + $0x388] sm:$0xff]
      %v393 = vld [vmem:[%s273 + $0x390] sm:$0xff]
      %v394 = vld [vmem:[%s273 + $0x398] sm:$0xff]
      %v395 = vld [vmem:[%s273 + $0x3a0] sm:$0xff]
      %v396 = vld [vmem:[%s273 + $0x3a8] sm:$0xff]
      %v397 = vld [vmem:[%s273 + $0x3b0] sm:$0xff]
      %v398 = vld [vmem:[%s273 + $0x3b8] sm:$0xff]
      %vm399 = vcmask 31744
      %400 = vst.msk [vmem:[#allocation2] sm:$0xff] %vm399, 0.0
      %401 = vst.msk [vmem:[#allocation2 + $0x8] sm:$0xff] %vm399, 0.0
      %vm402 = vcmask 25600
      %403 = vst.msk [vmem:[#allocation2 + $0x10] sm:$0x3] %vm402, 0.0
      %404 = vst.msk [vmem:[#allocation2 + $0x18] sm:$0xff] %vm399, 0.0
      %405 = vst.msk [vmem:[#allocation2 + $0x20] sm:$0xff] %vm399, 0.0
      %406 = vst.msk [vmem:[#allocation2 + $0x28] sm:$0x3] %vm402, 0.0
      %407 = vst.msk [vmem:[#allocation2 + $0x30] sm:$0xff] %vm399, 0.0
      %408 = vst.msk [vmem:[#allocation2 + $0x38] sm:$0xff] %vm399, 0.0
      %409 = vst.msk [vmem:[#allocation2 + $0x40] sm:$0x3] %vm402, 0.0
      %410 = vst.msk [vmem:[#allocation2 + $0x48] sm:$0xff] %vm399, 0.0
      %411 = vst.msk [vmem:[#allocation2 + $0x50] sm:$0xff] %vm399, 0.0
      %412 = vst.msk [vmem:[#allocation2 + $0x58] sm:$0x3] %vm402, 0.0
      %413 = vst.msk [vmem:[#allocation2 + $0x60] sm:$0xff] %vm399, 0.0
      %414 = vst.msk [vmem:[#allocation2 + $0x68] sm:$0xff] %vm399, 0.0
      %415 = vst.msk [vmem:[#allocation2 + $0x70] sm:$0x3] %vm402, 0.0
      %416 = vst.msk [vmem:[#allocation2 + $0x78] sm:$0xff] %vm399, 0.0
      %417 = vst.msk [vmem:[#allocation2 + $0x80] sm:$0xff] %vm399, 0.0
      %418 = vst.msk [vmem:[#allocation2 + $0x88] sm:$0x3] %vm402, 0.0
      %419 = vst.msk [vmem:[#allocation2 + $0x90] sm:$0xff] %vm399, 0.0
      %420 = vst.msk [vmem:[#allocation2 + $0x98] sm:$0xff] %vm399, 0.0
      %421 = vst.msk [vmem:[#allocation2 + $0xa0] sm:$0x3] %vm402, 0.0
      %422 = vst.msk [vmem:[#allocation2 + $0xa8] sm:$0xff] %vm399, 0.0
      %423 = vst.msk [vmem:[#allocation2 + $0xb0] sm:$0xff] %vm399, 0.0
      %424 = vst.msk [vmem:[#allocation2 + $0xb8] sm:$0x3] %vm402, 0.0
      %425 = vst.msk [vmem:[#allocation2 + $0xc0] sm:$0xff] %vm399, 0.0
      %426 = vst.msk [vmem:[#allocation2 + $0xc8] sm:$0xff] %vm399, 0.0
      %427 = vst.msk [vmem:[#allocation2 + $0xd0] sm:$0x3] %vm402, 0.0
      %428 = vst.msk [vmem:[#allocation2 + $0xd8] sm:$0xff] %vm399, 0.0
      %429 = vst.msk [vmem:[#allocation2 + $0xe0] sm:$0xff] %vm399, 0.0
      %430 = vst.msk [vmem:[#allocation2 + $0xe8] sm:$0x3] %vm402, 0.0
      %431 = vst.msk [vmem:[#allocation2 + $0xf0] sm:$0xff] %vm399, 0.0
      %432 = vst.msk [vmem:[#allocation2 + $0xf8] sm:$0xff] %vm399, 0.0
      %433 = vst.msk [vmem:[#allocation2 + $0x100] sm:$0x3] %vm402, 0.0
      %434 = vst.msk [vmem:[#allocation2 + $0x108] sm:$0xff] %vm399, 0.0
      %435 = vst.msk [vmem:[#allocation2 + $0x110] sm:$0xff] %vm399, 0.0
      %436 = vst.msk [vmem:[#allocation2 + $0x118] sm:$0x3] %vm402, 0.0
      %437 = vst.msk [vmem:[#allocation2 + $0x120] sm:$0xff] %vm399, 0.0
      %438 = vst.msk [vmem:[#allocation2 + $0x128] sm:$0xff] %vm399, 0.0
      %439 = vst.msk [vmem:[#allocation2 + $0x130] sm:$0x3] %vm402, 0.0
      %440 = vst.msk [vmem:[#allocation2 + $0x138] sm:$0xff] %vm399, 0.0
      %441 = vst.msk [vmem:[#allocation2 + $0x140] sm:$0xff] %vm399, 0.0
      %442 = vst.msk [vmem:[#allocation2 + $0x148] sm:$0x3] %vm402, 0.0
      %443 = vst.msk [vmem:[#allocation2 + $0x150] sm:$0xff] %vm399, 0.0
      %444 = vst.msk [vmem:[#allocation2 + $0x158] sm:$0xff] %vm399, 0.0
      %445 = vst.msk [vmem:[#allocation2 + $0x160] sm:$0x3] %vm402, 0.0
      %446 = vst.msk [vmem:[#allocation2 + $0x168] sm:$0xff] %vm399, 0.0
      %447 = vst.msk [vmem:[#allocation2 + $0x170] sm:$0xff] %vm399, 0.0
      %448 = vst.msk [vmem:[#allocation2 + $0x178] sm:$0x3] %vm402, 0.0
      %449 = vst.msk [vmem:[#allocation2 + $0x180] sm:$0xff] %vm399, 0.0
      %450 = vst.msk [vmem:[#allocation2 + $0x188] sm:$0xff] %vm399, 0.0
      %451 = vst.msk [vmem:[#allocation2 + $0x190] sm:$0x3] %vm402, 0.0
      %452 = vst.msk [vmem:[#allocation2 + $0x198] sm:$0xff] %vm399, 0.0
      %453 = vst.msk [vmem:[#allocation2 + $0x1a0] sm:$0xff] %vm399, 0.0
      %454 = vst.msk [vmem:[#allocation2 + $0x1a8] sm:$0x3] %vm402, 0.0
      %455 = vst.msk [vmem:[#allocation2 + $0x1b0] sm:$0xff] %vm399, 0.0
      %456 = vst.msk [vmem:[#allocation2 + $0x1b8] sm:$0xff] %vm399, 0.0
      %457 = vst.msk [vmem:[#allocation2 + $0x1c0] sm:$0x3] %vm402, 0.0
      %458 = vst.msk [vmem:[#allocation2 + $0x1c8] sm:$0xff] %vm399, 0.0
      %459 = vst.msk [vmem:[#allocation2 + $0x1d0] sm:$0xff] %vm399, 0.0
      %460 = vst.msk [vmem:[#allocation2 + $0x1d8] sm:$0x3] %vm402, 0.0
      %461 = vst.msk [vmem:[#allocation2 + $0x1e0] sm:$0xff] %vm399, 0.0
      %462 = vst.msk [vmem:[#allocation2 + $0x1e8] sm:$0xff] %vm399, 0.0
      %463 = vst.msk [vmem:[#allocation2 + $0x1f0] sm:$0x3] %vm402, 0.0
      %464 = vst.msk [vmem:[#allocation2 + $0x1f8] sm:$0xff] %vm399, 0.0
      %465 = vst.msk [vmem:[#allocation2 + $0x200] sm:$0xff] %vm399, 0.0
      %466 = vst.msk [vmem:[#allocation2 + $0x208] sm:$0x3] %vm402, 0.0
      %467 = vst.msk [vmem:[#allocation2 + $0x210] sm:$0xff] %vm399, 0.0
      %468 = vst.msk [vmem:[#allocation2 + $0x218] sm:$0xff] %vm399, 0.0
      %469 = vst.msk [vmem:[#allocation2 + $0x220] sm:$0x3] %vm402, 0.0
      %470 = vst.msk [vmem:[#allocation2 + $0x228] sm:$0xff] %vm399, 0.0
      %471 = vst.msk [vmem:[#allocation2 + $0x230] sm:$0xff] %vm399, 0.0
      %472 = vst.msk [vmem:[#allocation2 + $0x238] sm:$0x3] %vm402, 0.0
      %473 = vst.msk [vmem:[#allocation2 + $0x240] sm:$0xff] %vm399, 0.0
      %474 = vst.msk [vmem:[#allocation2 + $0x248] sm:$0xff] %vm399, 0.0
      %475 = vst.msk [vmem:[#allocation2 + $0x250] sm:$0x3] %vm402, 0.0
      %476 = vst.msk [vmem:[#allocation2 + $0x258] sm:$0xff] %vm399, 0.0
      %477 = vst.msk [vmem:[#allocation2 + $0x260] sm:$0xff] %vm399, 0.0
      %478 = vst.msk [vmem:[#allocation2 + $0x268] sm:$0x3] %vm402, 0.0
      %479 = vst.msk [vmem:[#allocation2 + $0x270] sm:$0xff] %vm399, 0.0
      %480 = vst.msk [vmem:[#allocation2 + $0x278] sm:$0xff] %vm399, 0.0
      %481 = vst.msk [vmem:[#allocation2 + $0x280] sm:$0x3] %vm402, 0.0
      %482 = vst.msk [vmem:[#allocation2 + $0x288] sm:$0xff] %vm399, 0.0
      %483 = vst.msk [vmem:[#allocation2 + $0x290] sm:$0xff] %vm399, 0.0
      %484 = vst.msk [vmem:[#allocation2 + $0x298] sm:$0x3] %vm402, 0.0
      %485 = vst.msk [vmem:[#allocation2 + $0x2a0] sm:$0xff] %vm399, 0.0
      %486 = vst.msk [vmem:[#allocation2 + $0x2a8] sm:$0xff] %vm399, 0.0
      %487 = vst.msk [vmem:[#allocation2 + $0x2b0] sm:$0x3] %vm402, 0.0
      %488 = vst.msk [vmem:[#allocation2 + $0x2b8] sm:$0xff] %vm399, 0.0
      %489 = vst.msk [vmem:[#allocation2 + $0x2c0] sm:$0xff] %vm399, 0.0
      %490 = vst.msk [vmem:[#allocation2 + $0x2c8] sm:$0x3] %vm402, 0.0
      %491 = vst.msk [vmem:[#allocation2 + $0x2d0] sm:$0xff] %vm399, 0.0
      %492 = vst.msk [vmem:[#allocation2 + $0x2d8] sm:$0xff] %vm399, 0.0
      %493 = vst.msk [vmem:[#allocation2 + $0x2e0] sm:$0x3] %vm402, 0.0
      %494 = vst.msk [vmem:[#allocation2 + $0x2e8] sm:$0xff] %vm399, 0.0
      %495 = vst.msk [vmem:[#allocation2 + $0x2f0] sm:$0xff] %vm399, 0.0
      %496 = vst.msk [vmem:[#allocation2 + $0x2f8] sm:$0x3] %vm402, 0.0
      %497 = vst.msk [vmem:[#allocation2 + $0x300] sm:$0xff] %vm399, 0.0
      %498 = vst.msk [vmem:[#allocation2 + $0x308] sm:$0xff] %vm399, 0.0
      %499 = vst.msk [vmem:[#allocation2 + $0x310] sm:$0x3] %vm402, 0.0
      %500 = vst.msk [vmem:[#allocation2 + $0x318] sm:$0xff] %vm399, 0.0
      %501 = vst.msk [vmem:[#allocation2 + $0x320] sm:$0xff] %vm399, 0.0
      %502 = vst.msk [vmem:[#allocation2 + $0x328] sm:$0x3] %vm402, 0.0
      %503 = vst.msk [vmem:[#allocation2 + $0x330] sm:$0xff] %vm399, 0.0
      %504 = vst.msk [vmem:[#allocation2 + $0x338] sm:$0xff] %vm399, 0.0
      %505 = vst.msk [vmem:[#allocation2 + $0x340] sm:$0x3] %vm402, 0.0
      %506 = vst.msk [vmem:[#allocation2 + $0x348] sm:$0xff] %vm399, 0.0
      %507 = vst.msk [vmem:[#allocation2 + $0x350] sm:$0xff] %vm399, 0.0
      %508 = vst.msk [vmem:[#allocation2 + $0x358] sm:$0x3] %vm402, 0.0
      %509 = vst.msk [vmem:[#allocation2 + $0x360] sm:$0xff] %vm399, 0.0
      %510 = vst.msk [vmem:[#allocation2 + $0x368] sm:$0xff] %vm399, 0.0
      %511 = vst.msk [vmem:[#allocation2 + $0x370] sm:$0x3] %vm402, 0.0
      %512 = vst.msk [vmem:[#allocation2 + $0x378] sm:$0xff] %vm399, 0.0
      %513 = vst.msk [vmem:[#allocation2 + $0x380] sm:$0xff] %vm399, 0.0
      %514 = vst.msk [vmem:[#allocation2 + $0x388] sm:$0x3] %vm402, 0.0
      %515 = vst.msk [vmem:[#allocation2 + $0x390] sm:$0xff] %vm399, 0.0
      %516 = vst.msk [vmem:[#allocation2 + $0x398] sm:$0xff] %vm399, 0.0
      %517 = vst.msk [vmem:[#allocation2 + $0x3a0] sm:$0x3] %vm402, 0.0
      %518 = vst.msk [vmem:[#allocation2 + $0x3a8] sm:$0xff] %vm399, 0.0
      %519 = vst.msk [vmem:[#allocation2 + $0x3b0] sm:$0xff] %vm399, 0.0
      %520 = vst.msk [vmem:[#allocation2 + $0x3b8] sm:$0x3] %vm402, 0.0
      %521 = vst.msk [vmem:[#allocation2 + $0x3c0] sm:$0xff] %vm399, 0.0
      %522 = vst.msk [vmem:[#allocation2 + $0x3c8] sm:$0xff] %vm399, 0.0
      %523 = vst.msk [vmem:[#allocation2 + $0x3d0] sm:$0x3] %vm402, 0.0
      %524 = vst.msk [vmem:[#allocation2 + $0x3d8] sm:$0xff] %vm399, 0.0
      %525 = vst.msk [vmem:[#allocation2 + $0x3e0] sm:$0xff] %vm399, 0.0
      %526 = vst.msk [vmem:[#allocation2 + $0x3e8] sm:$0x3] %vm402, 0.0
      %527 = vst.msk [vmem:[#allocation2 + $0x3f0] sm:$0xff] %vm399, 0.0
      %528 = vst.msk [vmem:[#allocation2 + $0x3f8] sm:$0xff] %vm399, 0.0
      %529 = vst.msk [vmem:[#allocation2 + $0x400] sm:$0x3] %vm402, 0.0
      %530 = vst.msk [vmem:[#allocation2 + $0x408] sm:$0xff] %vm399, 0.0
      %531 = vst.msk [vmem:[#allocation2 + $0x410] sm:$0xff] %vm399, 0.0
      %532 = vst.msk [vmem:[#allocation2 + $0x418] sm:$0x3] %vm402, 0.0
      %533 = vst.msk [vmem:[#allocation2 + $0x420] sm:$0xff] %vm399, 0.0
      %534 = vst.msk [vmem:[#allocation2 + $0x428] sm:$0xff] %vm399, 0.0
      %535 = vst.msk [vmem:[#allocation2 + $0x430] sm:$0x3] %vm402, 0.0
      %536 = vst.msk [vmem:[#allocation2 + $0x438] sm:$0xff] %vm399, 0.0
      %537 = vst.msk [vmem:[#allocation2 + $0x440] sm:$0xff] %vm399, 0.0
      %538 = vst.msk [vmem:[#allocation2 + $0x448] sm:$0x3] %vm402, 0.0
      %539 = vst.msk [vmem:[#allocation2 + $0x450] sm:$0xff] %vm399, 0.0
      %540 = vst.msk [vmem:[#allocation2 + $0x458] sm:$0xff] %vm399, 0.0
      %541 = vst.msk [vmem:[#allocation2 + $0x460] sm:$0x3] %vm402, 0.0
      %542 = vst.msk [vmem:[#allocation2 + $0x468] sm:$0xff] %vm399, 0.0
      %543 = vst.msk [vmem:[#allocation2 + $0x470] sm:$0xff] %vm399, 0.0
      %544 = vst.msk [vmem:[#allocation2 + $0x478] sm:$0x3] %vm402, 0.0
      %545 = vst.msk [vmem:[#allocation2 + $0x480] sm:$0xff] %vm399, 0.0
      %546 = vst.msk [vmem:[#allocation2 + $0x488] sm:$0xff] %vm399, 0.0
      %547 = vst.msk [vmem:[#allocation2 + $0x490] sm:$0x3] %vm402, 0.0
      %548 = vst.msk [vmem:[#allocation2 + $0x498] sm:$0xff] %vm399, 0.0
      %549 = vst.msk [vmem:[#allocation2 + $0x4a0] sm:$0xff] %vm399, 0.0
      %550 = vst.msk [vmem:[#allocation2 + $0x4a8] sm:$0x3] %vm402, 0.0
      %551 = vst.msk [vmem:[#allocation2 + $0x4b0] sm:$0xff] %vm399, 0.0
      %552 = vst.msk [vmem:[#allocation2 + $0x4b8] sm:$0xff] %vm399, 0.0
      %553 = vst.msk [vmem:[#allocation2 + $0x4c0] sm:$0x3] %vm402, 0.0
      %554 = vst.msk [vmem:[#allocation2 + $0x4c8] sm:$0xff] %vm399, 0.0
      %555 = vst.msk [vmem:[#allocation2 + $0x4d0] sm:$0xff] %vm399, 0.0
      %556 = vst.msk [vmem:[#allocation2 + $0x4d8] sm:$0x3] %vm402, 0.0
      %557 = vst.msk [vmem:[#allocation2 + $0x4e0] sm:$0xff] %vm399, 0.0
      %558 = vst.msk [vmem:[#allocation2 + $0x4e8] sm:$0xff] %vm399, 0.0
      %559 = vst.msk [vmem:[#allocation2 + $0x4f0] sm:$0x3] %vm402, 0.0
      %560 = vst.msk [vmem:[#allocation2 + $0x4f8] sm:$0xff] %vm399, 0.0
      %561 = vst.msk [vmem:[#allocation2 + $0x500] sm:$0xff] %vm399, 0.0
      %562 = vst.msk [vmem:[#allocation2 + $0x508] sm:$0x3] %vm402, 0.0
      %563 = vst.msk [vmem:[#allocation2 + $0x510] sm:$0xff] %vm399, 0.0
      %564 = vst.msk [vmem:[#allocation2 + $0x518] sm:$0xff] %vm399, 0.0
      %565 = vst.msk [vmem:[#allocation2 + $0x520] sm:$0x3] %vm402, 0.0
      %566 = vst.msk [vmem:[#allocation2 + $0x528] sm:$0xff] %vm399, 0.0
      %567 = vst.msk [vmem:[#allocation2 + $0x530] sm:$0xff] %vm399, 0.0
      %568 = vst.msk [vmem:[#allocation2 + $0x538] sm:$0x3] %vm402, 0.0
      %569 = vst.msk [vmem:[#allocation2 + $0x540] sm:$0xff] %vm399, 0.0
      %570 = vst.msk [vmem:[#allocation2 + $0x548] sm:$0xff] %vm399, 0.0
      %571 = vst.msk [vmem:[#allocation2 + $0x550] sm:$0x3] %vm402, 0.0
      %572 = vst.msk [vmem:[#allocation2 + $0x558] sm:$0xff] %vm399, 0.0
      %573 = vst.msk [vmem:[#allocation2 + $0x560] sm:$0xff] %vm399, 0.0
      %574 = vst.msk [vmem:[#allocation2 + $0x568] sm:$0x3] %vm402, 0.0
      %575 = vst.msk [vmem:[#allocation2 + $0x570] sm:$0xff] %vm399, 0.0
      %576 = vst.msk [vmem:[#allocation2 + $0x578] sm:$0xff] %vm399, 0.0
      %577 = vst.msk [vmem:[#allocation2 + $0x580] sm:$0x3] %vm402, 0.0
      %578 = vst.msk [vmem:[#allocation2 + $0x588] sm:$0xff] %vm399, 0.0
      %579 = vst.msk [vmem:[#allocation2 + $0x590] sm:$0xff] %vm399, 0.0
      %580 = vst.msk [vmem:[#allocation2 + $0x598] sm:$0x3] %vm402, 0.0
      %581 = vst.msk [vmem:[#allocation2 + $0x5a0] sm:$0xff] %vm399, 0.0
      %582 = vst.msk [vmem:[#allocation2 + $0x5a8] sm:$0xff] %vm399, 0.0
      %583 = vst.msk [vmem:[#allocation2 + $0x5b0] sm:$0x3] %vm402, 0.0
      %584 = vst.msk [vmem:[#allocation2 + $0x5b8] sm:$0xff] %vm399, 0.0
      %585 = vst.msk [vmem:[#allocation2 + $0x5c0] sm:$0xff] %vm399, 0.0
      %586 = vst.msk [vmem:[#allocation2 + $0x5c8] sm:$0x3] %vm402, 0.0
      %s587 = scalar_lea.vmem [#allocation2], 24
      %588 = vst.msk [vmem:[%s587 + $0x1] sm:$0xff] %vm399, %v279
      %589 = vst.msk [vmem:[%s587 + $0x9] sm:$0xff] %vm399, %v280
      %590 = vst.msk [vmem:[%s587 + $0x19] sm:$0xff] %vm399, %v281
      %591 = vst.msk [vmem:[%s587 + $0x21] sm:$0xff] %vm399, %v282
      %592 = vst.msk [vmem:[%s587 + $0x31] sm:$0xff] %vm399, %v283
      %593 = vst.msk [vmem:[%s587 + $0x39] sm:$0xff] %vm399, %v284
      %594 = vst.msk [vmem:[%s587 + $0x49] sm:$0xff] %vm399, %v285
      %595 = vst.msk [vmem:[%s587 + $0x51] sm:$0xff] %vm399, %v286
      %596 = vst.msk [vmem:[%s587 + $0x61] sm:$0xff] %vm399, %v287
      %597 = vst.msk [vmem:[%s587 + $0x69] sm:$0xff] %vm399, %v288
      %598 = vst.msk [vmem:[%s587 + $0x79] sm:$0xff] %vm399, %v289
      %599 = vst.msk [vmem:[%s587 + $0x81] sm:$0xff] %vm399, %v290
      %600 = vst.msk [vmem:[%s587 + $0x91] sm:$0xff] %vm399, %v291
      %601 = vst.msk [vmem:[%s587 + $0x99] sm:$0xff] %vm399, %v292
      %602 = vst.msk [vmem:[%s587 + $0xa9] sm:$0xff] %vm399, %v293
      %603 = vst.msk [vmem:[%s587 + $0xb1] sm:$0xff] %vm399, %v294
      %604 = vst.msk [vmem:[%s587 + $0xc1] sm:$0xff] %vm399, %v295
      %605 = vst.msk [vmem:[%s587 + $0xc9] sm:$0xff] %vm399, %v296
      %606 = vst.msk [vmem:[%s587 + $0xd9] sm:$0xff] %vm399, %v297
      %607 = vst.msk [vmem:[%s587 + $0xe1] sm:$0xff] %vm399, %v298
      %608 = vst.msk [vmem:[%s587 + $0xf1] sm:$0xff] %vm399, %v299
      %609 = vst.msk [vmem:[%s587 + $0xf9] sm:$0xff] %vm399, %v300
      %610 = vst.msk [vmem:[%s587 + $0x109] sm:$0xff] %vm399, %v301
      %611 = vst.msk [vmem:[%s587 + $0x111] sm:$0xff] %vm399, %v302
      %612 = vst.msk [vmem:[%s587 + $0x121] sm:$0xff] %vm399, %v303
      %613 = vst.msk [vmem:[%s587 + $0x129] sm:$0xff] %vm399, %v304
      %614 = vst.msk [vmem:[%s587 + $0x139] sm:$0xff] %vm399, %v305
      %615 = vst.msk [vmem:[%s587 + $0x141] sm:$0xff] %vm399, %v306
      %616 = vst.msk [vmem:[%s587 + $0x151] sm:$0xff] %vm399, %v307
      %617 = vst.msk [vmem:[%s587 + $0x159] sm:$0xff] %vm399, %v308
      %618 = vst.msk [vmem:[%s587 + $0x169] sm:$0xff] %vm399, %v309
      %619 = vst.msk [vmem:[%s587 + $0x171] sm:$0xff] %vm399, %v310
      %620 = vst.msk [vmem:[%s587 + $0x181] sm:$0xff] %vm399, %v311
      %621 = vst.msk [vmem:[%s587 + $0x189] sm:$0xff] %vm399, %v312
      %622 = vst.msk [vmem:[%s587 + $0x199] sm:$0xff] %vm399, %v313
      %623 = vst.msk [vmem:[%s587 + $0x1a1] sm:$0xff] %vm399, %v314
      %624 = vst.msk [vmem:[%s587 + $0x1b1] sm:$0xff] %vm399, %v315
      %625 = vst.msk [vmem:[%s587 + $0x1b9] sm:$0xff] %vm399, %v316
      %626 = vst.msk [vmem:[%s587 + $0x1c9] sm:$0xff] %vm399, %v317
      %627 = vst.msk [vmem:[%s587 + $0x1d1] sm:$0xff] %vm399, %v318
      %628 = vst.msk [vmem:[%s587 + $0x1e1] sm:$0xff] %vm399, %v319
      %629 = vst.msk [vmem:[%s587 + $0x1e9] sm:$0xff] %vm399, %v320
      %630 = vst.msk [vmem:[%s587 + $0x1f9] sm:$0xff] %vm399, %v321
      %631 = vst.msk [vmem:[%s587 + $0x201] sm:$0xff] %vm399, %v322
      %632 = vst.msk [vmem:[%s587 + $0x211] sm:$0xff] %vm399, %v323
      %633 = vst.msk [vmem:[%s587 + $0x219] sm:$0xff] %vm399, %v324
      %634 = vst.msk [vmem:[%s587 + $0x229] sm:$0xff] %vm399, %v325
      %635 = vst.msk [vmem:[%s587 + $0x231] sm:$0xff] %vm399, %v326
      %636 = vst.msk [vmem:[%s587 + $0x241] sm:$0xff] %vm399, %v327
      %637 = vst.msk [vmem:[%s587 + $0x249] sm:$0xff] %vm399, %v328
      %638 = vst.msk [vmem:[%s587 + $0x259] sm:$0xff] %vm399, %v329
      %639 = vst.msk [vmem:[%s587 + $0x261] sm:$0xff] %vm399, %v330
      %640 = vst.msk [vmem:[%s587 + $0x271] sm:$0xff] %vm399, %v331
      %641 = vst.msk [vmem:[%s587 + $0x279] sm:$0xff] %vm399, %v332
      %642 = vst.msk [vmem:[%s587 + $0x289] sm:$0xff] %vm399, %v333
      %643 = vst.msk [vmem:[%s587 + $0x291] sm:$0xff] %vm399, %v334
      %644 = vst.msk [vmem:[%s587 + $0x2a1] sm:$0xff] %vm399, %v335
      %645 = vst.msk [vmem:[%s587 + $0x2a9] sm:$0xff] %vm399, %v336
      %646 = vst.msk [vmem:[%s587 + $0x2b9] sm:$0xff] %vm399, %v337
      %647 = vst.msk [vmem:[%s587 + $0x2c1] sm:$0xff] %vm399, %v338
      %648 = vst.msk [vmem:[%s587 + $0x2d1] sm:$0xff] %vm399, %v339
      %649 = vst.msk [vmem:[%s587 + $0x2d9] sm:$0xff] %vm399, %v340
      %650 = vst.msk [vmem:[%s587 + $0x2e9] sm:$0xff] %vm399, %v341
      %651 = vst.msk [vmem:[%s587 + $0x2f1] sm:$0xff] %vm399, %v342
      %652 = vst.msk [vmem:[%s587 + $0x301] sm:$0xff] %vm399, %v343
      %653 = vst.msk [vmem:[%s587 + $0x309] sm:$0xff] %vm399, %v344
      %654 = vst.msk [vmem:[%s587 + $0x319] sm:$0xff] %vm399, %v345
      %655 = vst.msk [vmem:[%s587 + $0x321] sm:$0xff] %vm399, %v346
      %656 = vst.msk [vmem:[%s587 + $0x331] sm:$0xff] %vm399, %v347
      %657 = vst.msk [vmem:[%s587 + $0x339] sm:$0xff] %vm399, %v348
      %658 = vst.msk [vmem:[%s587 + $0x349] sm:$0xff] %vm399, %v349
      %659 = vst.msk [vmem:[%s587 + $0x351] sm:$0xff] %vm399, %v350
      %660 = vst.msk [vmem:[%s587 + $0x361] sm:$0xff] %vm399, %v351
      %661 = vst.msk [vmem:[%s587 + $0x369] sm:$0xff] %vm399, %v352
      %662 = vst.msk [vmem:[%s587 + $0x379] sm:$0xff] %vm399, %v353
      %663 = vst.msk [vmem:[%s587 + $0x381] sm:$0xff] %vm399, %v354
      %664 = vst.msk [vmem:[%s587 + $0x391] sm:$0xff] %vm399, %v355
      %665 = vst.msk [vmem:[%s587 + $0x399] sm:$0xff] %vm399, %v356
      %666 = vst.msk [vmem:[%s587 + $0x3a9] sm:$0xff] %vm399, %v357
      %667 = vst.msk [vmem:[%s587 + $0x3b1] sm:$0xff] %vm399, %v358
      %668 = vst.msk [vmem:[%s587 + $0x3c1] sm:$0xff] %vm399, %v359
      %669 = vst.msk [vmem:[%s587 + $0x3c9] sm:$0xff] %vm399, %v360
      %670 = vst.msk [vmem:[%s587 + $0x3d9] sm:$0xff] %vm399, %v361
      %671 = vst.msk [vmem:[%s587 + $0x3e1] sm:$0xff] %vm399, %v362
      %672 = vst.msk [vmem:[%s587 + $0x3f1] sm:$0xff] %vm399, %v363
      %673 = vst.msk [vmem:[%s587 + $0x3f9] sm:$0xff] %vm399, %v364
      %674 = vst.msk [vmem:[%s587 + $0x409] sm:$0xff] %vm399, %v365
      %675 = vst.msk [vmem:[%s587 + $0x411] sm:$0xff] %vm399, %v366
      %676 = vst.msk [vmem:[%s587 + $0x421] sm:$0xff] %vm399, %v367
      %677 = vst.msk [vmem:[%s587 + $0x429] sm:$0xff] %vm399, %v368
      %678 = vst.msk [vmem:[%s587 + $0x439] sm:$0xff] %vm399, %v369
      %679 = vst.msk [vmem:[%s587 + $0x441] sm:$0xff] %vm399, %v370
      %680 = vst.msk [vmem:[%s587 + $0x451] sm:$0xff] %vm399, %v371
      %681 = vst.msk [vmem:[%s587 + $0x459] sm:$0xff] %vm399, %v372
      %682 = vst.msk [vmem:[%s587 + $0x469] sm:$0xff] %vm399, %v373
      %683 = vst.msk [vmem:[%s587 + $0x471] sm:$0xff] %vm399, %v374
      %684 = vst.msk [vmem:[%s587 + $0x481] sm:$0xff] %vm399, %v375
      %685 = vst.msk [vmem:[%s587 + $0x489] sm:$0xff] %vm399, %v376
      %686 = vst.msk [vmem:[%s587 + $0x499] sm:$0xff] %vm399, %v377
      %687 = vst.msk [vmem:[%s587 + $0x4a1] sm:$0xff] %vm399, %v378
      %688 = vst.msk [vmem:[%s587 + $0x4b1] sm:$0xff] %vm399, %v379
      %689 = vst.msk [vmem:[%s587 + $0x4b9] sm:$0xff] %vm399, %v380
      %690 = vst.msk [vmem:[%s587 + $0x4c9] sm:$0xff] %vm399, %v381
      %691 = vst.msk [vmem:[%s587 + $0x4d1] sm:$0xff] %vm399, %v382
      %692 = vst.msk [vmem:[%s587 + $0x4e1] sm:$0xff] %vm399, %v383
      %693 = vst.msk [vmem:[%s587 + $0x4e9] sm:$0xff] %vm399, %v384
      %694 = vst.msk [vmem:[%s587 + $0x4f9] sm:$0xff] %vm399, %v385
      %695 = vst.msk [vmem:[%s587 + $0x501] sm:$0xff] %vm399, %v386
      %696 = vst.msk [vmem:[%s587 + $0x511] sm:$0xff] %vm399, %v387
      %697 = vst.msk [vmem:[%s587 + $0x519] sm:$0xff] %vm399, %v388
      %698 = vst.msk [vmem:[%s587 + $0x529] sm:$0xff] %vm399, %v389
      %699 = vst.msk [vmem:[%s587 + $0x531] sm:$0xff] %vm399, %v390
      %700 = vst.msk [vmem:[%s587 + $0x541] sm:$0xff] %vm399, %v391
      %701 = vst.msk [vmem:[%s587 + $0x549] sm:$0xff] %vm399, %v392
      %702 = vst.msk [vmem:[%s587 + $0x559] sm:$0xff] %vm399, %v393
      %703 = vst.msk [vmem:[%s587 + $0x561] sm:$0xff] %vm399, %v394
      %704 = vst.msk [vmem:[%s587 + $0x571] sm:$0xff] %vm399, %v395
      %705 = vst.msk [vmem:[%s587 + $0x579] sm:$0xff] %vm399, %v396
      %706 = vst.msk [vmem:[%s587 + $0x589] sm:$0xff] %vm399, %v397
      %707 = vst.msk [vmem:[%s587 + $0x591] sm:$0xff] %vm399, %v398
      %v708 = vld [vmem:[#allocation2] sm:$0xff]
      %v709 = vld [vmem:[#allocation2 + $0x8] sm:$0xff]
      %v710 = vld [vmem:[#allocation2 + $0x18] sm:$0xff]
      %v711 = vld [vmem:[#allocation2 + $0x20] sm:$0xff]
      %v712 = vld [vmem:[#allocation2 + $0x30] sm:$0xff]
      %v713 = vld [vmem:[#allocation2 + $0x38] sm:$0xff]
      %v714 = vld [vmem:[#allocation2 + $0x48] sm:$0xff]
      %v715 = vld [vmem:[#allocation2 + $0x50] sm:$0xff]
      %v716 = vld [vmem:[#allocation2 + $0x60] sm:$0xff]
      %v717 = vld [vmem:[#allocation2 + $0x68] sm:$0xff]
      %v718 = vld [vmem:[#allocation2 + $0x78] sm:$0xff]
      %v719 = vld [vmem:[#allocation2 + $0x80] sm:$0xff]
      %v720 = vld [vmem:[#allocation2 + $0x90] sm:$0xff]
      %v721 = vld [vmem:[#allocation2 + $0x98] sm:$0xff]
      %v722 = vld [vmem:[#allocation2 + $0xa8] sm:$0xff]
      %v723 = vld [vmem:[#allocation2 + $0xb0] sm:$0xff]
      %v724 = vld [vmem:[#allocation2 + $0xc0] sm:$0xff]
      %v725 = vld [vmem:[#allocation2 + $0xc8] sm:$0xff]
      %v726 = vld [vmem:[#allocation2 + $0xd8] sm:$0xff]
      %v727 = vld [vmem:[#allocation2 + $0xe0] sm:$0xff]
      %v728 = vld [vmem:[#allocation2 + $0xf0] sm:$0xff]
      %v729 = vld [vmem:[#allocation2 + $0xf8] sm:$0xff]
      %v730 = vld [vmem:[#allocation2 + $0x108] sm:$0xff]
      %v731 = vld [vmem:[#allocation2 + $0x110] sm:$0xff]
      %v732 = vld [vmem:[#allocation2 + $0x120] sm:$0xff]
      %v733 = vld [vmem:[#allocation2 + $0x128] sm:$0xff]
      %v734 = vld [vmem:[#allocation2 + $0x138] sm:$0xff]
      %v735 = vld [vmem:[#allocation2 + $0x140] sm:$0xff]
      %v736 = vld [vmem:[#allocation2 + $0x150] sm:$0xff]
      %v737 = vld [vmem:[#allocation2 + $0x158] sm:$0xff]
      %v738 = vld [vmem:[#allocation2 + $0x168] sm:$0xff]
      %v739 = vld [vmem:[#allocation2 + $0x170] sm:$0xff]
      %v740 = vld [vmem:[#allocation2 + $0x180] sm:$0xff]
      %v741 = vld [vmem:[#allocation2 + $0x188] sm:$0xff]
      %v742 = vld [vmem:[#allocation2 + $0x198] sm:$0xff]
      %v743 = vld [vmem:[#allocation2 + $0x1a0] sm:$0xff]
      %v744 = vld [vmem:[#allocation2 + $0x1b0] sm:$0xff]
      %v745 = vld [vmem:[#allocation2 + $0x1b8] sm:$0xff]
      %v746 = vld [vmem:[#allocation2 + $0x1c8] sm:$0xff]
      %v747 = vld [vmem:[#allocation2 + $0x1d0] sm:$0xff]
      %v748 = vld [vmem:[#allocation2 + $0x1e0] sm:$0xff]
      %v749 = vld [vmem:[#allocation2 + $0x1e8] sm:$0xff]
      %v750 = vld [vmem:[#allocation2 + $0x1f8] sm:$0xff]
      %v751 = vld [vmem:[#allocation2 + $0x200] sm:$0xff]
      %v752 = vld [vmem:[#allocation2 + $0x210] sm:$0xff]
      %v753 = vld [vmem:[#allocation2 + $0x218] sm:$0xff]
      %v754 = vld [vmem:[#allocation2 + $0x228] sm:$0xff]
      %v755 = vld [vmem:[#allocation2 + $0x230] sm:$0xff]
      %v756 = vld [vmem:[#allocation2 + $0x240] sm:$0xff]
      %v757 = vld [vmem:[#allocation2 + $0x248] sm:$0xff]
      %v758 = vld [vmem:[#allocation2 + $0x258] sm:$0xff]
      %v759 = vld [vmem:[#allocation2 + $0x260] sm:$0xff]
      %v760 = vld [vmem:[#allocation2 + $0x270] sm:$0xff]
      %v761 = vld [vmem:[#allocation2 + $0x278] sm:$0xff]
      %v762 = vld [vmem:[#allocation2 + $0x288] sm:$0xff]
      %v763 = vld [vmem:[#allocation2 + $0x290] sm:$0xff]
      %v764 = vld [vmem:[#allocation2 + $0x2a0] sm:$0xff]
      %v765 = vld [vmem:[#allocation2 + $0x2a8] sm:$0xff]
      %v766 = vld [vmem:[#allocation2 + $0x2b8] sm:$0xff]
      %v767 = vld [vmem:[#allocation2 + $0x2c0] sm:$0xff]
      %v768 = vld [vmem:[#allocation2 + $0x2d0] sm:$0xff]
      %v769 = vld [vmem:[#allocation2 + $0x2d8] sm:$0xff]
      %v770 = vld [vmem:[#allocation2 + $0x2e8] sm:$0xff]
      %v771 = vld [vmem:[#allocation2 + $0x2f0] sm:$0xff]
      %v772 = vld [vmem:[#allocation2 + $0x300] sm:$0xff]
      %v773 = vld [vmem:[#allocation2 + $0x308] sm:$0xff]
      %v774 = vld [vmem:[#allocation2 + $0x318] sm:$0xff]
      %v775 = vld [vmem:[#allocation2 + $0x320] sm:$0xff]
      %v776 = vld [vmem:[#allocation2 + $0x330] sm:$0xff]
      %v777 = vld [vmem:[#allocation2 + $0x338] sm:$0xff]
      %v778 = vld [vmem:[#allocation2 + $0x348] sm:$0xff]
      %v779 = vld [vmem:[#allocation2 + $0x350] sm:$0xff]
      %v780 = vld [vmem:[#allocation2 + $0x360] sm:$0xff]
      %v781 = vld [vmem:[#allocation2 + $0x368] sm:$0xff]
      %v782 = vld [vmem:[#allocation2 + $0x378] sm:$0xff]
      %v783 = vld [vmem:[#allocation2 + $0x380] sm:$0xff]
      %v784 = vld [vmem:[#allocation2 + $0x390] sm:$0xff]
      %v785 = vld [vmem:[#allocation2 + $0x398] sm:$0xff]
      %v786 = vld [vmem:[#allocation2 + $0x3a8] sm:$0xff]
      %v787 = vld [vmem:[#allocation2 + $0x3b0] sm:$0xff]
      %v788 = vld [vmem:[#allocation2 + $0x3c0] sm:$0xff]
      %v789 = vld [vmem:[#allocation2 + $0x3c8] sm:$0xff]
      %v790 = vld [vmem:[#allocation2 + $0x3d8] sm:$0xff]
      %v791 = vld [vmem:[#allocation2 + $0x3e0] sm:$0xff]
      %v792 = vld [vmem:[#allocation2 + $0x3f0] sm:$0xff]
      %v793 = vld [vmem:[#allocation2 + $0x3f8] sm:$0xff]
      %v794 = vld [vmem:[#allocation2 + $0x408] sm:$0xff]
      %v795 = vld [vmem:[#allocation2 + $0x410] sm:$0xff]
      %v796 = vld [vmem:[#allocation2 + $0x420] sm:$0xff]
      %v797 = vld [vmem:[#allocation2 + $0x428] sm:$0xff]
      %v798 = vld [vmem:[#allocation2 + $0x438] sm:$0xff]
      %v799 = vld [vmem:[#allocation2 + $0x440] sm:$0xff]
      %v800 = vld [vmem:[#allocation2 + $0x450] sm:$0xff]
      %v801 = vld [vmem:[#allocation2 + $0x458] sm:$0xff]
      %v802 = vld [vmem:[#allocation2 + $0x468] sm:$0xff]
      %v803 = vld [vmem:[#allocation2 + $0x470] sm:$0xff]
      %v804 = vld [vmem:[#allocation2 + $0x480] sm:$0xff]
      %v805 = vld [vmem:[#allocation2 + $0x488] sm:$0xff]
      %v806 = vld [vmem:[#allocation2 + $0x498] sm:$0xff]
      %v807 = vld [vmem:[#allocation2 + $0x4a0] sm:$0xff]
      %v808 = vld [vmem:[#allocation2 + $0x4b0] sm:$0xff]
      %v809 = vld [vmem:[#allocation2 + $0x4b8] sm:$0xff]
      %v810 = vld [vmem:[#allocation2 + $0x4c8] sm:$0xff]
      %v811 = vld [vmem:[#allocation2 + $0x4d0] sm:$0xff]
      %v812 = vld [vmem:[#allocation2 + $0x4e0] sm:$0xff]
      %v813 = vld [vmem:[#allocation2 + $0x4e8] sm:$0xff]
      %v814 = vld [vmem:[#allocation2 + $0x4f8] sm:$0xff]
      %v815 = vld [vmem:[#allocation2 + $0x500] sm:$0xff]
      %v816 = vld [vmem:[#allocation2 + $0x510] sm:$0xff]
      %v817 = vld [vmem:[#allocation2 + $0x518] sm:$0xff]
      %v818 = vld [vmem:[#allocation2 + $0x528] sm:$0xff]
      %v819 = vld [vmem:[#allocation2 + $0x530] sm:$0xff]
      %v820 = vld [vmem:[#allocation2 + $0x540] sm:$0xff]
      %v821 = vld [vmem:[#allocation2 + $0x548] sm:$0xff]
      %v822 = vld [vmem:[#allocation2 + $0x558] sm:$0xff]
      %v823 = vld [vmem:[#allocation2 + $0x560] sm:$0xff]
      %v824 = vld [vmem:[#allocation2 + $0x570] sm:$0xff]
      %v825 = vld [vmem:[#allocation2 + $0x578] sm:$0xff]
      %v826 = vld [vmem:[#allocation2 + $0x588] sm:$0xff]
      %v827 = vld [vmem:[#allocation2 + $0x590] sm:$0xff]
      %828 = vst.msk [vmem:[#allocation5] sm:$0xff] %vm399, %v708
      %829 = vst.msk [vmem:[#allocation5 + $0x8] sm:$0xff] %vm399, %v709
      %830 = vst.msk [vmem:[#allocation5 + $0x10] sm:$0xff] %vm399, %v710
      %831 = vst.msk [vmem:[#allocation5 + $0x18] sm:$0xff] %vm399, %v711
      %832 = vst.msk [vmem:[#allocation5 + $0x20] sm:$0xff] %vm399, %v712
      %833 = vst.msk [vmem:[#allocation5 + $0x28] sm:$0xff] %vm399, %v713
      %834 = vst.msk [vmem:[#allocation5 + $0x30] sm:$0xff] %vm399, %v714
      %835 = vst.msk [vmem:[#allocation5 + $0x38] sm:$0xff] %vm399, %v715
      %836 = vst.msk [vmem:[#allocation5 + $0x40] sm:$0xff] %vm399, %v716
      %837 = vst.msk [vmem:[#allocation5 + $0x48] sm:$0xff] %vm399, %v717
      %838 = vst.msk [vmem:[#allocation5 + $0x50] sm:$0xff] %vm399, %v718
      %839 = vst.msk [vmem:[#allocation5 + $0x58] sm:$0xff] %vm399, %v719
      %840 = vst.msk [vmem:[#allocation5 + $0x60] sm:$0xff] %vm399, %v720
      %841 = vst.msk [vmem:[#allocation5 + $0x68] sm:$0xff] %vm399, %v721
      %842 = vst.msk [vmem:[#allocation5 + $0x70] sm:$0xff] %vm399, %v722
      %843 = vst.msk [vmem:[#allocation5 + $0x78] sm:$0xff] %vm399, %v723
      %844 = vst.msk [vmem:[#allocation5 + $0x80] sm:$0xff] %vm399, %v724
      %845 = vst.msk [vmem:[#allocation5 + $0x88] sm:$0xff] %vm399, %v725
      %846 = vst.msk [vmem:[#allocation5 + $0x90] sm:$0xff] %vm399, %v726
      %847 = vst.msk [vmem:[#allocation5 + $0x98] sm:$0xff] %vm399, %v727
      %848 = vst.msk [vmem:[#allocation5 + $0xa0] sm:$0xff] %vm399, %v728
      %849 = vst.msk [vmem:[#allocation5 + $0xa8] sm:$0xff] %vm399, %v729
      %850 = vst.msk [vmem:[#allocation5 + $0xb0] sm:$0xff] %vm399, %v730
      %851 = vst.msk [vmem:[#allocation5 + $0xb8] sm:$0xff] %vm399, %v731
      %852 = vst.msk [vmem:[#allocation5 + $0xc0] sm:$0xff] %vm399, %v732
      %853 = vst.msk [vmem:[#allocation5 + $0xc8] sm:$0xff] %vm399, %v733
      %854 = vst.msk [vmem:[#allocation5 + $0xd0] sm:$0xff] %vm399, %v734
      %855 = vst.msk [vmem:[#allocation5 + $0xd8] sm:$0xff] %vm399, %v735
      %856 = vst.msk [vmem:[#allocation5 + $0xe0] sm:$0xff] %vm399, %v736
      %857 = vst.msk [vmem:[#allocation5 + $0xe8] sm:$0xff] %vm399, %v737
      %858 = vst.msk [vmem:[#allocation5 + $0xf0] sm:$0xff] %vm399, %v738
      %859 = vst.msk [vmem:[#allocation5 + $0xf8] sm:$0xff] %vm399, %v739
      %860 = vst.msk [vmem:[#allocation5 + $0x100] sm:$0xff] %vm399, %v740
      %861 = vst.msk [vmem:[#allocation5 + $0x108] sm:$0xff] %vm399, %v741
      %862 = vst.msk [vmem:[#allocation5 + $0x110] sm:$0xff] %vm399, %v742
      %863 = vst.msk [vmem:[#allocation5 + $0x118] sm:$0xff] %vm399, %v743
      %864 = vst.msk [vmem:[#allocation5 + $0x120] sm:$0xff] %vm399, %v744
      %865 = vst.msk [vmem:[#allocation5 + $0x128] sm:$0xff] %vm399, %v745
      %866 = vst.msk [vmem:[#allocation5 + $0x130] sm:$0xff] %vm399, %v746
      %867 = vst.msk [vmem:[#allocation5 + $0x138] sm:$0xff] %vm399, %v747
      %868 = vst.msk [vmem:[#allocation5 + $0x140] sm:$0xff] %vm399, %v748
      %869 = vst.msk [vmem:[#allocation5 + $0x148] sm:$0xff] %vm399, %v749
      %870 = vst.msk [vmem:[#allocation5 + $0x150] sm:$0xff] %vm399, %v750
      %871 = vst.msk [vmem:[#allocation5 + $0x158] sm:$0xff] %vm399, %v751
      %872 = vst.msk [vmem:[#allocation5 + $0x160] sm:$0xff] %vm399, %v752
      %873 = vst.msk [vmem:[#allocation5 + $0x168] sm:$0xff] %vm399, %v753
      %874 = vst.msk [vmem:[#allocation5 + $0x170] sm:$0xff] %vm399, %v754
      %875 = vst.msk [vmem:[#allocation5 + $0x178] sm:$0xff] %vm399, %v755
      %876 = vst.msk [vmem:[#allocation5 + $0x180] sm:$0xff] %vm399, %v756
      %877 = vst.msk [vmem:[#allocation5 + $0x188] sm:$0xff] %vm399, %v757
      %878 = vst.msk [vmem:[#allocation5 + $0x190] sm:$0xff] %vm399, %v758
      %879 = vst.msk [vmem:[#allocation5 + $0x198] sm:$0xff] %vm399, %v759
      %880 = vst.msk [vmem:[#allocation5 + $0x1a0] sm:$0xff] %vm399, %v760
      %881 = vst.msk [vmem:[#allocation5 + $0x1a8] sm:$0xff] %vm399, %v761
      %882 = vst.msk [vmem:[#allocation5 + $0x1b0] sm:$0xff] %vm399, %v762
      %883 = vst.msk [vmem:[#allocation5 + $0x1b8] sm:$0xff] %vm399, %v763
      %884 = vst.msk [vmem:[#allocation5 + $0x1c0] sm:$0xff] %vm399, %v764
      %885 = vst.msk [vmem:[#allocation5 + $0x1c8] sm:$0xff] %vm399, %v765
      %886 = vst.msk [vmem:[#allocation5 + $0x1d0] sm:$0xff] %vm399, %v766
      %887 = vst.msk [vmem:[#allocation5 + $0x1d8] sm:$0xff] %vm399, %v767
      %888 = vst.msk [vmem:[#allocation5 + $0x1e0] sm:$0xff] %vm399, %v768
      %889 = vst.msk [vmem:[#allocation5 + $0x1e8] sm:$0xff] %vm399, %v769
      %890 = vst.msk [vmem:[#allocation5 + $0x1f0] sm:$0xff] %vm399, %v770
      %891 = vst.msk [vmem:[#allocation5 + $0x1f8] sm:$0xff] %vm399, %v771
      %892 = vst.msk [vmem:[#allocation5 + $0x200] sm:$0xff] %vm399, %v772
      %893 = vst.msk [vmem:[#allocation5 + $0x208] sm:$0xff] %vm399, %v773
      %894 = vst.msk [vmem:[#allocation5 + $0x210] sm:$0xff] %vm399, %v774
      %895 = vst.msk [vmem:[#allocation5 + $0x218] sm:$0xff] %vm399, %v775
      %896 = vst.msk [vmem:[#allocation5 + $0x220] sm:$0xff] %vm399, %v776
      %897 = vst.msk [vmem:[#allocation5 + $0x228] sm:$0xff] %vm399, %v777
      %898 = vst.msk [vmem:[#allocation5 + $0x230] sm:$0xff] %vm399, %v778
      %899 = vst.msk [vmem:[#allocation5 + $0x238] sm:$0xff] %vm399, %v779
      %900 = vst.msk [vmem:[#allocation5 + $0x240] sm:$0xff] %vm399, %v780
      %901 = vst.msk [vmem:[#allocation5 + $0x248] sm:$0xff] %vm399, %v781
      %902 = vst.msk [vmem:[#allocation5 + $0x250] sm:$0xff] %vm399, %v782
      %903 = vst.msk [vmem:[#allocation5 + $0x258] sm:$0xff] %vm399, %v783
      %904 = vst.msk [vmem:[#allocation5 + $0x260] sm:$0xff] %vm399, %v784
      %905 = vst.msk [vmem:[#allocation5 + $0x268] sm:$0xff] %vm399, %v785
      %906 = vst.msk [vmem:[#allocation5 + $0x270] sm:$0xff] %vm399, %v786
      %907 = vst.msk [vmem:[#allocation5 + $0x278] sm:$0xff] %vm399, %v787
      %908 = vst.msk [vmem:[#allocation5 + $0x280] sm:$0xff] %vm399, %v788
      %909 = vst.msk [vmem:[#allocation5 + $0x288] sm:$0xff] %vm399, %v789
      %910 = vst.msk [vmem:[#allocation5 + $0x290] sm:$0xff] %vm399, %v790
      %911 = vst.msk [vmem:[#allocation5 + $0x298] sm:$0xff] %vm399, %v791
      %912 = vst.msk [vmem:[#allocation5 + $0x2a0] sm:$0xff] %vm399, %v792
      %913 = vst.msk [vmem:[#allocation5 + $0x2a8] sm:$0xff] %vm399, %v793
      %914 = vst.msk [vmem:[#allocation5 + $0x2b0] sm:$0xff] %vm399, %v794
      %915 = vst.msk [vmem:[#allocation5 + $0x2b8] sm:$0xff] %vm399, %v795
      %916 = vst.msk [vmem:[#allocation5 + $0x2c0] sm:$0xff] %vm399, %v796
      %917 = vst.msk [vmem:[#allocation5 + $0x2c8] sm:$0xff] %vm399, %v797
      %918 = vst.msk [vmem:[#allocation5 + $0x2d0] sm:$0xff] %vm399, %v798
      %919 = vst.msk [vmem:[#allocation5 + $0x2d8] sm:$0xff] %vm399, %v799
      %920 = vst.msk [vmem:[#allocation5 + $0x2e0] sm:$0xff] %vm399, %v800
      %921 = vst.msk [vmem:[#allocation5 + $0x2e8] sm:$0xff] %vm399, %v801
      %922 = vst.msk [vmem:[#allocation5 + $0x2f0] sm:$0xff] %vm399, %v802
      %923 = vst.msk [vmem:[#allocation5 + $0x2f8] sm:$0xff] %vm399, %v803
      %924 = vst.msk [vmem:[#allocation5 + $0x300] sm:$0xff] %vm399, %v804
      %925 = vst.msk [vmem:[#allocation5 + $0x308] sm:$0xff] %vm399, %v805
      %926 = vst.msk [vmem:[#allocation5 + $0x310] sm:$0xff] %vm399, %v806
      %927 = vst.msk [vmem:[#allocation5 + $0x318] sm:$0xff] %vm399, %v807
      %928 = vst.msk [vmem:[#allocation5 + $0x320] sm:$0xff] %vm399, %v808
      %929 = vst.msk [vmem:[#allocation5 + $0x328] sm:$0xff] %vm399, %v809
      %930 = vst.msk [vmem:[#allocation5 + $0x330] sm:$0xff] %vm399, %v810
      %931 = vst.msk [vmem:[#allocation5 + $0x338] sm:$0xff] %vm399, %v811
      %932 = vst.msk [vmem:[#allocation5 + $0x340] sm:$0xff] %vm399, %v812
      %933 = vst.msk [vmem:[#allocation5 + $0x348] sm:$0xff] %vm399, %v813
      %934 = vst.msk [vmem:[#allocation5 + $0x350] sm:$0xff] %vm399, %v814
      %935 = vst.msk [vmem:[#allocation5 + $0x358] sm:$0xff] %vm399, %v815
      %936 = vst.msk [vmem:[#allocation5 + $0x360] sm:$0xff] %vm399, %v816
      %937 = vst.msk [vmem:[#allocation5 + $0x368] sm:$0xff] %vm399, %v817
      %938 = vst.msk [vmem:[#allocation5 + $0x370] sm:$0xff] %vm399, %v818
      %939 = vst.msk [vmem:[#allocation5 + $0x378] sm:$0xff] %vm399, %v819
      %940 = vst.msk [vmem:[#allocation5 + $0x380] sm:$0xff] %vm399, %v820
      %941 = vst.msk [vmem:[#allocation5 + $0x388] sm:$0xff] %vm399, %v821
      %942 = vst.msk [vmem:[#allocation5 + $0x390] sm:$0xff] %vm399, %v822
      %943 = vst.msk [vmem:[#allocation5 + $0x398] sm:$0xff] %vm399, %v823
      %944 = vst.msk [vmem:[#allocation5 + $0x3a0] sm:$0xff] %vm399, %v824
      %945 = vst.msk [vmem:[#allocation5 + $0x3a8] sm:$0xff] %vm399, %v825
      %946 = vst.msk [vmem:[#allocation5 + $0x3b0] sm:$0xff] %vm399, %v826
      %947 = vst.msk [vmem:[#allocation5 + $0x3b8] sm:$0xff] %vm399, %v827
      %v948 = vld [vmem:[%s587] sm:$0xff]
      %v949 = vld [vmem:[%s587 + $0x8] sm:$0xff]
      %v950 = vld [vmem:[%s587 + $0x18] sm:$0xff]
      %v951 = vld [vmem:[%s587 + $0x20] sm:$0xff]
      %v952 = vld [vmem:[%s587 + $0x30] sm:$0xff]
      %v953 = vld [vmem:[%s587 + $0x38] sm:$0xff]
      %v954 = vld [vmem:[%s587 + $0x48] sm:$0xff]
      %v955 = vld [vmem:[%s587 + $0x50] sm:$0xff]
      %v956 = vld [vmem:[%s587 + $0x60] sm:$0xff]
      %v957 = vld [vmem:[%s587 + $0x68] sm:$0xff]
      %v958 = vld [vmem:[%s587 + $0x78] sm:$0xff]
      %v959 = vld [vmem:[%s587 + $0x80] sm:$0xff]
      %v960 = vld [vmem:[%s587 + $0x90] sm:$0xff]
      %v961 = vld [vmem:[%s587 + $0x98] sm:$0xff]
      %v962 = vld [vmem:[%s587 + $0xa8] sm:$0xff]
      %v963 = vld [vmem:[%s587 + $0xb0] sm:$0xff]
      %v964 = vld [vmem:[%s587 + $0xc0] sm:$0xff]
      %v965 = vld [vmem:[%s587 + $0xc8] sm:$0xff]
      %v966 = vld [vmem:[%s587 + $0xd8] sm:$0xff]
      %v967 = vld [vmem:[%s587 + $0xe0] sm:$0xff]
      %v968 = vld [vmem:[%s587 + $0xf0] sm:$0xff]
      %v969 = vld [vmem:[%s587 + $0xf8] sm:$0xff]
      %v970 = vld [vmem:[%s587 + $0x108] sm:$0xff]
      %v971 = vld [vmem:[%s587 + $0x110] sm:$0xff]
      %v972 = vld [vmem:[%s587 + $0x120] sm:$0xff]
      %v973 = vld [vmem:[%s587 + $0x128] sm:$0xff]
      %v974 = vld [vmem:[%s587 + $0x138] sm:$0xff]
      %v975 = vld [vmem:[%s587 + $0x140] sm:$0xff]
      %v976 = vld [vmem:[%s587 + $0x150] sm:$0xff]
      %v977 = vld [vmem:[%s587 + $0x158] sm:$0xff]
      %v978 = vld [vmem:[%s587 + $0x168] sm:$0xff]
      %v979 = vld [vmem:[%s587 + $0x170] sm:$0xff]
      %v980 = vld [vmem:[%s587 + $0x180] sm:$0xff]
      %v981 = vld [vmem:[%s587 + $0x188] sm:$0xff]
      %v982 = vld [vmem:[%s587 + $0x198] sm:$0xff]
      %v983 = vld [vmem:[%s587 + $0x1a0] sm:$0xff]
      %v984 = vld [vmem:[%s587 + $0x1b0] sm:$0xff]
      %v985 = vld [vmem:[%s587 + $0x1b8] sm:$0xff]
      %v986 = vld [vmem:[%s587 + $0x1c8] sm:$0xff]
      %v987 = vld [vmem:[%s587 + $0x1d0] sm:$0xff]
      %v988 = vld [vmem:[%s587 + $0x1e0] sm:$0xff]
      %v989 = vld [vmem:[%s587 + $0x1e8] sm:$0xff]
      %v990 = vld [vmem:[%s587 + $0x1f8] sm:$0xff]
      %v991 = vld [vmem:[%s587 + $0x200] sm:$0xff]
      %v992 = vld [vmem:[%s587 + $0x210] sm:$0xff]
      %v993 = vld [vmem:[%s587 + $0x218] sm:$0xff]
      %v994 = vld [vmem:[%s587 + $0x228] sm:$0xff]
      %v995 = vld [vmem:[%s587 + $0x230] sm:$0xff]
      %v996 = vld [vmem:[%s587 + $0x240] sm:$0xff]
      %v997 = vld [vmem:[%s587 + $0x248] sm:$0xff]
      %v998 = vld [vmem:[%s587 + $0x258] sm:$0xff]
      %v999 = vld [vmem:[%s587 + $0x260] sm:$0xff]
      %v1000 = vld [vmem:[%s587 + $0x270] sm:$0xff]
      %v1001 = vld [vmem:[%s587 + $0x278] sm:$0xff]
      %v1002 = vld [vmem:[%s587 + $0x288] sm:$0xff]
      %v1003 = vld [vmem:[%s587 + $0x290] sm:$0xff]
      %v1004 = vld [vmem:[%s587 + $0x2a0] sm:$0xff]
      %v1005 = vld [vmem:[%s587 + $0x2a8] sm:$0xff]
      %v1006 = vld [vmem:[%s587 + $0x2b8] sm:$0xff]
      %v1007 = vld [vmem:[%s587 + $0x2c0] sm:$0xff]
      %v1008 = vld [vmem:[%s587 + $0x2d0] sm:$0xff]
      %v1009 = vld [vmem:[%s587 + $0x2d8] sm:$0xff]
      %v1010 = vld [vmem:[%s587 + $0x2e8] sm:$0xff]
      %v1011 = vld [vmem:[%s587 + $0x2f0] sm:$0xff]
      %v1012 = vld [vmem:[%s587 + $0x300] sm:$0xff]
      %v1013 = vld [vmem:[%s587 + $0x308] sm:$0xff]
      %v1014 = vld [vmem:[%s587 + $0x318] sm:$0xff]
      %v1015 = vld [vmem:[%s587 + $0x320] sm:$0xff]
      %v1016 = vld [vmem:[%s587 + $0x330] sm:$0xff]
      %v1017 = vld [vmem:[%s587 + $0x338] sm:$0xff]
      %v1018 = vld [vmem:[%s587 + $0x348] sm:$0xff]
      %v1019 = vld [vmem:[%s587 + $0x350] sm:$0xff]
      %v1020 = vld [vmem:[%s587 + $0x360] sm:$0xff]
      %v1021 = vld [vmem:[%s587 + $0x368] sm:$0xff]
      %v1022 = vld [vmem:[%s587 + $0x378] sm:$0xff]
      %v1023 = vld [vmem:[%s587 + $0x380] sm:$0xff]
      %v1024 = vld [vmem:[%s587 + $0x390] sm:$0xff]
      %v1025 = vld [vmem:[%s587 + $0x398] sm:$0xff]
      %v1026 = vld [vmem:[%s587 + $0x3a8] sm:$0xff]
      %v1027 = vld [vmem:[%s587 + $0x3b0] sm:$0xff]
      %v1028 = vld [vmem:[%s587 + $0x3c0] sm:$0xff]
      %v1029 = vld [vmem:[%s587 + $0x3c8] sm:$0xff]
      %v1030 = vld [vmem:[%s587 + $0x3d8] sm:$0xff]
      %v1031 = vld [vmem:[%s587 + $0x3e0] sm:$0xff]
      %v1032 = vld [vmem:[%s587 + $0x3f0] sm:$0xff]
      %v1033 = vld [vmem:[%s587 + $0x3f8] sm:$0xff]
      %v1034 = vld [vmem:[%s587 + $0x408] sm:$0xff]
      %v1035 = vld [vmem:[%s587 + $0x410] sm:$0xff]
      %v1036 = vld [vmem:[%s587 + $0x420] sm:$0xff]
      %v1037 = vld [vmem:[%s587 + $0x428] sm:$0xff]
      %v1038 = vld [vmem:[%s587 + $0x438] sm:$0xff]
      %v1039 = vld [vmem:[%s587 + $0x440] sm:$0xff]
      %v1040 = vld [vmem:[%s587 + $0x450] sm:$0xff]
      %v1041 = vld [vmem:[%s587 + $0x458] sm:$0xff]
      %v1042 = vld [vmem:[%s587 + $0x468] sm:$0xff]
      %v1043 = vld [vmem:[%s587 + $0x470] sm:$0xff]
      %v1044 = vld [vmem:[%s587 + $0x480] sm:$0xff]
      %v1045 = vld [vmem:[%s587 + $0x488] sm:$0xff]
      %v1046 = vld [vmem:[%s587 + $0x498] sm:$0xff]
      %v1047 = vld [vmem:[%s587 + $0x4a0] sm:$0xff]
      %v1048 = vld [vmem:[%s587 + $0x4b0] sm:$0xff]
      %v1049 = vld [vmem:[%s587 + $0x4b8] sm:$0xff]
      %v1050 = vld [vmem:[%s587 + $0x4c8] sm:$0xff]
      %v1051 = vld [vmem:[%s587 + $0x4d0] sm:$0xff]
      %v1052 = vld [vmem:[%s587 + $0x4e0] sm:$0xff]
      %v1053 = vld [vmem:[%s587 + $0x4e8] sm:$0xff]
      %v1054 = vld [vmem:[%s587 + $0x4f8] sm:$0xff]
      %v1055 = vld [vmem:[%s587 + $0x500] sm:$0xff]
      %v1056 = vld [vmem:[%s587 + $0x510] sm:$0xff]
      %v1057 = vld [vmem:[%s587 + $0x518] sm:$0xff]
      %v1058 = vld [vmem:[%s587 + $0x528] sm:$0xff]
      %v1059 = vld [vmem:[%s587 + $0x530] sm:$0xff]
      %v1060 = vld [vmem:[%s587 + $0x540] sm:$0xff]
      %v1061 = vld [vmem:[%s587 + $0x548] sm:$0xff]
      %v1062 = vld [vmem:[%s587 + $0x558] sm:$0xff]
      %v1063 = vld [vmem:[%s587 + $0x560] sm:$0xff]
      %v1064 = vld [vmem:[%s587 + $0x570] sm:$0xff]
      %v1065 = vld [vmem:[%s587 + $0x578] sm:$0xff]
      %v1066 = vld [vmem:[%s587 + $0x588] sm:$0xff]
      %v1067 = vld [vmem:[%s587 + $0x590] sm:$0xff]
      %1188 = vrot.lane.b32.xlu0 %v948, 4
      %v1189 = vpop.permute.xlu0 %1188
      %1190 = vrot.lane.b32.xlu0 %v949, 4
      %v1191 = vpop.permute.xlu0 %1190
      %1192 = vrot.lane.b32.xlu0 %v950, 4
      %v1193 = vpop.permute.xlu0 %1192
      %1194 = vrot.lane.b32.xlu0 %v951, 4
      %v1195 = vpop.permute.xlu0 %1194
      %1196 = vrot.lane.b32.xlu0 %v952, 4
      %v1197 = vpop.permute.xlu0 %1196
      %1198 = vrot.lane.b32.xlu0 %v953, 4
      %v1199 = vpop.permute.xlu0 %1198
      %1200 = vrot.lane.b32.xlu0 %v954, 4
      %v1201 = vpop.permute.xlu0 %1200
      %1202 = vrot.lane.b32.xlu0 %v955, 4
      %v1203 = vpop.permute.xlu0 %1202
      %1204 = vrot.lane.b32.xlu0 %v956, 4
      %v1205 = vpop.permute.xlu0 %1204
      %1206 = vrot.lane.b32.xlu0 %v957, 4
      %v1207 = vpop.permute.xlu0 %1206
      %1208 = vrot.lane.b32.xlu0 %v958, 4
      %v1209 = vpop.permute.xlu0 %1208
      %1210 = vrot.lane.b32.xlu0 %v959, 4
      %v1211 = vpop.permute.xlu0 %1210
      %1212 = vrot.lane.b32.xlu0 %v960, 4
      %v1213 = vpop.permute.xlu0 %1212
      %1214 = vrot.lane.b32.xlu0 %v961, 4
      %v1215 = vpop.permute.xlu0 %1214
      %1216 = vrot.lane.b32.xlu0 %v962, 4
      %v1217 = vpop.permute.xlu0 %1216
      %1218 = vrot.lane.b32.xlu0 %v963, 4
      %v1219 = vpop.permute.xlu0 %1218
      %1220 = vrot.lane.b32.xlu0 %v964, 4
      %v1221 = vpop.permute.xlu0 %1220
      %1222 = vrot.lane.b32.xlu0 %v965, 4
      %v1223 = vpop.permute.xlu0 %1222
      %1224 = vrot.lane.b32.xlu0 %v966, 4
      %v1225 = vpop.permute.xlu0 %1224
      %1226 = vrot.lane.b32.xlu0 %v967, 4
      %v1227 = vpop.permute.xlu0 %1226
      %1228 = vrot.lane.b32.xlu0 %v968, 4
      %v1229 = vpop.permute.xlu0 %1228
      %1230 = vrot.lane.b32.xlu0 %v969, 4
      %v1231 = vpop.permute.xlu0 %1230
      %1232 = vrot.lane.b32.xlu0 %v970, 4
      %v1233 = vpop.permute.xlu0 %1232
      %1234 = vrot.lane.b32.xlu0 %v971, 4
      %v1235 = vpop.permute.xlu0 %1234
      %1236 = vrot.lane.b32.xlu0 %v972, 4
      %v1237 = vpop.permute.xlu0 %1236
      %1238 = vrot.lane.b32.xlu0 %v973, 4
      %v1239 = vpop.permute.xlu0 %1238
      %1240 = vrot.lane.b32.xlu0 %v974, 4
      %v1241 = vpop.permute.xlu0 %1240
      %1242 = vrot.lane.b32.xlu0 %v975, 4
      %v1243 = vpop.permute.xlu0 %1242
      %1244 = vrot.lane.b32.xlu0 %v976, 4
      %v1245 = vpop.permute.xlu0 %1244
      %1246 = vrot.lane.b32.xlu0 %v977, 4
      %v1247 = vpop.permute.xlu0 %1246
      %1248 = vrot.lane.b32.xlu0 %v978, 4
      %v1249 = vpop.permute.xlu0 %1248
      %1250 = vrot.lane.b32.xlu0 %v979, 4
      %v1251 = vpop.permute.xlu0 %1250
      %1252 = vrot.lane.b32.xlu0 %v980, 4
      %v1253 = vpop.permute.xlu0 %1252
      %1254 = vrot.lane.b32.xlu0 %v981, 4
      %v1255 = vpop.permute.xlu0 %1254
      %1256 = vrot.lane.b32.xlu0 %v982, 4
      %v1257 = vpop.permute.xlu0 %1256
      %1258 = vrot.lane.b32.xlu0 %v983, 4
      %v1259 = vpop.permute.xlu0 %1258
      %1260 = vrot.lane.b32.xlu0 %v984, 4
      %v1261 = vpop.permute.xlu0 %1260
      %1262 = vrot.lane.b32.xlu0 %v985, 4
      %v1263 = vpop.permute.xlu0 %1262
      %1264 = vrot.lane.b32.xlu0 %v986, 4
      %v1265 = vpop.permute.xlu0 %1264
      %1266 = vrot.lane.b32.xlu0 %v987, 4
      %v1267 = vpop.permute.xlu0 %1266
      %1268 = vrot.lane.b32.xlu0 %v988, 4
      %v1269 = vpop.permute.xlu0 %1268
      %1270 = vrot.lane.b32.xlu0 %v989, 4
      %v1271 = vpop.permute.xlu0 %1270
      %1272 = vrot.lane.b32.xlu0 %v990, 4
      %v1273 = vpop.permute.xlu0 %1272
      %1274 = vrot.lane.b32.xlu0 %v991, 4
      %v1275 = vpop.permute.xlu0 %1274
      %1276 = vrot.lane.b32.xlu0 %v992, 4
      %v1277 = vpop.permute.xlu0 %1276
      %1278 = vrot.lane.b32.xlu0 %v993, 4
      %v1279 = vpop.permute.xlu0 %1278
      %1280 = vrot.lane.b32.xlu0 %v994, 4
      %v1281 = vpop.permute.xlu0 %1280
      %1282 = vrot.lane.b32.xlu0 %v995, 4
      %v1283 = vpop.permute.xlu0 %1282
      %1284 = vrot.lane.b32.xlu0 %v996, 4
      %v1285 = vpop.permute.xlu0 %1284
      %1286 = vrot.lane.b32.xlu0 %v997, 4
      %v1287 = vpop.permute.xlu0 %1286
      %1288 = vrot.lane.b32.xlu0 %v998, 4
      %v1289 = vpop.permute.xlu0 %1288
      %1290 = vrot.lane.b32.xlu0 %v999, 4
      %v1291 = vpop.permute.xlu0 %1290
      %1292 = vrot.lane.b32.xlu0 %v1000, 4
      %v1293 = vpop.permute.xlu0 %1292
      %1294 = vrot.lane.b32.xlu0 %v1001, 4
      %v1295 = vpop.permute.xlu0 %1294
      %1296 = vrot.lane.b32.xlu0 %v1002, 4
      %v1297 = vpop.permute.xlu0 %1296
      %1298 = vrot.lane.b32.xlu0 %v1003, 4
      %v1299 = vpop.permute.xlu0 %1298
      %1300 = vrot.lane.b32.xlu0 %v1004, 4
      %v1301 = vpop.permute.xlu0 %1300
      %1302 = vrot.lane.b32.xlu0 %v1005, 4
      %v1303 = vpop.permute.xlu0 %1302
      %1304 = vrot.lane.b32.xlu0 %v1006, 4
      %v1305 = vpop.permute.xlu0 %1304
      %1306 = vrot.lane.b32.xlu0 %v1007, 4
      %v1307 = vpop.permute.xlu0 %1306
      %1308 = vrot.lane.b32.xlu0 %v1008, 4
      %v1309 = vpop.permute.xlu0 %1308
      %1310 = vrot.lane.b32.xlu0 %v1009, 4
      %v1311 = vpop.permute.xlu0 %1310
      %1312 = vrot.lane.b32.xlu0 %v1010, 4
      %v1313 = vpop.permute.xlu0 %1312
      %1314 = vrot.lane.b32.xlu0 %v1011, 4
      %v1315 = vpop.permute.xlu0 %1314
      %1316 = vrot.lane.b32.xlu0 %v1012, 4
      %v1317 = vpop.permute.xlu0 %1316
      %1318 = vrot.lane.b32.xlu0 %v1013, 4
      %v1319 = vpop.permute.xlu0 %1318
      %1320 = vrot.lane.b32.xlu0 %v1014, 4
      %v1321 = vpop.permute.xlu0 %1320
      %1322 = vrot.lane.b32.xlu0 %v1015, 4
      %v1323 = vpop.permute.xlu0 %1322
      %1324 = vrot.lane.b32.xlu0 %v1016, 4
      %v1325 = vpop.permute.xlu0 %1324
      %1326 = vrot.lane.b32.xlu0 %v1017, 4
      %v1327 = vpop.permute.xlu0 %1326
      %1328 = vrot.lane.b32.xlu0 %v1018, 4
      %v1329 = vpop.permute.xlu0 %1328
      %1330 = vrot.lane.b32.xlu0 %v1019, 4
      %v1331 = vpop.permute.xlu0 %1330
      %1332 = vrot.lane.b32.xlu0 %v1020, 4
      %v1333 = vpop.permute.xlu0 %1332
      %1334 = vrot.lane.b32.xlu0 %v1021, 4
      %v1335 = vpop.permute.xlu0 %1334
      %1336 = vrot.lane.b32.xlu0 %v1022, 4
      %v1337 = vpop.permute.xlu0 %1336
      %1338 = vrot.lane.b32.xlu0 %v1023, 4
      %v1339 = vpop.permute.xlu0 %1338
      %1340 = vrot.lane.b32.xlu0 %v1024, 4
      %v1341 = vpop.permute.xlu0 %1340
      %1342 = vrot.lane.b32.xlu0 %v1025, 4
      %v1343 = vpop.permute.xlu0 %1342
      %1344 = vrot.lane.b32.xlu0 %v1026, 4
      %v1345 = vpop.permute.xlu0 %1344
      %1346 = vrot.lane.b32.xlu0 %v1027, 4
      %v1347 = vpop.permute.xlu0 %1346
      %1348 = vrot.lane.b32.xlu0 %v1028, 4
      %v1349 = vpop.permute.xlu0 %1348
      %1350 = vrot.lane.b32.xlu0 %v1029, 4
      %v1351 = vpop.permute.xlu0 %1350
      %1352 = vrot.lane.b32.xlu0 %v1030, 4
      %v1353 = vpop.permute.xlu0 %1352
      %1354 = vrot.lane.b32.xlu0 %v1031, 4
      %v1355 = vpop.permute.xlu0 %1354
      %1356 = vrot.lane.b32.xlu0 %v1032, 4
      %v1357 = vpop.permute.xlu0 %1356
      %1358 = vrot.lane.b32.xlu0 %v1033, 4
      %v1359 = vpop.permute.xlu0 %1358
      %1360 = vrot.lane.b32.xlu0 %v1034, 4
      %v1361 = vpop.permute.xlu0 %1360
      %1362 = vrot.lane.b32.xlu0 %v1035, 4
      %v1363 = vpop.permute.xlu0 %1362
      %1364 = vrot.lane.b32.xlu0 %v1036, 4
      %v1365 = vpop.permute.xlu0 %1364
      %1366 = vrot.lane.b32.xlu0 %v1037, 4
      %v1367 = vpop.permute.xlu0 %1366
      %1368 = vrot.lane.b32.xlu0 %v1038, 4
      %v1369 = vpop.permute.xlu0 %1368
      %1370 = vrot.lane.b32.xlu0 %v1039, 4
      %v1371 = vpop.permute.xlu0 %1370
      %1372 = vrot.lane.b32.xlu0 %v1040, 4
      %v1373 = vpop.permute.xlu0 %1372
      %1374 = vrot.lane.b32.xlu0 %v1041, 4
      %v1375 = vpop.permute.xlu0 %1374
      %1376 = vrot.lane.b32.xlu0 %v1042, 4
      %v1377 = vpop.permute.xlu0 %1376
      %1378 = vrot.lane.b32.xlu0 %v1043, 4
      %v1379 = vpop.permute.xlu0 %1378
      %1380 = vrot.lane.b32.xlu0 %v1044, 4
      %v1381 = vpop.permute.xlu0 %1380
      %1382 = vrot.lane.b32.xlu0 %v1045, 4
      %v1383 = vpop.permute.xlu0 %1382
      %1384 = vrot.lane.b32.xlu0 %v1046, 4
      %v1385 = vpop.permute.xlu0 %1384
      %1386 = vrot.lane.b32.xlu0 %v1047, 4
      %v1387 = vpop.permute.xlu0 %1386
      %1388 = vrot.lane.b32.xlu0 %v1048, 4
      %v1389 = vpop.permute.xlu0 %1388
      %1390 = vrot.lane.b32.xlu0 %v1049, 4
      %v1391 = vpop.permute.xlu0 %1390
      %1392 = vrot.lane.b32.xlu0 %v1050, 4
      %v1393 = vpop.permute.xlu0 %1392
      %1394 = vrot.lane.b32.xlu0 %v1051, 4
      %v1395 = vpop.permute.xlu0 %1394
      %1396 = vrot.lane.b32.xlu0 %v1052, 4
      %v1397 = vpop.permute.xlu0 %1396
      %1398 = vrot.lane.b32.xlu0 %v1053, 4
      %v1399 = vpop.permute.xlu0 %1398
      %1400 = vrot.lane.b32.xlu0 %v1054, 4
      %v1401 = vpop.permute.xlu0 %1400
      %1402 = vrot.lane.b32.xlu0 %v1055, 4
      %v1403 = vpop.permute.xlu0 %1402
      %1404 = vrot.lane.b32.xlu0 %v1056, 4
      %v1405 = vpop.permute.xlu0 %1404
      %1406 = vrot.lane.b32.xlu0 %v1057, 4
      %v1407 = vpop.permute.xlu0 %1406
      %1408 = vrot.lane.b32.xlu0 %v1058, 4
      %v1409 = vpop.permute.xlu0 %1408
      %1410 = vrot.lane.b32.xlu0 %v1059, 4
      %v1411 = vpop.permute.xlu0 %1410
      %1412 = vrot.lane.b32.xlu0 %v1060, 4
      %v1413 = vpop.permute.xlu0 %1412
      %1414 = vrot.lane.b32.xlu0 %v1061, 4
      %v1415 = vpop.permute.xlu0 %1414
      %1416 = vrot.lane.b32.xlu0 %v1062, 4
      %v1417 = vpop.permute.xlu0 %1416
      %1418 = vrot.lane.b32.xlu0 %v1063, 4
      %v1419 = vpop.permute.xlu0 %1418
      %1420 = vrot.lane.b32.xlu0 %v1064, 4
      %v1421 = vpop.permute.xlu0 %1420
      %1422 = vrot.lane.b32.xlu0 %v1065, 4
      %v1423 = vpop.permute.xlu0 %1422
      %1424 = vrot.lane.b32.xlu0 %v1066, 4
      %v1425 = vpop.permute.xlu0 %1424
      %1426 = vrot.lane.b32.xlu0 %v1067, 4
      %v1427 = vpop.permute.xlu0 %1426
      %vm1548 = vcmask 64544
      %1549 = vst.msk [vmem:[#allocation5] sm:$0xff] %vm1548, %v1189
      %1550 = vst.msk [vmem:[#allocation5 + $0x8] sm:$0xff] %vm1548, %v1191
      %1551 = vst.msk [vmem:[#allocation5 + $0x10] sm:$0xff] %vm1548, %v1193
      %1552 = vst.msk [vmem:[#allocation5 + $0x18] sm:$0xff] %vm1548, %v1195
      %1553 = vst.msk [vmem:[#allocation5 + $0x20] sm:$0xff] %vm1548, %v1197
      %1554 = vst.msk [vmem:[#allocation5 + $0x28] sm:$0xff] %vm1548, %v1199
      %1555 = vst.msk [vmem:[#allocation5 + $0x30] sm:$0xff] %vm1548, %v1201
      %1556 = vst.msk [vmem:[#allocation5 + $0x38] sm:$0xff] %vm1548, %v1203
      %1557 = vst.msk [vmem:[#allocation5 + $0x40] sm:$0xff] %vm1548, %v1205
      %1558 = vst.msk [vmem:[#allocation5 + $0x48] sm:$0xff] %vm1548, %v1207
      %1559 = vst.msk [vmem:[#allocation5 + $0x50] sm:$0xff] %vm1548, %v1209
      %1560 = vst.msk [vmem:[#allocation5 + $0x58] sm:$0xff] %vm1548, %v1211
      %1561 = vst.msk [vmem:[#allocation5 + $0x60] sm:$0xff] %vm1548, %v1213
      %1562 = vst.msk [vmem:[#allocation5 + $0x68] sm:$0xff] %vm1548, %v1215
      %1563 = vst.msk [vmem:[#allocation5 + $0x70] sm:$0xff] %vm1548, %v1217
      %1564 = vst.msk [vmem:[#allocation5 + $0x78] sm:$0xff] %vm1548, %v1219
      %1565 = vst.msk [vmem:[#allocation5 + $0x80] sm:$0xff] %vm1548, %v1221
      %1566 = vst.msk [vmem:[#allocation5 + $0x88] sm:$0xff] %vm1548, %v1223
      %1567 = vst.msk [vmem:[#allocation5 + $0x90] sm:$0xff] %vm1548, %v1225
      %1568 = vst.msk [vmem:[#allocation5 + $0x98] sm:$0xff] %vm1548, %v1227
      %1569 = vst.msk [vmem:[#allocation5 + $0xa0] sm:$0xff] %vm1548, %v1229
      %1570 = vst.msk [vmem:[#allocation5 + $0xa8] sm:$0xff] %vm1548, %v1231
      %1571 = vst.msk [vmem:[#allocation5 + $0xb0] sm:$0xff] %vm1548, %v1233
      %1572 = vst.msk [vmem:[#allocation5 + $0xb8] sm:$0xff] %vm1548, %v1235
      %1573 = vst.msk [vmem:[#allocation5 + $0xc0] sm:$0xff] %vm1548, %v1237
      %1574 = vst.msk [vmem:[#allocation5 + $0xc8] sm:$0xff] %vm1548, %v1239
      %1575 = vst.msk [vmem:[#allocation5 + $0xd0] sm:$0xff] %vm1548, %v1241
      %1576 = vst.msk [vmem:[#allocation5 + $0xd8] sm:$0xff] %vm1548, %v1243
      %1577 = vst.msk [vmem:[#allocation5 + $0xe0] sm:$0xff] %vm1548, %v1245
      %1578 = vst.msk [vmem:[#allocation5 + $0xe8] sm:$0xff] %vm1548, %v1247
      %1579 = vst.msk [vmem:[#allocation5 + $0xf0] sm:$0xff] %vm1548, %v1249
      %1580 = vst.msk [vmem:[#allocation5 + $0xf8] sm:$0xff] %vm1548, %v1251
      %1581 = vst.msk [vmem:[#allocation5 + $0x100] sm:$0xff] %vm1548, %v1253
      %1582 = vst.msk [vmem:[#allocation5 + $0x108] sm:$0xff] %vm1548, %v1255
      %1583 = vst.msk [vmem:[#allocation5 + $0x110] sm:$0xff] %vm1548, %v1257
      %1584 = vst.msk [vmem:[#allocation5 + $0x118] sm:$0xff] %vm1548, %v1259
      %1585 = vst.msk [vmem:[#allocation5 + $0x120] sm:$0xff] %vm1548, %v1261
      %1586 = vst.msk [vmem:[#allocation5 + $0x128] sm:$0xff] %vm1548, %v1263
      %1587 = vst.msk [vmem:[#allocation5 + $0x130] sm:$0xff] %vm1548, %v1265
      %1588 = vst.msk [vmem:[#allocation5 + $0x138] sm:$0xff] %vm1548, %v1267
      %1589 = vst.msk [vmem:[#allocation5 + $0x140] sm:$0xff] %vm1548, %v1269
      %1590 = vst.msk [vmem:[#allocation5 + $0x148] sm:$0xff] %vm1548, %v1271
      %1591 = vst.msk [vmem:[#allocation5 + $0x150] sm:$0xff] %vm1548, %v1273
      %1592 = vst.msk [vmem:[#allocation5 + $0x158] sm:$0xff] %vm1548, %v1275
      %1593 = vst.msk [vmem:[#allocation5 + $0x160] sm:$0xff] %vm1548, %v1277
      %1594 = vst.msk [vmem:[#allocation5 + $0x168] sm:$0xff] %vm1548, %v1279
      %1595 = vst.msk [vmem:[#allocation5 + $0x170] sm:$0xff] %vm1548, %v1281
      %1596 = vst.msk [vmem:[#allocation5 + $0x178] sm:$0xff] %vm1548, %v1283
      %1597 = vst.msk [vmem:[#allocation5 + $0x180] sm:$0xff] %vm1548, %v1285
      %1598 = vst.msk [vmem:[#allocation5 + $0x188] sm:$0xff] %vm1548, %v1287
      %1599 = vst.msk [vmem:[#allocation5 + $0x190] sm:$0xff] %vm1548, %v1289
      %1600 = vst.msk [vmem:[#allocation5 + $0x198] sm:$0xff] %vm1548, %v1291
      %1601 = vst.msk [vmem:[#allocation5 + $0x1a0] sm:$0xff] %vm1548, %v1293
      %1602 = vst.msk [vmem:[#allocation5 + $0x1a8] sm:$0xff] %vm1548, %v1295
      %1603 = vst.msk [vmem:[#allocation5 + $0x1b0] sm:$0xff] %vm1548, %v1297
      %1604 = vst.msk [vmem:[#allocation5 + $0x1b8] sm:$0xff] %vm1548, %v1299
      %1605 = vst.msk [vmem:[#allocation5 + $0x1c0] sm:$0xff] %vm1548, %v1301
      %1606 = vst.msk [vmem:[#allocation5 + $0x1c8] sm:$0xff] %vm1548, %v1303
      %1607 = vst.msk [vmem:[#allocation5 + $0x1d0] sm:$0xff] %vm1548, %v1305
      %1608 = vst.msk [vmem:[#allocation5 + $0x1d8] sm:$0xff] %vm1548, %v1307
      %1609 = vst.msk [vmem:[#allocation5 + $0x1e0] sm:$0xff] %vm1548, %v1309
      %1610 = vst.msk [vmem:[#allocation5 + $0x1e8] sm:$0xff] %vm1548, %v1311
      %1611 = vst.msk [vmem:[#allocation5 + $0x1f0] sm:$0xff] %vm1548, %v1313
      %1612 = vst.msk [vmem:[#allocation5 + $0x1f8] sm:$0xff] %vm1548, %v1315
      %1613 = vst.msk [vmem:[#allocation5 + $0x200] sm:$0xff] %vm1548, %v1317
      %1614 = vst.msk [vmem:[#allocation5 + $0x208] sm:$0xff] %vm1548, %v1319
      %1615 = vst.msk [vmem:[#allocation5 + $0x210] sm:$0xff] %vm1548, %v1321
      %1616 = vst.msk [vmem:[#allocation5 + $0x218] sm:$0xff] %vm1548, %v1323
      %1617 = vst.msk [vmem:[#allocation5 + $0x220] sm:$0xff] %vm1548, %v1325
      %1618 = vst.msk [vmem:[#allocation5 + $0x228] sm:$0xff] %vm1548, %v1327
      %1619 = vst.msk [vmem:[#allocation5 + $0x230] sm:$0xff] %vm1548, %v1329
      %1620 = vst.msk [vmem:[#allocation5 + $0x238] sm:$0xff] %vm1548, %v1331
      %1621 = vst.msk [vmem:[#allocation5 + $0x240] sm:$0xff] %vm1548, %v1333
      %1622 = vst.msk [vmem:[#allocation5 + $0x248] sm:$0xff] %vm1548, %v1335
      %1623 = vst.msk [vmem:[#allocation5 + $0x250] sm:$0xff] %vm1548, %v1337
      %1624 = vst.msk [vmem:[#allocation5 + $0x258] sm:$0xff] %vm1548, %v1339
      %1625 = vst.msk [vmem:[#allocation5 + $0x260] sm:$0xff] %vm1548, %v1341
      %1626 = vst.msk [vmem:[#allocation5 + $0x268] sm:$0xff] %vm1548, %v1343
      %1627 = vst.msk [vmem:[#allocation5 + $0x270] sm:$0xff] %vm1548, %v1345
      %1628 = vst.msk [vmem:[#allocation5 + $0x278] sm:$0xff] %vm1548, %v1347
      %1629 = vst.msk [vmem:[#allocation5 + $0x280] sm:$0xff] %vm1548, %v1349
      %1630 = vst.msk [vmem:[#allocation5 + $0x288] sm:$0xff] %vm1548, %v1351
      %1631 = vst.msk [vmem:[#allocation5 + $0x290] sm:$0xff] %vm1548, %v1353
      %1632 = vst.msk [vmem:[#allocation5 + $0x298] sm:$0xff] %vm1548, %v1355
      %1633 = vst.msk [vmem:[#allocation5 + $0x2a0] sm:$0xff] %vm1548, %v1357
      %1634 = vst.msk [vmem:[#allocation5 + $0x2a8] sm:$0xff] %vm1548, %v1359
      %1635 = vst.msk [vmem:[#allocation5 + $0x2b0] sm:$0xff] %vm1548, %v1361
      %1636 = vst.msk [vmem:[#allocation5 + $0x2b8] sm:$0xff] %vm1548, %v1363
      %1637 = vst.msk [vmem:[#allocation5 + $0x2c0] sm:$0xff] %vm1548, %v1365
      %1638 = vst.msk [vmem:[#allocation5 + $0x2c8] sm:$0xff] %vm1548, %v1367
      %1639 = vst.msk [vmem:[#allocation5 + $0x2d0] sm:$0xff] %vm1548, %v1369
      %1640 = vst.msk [vmem:[#allocation5 + $0x2d8] sm:$0xff] %vm1548, %v1371
      %1641 = vst.msk [vmem:[#allocation5 + $0x2e0] sm:$0xff] %vm1548, %v1373
      %1642 = vst.msk [vmem:[#allocation5 + $0x2e8] sm:$0xff] %vm1548, %v1375
      %1643 = vst.msk [vmem:[#allocation5 + $0x2f0] sm:$0xff] %vm1548, %v1377
      %1644 = vst.msk [vmem:[#allocation5 + $0x2f8] sm:$0xff] %vm1548, %v1379
      %1645 = vst.msk [vmem:[#allocation5 + $0x300] sm:$0xff] %vm1548, %v1381
      %1646 = vst.msk [vmem:[#allocation5 + $0x308] sm:$0xff] %vm1548, %v1383
      %1647 = vst.msk [vmem:[#allocation5 + $0x310] sm:$0xff] %vm1548, %v1385
      %1648 = vst.msk [vmem:[#allocation5 + $0x318] sm:$0xff] %vm1548, %v1387
      %1649 = vst.msk [vmem:[#allocation5 + $0x320] sm:$0xff] %vm1548, %v1389
      %1650 = vst.msk [vmem:[#allocation5 + $0x328] sm:$0xff] %vm1548, %v1391
      %1651 = vst.msk [vmem:[#allocation5 + $0x330] sm:$0xff] %vm1548, %v1393
      %1652 = vst.msk [vmem:[#allocation5 + $0x338] sm:$0xff] %vm1548, %v1395
      %1653 = vst.msk [vmem:[#allocation5 + $0x340] sm:$0xff] %vm1548, %v1397
      %1654 = vst.msk [vmem:[#allocation5 + $0x348] sm:$0xff] %vm1548, %v1399
      %1655 = vst.msk [vmem:[#allocation5 + $0x350] sm:$0xff] %vm1548, %v1401
      %1656 = vst.msk [vmem:[#allocation5 + $0x358] sm:$0xff] %vm1548, %v1403
      %1657 = vst.msk [vmem:[#allocation5 + $0x360] sm:$0xff] %vm1548, %v1405
      %1658 = vst.msk [vmem:[#allocation5 + $0x368] sm:$0xff] %vm1548, %v1407
      %1659 = vst.msk [vmem:[#allocation5 + $0x370] sm:$0xff] %vm1548, %v1409
      %1660 = vst.msk [vmem:[#allocation5 + $0x378] sm:$0xff] %vm1548, %v1411
      %1661 = vst.msk [vmem:[#allocation5 + $0x380] sm:$0xff] %vm1548, %v1413
      %1662 = vst.msk [vmem:[#allocation5 + $0x388] sm:$0xff] %vm1548, %v1415
      %1663 = vst.msk [vmem:[#allocation5 + $0x390] sm:$0xff] %vm1548, %v1417
      %1664 = vst.msk [vmem:[#allocation5 + $0x398] sm:$0xff] %vm1548, %v1419
      %1665 = vst.msk [vmem:[#allocation5 + $0x3a0] sm:$0xff] %vm1548, %v1421
      %1666 = vst.msk [vmem:[#allocation5 + $0x3a8] sm:$0xff] %vm1548, %v1423
      %1667 = vst.msk [vmem:[#allocation5 + $0x3b0] sm:$0xff] %vm1548, %v1425
      %1668 = vst.msk [vmem:[#allocation5 + $0x3b8] sm:$0xff] %vm1548, %v1427
      %s1669 = scalar_lea.vmem [#allocation2], 48
      %v1670 = vld [vmem:[%s1669] sm:$0xff]
      %v1671 = vld [vmem:[%s1669 + $0x8] sm:$0xff]
      %v1672 = vld [vmem:[%s1669 + $0x18] sm:$0xff]
      %v1673 = vld [vmem:[%s1669 + $0x20] sm:$0xff]
      %v1674 = vld [vmem:[%s1669 + $0x30] sm:$0xff]
      %v1675 = vld [vmem:[%s1669 + $0x38] sm:$0xff]
      %v1676 = vld [vmem:[%s1669 + $0x48] sm:$0xff]
      %v1677 = vld [vmem:[%s1669 + $0x50] sm:$0xff]
      %v1678 = vld [vmem:[%s1669 + $0x60] sm:$0xff]
      %v1679 = vld [vmem:[%s1669 + $0x68] sm:$0xff]
      %v1680 = vld [vmem:[%s1669 + $0x78] sm:$0xff]
      %v1681 = vld [vmem:[%s1669 + $0x80] sm:$0xff]
      %v1682 = vld [vmem:[%s1669 + $0x90] sm:$0xff]
      %v1683 = vld [vmem:[%s1669 + $0x98] sm:$0xff]
      %v1684 = vld [vmem:[%s1669 + $0xa8] sm:$0xff]
      %v1685 = vld [vmem:[%s1669 + $0xb0] sm:$0xff]
      %v1686 = vld [vmem:[%s1669 + $0xc0] sm:$0xff]
      %v1687 = vld [vmem:[%s1669 + $0xc8] sm:$0xff]
      %v1688 = vld [vmem:[%s1669 + $0xd8] sm:$0xff]
      %v1689 = vld [vmem:[%s1669 + $0xe0] sm:$0xff]
      %v1690 = vld [vmem:[%s1669 + $0xf0] sm:$0xff]
      %v1691 = vld [vmem:[%s1669 + $0xf8] sm:$0xff]
      %v1692 = vld [vmem:[%s1669 + $0x108] sm:$0xff]
      %v1693 = vld [vmem:[%s1669 + $0x110] sm:$0xff]
      %v1694 = vld [vmem:[%s1669 + $0x120] sm:$0xff]
      %v1695 = vld [vmem:[%s1669 + $0x128] sm:$0xff]
      %v1696 = vld [vmem:[%s1669 + $0x138] sm:$0xff]
      %v1697 = vld [vmem:[%s1669 + $0x140] sm:$0xff]
      %v1698 = vld [vmem:[%s1669 + $0x150] sm:$0xff]
      %v1699 = vld [vmem:[%s1669 + $0x158] sm:$0xff]
      %v1700 = vld [vmem:[%s1669 + $0x168] sm:$0xff]
      %v1701 = vld [vmem:[%s1669 + $0x170] sm:$0xff]
      %v1702 = vld [vmem:[%s1669 + $0x180] sm:$0xff]
      %v1703 = vld [vmem:[%s1669 + $0x188] sm:$0xff]
      %v1704 = vld [vmem:[%s1669 + $0x198] sm:$0xff]
      %v1705 = vld [vmem:[%s1669 + $0x1a0] sm:$0xff]
      %v1706 = vld [vmem:[%s1669 + $0x1b0] sm:$0xff]
      %v1707 = vld [vmem:[%s1669 + $0x1b8] sm:$0xff]
      %v1708 = vld [vmem:[%s1669 + $0x1c8] sm:$0xff]
      %v1709 = vld [vmem:[%s1669 + $0x1d0] sm:$0xff]
      %v1710 = vld [vmem:[%s1669 + $0x1e0] sm:$0xff]
      %v1711 = vld [vmem:[%s1669 + $0x1e8] sm:$0xff]
      %v1712 = vld [vmem:[%s1669 + $0x1f8] sm:$0xff]
      %v1713 = vld [vmem:[%s1669 + $0x200] sm:$0xff]
      %v1714 = vld [vmem:[%s1669 + $0x210] sm:$0xff]
      %v1715 = vld [vmem:[%s1669 + $0x218] sm:$0xff]
      %v1716 = vld [vmem:[%s1669 + $0x228] sm:$0xff]
      %v1717 = vld [vmem:[%s1669 + $0x230] sm:$0xff]
      %v1718 = vld [vmem:[%s1669 + $0x240] sm:$0xff]
      %v1719 = vld [vmem:[%s1669 + $0x248] sm:$0xff]
      %v1720 = vld [vmem:[%s1669 + $0x258] sm:$0xff]
      %v1721 = vld [vmem:[%s1669 + $0x260] sm:$0xff]
      %v1722 = vld [vmem:[%s1669 + $0x270] sm:$0xff]
      %v1723 = vld [vmem:[%s1669 + $0x278] sm:$0xff]
      %v1724 = vld [vmem:[%s1669 + $0x288] sm:$0xff]
      %v1725 = vld [vmem:[%s1669 + $0x290] sm:$0xff]
      %v1726 = vld [vmem:[%s1669 + $0x2a0] sm:$0xff]
      %v1727 = vld [vmem:[%s1669 + $0x2a8] sm:$0xff]
      %v1728 = vld [vmem:[%s1669 + $0x2b8] sm:$0xff]
      %v1729 = vld [vmem:[%s1669 + $0x2c0] sm:$0xff]
      %v1730 = vld [vmem:[%s1669 + $0x2d0] sm:$0xff]
      %v1731 = vld [vmem:[%s1669 + $0x2d8] sm:$0xff]
      %v1732 = vld [vmem:[%s1669 + $0x2e8] sm:$0xff]
      %v1733 = vld [vmem:[%s1669 + $0x2f0] sm:$0xff]
      %v1734 = vld [vmem:[%s1669 + $0x300] sm:$0xff]
      %v1735 = vld [vmem:[%s1669 + $0x308] sm:$0xff]
      %v1736 = vld [vmem:[%s1669 + $0x318] sm:$0xff]
      %v1737 = vld [vmem:[%s1669 + $0x320] sm:$0xff]
      %v1738 = vld [vmem:[%s1669 + $0x330] sm:$0xff]
      %v1739 = vld [vmem:[%s1669 + $0x338] sm:$0xff]
      %v1740 = vld [vmem:[%s1669 + $0x348] sm:$0xff]
      %v1741 = vld [vmem:[%s1669 + $0x350] sm:$0xff]
      %v1742 = vld [vmem:[%s1669 + $0x360] sm:$0xff]
      %v1743 = vld [vmem:[%s1669 + $0x368] sm:$0xff]
      %v1744 = vld [vmem:[%s1669 + $0x378] sm:$0xff]
      %v1745 = vld [vmem:[%s1669 + $0x380] sm:$0xff]
      %v1746 = vld [vmem:[%s1669 + $0x390] sm:$0xff]
      %v1747 = vld [vmem:[%s1669 + $0x398] sm:$0xff]
      %v1748 = vld [vmem:[%s1669 + $0x3a8] sm:$0xff]
      %v1749 = vld [vmem:[%s1669 + $0x3b0] sm:$0xff]
      %v1750 = vld [vmem:[%s1669 + $0x3c0] sm:$0xff]
      %v1751 = vld [vmem:[%s1669 + $0x3c8] sm:$0xff]
      %v1752 = vld [vmem:[%s1669 + $0x3d8] sm:$0xff]
      %v1753 = vld [vmem:[%s1669 + $0x3e0] sm:$0xff]
      %v1754 = vld [vmem:[%s1669 + $0x3f0] sm:$0xff]
      %v1755 = vld [vmem:[%s1669 + $0x3f8] sm:$0xff]
      %v1756 = vld [vmem:[%s1669 + $0x408] sm:$0xff]
      %v1757 = vld [vmem:[%s1669 + $0x410] sm:$0xff]
      %v1758 = vld [vmem:[%s1669 + $0x420] sm:$0xff]
      %v1759 = vld [vmem:[%s1669 + $0x428] sm:$0xff]
      %v1760 = vld [vmem:[%s1669 + $0x438] sm:$0xff]
      %v1761 = vld [vmem:[%s1669 + $0x440] sm:$0xff]
      %v1762 = vld [vmem:[%s1669 + $0x450] sm:$0xff]
      %v1763 = vld [vmem:[%s1669 + $0x458] sm:$0xff]
      %v1764 = vld [vmem:[%s1669 + $0x468] sm:$0xff]
      %v1765 = vld [vmem:[%s1669 + $0x470] sm:$0xff]
      %v1766 = vld [vmem:[%s1669 + $0x480] sm:$0xff]
      %v1767 = vld [vmem:[%s1669 + $0x488] sm:$0xff]
      %v1768 = vld [vmem:[%s1669 + $0x498] sm:$0xff]
      %v1769 = vld [vmem:[%s1669 + $0x4a0] sm:$0xff]
      %v1770 = vld [vmem:[%s1669 + $0x4b0] sm:$0xff]
      %v1771 = vld [vmem:[%s1669 + $0x4b8] sm:$0xff]
      %v1772 = vld [vmem:[%s1669 + $0x4c8] sm:$0xff]
      %v1773 = vld [vmem:[%s1669 + $0x4d0] sm:$0xff]
      %v1774 = vld [vmem:[%s1669 + $0x4e0] sm:$0xff]
      %v1775 = vld [vmem:[%s1669 + $0x4e8] sm:$0xff]
      %v1776 = vld [vmem:[%s1669 + $0x4f8] sm:$0xff]
      %v1777 = vld [vmem:[%s1669 + $0x500] sm:$0xff]
      %v1778 = vld [vmem:[%s1669 + $0x510] sm:$0xff]
      %v1779 = vld [vmem:[%s1669 + $0x518] sm:$0xff]
      %v1780 = vld [vmem:[%s1669 + $0x528] sm:$0xff]
      %v1781 = vld [vmem:[%s1669 + $0x530] sm:$0xff]
      %v1782 = vld [vmem:[%s1669 + $0x540] sm:$0xff]
      %v1783 = vld [vmem:[%s1669 + $0x548] sm:$0xff]
      %v1784 = vld [vmem:[%s1669 + $0x558] sm:$0xff]
      %v1785 = vld [vmem:[%s1669 + $0x560] sm:$0xff]
      %v1786 = vld [vmem:[%s1669 + $0x570] sm:$0xff]
      %v1787 = vld [vmem:[%s1669 + $0x578] sm:$0xff]
      %v1788 = vld [vmem:[%s1669 + $0x588] sm:$0xff]
      %v1789 = vld [vmem:[%s1669 + $0x590] sm:$0xff]
      %1910 = vrot.lane.b32.xlu0 %v1670, 8
      %v1911 = vpop.permute.xlu0 %1910
      %1912 = vrot.lane.b32.xlu0 %v1671, 8
      %v1913 = vpop.permute.xlu0 %1912
      %1914 = vrot.lane.b32.xlu0 %v1672, 8
      %v1915 = vpop.permute.xlu0 %1914
      %1916 = vrot.lane.b32.xlu0 %v1673, 8
      %v1917 = vpop.permute.xlu0 %1916
      %1918 = vrot.lane.b32.xlu0 %v1674, 8
      %v1919 = vpop.permute.xlu0 %1918
      %1920 = vrot.lane.b32.xlu0 %v1675, 8
      %v1921 = vpop.permute.xlu0 %1920
      %1922 = vrot.lane.b32.xlu0 %v1676, 8
      %v1923 = vpop.permute.xlu0 %1922
      %1924 = vrot.lane.b32.xlu0 %v1677, 8
      %v1925 = vpop.permute.xlu0 %1924
      %1926 = vrot.lane.b32.xlu0 %v1678, 8
      %v1927 = vpop.permute.xlu0 %1926
      %1928 = vrot.lane.b32.xlu0 %v1679, 8
      %v1929 = vpop.permute.xlu0 %1928
      %1930 = vrot.lane.b32.xlu0 %v1680, 8
      %v1931 = vpop.permute.xlu0 %1930
      %1932 = vrot.lane.b32.xlu0 %v1681, 8
      %v1933 = vpop.permute.xlu0 %1932
      %1934 = vrot.lane.b32.xlu0 %v1682, 8
      %v1935 = vpop.permute.xlu0 %1934
      %1936 = vrot.lane.b32.xlu0 %v1683, 8
      %v1937 = vpop.permute.xlu0 %1936
      %1938 = vrot.lane.b32.xlu0 %v1684, 8
      %v1939 = vpop.permute.xlu0 %1938
      %1940 = vrot.lane.b32.xlu0 %v1685, 8
      %v1941 = vpop.permute.xlu0 %1940
      %1942 = vrot.lane.b32.xlu0 %v1686, 8
      %v1943 = vpop.permute.xlu0 %1942
      %1944 = vrot.lane.b32.xlu0 %v1687, 8
      %v1945 = vpop.permute.xlu0 %1944
      %1946 = vrot.lane.b32.xlu0 %v1688, 8
      %v1947 = vpop.permute.xlu0 %1946
      %1948 = vrot.lane.b32.xlu0 %v1689, 8
      %v1949 = vpop.permute.xlu0 %1948
      %1950 = vrot.lane.b32.xlu0 %v1690, 8
      %v1951 = vpop.permute.xlu0 %1950
      %1952 = vrot.lane.b32.xlu0 %v1691, 8
      %v1953 = vpop.permute.xlu0 %1952
      %1954 = vrot.lane.b32.xlu0 %v1692, 8
      %v1955 = vpop.permute.xlu0 %1954
      %1956 = vrot.lane.b32.xlu0 %v1693, 8
      %v1957 = vpop.permute.xlu0 %1956
      %1958 = vrot.lane.b32.xlu0 %v1694, 8
      %v1959 = vpop.permute.xlu0 %1958
      %1960 = vrot.lane.b32.xlu0 %v1695, 8
      %v1961 = vpop.permute.xlu0 %1960
      %1962 = vrot.lane.b32.xlu0 %v1696, 8
      %v1963 = vpop.permute.xlu0 %1962
      %1964 = vrot.lane.b32.xlu0 %v1697, 8
      %v1965 = vpop.permute.xlu0 %1964
      %1966 = vrot.lane.b32.xlu0 %v1698, 8
      %v1967 = vpop.permute.xlu0 %1966
      %1968 = vrot.lane.b32.xlu0 %v1699, 8
      %v1969 = vpop.permute.xlu0 %1968
      %1970 = vrot.lane.b32.xlu0 %v1700, 8
      %v1971 = vpop.permute.xlu0 %1970
      %1972 = vrot.lane.b32.xlu0 %v1701, 8
      %v1973 = vpop.permute.xlu0 %1972
      %1974 = vrot.lane.b32.xlu0 %v1702, 8
      %v1975 = vpop.permute.xlu0 %1974
      %1976 = vrot.lane.b32.xlu0 %v1703, 8
      %v1977 = vpop.permute.xlu0 %1976
      %1978 = vrot.lane.b32.xlu0 %v1704, 8
      %v1979 = vpop.permute.xlu0 %1978
      %1980 = vrot.lane.b32.xlu0 %v1705, 8
      %v1981 = vpop.permute.xlu0 %1980
      %1982 = vrot.lane.b32.xlu0 %v1706, 8
      %v1983 = vpop.permute.xlu0 %1982
      %1984 = vrot.lane.b32.xlu0 %v1707, 8
      %v1985 = vpop.permute.xlu0 %1984
      %1986 = vrot.lane.b32.xlu0 %v1708, 8
      %v1987 = vpop.permute.xlu0 %1986
      %1988 = vrot.lane.b32.xlu0 %v1709, 8
      %v1989 = vpop.permute.xlu0 %1988
      %1990 = vrot.lane.b32.xlu0 %v1710, 8
      %v1991 = vpop.permute.xlu0 %1990
      %1992 = vrot.lane.b32.xlu0 %v1711, 8
      %v1993 = vpop.permute.xlu0 %1992
      %1994 = vrot.lane.b32.xlu0 %v1712, 8
      %v1995 = vpop.permute.xlu0 %1994
      %1996 = vrot.lane.b32.xlu0 %v1713, 8
      %v1997 = vpop.permute.xlu0 %1996
      %1998 = vrot.lane.b32.xlu0 %v1714, 8
      %v1999 = vpop.permute.xlu0 %1998
      %2000 = vrot.lane.b32.xlu0 %v1715, 8
      %v2001 = vpop.permute.xlu0 %2000
      %2002 = vrot.lane.b32.xlu0 %v1716, 8
      %v2003 = vpop.permute.xlu0 %2002
      %2004 = vrot.lane.b32.xlu0 %v1717, 8
      %v2005 = vpop.permute.xlu0 %2004
      %2006 = vrot.lane.b32.xlu0 %v1718, 8
      %v2007 = vpop.permute.xlu0 %2006
      %2008 = vrot.lane.b32.xlu0 %v1719, 8
      %v2009 = vpop.permute.xlu0 %2008
      %2010 = vrot.lane.b32.xlu0 %v1720, 8
      %v2011 = vpop.permute.xlu0 %2010
      %2012 = vrot.lane.b32.xlu0 %v1721, 8
      %v2013 = vpop.permute.xlu0 %2012
      %2014 = vrot.lane.b32.xlu0 %v1722, 8
      %v2015 = vpop.permute.xlu0 %2014
      %2016 = vrot.lane.b32.xlu0 %v1723, 8
      %v2017 = vpop.permute.xlu0 %2016
      %2018 = vrot.lane.b32.xlu0 %v1724, 8
      %v2019 = vpop.permute.xlu0 %2018
      %2020 = vrot.lane.b32.xlu0 %v1725, 8
      %v2021 = vpop.permute.xlu0 %2020
      %2022 = vrot.lane.b32.xlu0 %v1726, 8
      %v2023 = vpop.permute.xlu0 %2022
      %2024 = vrot.lane.b32.xlu0 %v1727, 8
      %v2025 = vpop.permute.xlu0 %2024
      %2026 = vrot.lane.b32.xlu0 %v1728, 8
      %v2027 = vpop.permute.xlu0 %2026
      %2028 = vrot.lane.b32.xlu0 %v1729, 8
      %v2029 = vpop.permute.xlu0 %2028
      %2030 = vrot.lane.b32.xlu0 %v1730, 8
      %v2031 = vpop.permute.xlu0 %2030
      %2032 = vrot.lane.b32.xlu0 %v1731, 8
      %v2033 = vpop.permute.xlu0 %2032
      %2034 = vrot.lane.b32.xlu0 %v1732, 8
      %v2035 = vpop.permute.xlu0 %2034
      %2036 = vrot.lane.b32.xlu0 %v1733, 8
      %v2037 = vpop.permute.xlu0 %2036
      %2038 = vrot.lane.b32.xlu0 %v1734, 8
      %v2039 = vpop.permute.xlu0 %2038
      %2040 = vrot.lane.b32.xlu0 %v1735, 8
      %v2041 = vpop.permute.xlu0 %2040
      %2042 = vrot.lane.b32.xlu0 %v1736, 8
      %v2043 = vpop.permute.xlu0 %2042
      %2044 = vrot.lane.b32.xlu0 %v1737, 8
      %v2045 = vpop.permute.xlu0 %2044
      %2046 = vrot.lane.b32.xlu0 %v1738, 8
      %v2047 = vpop.permute.xlu0 %2046
      %2048 = vrot.lane.b32.xlu0 %v1739, 8
      %v2049 = vpop.permute.xlu0 %2048
      %2050 = vrot.lane.b32.xlu0 %v1740, 8
      %v2051 = vpop.permute.xlu0 %2050
      %2052 = vrot.lane.b32.xlu0 %v1741, 8
      %v2053 = vpop.permute.xlu0 %2052
      %2054 = vrot.lane.b32.xlu0 %v1742, 8
      %v2055 = vpop.permute.xlu0 %2054
      %2056 = vrot.lane.b32.xlu0 %v1743, 8
      %v2057 = vpop.permute.xlu0 %2056
      %2058 = vrot.lane.b32.xlu0 %v1744, 8
      %v2059 = vpop.permute.xlu0 %2058
      %2060 = vrot.lane.b32.xlu0 %v1745, 8
      %v2061 = vpop.permute.xlu0 %2060
      %2062 = vrot.lane.b32.xlu0 %v1746, 8
      %v2063 = vpop.permute.xlu0 %2062
      %2064 = vrot.lane.b32.xlu0 %v1747, 8
      %v2065 = vpop.permute.xlu0 %2064
      %2066 = vrot.lane.b32.xlu0 %v1748, 8
      %v2067 = vpop.permute.xlu0 %2066
      %2068 = vrot.lane.b32.xlu0 %v1749, 8
      %v2069 = vpop.permute.xlu0 %2068
      %2070 = vrot.lane.b32.xlu0 %v1750, 8
      %v2071 = vpop.permute.xlu0 %2070
      %2072 = vrot.lane.b32.xlu0 %v1751, 8
      %v2073 = vpop.permute.xlu0 %2072
      %2074 = vrot.lane.b32.xlu0 %v1752, 8
      %v2075 = vpop.permute.xlu0 %2074
      %2076 = vrot.lane.b32.xlu0 %v1753, 8
      %v2077 = vpop.permute.xlu0 %2076
      %2078 = vrot.lane.b32.xlu0 %v1754, 8
      %v2079 = vpop.permute.xlu0 %2078
      %2080 = vrot.lane.b32.xlu0 %v1755, 8
      %v2081 = vpop.permute.xlu0 %2080
      %2082 = vrot.lane.b32.xlu0 %v1756, 8
      %v2083 = vpop.permute.xlu0 %2082
      %2084 = vrot.lane.b32.xlu0 %v1757, 8
      %v2085 = vpop.permute.xlu0 %2084
      %2086 = vrot.lane.b32.xlu0 %v1758, 8
      %v2087 = vpop.permute.xlu0 %2086
      %2088 = vrot.lane.b32.xlu0 %v1759, 8
      %v2089 = vpop.permute.xlu0 %2088
      %2090 = vrot.lane.b32.xlu0 %v1760, 8
      %v2091 = vpop.permute.xlu0 %2090
      %2092 = vrot.lane.b32.xlu0 %v1761, 8
      %v2093 = vpop.permute.xlu0 %2092
      %2094 = vrot.lane.b32.xlu0 %v1762, 8
      %v2095 = vpop.permute.xlu0 %2094
      %2096 = vrot.lane.b32.xlu0 %v1763, 8
      %v2097 = vpop.permute.xlu0 %2096
      %2098 = vrot.lane.b32.xlu0 %v1764, 8
      %v2099 = vpop.permute.xlu0 %2098
      %2100 = vrot.lane.b32.xlu0 %v1765, 8
      %v2101 = vpop.permute.xlu0 %2100
      %2102 = vrot.lane.b32.xlu0 %v1766, 8
      %v2103 = vpop.permute.xlu0 %2102
      %2104 = vrot.lane.b32.xlu0 %v1767, 8
      %v2105 = vpop.permute.xlu0 %2104
      %2106 = vrot.lane.b32.xlu0 %v1768, 8
      %v2107 = vpop.permute.xlu0 %2106
      %2108 = vrot.lane.b32.xlu0 %v1769, 8
      %v2109 = vpop.permute.xlu0 %2108
      %2110 = vrot.lane.b32.xlu0 %v1770, 8
      %v2111 = vpop.permute.xlu0 %2110
      %2112 = vrot.lane.b32.xlu0 %v1771, 8
      %v2113 = vpop.permute.xlu0 %2112
      %2114 = vrot.lane.b32.xlu0 %v1772, 8
      %v2115 = vpop.permute.xlu0 %2114
      %2116 = vrot.lane.b32.xlu0 %v1773, 8
      %v2117 = vpop.permute.xlu0 %2116
      %2118 = vrot.lane.b32.xlu0 %v1774, 8
      %v2119 = vpop.permute.xlu0 %2118
      %2120 = vrot.lane.b32.xlu0 %v1775, 8
      %v2121 = vpop.permute.xlu0 %2120
      %2122 = vrot.lane.b32.xlu0 %v1776, 8
      %v2123 = vpop.permute.xlu0 %2122
      %2124 = vrot.lane.b32.xlu0 %v1777, 8
      %v2125 = vpop.permute.xlu0 %2124
      %2126 = vrot.lane.b32.xlu0 %v1778, 8
      %v2127 = vpop.permute.xlu0 %2126
      %2128 = vrot.lane.b32.xlu0 %v1779, 8
      %v2129 = vpop.permute.xlu0 %2128
      %2130 = vrot.lane.b32.xlu0 %v1780, 8
      %v2131 = vpop.permute.xlu0 %2130
      %2132 = vrot.lane.b32.xlu0 %v1781, 8
      %v2133 = vpop.permute.xlu0 %2132
      %2134 = vrot.lane.b32.xlu0 %v1782, 8
      %v2135 = vpop.permute.xlu0 %2134
      %2136 = vrot.lane.b32.xlu0 %v1783, 8
      %v2137 = vpop.permute.xlu0 %2136
      %2138 = vrot.lane.b32.xlu0 %v1784, 8
      %v2139 = vpop.permute.xlu0 %2138
      %2140 = vrot.lane.b32.xlu0 %v1785, 8
      %v2141 = vpop.permute.xlu0 %2140
      %2142 = vrot.lane.b32.xlu0 %v1786, 8
      %v2143 = vpop.permute.xlu0 %2142
      %2144 = vrot.lane.b32.xlu0 %v1787, 8
      %v2145 = vpop.permute.xlu0 %2144
      %2146 = vrot.lane.b32.xlu0 %v1788, 8
      %v2147 = vpop.permute.xlu0 %2146
      %2148 = vrot.lane.b32.xlu0 %v1789, 8
      %v2149 = vpop.permute.xlu0 %2148
      %vm2270 = vcmask 97344
      %2271 = vst.msk [vmem:[#allocation5] sm:$0xff] %vm2270, %v1911
      %2272 = vst.msk [vmem:[#allocation5 + $0x8] sm:$0xff] %vm2270, %v1913
      %2273 = vst.msk [vmem:[#allocation5 + $0x10] sm:$0xff] %vm2270, %v1915
      %2274 = vst.msk [vmem:[#allocation5 + $0x18] sm:$0xff] %vm2270, %v1917
      %2275 = vst.msk [vmem:[#allocation5 + $0x20] sm:$0xff] %vm2270, %v1919
      %2276 = vst.msk [vmem:[#allocation5 + $0x28] sm:$0xff] %vm2270, %v1921
      %2277 = vst.msk [vmem:[#allocation5 + $0x30] sm:$0xff] %vm2270, %v1923
      %2278 = vst.msk [vmem:[#allocation5 + $0x38] sm:$0xff] %vm2270, %v1925
      %2279 = vst.msk [vmem:[#allocation5 + $0x40] sm:$0xff] %vm2270, %v1927
      %2280 = vst.msk [vmem:[#allocation5 + $0x48] sm:$0xff] %vm2270, %v1929
      %2281 = vst.msk [vmem:[#allocation5 + $0x50] sm:$0xff] %vm2270, %v1931
      %2282 = vst.msk [vmem:[#allocation5 + $0x58] sm:$0xff] %vm2270, %v1933
      %2283 = vst.msk [vmem:[#allocation5 + $0x60] sm:$0xff] %vm2270, %v1935
      %2284 = vst.msk [vmem:[#allocation5 + $0x68] sm:$0xff] %vm2270, %v1937
      %2285 = vst.msk [vmem:[#allocation5 + $0x70] sm:$0xff] %vm2270, %v1939
      %2286 = vst.msk [vmem:[#allocation5 + $0x78] sm:$0xff] %vm2270, %v1941
      %2287 = vst.msk [vmem:[#allocation5 + $0x80] sm:$0xff] %vm2270, %v1943
      %2288 = vst.msk [vmem:[#allocation5 + $0x88] sm:$0xff] %vm2270, %v1945
      %2289 = vst.msk [vmem:[#allocation5 + $0x90] sm:$0xff] %vm2270, %v1947
      %2290 = vst.msk [vmem:[#allocation5 + $0x98] sm:$0xff] %vm2270, %v1949
      %2291 = vst.msk [vmem:[#allocation5 + $0xa0] sm:$0xff] %vm2270, %v1951
      %2292 = vst.msk [vmem:[#allocation5 + $0xa8] sm:$0xff] %vm2270, %v1953
      %2293 = vst.msk [vmem:[#allocation5 + $0xb0] sm:$0xff] %vm2270, %v1955
      %2294 = vst.msk [vmem:[#allocation5 + $0xb8] sm:$0xff] %vm2270, %v1957
      %2295 = vst.msk [vmem:[#allocation5 + $0xc0] sm:$0xff] %vm2270, %v1959
      %2296 = vst.msk [vmem:[#allocation5 + $0xc8] sm:$0xff] %vm2270, %v1961
      %2297 = vst.msk [vmem:[#allocation5 + $0xd0] sm:$0xff] %vm2270, %v1963
      %2298 = vst.msk [vmem:[#allocation5 + $0xd8] sm:$0xff] %vm2270, %v1965
      %2299 = vst.msk [vmem:[#allocation5 + $0xe0] sm:$0xff] %vm2270, %v1967
      %2300 = vst.msk [vmem:[#allocation5 + $0xe8] sm:$0xff] %vm2270, %v1969
      %2301 = vst.msk [vmem:[#allocation5 + $0xf0] sm:$0xff] %vm2270, %v1971
      %2302 = vst.msk [vmem:[#allocation5 + $0xf8] sm:$0xff] %vm2270, %v1973
      %2303 = vst.msk [vmem:[#allocation5 + $0x100] sm:$0xff] %vm2270, %v1975
      %2304 = vst.msk [vmem:[#allocation5 + $0x108] sm:$0xff] %vm2270, %v1977
      %2305 = vst.msk [vmem:[#allocation5 + $0x110] sm:$0xff] %vm2270, %v1979
      %2306 = vst.msk [vmem:[#allocation5 + $0x118] sm:$0xff] %vm2270, %v1981
      %2307 = vst.msk [vmem:[#allocation5 + $0x120] sm:$0xff] %vm2270, %v1983
      %2308 = vst.msk [vmem:[#allocation5 + $0x128] sm:$0xff] %vm2270, %v1985
      %2309 = vst.msk [vmem:[#allocation5 + $0x130] sm:$0xff] %vm2270, %v1987
      %2310 = vst.msk [vmem:[#allocation5 + $0x138] sm:$0xff] %vm2270, %v1989
      %2311 = vst.msk [vmem:[#allocation5 + $0x140] sm:$0xff] %vm2270, %v1991
      %2312 = vst.msk [vmem:[#allocation5 + $0x148] sm:$0xff] %vm2270, %v1993
      %2313 = vst.msk [vmem:[#allocation5 + $0x150] sm:$0xff] %vm2270, %v1995
      %2314 = vst.msk [vmem:[#allocation5 + $0x158] sm:$0xff] %vm2270, %v1997
      %2315 = vst.msk [vmem:[#allocation5 + $0x160] sm:$0xff] %vm2270, %v1999
      %2316 = vst.msk [vmem:[#allocation5 + $0x168] sm:$0xff] %vm2270, %v2001
      %2317 = vst.msk [vmem:[#allocation5 + $0x170] sm:$0xff] %vm2270, %v2003
      %2318 = vst.msk [vmem:[#allocation5 + $0x178] sm:$0xff] %vm2270, %v2005
      %2319 = vst.msk [vmem:[#allocation5 + $0x180] sm:$0xff] %vm2270, %v2007
      %2320 = vst.msk [vmem:[#allocation5 + $0x188] sm:$0xff] %vm2270, %v2009
      %2321 = vst.msk [vmem:[#allocation5 + $0x190] sm:$0xff] %vm2270, %v2011
      %2322 = vst.msk [vmem:[#allocation5 + $0x198] sm:$0xff] %vm2270, %v2013
      %2323 = vst.msk [vmem:[#allocation5 + $0x1a0] sm:$0xff] %vm2270, %v2015
      %2324 = vst.msk [vmem:[#allocation5 + $0x1a8] sm:$0xff] %vm2270, %v2017
      %2325 = vst.msk [vmem:[#allocation5 + $0x1b0] sm:$0xff] %vm2270, %v2019
      %2326 = vst.msk [vmem:[#allocation5 + $0x1b8] sm:$0xff] %vm2270, %v2021
      %2327 = vst.msk [vmem:[#allocation5 + $0x1c0] sm:$0xff] %vm2270, %v2023
      %2328 = vst.msk [vmem:[#allocation5 + $0x1c8] sm:$0xff] %vm2270, %v2025
      %2329 = vst.msk [vmem:[#allocation5 + $0x1d0] sm:$0xff] %vm2270, %v2027
      %2330 = vst.msk [vmem:[#allocation5 + $0x1d8] sm:$0xff] %vm2270, %v2029
      %2331 = vst.msk [vmem:[#allocation5 + $0x1e0] sm:$0xff] %vm2270, %v2031
      %2332 = vst.msk [vmem:[#allocation5 + $0x1e8] sm:$0xff] %vm2270, %v2033
      %2333 = vst.msk [vmem:[#allocation5 + $0x1f0] sm:$0xff] %vm2270, %v2035
      %2334 = vst.msk [vmem:[#allocation5 + $0x1f8] sm:$0xff] %vm2270, %v2037
      %2335 = vst.msk [vmem:[#allocation5 + $0x200] sm:$0xff] %vm2270, %v2039
      %2336 = vst.msk [vmem:[#allocation5 + $0x208] sm:$0xff] %vm2270, %v2041
      %2337 = vst.msk [vmem:[#allocation5 + $0x210] sm:$0xff] %vm2270, %v2043
      %2338 = vst.msk [vmem:[#allocation5 + $0x218] sm:$0xff] %vm2270, %v2045
      %2339 = vst.msk [vmem:[#allocation5 + $0x220] sm:$0xff] %vm2270, %v2047
      %2340 = vst.msk [vmem:[#allocation5 + $0x228] sm:$0xff] %vm2270, %v2049
      %2341 = vst.msk [vmem:[#allocation5 + $0x230] sm:$0xff] %vm2270, %v2051
      %2342 = vst.msk [vmem:[#allocation5 + $0x238] sm:$0xff] %vm2270, %v2053
      %2343 = vst.msk [vmem:[#allocation5 + $0x240] sm:$0xff] %vm2270, %v2055
      %2344 = vst.msk [vmem:[#allocation5 + $0x248] sm:$0xff] %vm2270, %v2057
      %2345 = vst.msk [vmem:[#allocation5 + $0x250] sm:$0xff] %vm2270, %v2059
      %2346 = vst.msk [vmem:[#allocation5 + $0x258] sm:$0xff] %vm2270, %v2061
      %2347 = vst.msk [vmem:[#allocation5 + $0x260] sm:$0xff] %vm2270, %v2063
      %2348 = vst.msk [vmem:[#allocation5 + $0x268] sm:$0xff] %vm2270, %v2065
      %2349 = vst.msk [vmem:[#allocation5 + $0x270] sm:$0xff] %vm2270, %v2067
      %2350 = vst.msk [vmem:[#allocation5 + $0x278] sm:$0xff] %vm2270, %v2069
      %2351 = vst.msk [vmem:[#allocation5 + $0x280] sm:$0xff] %vm2270, %v2071
      %2352 = vst.msk [vmem:[#allocation5 + $0x288] sm:$0xff] %vm2270, %v2073
      %2353 = vst.msk [vmem:[#allocation5 + $0x290] sm:$0xff] %vm2270, %v2075
      %2354 = vst.msk [vmem:[#allocation5 + $0x298] sm:$0xff] %vm2270, %v2077
      %2355 = vst.msk [vmem:[#allocation5 + $0x2a0] sm:$0xff] %vm2270, %v2079
      %2356 = vst.msk [vmem:[#allocation5 + $0x2a8] sm:$0xff] %vm2270, %v2081
      %2357 = vst.msk [vmem:[#allocation5 + $0x2b0] sm:$0xff] %vm2270, %v2083
      %2358 = vst.msk [vmem:[#allocation5 + $0x2b8] sm:$0xff] %vm2270, %v2085
      %2359 = vst.msk [vmem:[#allocation5 + $0x2c0] sm:$0xff] %vm2270, %v2087
      %2360 = vst.msk [vmem:[#allocation5 + $0x2c8] sm:$0xff] %vm2270, %v2089
      %2361 = vst.msk [vmem:[#allocation5 + $0x2d0] sm:$0xff] %vm2270, %v2091
      %2362 = vst.msk [vmem:[#allocation5 + $0x2d8] sm:$0xff] %vm2270, %v2093
      %2363 = vst.msk [vmem:[#allocation5 + $0x2e0] sm:$0xff] %vm2270, %v2095
      %2364 = vst.msk [vmem:[#allocation5 + $0x2e8] sm:$0xff] %vm2270, %v2097
      %2365 = vst.msk [vmem:[#allocation5 + $0x2f0] sm:$0xff] %vm2270, %v2099
      %2366 = vst.msk [vmem:[#allocation5 + $0x2f8] sm:$0xff] %vm2270, %v2101
      %2367 = vst.msk [vmem:[#allocation5 + $0x300] sm:$0xff] %vm2270, %v2103
      %2368 = vst.msk [vmem:[#allocation5 + $0x308] sm:$0xff] %vm2270, %v2105
      %2369 = vst.msk [vmem:[#allocation5 + $0x310] sm:$0xff] %vm2270, %v2107
      %2370 = vst.msk [vmem:[#allocation5 + $0x318] sm:$0xff] %vm2270, %v2109
      %2371 = vst.msk [vmem:[#allocation5 + $0x320] sm:$0xff] %vm2270, %v2111
      %2372 = vst.msk [vmem:[#allocation5 + $0x328] sm:$0xff] %vm2270, %v2113
      %2373 = vst.msk [vmem:[#allocation5 + $0x330] sm:$0xff] %vm2270, %v2115
      %2374 = vst.msk [vmem:[#allocation5 + $0x338] sm:$0xff] %vm2270, %v2117
      %2375 = vst.msk [vmem:[#allocation5 + $0x340] sm:$0xff] %vm2270, %v2119
      %2376 = vst.msk [vmem:[#allocation5 + $0x348] sm:$0xff] %vm2270, %v2121
      %2377 = vst.msk [vmem:[#allocation5 + $0x350] sm:$0xff] %vm2270, %v2123
      %2378 = vst.msk [vmem:[#allocation5 + $0x358] sm:$0xff] %vm2270, %v2125
      %2379 = vst.msk [vmem:[#allocation5 + $0x360] sm:$0xff] %vm2270, %v2127
      %2380 = vst.msk [vmem:[#allocation5 + $0x368] sm:$0xff] %vm2270, %v2129
      %2381 = vst.msk [vmem:[#allocation5 + $0x370] sm:$0xff] %vm2270, %v2131
      %2382 = vst.msk [vmem:[#allocation5 + $0x378] sm:$0xff] %vm2270, %v2133
      %2383 = vst.msk [vmem:[#allocation5 + $0x380] sm:$0xff] %vm2270, %v2135
      %2384 = vst.msk [vmem:[#allocation5 + $0x388] sm:$0xff] %vm2270, %v2137
      %2385 = vst.msk [vmem:[#allocation5 + $0x390] sm:$0xff] %vm2270, %v2139
      %2386 = vst.msk [vmem:[#allocation5 + $0x398] sm:$0xff] %vm2270, %v2141
      %2387 = vst.msk [vmem:[#allocation5 + $0x3a0] sm:$0xff] %vm2270, %v2143
      %2388 = vst.msk [vmem:[#allocation5 + $0x3a8] sm:$0xff] %vm2270, %v2145
      %2389 = vst.msk [vmem:[#allocation5 + $0x3b0] sm:$0xff] %vm2270, %v2147
      %2390 = vst.msk [vmem:[#allocation5 + $0x3b8] sm:$0xff] %vm2270, %v2149
      %v2391 = vld [vmem:[#allocation2 + $0x1] sm:$0xff]
      %v2392 = vld [vmem:[#allocation2 + $0x9] sm:$0xff]
      %v2393 = vld [vmem:[#allocation2 + $0x19] sm:$0xff]
      %v2394 = vld [vmem:[#allocation2 + $0x21] sm:$0xff]
      %v2395 = vld [vmem:[#allocation2 + $0x31] sm:$0xff]
      %v2396 = vld [vmem:[#allocation2 + $0x39] sm:$0xff]
      %v2397 = vld [vmem:[#allocation2 + $0x49] sm:$0xff]
      %v2398 = vld [vmem:[#allocation2 + $0x51] sm:$0xff]
      %v2399 = vld [vmem:[#allocation2 + $0x61] sm:$0xff]
      %v2400 = vld [vmem:[#allocation2 + $0x69] sm:$0xff]
      %v2401 = vld [vmem:[#allocation2 + $0x79] sm:$0xff]
      %v2402 = vld [vmem:[#allocation2 + $0x81] sm:$0xff]
      %v2403 = vld [vmem:[#allocation2 + $0x91] sm:$0xff]
      %v2404 = vld [vmem:[#allocation2 + $0x99] sm:$0xff]
      %v2405 = vld [vmem:[#allocation2 + $0xa9] sm:$0xff]
      %v2406 = vld [vmem:[#allocation2 + $0xb1] sm:$0xff]
      %v2407 = vld [vmem:[#allocation2 + $0xc1] sm:$0xff]
      %v2408 = vld [vmem:[#allocation2 + $0xc9] sm:$0xff]
      %v2409 = vld [vmem:[#allocation2 + $0xd9] sm:$0xff]
      %v2410 = vld [vmem:[#allocation2 + $0xe1] sm:$0xff]
      %v2411 = vld [vmem:[#allocation2 + $0xf1] sm:$0xff]
      %v2412 = vld [vmem:[#allocation2 + $0xf9] sm:$0xff]
      %v2413 = vld [vmem:[#allocation2 + $0x109] sm:$0xff]
      %v2414 = vld [vmem:[#allocation2 + $0x111] sm:$0xff]
      %v2415 = vld [vmem:[#allocation2 + $0x121] sm:$0xff]
      %v2416 = vld [vmem:[#allocation2 + $0x129] sm:$0xff]
      %v2417 = vld [vmem:[#allocation2 + $0x139] sm:$0xff]
      %v2418 = vld [vmem:[#allocation2 + $0x141] sm:$0xff]
      %v2419 = vld [vmem:[#allocation2 + $0x151] sm:$0xff]
      %v2420 = vld [vmem:[#allocation2 + $0x159] sm:$0xff]
      %v2421 = vld [vmem:[#allocation2 + $0x169] sm:$0xff]
      %v2422 = vld [vmem:[#allocation2 + $0x171] sm:$0xff]
      %v2423 = vld [vmem:[#allocation2 + $0x181] sm:$0xff]
      %v2424 = vld [vmem:[#allocation2 + $0x189] sm:$0xff]
      %v2425 = vld [vmem:[#allocation2 + $0x199] sm:$0xff]
      %v2426 = vld [vmem:[#allocation2 + $0x1a1] sm:$0xff]
      %v2427 = vld [vmem:[#allocation2 + $0x1b1] sm:$0xff]
      %v2428 = vld [vmem:[#allocation2 + $0x1b9] sm:$0xff]
      %v2429 = vld [vmem:[#allocation2 + $0x1c9] sm:$0xff]
      %v2430 = vld [vmem:[#allocation2 + $0x1d1] sm:$0xff]
      %v2431 = vld [vmem:[#allocation2 + $0x1e1] sm:$0xff]
      %v2432 = vld [vmem:[#allocation2 + $0x1e9] sm:$0xff]
      %v2433 = vld [vmem:[#allocation2 + $0x1f9] sm:$0xff]
      %v2434 = vld [vmem:[#allocation2 + $0x201] sm:$0xff]
      %v2435 = vld [vmem:[#allocation2 + $0x211] sm:$0xff]
      %v2436 = vld [vmem:[#allocation2 + $0x219] sm:$0xff]
      %v2437 = vld [vmem:[#allocation2 + $0x229] sm:$0xff]
      %v2438 = vld [vmem:[#allocation2 + $0x231] sm:$0xff]
      %v2439 = vld [vmem:[#allocation2 + $0x241] sm:$0xff]
      %v2440 = vld [vmem:[#allocation2 + $0x249] sm:$0xff]
      %v2441 = vld [vmem:[#allocation2 + $0x259] sm:$0xff]
      %v2442 = vld [vmem:[#allocation2 + $0x261] sm:$0xff]
      %v2443 = vld [vmem:[#allocation2 + $0x271] sm:$0xff]
      %v2444 = vld [vmem:[#allocation2 + $0x279] sm:$0xff]
      %v2445 = vld [vmem:[#allocation2 + $0x289] sm:$0xff]
      %v2446 = vld [vmem:[#allocation2 + $0x291] sm:$0xff]
      %v2447 = vld [vmem:[#allocation2 + $0x2a1] sm:$0xff]
      %v2448 = vld [vmem:[#allocation2 + $0x2a9] sm:$0xff]
      %v2449 = vld [vmem:[#allocation2 + $0x2b9] sm:$0xff]
      %v2450 = vld [vmem:[#allocation2 + $0x2c1] sm:$0xff]
      %v2451 = vld [vmem:[#allocation2 + $0x2d1] sm:$0xff]
      %v2452 = vld [vmem:[#allocation2 + $0x2d9] sm:$0xff]
      %v2453 = vld [vmem:[#allocation2 + $0x2e9] sm:$0xff]
      %v2454 = vld [vmem:[#allocation2 + $0x2f1] sm:$0xff]
      %v2455 = vld [vmem:[#allocation2 + $0x301] sm:$0xff]
      %v2456 = vld [vmem:[#allocation2 + $0x309] sm:$0xff]
      %v2457 = vld [vmem:[#allocation2 + $0x319] sm:$0xff]
      %v2458 = vld [vmem:[#allocation2 + $0x321] sm:$0xff]
      %v2459 = vld [vmem:[#allocation2 + $0x331] sm:$0xff]
      %v2460 = vld [vmem:[#allocation2 + $0x339] sm:$0xff]
      %v2461 = vld [vmem:[#allocation2 + $0x349] sm:$0xff]
      %v2462 = vld [vmem:[#allocation2 + $0x351] sm:$0xff]
      %v2463 = vld [vmem:[#allocation2 + $0x361] sm:$0xff]
      %v2464 = vld [vmem:[#allocation2 + $0x369] sm:$0xff]
      %v2465 = vld [vmem:[#allocation2 + $0x379] sm:$0xff]
      %v2466 = vld [vmem:[#allocation2 + $0x381] sm:$0xff]
      %v2467 = vld [vmem:[#allocation2 + $0x391] sm:$0xff]
      %v2468 = vld [vmem:[#allocation2 + $0x399] sm:$0xff]
      %v2469 = vld [vmem:[#allocation2 + $0x3a9] sm:$0xff]
      %v2470 = vld [vmem:[#allocation2 + $0x3b1] sm:$0xff]
      %v2471 = vld [vmem:[#allocation2 + $0x3c1] sm:$0xff]
      %v2472 = vld [vmem:[#allocation2 + $0x3c9] sm:$0xff]
      %v2473 = vld [vmem:[#allocation2 + $0x3d9] sm:$0xff]
      %v2474 = vld [vmem:[#allocation2 + $0x3e1] sm:$0xff]
      %v2475 = vld [vmem:[#allocation2 + $0x3f1] sm:$0xff]
      %v2476 = vld [vmem:[#allocation2 + $0x3f9] sm:$0xff]
      %v2477 = vld [vmem:[#allocation2 + $0x409] sm:$0xff]
      %v2478 = vld [vmem:[#allocation2 + $0x411] sm:$0xff]
      %v2479 = vld [vmem:[#allocation2 + $0x421] sm:$0xff]
      %v2480 = vld [vmem:[#allocation2 + $0x429] sm:$0xff]
      %v2481 = vld [vmem:[#allocation2 + $0x439] sm:$0xff]
      %v2482 = vld [vmem:[#allocation2 + $0x441] sm:$0xff]
      %v2483 = vld [vmem:[#allocation2 + $0x451] sm:$0xff]
      %v2484 = vld [vmem:[#allocation2 + $0x459] sm:$0xff]
      %v2485 = vld [vmem:[#allocation2 + $0x469] sm:$0xff]
      %v2486 = vld [vmem:[#allocation2 + $0x471] sm:$0xff]
      %v2487 = vld [vmem:[#allocation2 + $0x481] sm:$0xff]
      %v2488 = vld [vmem:[#allocation2 + $0x489] sm:$0xff]
      %v2489 = vld [vmem:[#allocation2 + $0x499] sm:$0xff]
      %v2490 = vld [vmem:[#allocation2 + $0x4a1] sm:$0xff]
      %v2491 = vld [vmem:[#allocation2 + $0x4b1] sm:$0xff]
      %v2492 = vld [vmem:[#allocation2 + $0x4b9] sm:$0xff]
      %v2493 = vld [vmem:[#allocation2 + $0x4c9] sm:$0xff]
      %v2494 = vld [vmem:[#allocation2 + $0x4d1] sm:$0xff]
      %v2495 = vld [vmem:[#allocation2 + $0x4e1] sm:$0xff]
      %v2496 = vld [vmem:[#allocation2 + $0x4e9] sm:$0xff]
      %v2497 = vld [vmem:[#allocation2 + $0x4f9] sm:$0xff]
      %v2498 = vld [vmem:[#allocation2 + $0x501] sm:$0xff]
      %v2499 = vld [vmem:[#allocation2 + $0x511] sm:$0xff]
      %v2500 = vld [vmem:[#allocation2 + $0x519] sm:$0xff]
      %v2501 = vld [vmem:[#allocation2 + $0x529] sm:$0xff]
      %v2502 = vld [vmem:[#allocation2 + $0x531] sm:$0xff]
      %v2503 = vld [vmem:[#allocation2 + $0x541] sm:$0xff]
      %v2504 = vld [vmem:[#allocation2 + $0x549] sm:$0xff]
      %v2505 = vld [vmem:[#allocation2 + $0x559] sm:$0xff]
      %v2506 = vld [vmem:[#allocation2 + $0x561] sm:$0xff]
      %v2507 = vld [vmem:[#allocation2 + $0x571] sm:$0xff]
      %v2508 = vld [vmem:[#allocation2 + $0x579] sm:$0xff]
      %v2509 = vld [vmem:[#allocation2 + $0x589] sm:$0xff]
      %v2510 = vld [vmem:[#allocation2 + $0x591] sm:$0xff]
      %2631 = vrot.lane.b32.xlu0 %v2391, 12
      %v2632 = vpop.permute.xlu0 %2631
      %2633 = vrot.lane.b32.xlu0 %v2392, 12
      %v2634 = vpop.permute.xlu0 %2633
      %2635 = vrot.lane.b32.xlu0 %v2393, 12
      %v2636 = vpop.permute.xlu0 %2635
      %2637 = vrot.lane.b32.xlu0 %v2394, 12
      %v2638 = vpop.permute.xlu0 %2637
      %2639 = vrot.lane.b32.xlu0 %v2395, 12
      %v2640 = vpop.permute.xlu0 %2639
      %2641 = vrot.lane.b32.xlu0 %v2396, 12
      %v2642 = vpop.permute.xlu0 %2641
      %2643 = vrot.lane.b32.xlu0 %v2397, 12
      %v2644 = vpop.permute.xlu0 %2643
      %2645 = vrot.lane.b32.xlu0 %v2398, 12
      %v2646 = vpop.permute.xlu0 %2645
      %2647 = vrot.lane.b32.xlu0 %v2399, 12
      %v2648 = vpop.permute.xlu0 %2647
      %2649 = vrot.lane.b32.xlu0 %v2400, 12
      %v2650 = vpop.permute.xlu0 %2649
      %2651 = vrot.lane.b32.xlu0 %v2401, 12
      %v2652 = vpop.permute.xlu0 %2651
      %2653 = vrot.lane.b32.xlu0 %v2402, 12
      %v2654 = vpop.permute.xlu0 %2653
      %2655 = vrot.lane.b32.xlu0 %v2403, 12
      %v2656 = vpop.permute.xlu0 %2655
      %2657 = vrot.lane.b32.xlu0 %v2404, 12
      %v2658 = vpop.permute.xlu0 %2657
      %2659 = vrot.lane.b32.xlu0 %v2405, 12
      %v2660 = vpop.permute.xlu0 %2659
      %2661 = vrot.lane.b32.xlu0 %v2406, 12
      %v2662 = vpop.permute.xlu0 %2661
      %2663 = vrot.lane.b32.xlu0 %v2407, 12
      %v2664 = vpop.permute.xlu0 %2663
      %2665 = vrot.lane.b32.xlu0 %v2408, 12
      %v2666 = vpop.permute.xlu0 %2665
      %2667 = vrot.lane.b32.xlu0 %v2409, 12
      %v2668 = vpop.permute.xlu0 %2667
      %2669 = vrot.lane.b32.xlu0 %v2410, 12
      %v2670 = vpop.permute.xlu0 %2669
      %2671 = vrot.lane.b32.xlu0 %v2411, 12
      %v2672 = vpop.permute.xlu0 %2671
      %2673 = vrot.lane.b32.xlu0 %v2412, 12
      %v2674 = vpop.permute.xlu0 %2673
      %2675 = vrot.lane.b32.xlu0 %v2413, 12
      %v2676 = vpop.permute.xlu0 %2675
      %2677 = vrot.lane.b32.xlu0 %v2414, 12
      %v2678 = vpop.permute.xlu0 %2677
      %2679 = vrot.lane.b32.xlu0 %v2415, 12
      %v2680 = vpop.permute.xlu0 %2679
      %2681 = vrot.lane.b32.xlu0 %v2416, 12
      %v2682 = vpop.permute.xlu0 %2681
      %2683 = vrot.lane.b32.xlu0 %v2417, 12
      %v2684 = vpop.permute.xlu0 %2683
      %2685 = vrot.lane.b32.xlu0 %v2418, 12
      %v2686 = vpop.permute.xlu0 %2685
      %2687 = vrot.lane.b32.xlu0 %v2419, 12
      %v2688 = vpop.permute.xlu0 %2687
      %2689 = vrot.lane.b32.xlu0 %v2420, 12
      %v2690 = vpop.permute.xlu0 %2689
      %2691 = vrot.lane.b32.xlu0 %v2421, 12
      %v2692 = vpop.permute.xlu0 %2691
      %2693 = vrot.lane.b32.xlu0 %v2422, 12
      %v2694 = vpop.permute.xlu0 %2693
      %2695 = vrot.lane.b32.xlu0 %v2423, 12
      %v2696 = vpop.permute.xlu0 %2695
      %2697 = vrot.lane.b32.xlu0 %v2424, 12
      %v2698 = vpop.permute.xlu0 %2697
      %2699 = vrot.lane.b32.xlu0 %v2425, 12
      %v2700 = vpop.permute.xlu0 %2699
      %2701 = vrot.lane.b32.xlu0 %v2426, 12
      %v2702 = vpop.permute.xlu0 %2701
      %2703 = vrot.lane.b32.xlu0 %v2427, 12
      %v2704 = vpop.permute.xlu0 %2703
      %2705 = vrot.lane.b32.xlu0 %v2428, 12
      %v2706 = vpop.permute.xlu0 %2705
      %2707 = vrot.lane.b32.xlu0 %v2429, 12
      %v2708 = vpop.permute.xlu0 %2707
      %2709 = vrot.lane.b32.xlu0 %v2430, 12
      %v2710 = vpop.permute.xlu0 %2709
      %2711 = vrot.lane.b32.xlu0 %v2431, 12
      %v2712 = vpop.permute.xlu0 %2711
      %2713 = vrot.lane.b32.xlu0 %v2432, 12
      %v2714 = vpop.permute.xlu0 %2713
      %2715 = vrot.lane.b32.xlu0 %v2433, 12
      %v2716 = vpop.permute.xlu0 %2715
      %2717 = vrot.lane.b32.xlu0 %v2434, 12
      %v2718 = vpop.permute.xlu0 %2717
      %2719 = vrot.lane.b32.xlu0 %v2435, 12
      %v2720 = vpop.permute.xlu0 %2719
      %2721 = vrot.lane.b32.xlu0 %v2436, 12
      %v2722 = vpop.permute.xlu0 %2721
      %2723 = vrot.lane.b32.xlu0 %v2437, 12
      %v2724 = vpop.permute.xlu0 %2723
      %2725 = vrot.lane.b32.xlu0 %v2438, 12
      %v2726 = vpop.permute.xlu0 %2725
      %2727 = vrot.lane.b32.xlu0 %v2439, 12
      %v2728 = vpop.permute.xlu0 %2727
      %2729 = vrot.lane.b32.xlu0 %v2440, 12
      %v2730 = vpop.permute.xlu0 %2729
      %2731 = vrot.lane.b32.xlu0 %v2441, 12
      %v2732 = vpop.permute.xlu0 %2731
      %2733 = vrot.lane.b32.xlu0 %v2442, 12
      %v2734 = vpop.permute.xlu0 %2733
      %2735 = vrot.lane.b32.xlu0 %v2443, 12
      %v2736 = vpop.permute.xlu0 %2735
      %2737 = vrot.lane.b32.xlu0 %v2444, 12
      %v2738 = vpop.permute.xlu0 %2737
      %2739 = vrot.lane.b32.xlu0 %v2445, 12
      %v2740 = vpop.permute.xlu0 %2739
      %2741 = vrot.lane.b32.xlu0 %v2446, 12
      %v2742 = vpop.permute.xlu0 %2741
      %2743 = vrot.lane.b32.xlu0 %v2447, 12
      %v2744 = vpop.permute.xlu0 %2743
      %2745 = vrot.lane.b32.xlu0 %v2448, 12
      %v2746 = vpop.permute.xlu0 %2745
      %2747 = vrot.lane.b32.xlu0 %v2449, 12
      %v2748 = vpop.permute.xlu0 %2747
      %2749 = vrot.lane.b32.xlu0 %v2450, 12
      %v2750 = vpop.permute.xlu0 %2749
      %2751 = vrot.lane.b32.xlu0 %v2451, 12
      %v2752 = vpop.permute.xlu0 %2751
      %2753 = vrot.lane.b32.xlu0 %v2452, 12
      %v2754 = vpop.permute.xlu0 %2753
      %2755 = vrot.lane.b32.xlu0 %v2453, 12
      %v2756 = vpop.permute.xlu0 %2755
      %2757 = vrot.lane.b32.xlu0 %v2454, 12
      %v2758 = vpop.permute.xlu0 %2757
      %2759 = vrot.lane.b32.xlu0 %v2455, 12
      %v2760 = vpop.permute.xlu0 %2759
      %2761 = vrot.lane.b32.xlu0 %v2456, 12
      %v2762 = vpop.permute.xlu0 %2761
      %2763 = vrot.lane.b32.xlu0 %v2457, 12
      %v2764 = vpop.permute.xlu0 %2763
      %2765 = vrot.lane.b32.xlu0 %v2458, 12
      %v2766 = vpop.permute.xlu0 %2765
      %2767 = vrot.lane.b32.xlu0 %v2459, 12
      %v2768 = vpop.permute.xlu0 %2767
      %2769 = vrot.lane.b32.xlu0 %v2460, 12
      %v2770 = vpop.permute.xlu0 %2769
      %2771 = vrot.lane.b32.xlu0 %v2461, 12
      %v2772 = vpop.permute.xlu0 %2771
      %2773 = vrot.lane.b32.xlu0 %v2462, 12
      %v2774 = vpop.permute.xlu0 %2773
      %2775 = vrot.lane.b32.xlu0 %v2463, 12
      %v2776 = vpop.permute.xlu0 %2775
      %2777 = vrot.lane.b32.xlu0 %v2464, 12
      %v2778 = vpop.permute.xlu0 %2777
      %2779 = vrot.lane.b32.xlu0 %v2465, 12
      %v2780 = vpop.permute.xlu0 %2779
      %2781 = vrot.lane.b32.xlu0 %v2466, 12
      %v2782 = vpop.permute.xlu0 %2781
      %2783 = vrot.lane.b32.xlu0 %v2467, 12
      %v2784 = vpop.permute.xlu0 %2783
      %2785 = vrot.lane.b32.xlu0 %v2468, 12
      %v2786 = vpop.permute.xlu0 %2785
      %2787 = vrot.lane.b32.xlu0 %v2469, 12
      %v2788 = vpop.permute.xlu0 %2787
      %2789 = vrot.lane.b32.xlu0 %v2470, 12
      %v2790 = vpop.permute.xlu0 %2789
      %2791 = vrot.lane.b32.xlu0 %v2471, 12
      %v2792 = vpop.permute.xlu0 %2791
      %2793 = vrot.lane.b32.xlu0 %v2472, 12
      %v2794 = vpop.permute.xlu0 %2793
      %2795 = vrot.lane.b32.xlu0 %v2473, 12
      %v2796 = vpop.permute.xlu0 %2795
      %2797 = vrot.lane.b32.xlu0 %v2474, 12
      %v2798 = vpop.permute.xlu0 %2797
      %2799 = vrot.lane.b32.xlu0 %v2475, 12
      %v2800 = vpop.permute.xlu0 %2799
      %2801 = vrot.lane.b32.xlu0 %v2476, 12
      %v2802 = vpop.permute.xlu0 %2801
      %2803 = vrot.lane.b32.xlu0 %v2477, 12
      %v2804 = vpop.permute.xlu0 %2803
      %2805 = vrot.lane.b32.xlu0 %v2478, 12
      %v2806 = vpop.permute.xlu0 %2805
      %2807 = vrot.lane.b32.xlu0 %v2479, 12
      %v2808 = vpop.permute.xlu0 %2807
      %2809 = vrot.lane.b32.xlu0 %v2480, 12
      %v2810 = vpop.permute.xlu0 %2809
      %2811 = vrot.lane.b32.xlu0 %v2481, 12
      %v2812 = vpop.permute.xlu0 %2811
      %2813 = vrot.lane.b32.xlu0 %v2482, 12
      %v2814 = vpop.permute.xlu0 %2813
      %2815 = vrot.lane.b32.xlu0 %v2483, 12
      %v2816 = vpop.permute.xlu0 %2815
      %2817 = vrot.lane.b32.xlu0 %v2484, 12
      %v2818 = vpop.permute.xlu0 %2817
      %2819 = vrot.lane.b32.xlu0 %v2485, 12
      %v2820 = vpop.permute.xlu0 %2819
      %2821 = vrot.lane.b32.xlu0 %v2486, 12
      %v2822 = vpop.permute.xlu0 %2821
      %2823 = vrot.lane.b32.xlu0 %v2487, 12
      %v2824 = vpop.permute.xlu0 %2823
      %2825 = vrot.lane.b32.xlu0 %v2488, 12
      %v2826 = vpop.permute.xlu0 %2825
      %2827 = vrot.lane.b32.xlu0 %v2489, 12
      %v2828 = vpop.permute.xlu0 %2827
      %2829 = vrot.lane.b32.xlu0 %v2490, 12
      %v2830 = vpop.permute.xlu0 %2829
      %2831 = vrot.lane.b32.xlu0 %v2491, 12
      %v2832 = vpop.permute.xlu0 %2831
      %2833 = vrot.lane.b32.xlu0 %v2492, 12
      %v2834 = vpop.permute.xlu0 %2833
      %2835 = vrot.lane.b32.xlu0 %v2493, 12
      %v2836 = vpop.permute.xlu0 %2835
      %2837 = vrot.lane.b32.xlu0 %v2494, 12
      %v2838 = vpop.permute.xlu0 %2837
      %2839 = vrot.lane.b32.xlu0 %v2495, 12
      %v2840 = vpop.permute.xlu0 %2839
      %2841 = vrot.lane.b32.xlu0 %v2496, 12
      %v2842 = vpop.permute.xlu0 %2841
      %2843 = vrot.lane.b32.xlu0 %v2497, 12
      %v2844 = vpop.permute.xlu0 %2843
      %2845 = vrot.lane.b32.xlu0 %v2498, 12
      %v2846 = vpop.permute.xlu0 %2845
      %2847 = vrot.lane.b32.xlu0 %v2499, 12
      %v2848 = vpop.permute.xlu0 %2847
      %2849 = vrot.lane.b32.xlu0 %v2500, 12
      %v2850 = vpop.permute.xlu0 %2849
      %2851 = vrot.lane.b32.xlu0 %v2501, 12
      %v2852 = vpop.permute.xlu0 %2851
      %2853 = vrot.lane.b32.xlu0 %v2502, 12
      %v2854 = vpop.permute.xlu0 %2853
      %2855 = vrot.lane.b32.xlu0 %v2503, 12
      %v2856 = vpop.permute.xlu0 %2855
      %2857 = vrot.lane.b32.xlu0 %v2504, 12
      %v2858 = vpop.permute.xlu0 %2857
      %2859 = vrot.lane.b32.xlu0 %v2505, 12
      %v2860 = vpop.permute.xlu0 %2859
      %2861 = vrot.lane.b32.xlu0 %v2506, 12
      %v2862 = vpop.permute.xlu0 %2861
      %2863 = vrot.lane.b32.xlu0 %v2507, 12
      %v2864 = vpop.permute.xlu0 %2863
      %2865 = vrot.lane.b32.xlu0 %v2508, 12
      %v2866 = vpop.permute.xlu0 %2865
      %2867 = vrot.lane.b32.xlu0 %v2509, 12
      %v2868 = vpop.permute.xlu0 %2867
      %2869 = vrot.lane.b32.xlu0 %v2510, 12
      %v2870 = vpop.permute.xlu0 %2869
      %vm2991 = vcmask 130144
      %2992 = vst.msk [vmem:[#allocation5] sm:$0xff] %vm2991, %v2632
      %2993 = vst.msk [vmem:[#allocation5 + $0x8] sm:$0xff] %vm2991, %v2634
      %2994 = vst.msk [vmem:[#allocation5 + $0x10] sm:$0xff] %vm2991, %v2636
      %2995 = vst.msk [vmem:[#allocation5 + $0x18] sm:$0xff] %vm2991, %v2638
      %2996 = vst.msk [vmem:[#allocation5 + $0x20] sm:$0xff] %vm2991, %v2640
      %2997 = vst.msk [vmem:[#allocation5 + $0x28] sm:$0xff] %vm2991, %v2642
      %2998 = vst.msk [vmem:[#allocation5 + $0x30] sm:$0xff] %vm2991, %v2644
      %2999 = vst.msk [vmem:[#allocation5 + $0x38] sm:$0xff] %vm2991, %v2646
      %3000 = vst.msk [vmem:[#allocation5 + $0x40] sm:$0xff] %vm2991, %v2648
      %3001 = vst.msk [vmem:[#allocation5 + $0x48] sm:$0xff] %vm2991, %v2650
      %3002 = vst.msk [vmem:[#allocation5 + $0x50] sm:$0xff] %vm2991, %v2652
      %3003 = vst.msk [vmem:[#allocation5 + $0x58] sm:$0xff] %vm2991, %v2654
      %3004 = vst.msk [vmem:[#allocation5 + $0x60] sm:$0xff] %vm2991, %v2656
      %3005 = vst.msk [vmem:[#allocation5 + $0x68] sm:$0xff] %vm2991, %v2658
      %3006 = vst.msk [vmem:[#allocation5 + $0x70] sm:$0xff] %vm2991, %v2660
      %3007 = vst.msk [vmem:[#allocation5 + $0x78] sm:$0xff] %vm2991, %v2662
      %3008 = vst.msk [vmem:[#allocation5 + $0x80] sm:$0xff] %vm2991, %v2664
      %3009 = vst.msk [vmem:[#allocation5 + $0x88] sm:$0xff] %vm2991, %v2666
      %3010 = vst.msk [vmem:[#allocation5 + $0x90] sm:$0xff] %vm2991, %v2668
      %3011 = vst.msk [vmem:[#allocation5 + $0x98] sm:$0xff] %vm2991, %v2670
      %3012 = vst.msk [vmem:[#allocation5 + $0xa0] sm:$0xff] %vm2991, %v2672
      %3013 = vst.msk [vmem:[#allocation5 + $0xa8] sm:$0xff] %vm2991, %v2674
      %3014 = vst.msk [vmem:[#allocation5 + $0xb0] sm:$0xff] %vm2991, %v2676
      %3015 = vst.msk [vmem:[#allocation5 + $0xb8] sm:$0xff] %vm2991, %v2678
      %3016 = vst.msk [vmem:[#allocation5 + $0xc0] sm:$0xff] %vm2991, %v2680
      %3017 = vst.msk [vmem:[#allocation5 + $0xc8] sm:$0xff] %vm2991, %v2682
      %3018 = vst.msk [vmem:[#allocation5 + $0xd0] sm:$0xff] %vm2991, %v2684
      %3019 = vst.msk [vmem:[#allocation5 + $0xd8] sm:$0xff] %vm2991, %v2686
      %3020 = vst.msk [vmem:[#allocation5 + $0xe0] sm:$0xff] %vm2991, %v2688
      %3021 = vst.msk [vmem:[#allocation5 + $0xe8] sm:$0xff] %vm2991, %v2690
      %3022 = vst.msk [vmem:[#allocation5 + $0xf0] sm:$0xff] %vm2991, %v2692
      %3023 = vst.msk [vmem:[#allocation5 + $0xf8] sm:$0xff] %vm2991, %v2694
      %3024 = vst.msk [vmem:[#allocation5 + $0x100] sm:$0xff] %vm2991, %v2696
      %3025 = vst.msk [vmem:[#allocation5 + $0x108] sm:$0xff] %vm2991, %v2698
      %3026 = vst.msk [vmem:[#allocation5 + $0x110] sm:$0xff] %vm2991, %v2700
      %3027 = vst.msk [vmem:[#allocation5 + $0x118] sm:$0xff] %vm2991, %v2702
      %3028 = vst.msk [vmem:[#allocation5 + $0x120] sm:$0xff] %vm2991, %v2704
      %3029 = vst.msk [vmem:[#allocation5 + $0x128] sm:$0xff] %vm2991, %v2706
      %3030 = vst.msk [vmem:[#allocation5 + $0x130] sm:$0xff] %vm2991, %v2708
      %3031 = vst.msk [vmem:[#allocation5 + $0x138] sm:$0xff] %vm2991, %v2710
      %3032 = vst.msk [vmem:[#allocation5 + $0x140] sm:$0xff] %vm2991, %v2712
      %3033 = vst.msk [vmem:[#allocation5 + $0x148] sm:$0xff] %vm2991, %v2714
      %3034 = vst.msk [vmem:[#allocation5 + $0x150] sm:$0xff] %vm2991, %v2716
      %3035 = vst.msk [vmem:[#allocation5 + $0x158] sm:$0xff] %vm2991, %v2718
      %3036 = vst.msk [vmem:[#allocation5 + $0x160] sm:$0xff] %vm2991, %v2720
      %3037 = vst.msk [vmem:[#allocation5 + $0x168] sm:$0xff] %vm2991, %v2722
      %3038 = vst.msk [vmem:[#allocation5 + $0x170] sm:$0xff] %vm2991, %v2724
      %3039 = vst.msk [vmem:[#allocation5 + $0x178] sm:$0xff] %vm2991, %v2726
      %3040 = vst.msk [vmem:[#allocation5 + $0x180] sm:$0xff] %vm2991, %v2728
      %3041 = vst.msk [vmem:[#allocation5 + $0x188] sm:$0xff] %vm2991, %v2730
      %3042 = vst.msk [vmem:[#allocation5 + $0x190] sm:$0xff] %vm2991, %v2732
      %3043 = vst.msk [vmem:[#allocation5 + $0x198] sm:$0xff] %vm2991, %v2734
      %3044 = vst.msk [vmem:[#allocation5 + $0x1a0] sm:$0xff] %vm2991, %v2736
      %3045 = vst.msk [vmem:[#allocation5 + $0x1a8] sm:$0xff] %vm2991, %v2738
      %3046 = vst.msk [vmem:[#allocation5 + $0x1b0] sm:$0xff] %vm2991, %v2740
      %3047 = vst.msk [vmem:[#allocation5 + $0x1b8] sm:$0xff] %vm2991, %v2742
      %3048 = vst.msk [vmem:[#allocation5 + $0x1c0] sm:$0xff] %vm2991, %v2744
      %3049 = vst.msk [vmem:[#allocation5 + $0x1c8] sm:$0xff] %vm2991, %v2746
      %3050 = vst.msk [vmem:[#allocation5 + $0x1d0] sm:$0xff] %vm2991, %v2748
      %3051 = vst.msk [vmem:[#allocation5 + $0x1d8] sm:$0xff] %vm2991, %v2750
      %3052 = vst.msk [vmem:[#allocation5 + $0x1e0] sm:$0xff] %vm2991, %v2752
      %3053 = vst.msk [vmem:[#allocation5 + $0x1e8] sm:$0xff] %vm2991, %v2754
      %3054 = vst.msk [vmem:[#allocation5 + $0x1f0] sm:$0xff] %vm2991, %v2756
      %3055 = vst.msk [vmem:[#allocation5 + $0x1f8] sm:$0xff] %vm2991, %v2758
      %3056 = vst.msk [vmem:[#allocation5 + $0x200] sm:$0xff] %vm2991, %v2760
      %3057 = vst.msk [vmem:[#allocation5 + $0x208] sm:$0xff] %vm2991, %v2762
      %3058 = vst.msk [vmem:[#allocation5 + $0x210] sm:$0xff] %vm2991, %v2764
      %3059 = vst.msk [vmem:[#allocation5 + $0x218] sm:$0xff] %vm2991, %v2766
      %3060 = vst.msk [vmem:[#allocation5 + $0x220] sm:$0xff] %vm2991, %v2768
      %3061 = vst.msk [vmem:[#allocation5 + $0x228] sm:$0xff] %vm2991, %v2770
      %3062 = vst.msk [vmem:[#allocation5 + $0x230] sm:$0xff] %vm2991, %v2772
      %3063 = vst.msk [vmem:[#allocation5 + $0x238] sm:$0xff] %vm2991, %v2774
      %3064 = vst.msk [vmem:[#allocation5 + $0x240] sm:$0xff] %vm2991, %v2776
      %3065 = vst.msk [vmem:[#allocation5 + $0x248] sm:$0xff] %vm2991, %v2778
      %3066 = vst.msk [vmem:[#allocation5 + $0x250] sm:$0xff] %vm2991, %v2780
      %3067 = vst.msk [vmem:[#allocation5 + $0x258] sm:$0xff] %vm2991, %v2782
      %3068 = vst.msk [vmem:[#allocation5 + $0x260] sm:$0xff] %vm2991, %v2784
      %3069 = vst.msk [vmem:[#allocation5 + $0x268] sm:$0xff] %vm2991, %v2786
      %3070 = vst.msk [vmem:[#allocation5 + $0x270] sm:$0xff] %vm2991, %v2788
      %3071 = vst.msk [vmem:[#allocation5 + $0x278] sm:$0xff] %vm2991, %v2790
      %3072 = vst.msk [vmem:[#allocation5 + $0x280] sm:$0xff] %vm2991, %v2792
      %3073 = vst.msk [vmem:[#allocation5 + $0x288] sm:$0xff] %vm2991, %v2794
      %3074 = vst.msk [vmem:[#allocation5 + $0x290] sm:$0xff] %vm2991, %v2796
      %3075 = vst.msk [vmem:[#allocation5 + $0x298] sm:$0xff] %vm2991, %v2798
      %3076 = vst.msk [vmem:[#allocation5 + $0x2a0] sm:$0xff] %vm2991, %v2800
      %3077 = vst.msk [vmem:[#allocation5 + $0x2a8] sm:$0xff] %vm2991, %v2802
      %3078 = vst.msk [vmem:[#allocation5 + $0x2b0] sm:$0xff] %vm2991, %v2804
      %3079 = vst.msk [vmem:[#allocation5 + $0x2b8] sm:$0xff] %vm2991, %v2806
      %3080 = vst.msk [vmem:[#allocation5 + $0x2c0] sm:$0xff] %vm2991, %v2808
      %3081 = vst.msk [vmem:[#allocation5 + $0x2c8] sm:$0xff] %vm2991, %v2810
      %3082 = vst.msk [vmem:[#allocation5 + $0x2d0] sm:$0xff] %vm2991, %v2812
      %3083 = vst.msk [vmem:[#allocation5 + $0x2d8] sm:$0xff] %vm2991, %v2814
      %3084 = vst.msk [vmem:[#allocation5 + $0x2e0] sm:$0xff] %vm2991, %v2816
      %3085 = vst.msk [vmem:[#allocation5 + $0x2e8] sm:$0xff] %vm2991, %v2818
      %3086 = vst.msk [vmem:[#allocation5 + $0x2f0] sm:$0xff] %vm2991, %v2820
      %3087 = vst.msk [vmem:[#allocation5 + $0x2f8] sm:$0xff] %vm2991, %v2822
      %3088 = vst.msk [vmem:[#allocation5 + $0x300] sm:$0xff] %vm2991, %v2824
      %3089 = vst.msk [vmem:[#allocation5 + $0x308] sm:$0xff] %vm2991, %v2826
      %3090 = vst.msk [vmem:[#allocation5 + $0x310] sm:$0xff] %vm2991, %v2828
      %3091 = vst.msk [vmem:[#allocation5 + $0x318] sm:$0xff] %vm2991, %v2830
      %3092 = vst.msk [vmem:[#allocation5 + $0x320] sm:$0xff] %vm2991, %v2832
      %3093 = vst.msk [vmem:[#allocation5 + $0x328] sm:$0xff] %vm2991, %v2834
      %3094 = vst.msk [vmem:[#allocation5 + $0x330] sm:$0xff] %vm2991, %v2836
      %3095 = vst.msk [vmem:[#allocation5 + $0x338] sm:$0xff] %vm2991, %v2838
      %3096 = vst.msk [vmem:[#allocation5 + $0x340] sm:$0xff] %vm2991, %v2840
      %3097 = vst.msk [vmem:[#allocation5 + $0x348] sm:$0xff] %vm2991, %v2842
      %3098 = vst.msk [vmem:[#allocation5 + $0x350] sm:$0xff] %vm2991, %v2844
      %3099 = vst.msk [vmem:[#allocation5 + $0x358] sm:$0xff] %vm2991, %v2846
      %3100 = vst.msk [vmem:[#allocation5 + $0x360] sm:$0xff] %vm2991, %v2848
      %3101 = vst.msk [vmem:[#allocation5 + $0x368] sm:$0xff] %vm2991, %v2850
      %3102 = vst.msk [vmem:[#allocation5 + $0x370] sm:$0xff] %vm2991, %v2852
      %3103 = vst.msk [vmem:[#allocation5 + $0x378] sm:$0xff] %vm2991, %v2854
      %3104 = vst.msk [vmem:[#allocation5 + $0x380] sm:$0xff] %vm2991, %v2856
      %3105 = vst.msk [vmem:[#allocation5 + $0x388] sm:$0xff] %vm2991, %v2858
      %3106 = vst.msk [vmem:[#allocation5 + $0x390] sm:$0xff] %vm2991, %v2860
      %3107 = vst.msk [vmem:[#allocation5 + $0x398] sm:$0xff] %vm2991, %v2862
      %3108 = vst.msk [vmem:[#allocation5 + $0x3a0] sm:$0xff] %vm2991, %v2864
      %3109 = vst.msk [vmem:[#allocation5 + $0x3a8] sm:$0xff] %vm2991, %v2866
      %3110 = vst.msk [vmem:[#allocation5 + $0x3b0] sm:$0xff] %vm2991, %v2868
      %3111 = vst.msk [vmem:[#allocation5 + $0x3b8] sm:$0xff] %vm2991, %v2870
      %v3112 = vld [vmem:[%s587 + $0x1] sm:$0xff]
      %v3113 = vld [vmem:[%s587 + $0x9] sm:$0xff]
      %v3114 = vld [vmem:[%s587 + $0x19] sm:$0xff]
      %v3115 = vld [vmem:[%s587 + $0x21] sm:$0xff]
      %v3116 = vld [vmem:[%s587 + $0x31] sm:$0xff]
      %v3117 = vld [vmem:[%s587 + $0x39] sm:$0xff]
      %v3118 = vld [vmem:[%s587 + $0x49] sm:$0xff]
      %v3119 = vld [vmem:[%s587 + $0x51] sm:$0xff]
      %v3120 = vld [vmem:[%s587 + $0x61] sm:$0xff]
      %v3121 = vld [vmem:[%s587 + $0x69] sm:$0xff]
      %v3122 = vld [vmem:[%s587 + $0x79] sm:$0xff]
      %v3123 = vld [vmem:[%s587 + $0x81] sm:$0xff]
      %v3124 = vld [vmem:[%s587 + $0x91] sm:$0xff]
      %v3125 = vld [vmem:[%s587 + $0x99] sm:$0xff]
      %v3126 = vld [vmem:[%s587 + $0xa9] sm:$0xff]
      %v3127 = vld [vmem:[%s587 + $0xb1] sm:$0xff]
      %v3128 = vld [vmem:[%s587 + $0xc1] sm:$0xff]
      %v3129 = vld [vmem:[%s587 + $0xc9] sm:$0xff]
      %v3130 = vld [vmem:[%s587 + $0xd9] sm:$0xff]
      %v3131 = vld [vmem:[%s587 + $0xe1] sm:$0xff]
      %v3132 = vld [vmem:[%s587 + $0xf1] sm:$0xff]
      %v3133 = vld [vmem:[%s587 + $0xf9] sm:$0xff]
      %v3134 = vld [vmem:[%s587 + $0x109] sm:$0xff]
      %v3135 = vld [vmem:[%s587 + $0x111] sm:$0xff]
      %v3136 = vld [vmem:[%s587 + $0x121] sm:$0xff]
      %v3137 = vld [vmem:[%s587 + $0x129] sm:$0xff]
      %v3138 = vld [vmem:[%s587 + $0x139] sm:$0xff]
      %v3139 = vld [vmem:[%s587 + $0x141] sm:$0xff]
      %v3140 = vld [vmem:[%s587 + $0x151] sm:$0xff]
      %v3141 = vld [vmem:[%s587 + $0x159] sm:$0xff]
      %v3142 = vld [vmem:[%s587 + $0x169] sm:$0xff]
      %v3143 = vld [vmem:[%s587 + $0x171] sm:$0xff]
      %v3144 = vld [vmem:[%s587 + $0x181] sm:$0xff]
      %v3145 = vld [vmem:[%s587 + $0x189] sm:$0xff]
      %v3146 = vld [vmem:[%s587 + $0x199] sm:$0xff]
      %v3147 = vld [vmem:[%s587 + $0x1a1] sm:$0xff]
      %v3148 = vld [vmem:[%s587 + $0x1b1] sm:$0xff]
      %v3149 = vld [vmem:[%s587 + $0x1b9] sm:$0xff]
      %v3150 = vld [vmem:[%s587 + $0x1c9] sm:$0xff]
      %v3151 = vld [vmem:[%s587 + $0x1d1] sm:$0xff]
      %v3152 = vld [vmem:[%s587 + $0x1e1] sm:$0xff]
      %v3153 = vld [vmem:[%s587 + $0x1e9] sm:$0xff]
      %v3154 = vld [vmem:[%s587 + $0x1f9] sm:$0xff]
      %v3155 = vld [vmem:[%s587 + $0x201] sm:$0xff]
      %v3156 = vld [vmem:[%s587 + $0x211] sm:$0xff]
      %v3157 = vld [vmem:[%s587 + $0x219] sm:$0xff]
      %v3158 = vld [vmem:[%s587 + $0x229] sm:$0xff]
      %v3159 = vld [vmem:[%s587 + $0x231] sm:$0xff]
      %v3160 = vld [vmem:[%s587 + $0x241] sm:$0xff]
      %v3161 = vld [vmem:[%s587 + $0x249] sm:$0xff]
      %v3162 = vld [vmem:[%s587 + $0x259] sm:$0xff]
      %v3163 = vld [vmem:[%s587 + $0x261] sm:$0xff]
      %v3164 = vld [vmem:[%s587 + $0x271] sm:$0xff]
      %v3165 = vld [vmem:[%s587 + $0x279] sm:$0xff]
      %v3166 = vld [vmem:[%s587 + $0x289] sm:$0xff]
      %v3167 = vld [vmem:[%s587 + $0x291] sm:$0xff]
      %v3168 = vld [vmem:[%s587 + $0x2a1] sm:$0xff]
      %v3169 = vld [vmem:[%s587 + $0x2a9] sm:$0xff]
      %v3170 = vld [vmem:[%s587 + $0x2b9] sm:$0xff]
      %v3171 = vld [vmem:[%s587 + $0x2c1] sm:$0xff]
      %v3172 = vld [vmem:[%s587 + $0x2d1] sm:$0xff]
      %v3173 = vld [vmem:[%s587 + $0x2d9] sm:$0xff]
      %v3174 = vld [vmem:[%s587 + $0x2e9] sm:$0xff]
      %v3175 = vld [vmem:[%s587 + $0x2f1] sm:$0xff]
      %v3176 = vld [vmem:[%s587 + $0x301] sm:$0xff]
      %v3177 = vld [vmem:[%s587 + $0x309] sm:$0xff]
      %v3178 = vld [vmem:[%s587 + $0x319] sm:$0xff]
      %v3179 = vld [vmem:[%s587 + $0x321] sm:$0xff]
      %v3180 = vld [vmem:[%s587 + $0x331] sm:$0xff]
      %v3181 = vld [vmem:[%s587 + $0x339] sm:$0xff]
      %v3182 = vld [vmem:[%s587 + $0x349] sm:$0xff]
      %v3183 = vld [vmem:[%s587 + $0x351] sm:$0xff]
      %v3184 = vld [vmem:[%s587 + $0x361] sm:$0xff]
      %v3185 = vld [vmem:[%s587 + $0x369] sm:$0xff]
      %v3186 = vld [vmem:[%s587 + $0x379] sm:$0xff]
      %v3187 = vld [vmem:[%s587 + $0x381] sm:$0xff]
      %v3188 = vld [vmem:[%s587 + $0x391] sm:$0xff]
      %v3189 = vld [vmem:[%s587 + $0x399] sm:$0xff]
      %v3190 = vld [vmem:[%s587 + $0x3a9] sm:$0xff]
      %v3191 = vld [vmem:[%s587 + $0x3b1] sm:$0xff]
      %v3192 = vld [vmem:[%s587 + $0x3c1] sm:$0xff]
      %v3193 = vld [vmem:[%s587 + $0x3c9] sm:$0xff]
      %v3194 = vld [vmem:[%s587 + $0x3d9] sm:$0xff]
      %v3195 = vld [vmem:[%s587 + $0x3e1] sm:$0xff]
      %v3196 = vld [vmem:[%s587 + $0x3f1] sm:$0xff]
      %v3197 = vld [vmem:[%s587 + $0x3f9] sm:$0xff]
      %v3198 = vld [vmem:[%s587 + $0x409] sm:$0xff]
      %v3199 = vld [vmem:[%s587 + $0x411] sm:$0xff]
      %v3200 = vld [vmem:[%s587 + $0x421] sm:$0xff]
      %v3201 = vld [vmem:[%s587 + $0x429] sm:$0xff]
      %v3202 = vld [vmem:[%s587 + $0x439] sm:$0xff]
      %v3203 = vld [vmem:[%s587 + $0x441] sm:$0xff]
      %v3204 = vld [vmem:[%s587 + $0x451] sm:$0xff]
      %v3205 = vld [vmem:[%s587 + $0x459] sm:$0xff]
      %v3206 = vld [vmem:[%s587 + $0x469] sm:$0xff]
      %v3207 = vld [vmem:[%s587 + $0x471] sm:$0xff]
      %v3208 = vld [vmem:[%s587 + $0x481] sm:$0xff]
      %v3209 = vld [vmem:[%s587 + $0x489] sm:$0xff]
      %v3210 = vld [vmem:[%s587 + $0x499] sm:$0xff]
      %v3211 = vld [vmem:[%s587 + $0x4a1] sm:$0xff]
      %v3212 = vld [vmem:[%s587 + $0x4b1] sm:$0xff]
      %v3213 = vld [vmem:[%s587 + $0x4b9] sm:$0xff]
      %v3214 = vld [vmem:[%s587 + $0x4c9] sm:$0xff]
      %v3215 = vld [vmem:[%s587 + $0x4d1] sm:$0xff]
      %v3216 = vld [vmem:[%s587 + $0x4e1] sm:$0xff]
      %v3217 = vld [vmem:[%s587 + $0x4e9] sm:$0xff]
      %v3218 = vld [vmem:[%s587 + $0x4f9] sm:$0xff]
      %v3219 = vld [vmem:[%s587 + $0x501] sm:$0xff]
      %v3220 = vld [vmem:[%s587 + $0x511] sm:$0xff]
      %v3221 = vld [vmem:[%s587 + $0x519] sm:$0xff]
      %v3222 = vld [vmem:[%s587 + $0x529] sm:$0xff]
      %v3223 = vld [vmem:[%s587 + $0x531] sm:$0xff]
      %v3224 = vld [vmem:[%s587 + $0x541] sm:$0xff]
      %v3225 = vld [vmem:[%s587 + $0x549] sm:$0xff]
      %v3226 = vld [vmem:[%s587 + $0x559] sm:$0xff]
      %v3227 = vld [vmem:[%s587 + $0x561] sm:$0xff]
      %v3228 = vld [vmem:[%s587 + $0x571] sm:$0xff]
      %v3229 = vld [vmem:[%s587 + $0x579] sm:$0xff]
      %v3230 = vld [vmem:[%s587 + $0x589] sm:$0xff]
      %v3231 = vld [vmem:[%s587 + $0x591] sm:$0xff]
      %3352 = vrot.lane.b32.xlu0 %v3112, 16
      %v3353 = vpop.permute.xlu0 %3352
      %3354 = vrot.lane.b32.xlu0 %v3113, 16
      %v3355 = vpop.permute.xlu0 %3354
      %3356 = vrot.lane.b32.xlu0 %v3114, 16
      %v3357 = vpop.permute.xlu0 %3356
      %3358 = vrot.lane.b32.xlu0 %v3115, 16
      %v3359 = vpop.permute.xlu0 %3358
      %3360 = vrot.lane.b32.xlu0 %v3116, 16
      %v3361 = vpop.permute.xlu0 %3360
      %3362 = vrot.lane.b32.xlu0 %v3117, 16
      %v3363 = vpop.permute.xlu0 %3362
      %3364 = vrot.lane.b32.xlu0 %v3118, 16
      %v3365 = vpop.permute.xlu0 %3364
      %3366 = vrot.lane.b32.xlu0 %v3119, 16
      %v3367 = vpop.permute.xlu0 %3366
      %3368 = vrot.lane.b32.xlu0 %v3120, 16
      %v3369 = vpop.permute.xlu0 %3368
      %3370 = vrot.lane.b32.xlu0 %v3121, 16
      %v3371 = vpop.permute.xlu0 %3370
      %3372 = vrot.lane.b32.xlu0 %v3122, 16
      %v3373 = vpop.permute.xlu0 %3372
      %3374 = vrot.lane.b32.xlu0 %v3123, 16
      %v3375 = vpop.permute.xlu0 %3374
      %3376 = vrot.lane.b32.xlu0 %v3124, 16
      %v3377 = vpop.permute.xlu0 %3376
      %3378 = vrot.lane.b32.xlu0 %v3125, 16
      %v3379 = vpop.permute.xlu0 %3378
      %3380 = vrot.lane.b32.xlu0 %v3126, 16
      %v3381 = vpop.permute.xlu0 %3380
      %3382 = vrot.lane.b32.xlu0 %v3127, 16
      %v3383 = vpop.permute.xlu0 %3382
      %3384 = vrot.lane.b32.xlu0 %v3128, 16
      %v3385 = vpop.permute.xlu0 %3384
      %3386 = vrot.lane.b32.xlu0 %v3129, 16
      %v3387 = vpop.permute.xlu0 %3386
      %3388 = vrot.lane.b32.xlu0 %v3130, 16
      %v3389 = vpop.permute.xlu0 %3388
      %3390 = vrot.lane.b32.xlu0 %v3131, 16
      %v3391 = vpop.permute.xlu0 %3390
      %3392 = vrot.lane.b32.xlu0 %v3132, 16
      %v3393 = vpop.permute.xlu0 %3392
      %3394 = vrot.lane.b32.xlu0 %v3133, 16
      %v3395 = vpop.permute.xlu0 %3394
      %3396 = vrot.lane.b32.xlu0 %v3134, 16
      %v3397 = vpop.permute.xlu0 %3396
      %3398 = vrot.lane.b32.xlu0 %v3135, 16
      %v3399 = vpop.permute.xlu0 %3398
      %3400 = vrot.lane.b32.xlu0 %v3136, 16
      %v3401 = vpop.permute.xlu0 %3400
      %3402 = vrot.lane.b32.xlu0 %v3137, 16
      %v3403 = vpop.permute.xlu0 %3402
      %3404 = vrot.lane.b32.xlu0 %v3138, 16
      %v3405 = vpop.permute.xlu0 %3404
      %3406 = vrot.lane.b32.xlu0 %v3139, 16
      %v3407 = vpop.permute.xlu0 %3406
      %3408 = vrot.lane.b32.xlu0 %v3140, 16
      %v3409 = vpop.permute.xlu0 %3408
      %3410 = vrot.lane.b32.xlu0 %v3141, 16
      %v3411 = vpop.permute.xlu0 %3410
      %3412 = vrot.lane.b32.xlu0 %v3142, 16
      %v3413 = vpop.permute.xlu0 %3412
      %3414 = vrot.lane.b32.xlu0 %v3143, 16
      %v3415 = vpop.permute.xlu0 %3414
      %3416 = vrot.lane.b32.xlu0 %v3144, 16
      %v3417 = vpop.permute.xlu0 %3416
      %3418 = vrot.lane.b32.xlu0 %v3145, 16
      %v3419 = vpop.permute.xlu0 %3418
      %3420 = vrot.lane.b32.xlu0 %v3146, 16
      %v3421 = vpop.permute.xlu0 %3420
      %3422 = vrot.lane.b32.xlu0 %v3147, 16
      %v3423 = vpop.permute.xlu0 %3422
      %3424 = vrot.lane.b32.xlu0 %v3148, 16
      %v3425 = vpop.permute.xlu0 %3424
      %3426 = vrot.lane.b32.xlu0 %v3149, 16
      %v3427 = vpop.permute.xlu0 %3426
      %3428 = vrot.lane.b32.xlu0 %v3150, 16
      %v3429 = vpop.permute.xlu0 %3428
      %3430 = vrot.lane.b32.xlu0 %v3151, 16
      %v3431 = vpop.permute.xlu0 %3430
      %3432 = vrot.lane.b32.xlu0 %v3152, 16
      %v3433 = vpop.permute.xlu0 %3432
      %3434 = vrot.lane.b32.xlu0 %v3153, 16
      %v3435 = vpop.permute.xlu0 %3434
      %3436 = vrot.lane.b32.xlu0 %v3154, 16
      %v3437 = vpop.permute.xlu0 %3436
      %3438 = vrot.lane.b32.xlu0 %v3155, 16
      %v3439 = vpop.permute.xlu0 %3438
      %3440 = vrot.lane.b32.xlu0 %v3156, 16
      %v3441 = vpop.permute.xlu0 %3440
      %3442 = vrot.lane.b32.xlu0 %v3157, 16
      %v3443 = vpop.permute.xlu0 %3442
      %3444 = vrot.lane.b32.xlu0 %v3158, 16
      %v3445 = vpop.permute.xlu0 %3444
      %3446 = vrot.lane.b32.xlu0 %v3159, 16
      %v3447 = vpop.permute.xlu0 %3446
      %3448 = vrot.lane.b32.xlu0 %v3160, 16
      %v3449 = vpop.permute.xlu0 %3448
      %3450 = vrot.lane.b32.xlu0 %v3161, 16
      %v3451 = vpop.permute.xlu0 %3450
      %3452 = vrot.lane.b32.xlu0 %v3162, 16
      %v3453 = vpop.permute.xlu0 %3452
      %3454 = vrot.lane.b32.xlu0 %v3163, 16
      %v3455 = vpop.permute.xlu0 %3454
      %3456 = vrot.lane.b32.xlu0 %v3164, 16
      %v3457 = vpop.permute.xlu0 %3456
      %3458 = vrot.lane.b32.xlu0 %v3165, 16
      %v3459 = vpop.permute.xlu0 %3458
      %3460 = vrot.lane.b32.xlu0 %v3166, 16
      %v3461 = vpop.permute.xlu0 %3460
      %3462 = vrot.lane.b32.xlu0 %v3167, 16
      %v3463 = vpop.permute.xlu0 %3462
      %3464 = vrot.lane.b32.xlu0 %v3168, 16
      %v3465 = vpop.permute.xlu0 %3464
      %3466 = vrot.lane.b32.xlu0 %v3169, 16
      %v3467 = vpop.permute.xlu0 %3466
      %3468 = vrot.lane.b32.xlu0 %v3170, 16
      %v3469 = vpop.permute.xlu0 %3468
      %3470 = vrot.lane.b32.xlu0 %v3171, 16
      %v3471 = vpop.permute.xlu0 %3470
      %3472 = vrot.lane.b32.xlu0 %v3172, 16
      %v3473 = vpop.permute.xlu0 %3472
      %3474 = vrot.lane.b32.xlu0 %v3173, 16
      %v3475 = vpop.permute.xlu0 %3474
      %3476 = vrot.lane.b32.xlu0 %v3174, 16
      %v3477 = vpop.permute.xlu0 %3476
      %3478 = vrot.lane.b32.xlu0 %v3175, 16
      %v3479 = vpop.permute.xlu0 %3478
      %3480 = vrot.lane.b32.xlu0 %v3176, 16
      %v3481 = vpop.permute.xlu0 %3480
      %3482 = vrot.lane.b32.xlu0 %v3177, 16
      %v3483 = vpop.permute.xlu0 %3482
      %3484 = vrot.lane.b32.xlu0 %v3178, 16
      %v3485 = vpop.permute.xlu0 %3484
      %3486 = vrot.lane.b32.xlu0 %v3179, 16
      %v3487 = vpop.permute.xlu0 %3486
      %3488 = vrot.lane.b32.xlu0 %v3180, 16
      %v3489 = vpop.permute.xlu0 %3488
      %3490 = vrot.lane.b32.xlu0 %v3181, 16
      %v3491 = vpop.permute.xlu0 %3490
      %3492 = vrot.lane.b32.xlu0 %v3182, 16
      %v3493 = vpop.permute.xlu0 %3492
      %3494 = vrot.lane.b32.xlu0 %v3183, 16
      %v3495 = vpop.permute.xlu0 %3494
      %3496 = vrot.lane.b32.xlu0 %v3184, 16
      %v3497 = vpop.permute.xlu0 %3496
      %3498 = vrot.lane.b32.xlu0 %v3185, 16
      %v3499 = vpop.permute.xlu0 %3498
      %3500 = vrot.lane.b32.xlu0 %v3186, 16
      %v3501 = vpop.permute.xlu0 %3500
      %3502 = vrot.lane.b32.xlu0 %v3187, 16
      %v3503 = vpop.permute.xlu0 %3502
      %3504 = vrot.lane.b32.xlu0 %v3188, 16
      %v3505 = vpop.permute.xlu0 %3504
      %3506 = vrot.lane.b32.xlu0 %v3189, 16
      %v3507 = vpop.permute.xlu0 %3506
      %3508 = vrot.lane.b32.xlu0 %v3190, 16
      %v3509 = vpop.permute.xlu0 %3508
      %3510 = vrot.lane.b32.xlu0 %v3191, 16
      %v3511 = vpop.permute.xlu0 %3510
      %3512 = vrot.lane.b32.xlu0 %v3192, 16
      %v3513 = vpop.permute.xlu0 %3512
      %3514 = vrot.lane.b32.xlu0 %v3193, 16
      %v3515 = vpop.permute.xlu0 %3514
      %3516 = vrot.lane.b32.xlu0 %v3194, 16
      %v3517 = vpop.permute.xlu0 %3516
      %3518 = vrot.lane.b32.xlu0 %v3195, 16
      %v3519 = vpop.permute.xlu0 %3518
      %3520 = vrot.lane.b32.xlu0 %v3196, 16
      %v3521 = vpop.permute.xlu0 %3520
      %3522 = vrot.lane.b32.xlu0 %v3197, 16
      %v3523 = vpop.permute.xlu0 %3522
      %3524 = vrot.lane.b32.xlu0 %v3198, 16
      %v3525 = vpop.permute.xlu0 %3524
      %3526 = vrot.lane.b32.xlu0 %v3199, 16
      %v3527 = vpop.permute.xlu0 %3526
      %3528 = vrot.lane.b32.xlu0 %v3200, 16
      %v3529 = vpop.permute.xlu0 %3528
      %3530 = vrot.lane.b32.xlu0 %v3201, 16
      %v3531 = vpop.permute.xlu0 %3530
      %3532 = vrot.lane.b32.xlu0 %v3202, 16
      %v3533 = vpop.permute.xlu0 %3532
      %3534 = vrot.lane.b32.xlu0 %v3203, 16
      %v3535 = vpop.permute.xlu0 %3534
      %3536 = vrot.lane.b32.xlu0 %v3204, 16
      %v3537 = vpop.permute.xlu0 %3536
      %3538 = vrot.lane.b32.xlu0 %v3205, 16
      %v3539 = vpop.permute.xlu0 %3538
      %3540 = vrot.lane.b32.xlu0 %v3206, 16
      %v3541 = vpop.permute.xlu0 %3540
      %3542 = vrot.lane.b32.xlu0 %v3207, 16
      %v3543 = vpop.permute.xlu0 %3542
      %3544 = vrot.lane.b32.xlu0 %v3208, 16
      %v3545 = vpop.permute.xlu0 %3544
      %3546 = vrot.lane.b32.xlu0 %v3209, 16
      %v3547 = vpop.permute.xlu0 %3546
      %3548 = vrot.lane.b32.xlu0 %v3210, 16
      %v3549 = vpop.permute.xlu0 %3548
      %3550 = vrot.lane.b32.xlu0 %v3211, 16
      %v3551 = vpop.permute.xlu0 %3550
      %3552 = vrot.lane.b32.xlu0 %v3212, 16
      %v3553 = vpop.permute.xlu0 %3552
      %3554 = vrot.lane.b32.xlu0 %v3213, 16
      %v3555 = vpop.permute.xlu0 %3554
      %3556 = vrot.lane.b32.xlu0 %v3214, 16
      %v3557 = vpop.permute.xlu0 %3556
      %3558 = vrot.lane.b32.xlu0 %v3215, 16
      %v3559 = vpop.permute.xlu0 %3558
      %3560 = vrot.lane.b32.xlu0 %v3216, 16
      %v3561 = vpop.permute.xlu0 %3560
      %3562 = vrot.lane.b32.xlu0 %v3217, 16
      %v3563 = vpop.permute.xlu0 %3562
      %3564 = vrot.lane.b32.xlu0 %v3218, 16
      %v3565 = vpop.permute.xlu0 %3564
      %3566 = vrot.lane.b32.xlu0 %v3219, 16
      %v3567 = vpop.permute.xlu0 %3566
      %3568 = vrot.lane.b32.xlu0 %v3220, 16
      %v3569 = vpop.permute.xlu0 %3568
      %3570 = vrot.lane.b32.xlu0 %v3221, 16
      %v3571 = vpop.permute.xlu0 %3570
      %3572 = vrot.lane.b32.xlu0 %v3222, 16
      %v3573 = vpop.permute.xlu0 %3572
      %3574 = vrot.lane.b32.xlu0 %v3223, 16
      %v3575 = vpop.permute.xlu0 %3574
      %3576 = vrot.lane.b32.xlu0 %v3224, 16
      %v3577 = vpop.permute.xlu0 %3576
      %3578 = vrot.lane.b32.xlu0 %v3225, 16
      %v3579 = vpop.permute.xlu0 %3578
      %3580 = vrot.lane.b32.xlu0 %v3226, 16
      %v3581 = vpop.permute.xlu0 %3580
      %3582 = vrot.lane.b32.xlu0 %v3227, 16
      %v3583 = vpop.permute.xlu0 %3582
      %3584 = vrot.lane.b32.xlu0 %v3228, 16
      %v3585 = vpop.permute.xlu0 %3584
      %3586 = vrot.lane.b32.xlu0 %v3229, 16
      %v3587 = vpop.permute.xlu0 %3586
      %3588 = vrot.lane.b32.xlu0 %v3230, 16
      %v3589 = vpop.permute.xlu0 %3588
      %3590 = vrot.lane.b32.xlu0 %v3231, 16
      %v3591 = vpop.permute.xlu0 %3590
      %vm3712 = vcmask 162944
      %3713 = vst.msk [vmem:[#allocation5] sm:$0xff] %vm3712, %v3353
      %3714 = vst.msk [vmem:[#allocation5 + $0x8] sm:$0xff] %vm3712, %v3355
      %3715 = vst.msk [vmem:[#allocation5 + $0x10] sm:$0xff] %vm3712, %v3357
      %3716 = vst.msk [vmem:[#allocation5 + $0x18] sm:$0xff] %vm3712, %v3359
      %3717 = vst.msk [vmem:[#allocation5 + $0x20] sm:$0xff] %vm3712, %v3361
      %3718 = vst.msk [vmem:[#allocation5 + $0x28] sm:$0xff] %vm3712, %v3363
      %3719 = vst.msk [vmem:[#allocation5 + $0x30] sm:$0xff] %vm3712, %v3365
      %3720 = vst.msk [vmem:[#allocation5 + $0x38] sm:$0xff] %vm3712, %v3367
      %3721 = vst.msk [vmem:[#allocation5 + $0x40] sm:$0xff] %vm3712, %v3369
      %3722 = vst.msk [vmem:[#allocation5 + $0x48] sm:$0xff] %vm3712, %v3371
      %3723 = vst.msk [vmem:[#allocation5 + $0x50] sm:$0xff] %vm3712, %v3373
      %3724 = vst.msk [vmem:[#allocation5 + $0x58] sm:$0xff] %vm3712, %v3375
      %3725 = vst.msk [vmem:[#allocation5 + $0x60] sm:$0xff] %vm3712, %v3377
      %3726 = vst.msk [vmem:[#allocation5 + $0x68] sm:$0xff] %vm3712, %v3379
      %3727 = vst.msk [vmem:[#allocation5 + $0x70] sm:$0xff] %vm3712, %v3381
      %3728 = vst.msk [vmem:[#allocation5 + $0x78] sm:$0xff] %vm3712, %v3383
      %3729 = vst.msk [vmem:[#allocation5 + $0x80] sm:$0xff] %vm3712, %v3385
      %3730 = vst.msk [vmem:[#allocation5 + $0x88] sm:$0xff] %vm3712, %v3387
      %3731 = vst.msk [vmem:[#allocation5 + $0x90] sm:$0xff] %vm3712, %v3389
      %3732 = vst.msk [vmem:[#allocation5 + $0x98] sm:$0xff] %vm3712, %v3391
      %3733 = vst.msk [vmem:[#allocation5 + $0xa0] sm:$0xff] %vm3712, %v3393
      %3734 = vst.msk [vmem:[#allocation5 + $0xa8] sm:$0xff] %vm3712, %v3395
      %3735 = vst.msk [vmem:[#allocation5 + $0xb0] sm:$0xff] %vm3712, %v3397
      %3736 = vst.msk [vmem:[#allocation5 + $0xb8] sm:$0xff] %vm3712, %v3399
      %3737 = vst.msk [vmem:[#allocation5 + $0xc0] sm:$0xff] %vm3712, %v3401
      %3738 = vst.msk [vmem:[#allocation5 + $0xc8] sm:$0xff] %vm3712, %v3403
      %3739 = vst.msk [vmem:[#allocation5 + $0xd0] sm:$0xff] %vm3712, %v3405
      %3740 = vst.msk [vmem:[#allocation5 + $0xd8] sm:$0xff] %vm3712, %v3407
      %3741 = vst.msk [vmem:[#allocation5 + $0xe0] sm:$0xff] %vm3712, %v3409
      %3742 = vst.msk [vmem:[#allocation5 + $0xe8] sm:$0xff] %vm3712, %v3411
      %3743 = vst.msk [vmem:[#allocation5 + $0xf0] sm:$0xff] %vm3712, %v3413
      %3744 = vst.msk [vmem:[#allocation5 + $0xf8] sm:$0xff] %vm3712, %v3415
      %3745 = vst.msk [vmem:[#allocation5 + $0x100] sm:$0xff] %vm3712, %v3417
      %3746 = vst.msk [vmem:[#allocation5 + $0x108] sm:$0xff] %vm3712, %v3419
      %3747 = vst.msk [vmem:[#allocation5 + $0x110] sm:$0xff] %vm3712, %v3421
      %3748 = vst.msk [vmem:[#allocation5 + $0x118] sm:$0xff] %vm3712, %v3423
      %3749 = vst.msk [vmem:[#allocation5 + $0x120] sm:$0xff] %vm3712, %v3425
      %3750 = vst.msk [vmem:[#allocation5 + $0x128] sm:$0xff] %vm3712, %v3427
      %3751 = vst.msk [vmem:[#allocation5 + $0x130] sm:$0xff] %vm3712, %v3429
      %3752 = vst.msk [vmem:[#allocation5 + $0x138] sm:$0xff] %vm3712, %v3431
      %3753 = vst.msk [vmem:[#allocation5 + $0x140] sm:$0xff] %vm3712, %v3433
      %3754 = vst.msk [vmem:[#allocation5 + $0x148] sm:$0xff] %vm3712, %v3435
      %3755 = vst.msk [vmem:[#allocation5 + $0x150] sm:$0xff] %vm3712, %v3437
      %3756 = vst.msk [vmem:[#allocation5 + $0x158] sm:$0xff] %vm3712, %v3439
      %3757 = vst.msk [vmem:[#allocation5 + $0x160] sm:$0xff] %vm3712, %v3441
      %3758 = vst.msk [vmem:[#allocation5 + $0x168] sm:$0xff] %vm3712, %v3443
      %3759 = vst.msk [vmem:[#allocation5 + $0x170] sm:$0xff] %vm3712, %v3445
      %3760 = vst.msk [vmem:[#allocation5 + $0x178] sm:$0xff] %vm3712, %v3447
      %3761 = vst.msk [vmem:[#allocation5 + $0x180] sm:$0xff] %vm3712, %v3449
      %3762 = vst.msk [vmem:[#allocation5 + $0x188] sm:$0xff] %vm3712, %v3451
      %3763 = vst.msk [vmem:[#allocation5 + $0x190] sm:$0xff] %vm3712, %v3453
      %3764 = vst.msk [vmem:[#allocation5 + $0x198] sm:$0xff] %vm3712, %v3455
      %3765 = vst.msk [vmem:[#allocation5 + $0x1a0] sm:$0xff] %vm3712, %v3457
      %3766 = vst.msk [vmem:[#allocation5 + $0x1a8] sm:$0xff] %vm3712, %v3459
      %3767 = vst.msk [vmem:[#allocation5 + $0x1b0] sm:$0xff] %vm3712, %v3461
      %3768 = vst.msk [vmem:[#allocation5 + $0x1b8] sm:$0xff] %vm3712, %v3463
      %3769 = vst.msk [vmem:[#allocation5 + $0x1c0] sm:$0xff] %vm3712, %v3465
      %3770 = vst.msk [vmem:[#allocation5 + $0x1c8] sm:$0xff] %vm3712, %v3467
      %3771 = vst.msk [vmem:[#allocation5 + $0x1d0] sm:$0xff] %vm3712, %v3469
      %3772 = vst.msk [vmem:[#allocation5 + $0x1d8] sm:$0xff] %vm3712, %v3471
      %3773 = vst.msk [vmem:[#allocation5 + $0x1e0] sm:$0xff] %vm3712, %v3473
      %3774 = vst.msk [vmem:[#allocation5 + $0x1e8] sm:$0xff] %vm3712, %v3475
      %3775 = vst.msk [vmem:[#allocation5 + $0x1f0] sm:$0xff] %vm3712, %v3477
      %3776 = vst.msk [vmem:[#allocation5 + $0x1f8] sm:$0xff] %vm3712, %v3479
      %3777 = vst.msk [vmem:[#allocation5 + $0x200] sm:$0xff] %vm3712, %v3481
      %3778 = vst.msk [vmem:[#allocation5 + $0x208] sm:$0xff] %vm3712, %v3483
      %3779 = vst.msk [vmem:[#allocation5 + $0x210] sm:$0xff] %vm3712, %v3485
      %3780 = vst.msk [vmem:[#allocation5 + $0x218] sm:$0xff] %vm3712, %v3487
      %3781 = vst.msk [vmem:[#allocation5 + $0x220] sm:$0xff] %vm3712, %v3489
      %3782 = vst.msk [vmem:[#allocation5 + $0x228] sm:$0xff] %vm3712, %v3491
      %3783 = vst.msk [vmem:[#allocation5 + $0x230] sm:$0xff] %vm3712, %v3493
      %3784 = vst.msk [vmem:[#allocation5 + $0x238] sm:$0xff] %vm3712, %v3495
      %3785 = vst.msk [vmem:[#allocation5 + $0x240] sm:$0xff] %vm3712, %v3497
      %3786 = vst.msk [vmem:[#allocation5 + $0x248] sm:$0xff] %vm3712, %v3499
      %3787 = vst.msk [vmem:[#allocation5 + $0x250] sm:$0xff] %vm3712, %v3501
      %3788 = vst.msk [vmem:[#allocation5 + $0x258] sm:$0xff] %vm3712, %v3503
      %3789 = vst.msk [vmem:[#allocation5 + $0x260] sm:$0xff] %vm3712, %v3505
      %3790 = vst.msk [vmem:[#allocation5 + $0x268] sm:$0xff] %vm3712, %v3507
      %3791 = vst.msk [vmem:[#allocation5 + $0x270] sm:$0xff] %vm3712, %v3509
      %3792 = vst.msk [vmem:[#allocation5 + $0x278] sm:$0xff] %vm3712, %v3511
      %3793 = vst.msk [vmem:[#allocation5 + $0x280] sm:$0xff] %vm3712, %v3513
      %3794 = vst.msk [vmem:[#allocation5 + $0x288] sm:$0xff] %vm3712, %v3515
      %3795 = vst.msk [vmem:[#allocation5 + $0x290] sm:$0xff] %vm3712, %v3517
      %3796 = vst.msk [vmem:[#allocation5 + $0x298] sm:$0xff] %vm3712, %v3519
      %3797 = vst.msk [vmem:[#allocation5 + $0x2a0] sm:$0xff] %vm3712, %v3521
      %3798 = vst.msk [vmem:[#allocation5 + $0x2a8] sm:$0xff] %vm3712, %v3523
      %3799 = vst.msk [vmem:[#allocation5 + $0x2b0] sm:$0xff] %vm3712, %v3525
      %3800 = vst.msk [vmem:[#allocation5 + $0x2b8] sm:$0xff] %vm3712, %v3527
      %3801 = vst.msk [vmem:[#allocation5 + $0x2c0] sm:$0xff] %vm3712, %v3529
      %3802 = vst.msk [vmem:[#allocation5 + $0x2c8] sm:$0xff] %vm3712, %v3531
      %3803 = vst.msk [vmem:[#allocation5 + $0x2d0] sm:$0xff] %vm3712, %v3533
      %3804 = vst.msk [vmem:[#allocation5 + $0x2d8] sm:$0xff] %vm3712, %v3535
      %3805 = vst.msk [vmem:[#allocation5 + $0x2e0] sm:$0xff] %vm3712, %v3537
      %3806 = vst.msk [vmem:[#allocation5 + $0x2e8] sm:$0xff] %vm3712, %v3539
      %3807 = vst.msk [vmem:[#allocation5 + $0x2f0] sm:$0xff] %vm3712, %v3541
      %3808 = vst.msk [vmem:[#allocation5 + $0x2f8] sm:$0xff] %vm3712, %v3543
      %3809 = vst.msk [vmem:[#allocation5 + $0x300] sm:$0xff] %vm3712, %v3545
      %3810 = vst.msk [vmem:[#allocation5 + $0x308] sm:$0xff] %vm3712, %v3547
      %3811 = vst.msk [vmem:[#allocation5 + $0x310] sm:$0xff] %vm3712, %v3549
      %3812 = vst.msk [vmem:[#allocation5 + $0x318] sm:$0xff] %vm3712, %v3551
      %3813 = vst.msk [vmem:[#allocation5 + $0x320] sm:$0xff] %vm3712, %v3553
      %3814 = vst.msk [vmem:[#allocation5 + $0x328] sm:$0xff] %vm3712, %v3555
      %3815 = vst.msk [vmem:[#allocation5 + $0x330] sm:$0xff] %vm3712, %v3557
      %3816 = vst.msk [vmem:[#allocation5 + $0x338] sm:$0xff] %vm3712, %v3559
      %3817 = vst.msk [vmem:[#allocation5 + $0x340] sm:$0xff] %vm3712, %v3561
      %3818 = vst.msk [vmem:[#allocation5 + $0x348] sm:$0xff] %vm3712, %v3563
      %3819 = vst.msk [vmem:[#allocation5 + $0x350] sm:$0xff] %vm3712, %v3565
      %3820 = vst.msk [vmem:[#allocation5 + $0x358] sm:$0xff] %vm3712, %v3567
      %3821 = vst.msk [vmem:[#allocation5 + $0x360] sm:$0xff] %vm3712, %v3569
      %3822 = vst.msk [vmem:[#allocation5 + $0x368] sm:$0xff] %vm3712, %v3571
      %3823 = vst.msk [vmem:[#allocation5 + $0x370] sm:$0xff] %vm3712, %v3573
      %3824 = vst.msk [vmem:[#allocation5 + $0x378] sm:$0xff] %vm3712, %v3575
      %3825 = vst.msk [vmem:[#allocation5 + $0x380] sm:$0xff] %vm3712, %v3577
      %3826 = vst.msk [vmem:[#allocation5 + $0x388] sm:$0xff] %vm3712, %v3579
      %3827 = vst.msk [vmem:[#allocation5 + $0x390] sm:$0xff] %vm3712, %v3581
      %3828 = vst.msk [vmem:[#allocation5 + $0x398] sm:$0xff] %vm3712, %v3583
      %3829 = vst.msk [vmem:[#allocation5 + $0x3a0] sm:$0xff] %vm3712, %v3585
      %3830 = vst.msk [vmem:[#allocation5 + $0x3a8] sm:$0xff] %vm3712, %v3587
      %3831 = vst.msk [vmem:[#allocation5 + $0x3b0] sm:$0xff] %vm3712, %v3589
      %3832 = vst.msk [vmem:[#allocation5 + $0x3b8] sm:$0xff] %vm3712, %v3591
      %v3833 = vld [vmem:[%s1669 + $0x1] sm:$0xff]
      %v3834 = vld [vmem:[%s1669 + $0x9] sm:$0xff]
      %v3835 = vld [vmem:[%s1669 + $0x19] sm:$0xff]
      %v3836 = vld [vmem:[%s1669 + $0x21] sm:$0xff]
      %v3837 = vld [vmem:[%s1669 + $0x31] sm:$0xff]
      %v3838 = vld [vmem:[%s1669 + $0x39] sm:$0xff]
      %v3839 = vld [vmem:[%s1669 + $0x49] sm:$0xff]
      %v3840 = vld [vmem:[%s1669 + $0x51] sm:$0xff]
      %v3841 = vld [vmem:[%s1669 + $0x61] sm:$0xff]
      %v3842 = vld [vmem:[%s1669 + $0x69] sm:$0xff]
      %v3843 = vld [vmem:[%s1669 + $0x79] sm:$0xff]
      %v3844 = vld [vmem:[%s1669 + $0x81] sm:$0xff]
      %v3845 = vld [vmem:[%s1669 + $0x91] sm:$0xff]
      %v3846 = vld [vmem:[%s1669 + $0x99] sm:$0xff]
      %v3847 = vld [vmem:[%s1669 + $0xa9] sm:$0xff]
      %v3848 = vld [vmem:[%s1669 + $0xb1] sm:$0xff]
      %v3849 = vld [vmem:[%s1669 + $0xc1] sm:$0xff]
      %v3850 = vld [vmem:[%s1669 + $0xc9] sm:$0xff]
      %v3851 = vld [vmem:[%s1669 + $0xd9] sm:$0xff]
      %v3852 = vld [vmem:[%s1669 + $0xe1] sm:$0xff]
      %v3853 = vld [vmem:[%s1669 + $0xf1] sm:$0xff]
      %v3854 = vld [vmem:[%s1669 + $0xf9] sm:$0xff]
      %v3855 = vld [vmem:[%s1669 + $0x109] sm:$0xff]
      %v3856 = vld [vmem:[%s1669 + $0x111] sm:$0xff]
      %v3857 = vld [vmem:[%s1669 + $0x121] sm:$0xff]
      %v3858 = vld [vmem:[%s1669 + $0x129] sm:$0xff]
      %v3859 = vld [vmem:[%s1669 + $0x139] sm:$0xff]
      %v3860 = vld [vmem:[%s1669 + $0x141] sm:$0xff]
      %v3861 = vld [vmem:[%s1669 + $0x151] sm:$0xff]
      %v3862 = vld [vmem:[%s1669 + $0x159] sm:$0xff]
      %v3863 = vld [vmem:[%s1669 + $0x169] sm:$0xff]
      %v3864 = vld [vmem:[%s1669 + $0x171] sm:$0xff]
      %v3865 = vld [vmem:[%s1669 + $0x181] sm:$0xff]
      %v3866 = vld [vmem:[%s1669 + $0x189] sm:$0xff]
      %v3867 = vld [vmem:[%s1669 + $0x199] sm:$0xff]
      %v3868 = vld [vmem:[%s1669 + $0x1a1] sm:$0xff]
      %v3869 = vld [vmem:[%s1669 + $0x1b1] sm:$0xff]
      %v3870 = vld [vmem:[%s1669 + $0x1b9] sm:$0xff]
      %v3871 = vld [vmem:[%s1669 + $0x1c9] sm:$0xff]
      %v3872 = vld [vmem:[%s1669 + $0x1d1] sm:$0xff]
      %v3873 = vld [vmem:[%s1669 + $0x1e1] sm:$0xff]
      %v3874 = vld [vmem:[%s1669 + $0x1e9] sm:$0xff]
      %v3875 = vld [vmem:[%s1669 + $0x1f9] sm:$0xff]
      %v3876 = vld [vmem:[%s1669 + $0x201] sm:$0xff]
      %v3877 = vld [vmem:[%s1669 + $0x211] sm:$0xff]
      %v3878 = vld [vmem:[%s1669 + $0x219] sm:$0xff]
      %v3879 = vld [vmem:[%s1669 + $0x229] sm:$0xff]
      %v3880 = vld [vmem:[%s1669 + $0x231] sm:$0xff]
      %v3881 = vld [vmem:[%s1669 + $0x241] sm:$0xff]
      %v3882 = vld [vmem:[%s1669 + $0x249] sm:$0xff]
      %v3883 = vld [vmem:[%s1669 + $0x259] sm:$0xff]
      %v3884 = vld [vmem:[%s1669 + $0x261] sm:$0xff]
      %v3885 = vld [vmem:[%s1669 + $0x271] sm:$0xff]
      %v3886 = vld [vmem:[%s1669 + $0x279] sm:$0xff]
      %v3887 = vld [vmem:[%s1669 + $0x289] sm:$0xff]
      %v3888 = vld [vmem:[%s1669 + $0x291] sm:$0xff]
      %v3889 = vld [vmem:[%s1669 + $0x2a1] sm:$0xff]
      %v3890 = vld [vmem:[%s1669 + $0x2a9] sm:$0xff]
      %v3891 = vld [vmem:[%s1669 + $0x2b9] sm:$0xff]
      %v3892 = vld [vmem:[%s1669 + $0x2c1] sm:$0xff]
      %v3893 = vld [vmem:[%s1669 + $0x2d1] sm:$0xff]
      %v3894 = vld [vmem:[%s1669 + $0x2d9] sm:$0xff]
      %v3895 = vld [vmem:[%s1669 + $0x2e9] sm:$0xff]
      %v3896 = vld [vmem:[%s1669 + $0x2f1] sm:$0xff]
      %v3897 = vld [vmem:[%s1669 + $0x301] sm:$0xff]
      %v3898 = vld [vmem:[%s1669 + $0x309] sm:$0xff]
      %v3899 = vld [vmem:[%s1669 + $0x319] sm:$0xff]
      %v3900 = vld [vmem:[%s1669 + $0x321] sm:$0xff]
      %v3901 = vld [vmem:[%s1669 + $0x331] sm:$0xff]
      %v3902 = vld [vmem:[%s1669 + $0x339] sm:$0xff]
      %v3903 = vld [vmem:[%s1669 + $0x349] sm:$0xff]
      %v3904 = vld [vmem:[%s1669 + $0x351] sm:$0xff]
      %v3905 = vld [vmem:[%s1669 + $0x361] sm:$0xff]
      %v3906 = vld [vmem:[%s1669 + $0x369] sm:$0xff]
      %v3907 = vld [vmem:[%s1669 + $0x379] sm:$0xff]
      %v3908 = vld [vmem:[%s1669 + $0x381] sm:$0xff]
      %v3909 = vld [vmem:[%s1669 + $0x391] sm:$0xff]
      %v3910 = vld [vmem:[%s1669 + $0x399] sm:$0xff]
      %v3911 = vld [vmem:[%s1669 + $0x3a9] sm:$0xff]
      %v3912 = vld [vmem:[%s1669 + $0x3b1] sm:$0xff]
      %v3913 = vld [vmem:[%s1669 + $0x3c1] sm:$0xff]
      %v3914 = vld [vmem:[%s1669 + $0x3c9] sm:$0xff]
      %v3915 = vld [vmem:[%s1669 + $0x3d9] sm:$0xff]
      %v3916 = vld [vmem:[%s1669 + $0x3e1] sm:$0xff]
      %v3917 = vld [vmem:[%s1669 + $0x3f1] sm:$0xff]
      %v3918 = vld [vmem:[%s1669 + $0x3f9] sm:$0xff]
      %v3919 = vld [vmem:[%s1669 + $0x409] sm:$0xff]
      %v3920 = vld [vmem:[%s1669 + $0x411] sm:$0xff]
      %v3921 = vld [vmem:[%s1669 + $0x421] sm:$0xff]
      %v3922 = vld [vmem:[%s1669 + $0x429] sm:$0xff]
      %v3923 = vld [vmem:[%s1669 + $0x439] sm:$0xff]
      %v3924 = vld [vmem:[%s1669 + $0x441] sm:$0xff]
      %v3925 = vld [vmem:[%s1669 + $0x451] sm:$0xff]
      %v3926 = vld [vmem:[%s1669 + $0x459] sm:$0xff]
      %v3927 = vld [vmem:[%s1669 + $0x469] sm:$0xff]
      %v3928 = vld [vmem:[%s1669 + $0x471] sm:$0xff]
      %v3929 = vld [vmem:[%s1669 + $0x481] sm:$0xff]
      %v3930 = vld [vmem:[%s1669 + $0x489] sm:$0xff]
      %v3931 = vld [vmem:[%s1669 + $0x499] sm:$0xff]
      %v3932 = vld [vmem:[%s1669 + $0x4a1] sm:$0xff]
      %v3933 = vld [vmem:[%s1669 + $0x4b1] sm:$0xff]
      %v3934 = vld [vmem:[%s1669 + $0x4b9] sm:$0xff]
      %v3935 = vld [vmem:[%s1669 + $0x4c9] sm:$0xff]
      %v3936 = vld [vmem:[%s1669 + $0x4d1] sm:$0xff]
      %v3937 = vld [vmem:[%s1669 + $0x4e1] sm:$0xff]
      %v3938 = vld [vmem:[%s1669 + $0x4e9] sm:$0xff]
      %v3939 = vld [vmem:[%s1669 + $0x4f9] sm:$0xff]
      %v3940 = vld [vmem:[%s1669 + $0x501] sm:$0xff]
      %v3941 = vld [vmem:[%s1669 + $0x511] sm:$0xff]
      %v3942 = vld [vmem:[%s1669 + $0x519] sm:$0xff]
      %v3943 = vld [vmem:[%s1669 + $0x529] sm:$0xff]
      %v3944 = vld [vmem:[%s1669 + $0x531] sm:$0xff]
      %v3945 = vld [vmem:[%s1669 + $0x541] sm:$0xff]
      %v3946 = vld [vmem:[%s1669 + $0x549] sm:$0xff]
      %v3947 = vld [vmem:[%s1669 + $0x559] sm:$0xff]
      %v3948 = vld [vmem:[%s1669 + $0x561] sm:$0xff]
      %v3949 = vld [vmem:[%s1669 + $0x571] sm:$0xff]
      %v3950 = vld [vmem:[%s1669 + $0x579] sm:$0xff]
      %v3951 = vld [vmem:[%s1669 + $0x589] sm:$0xff]
      %v3952 = vld [vmem:[%s1669 + $0x591] sm:$0xff]
      %4073 = vrot.lane.b32.xlu0 %v3833, 20
      %v4074 = vpop.permute.xlu0 %4073
      %4075 = vrot.lane.b32.xlu0 %v3834, 20
      %v4076 = vpop.permute.xlu0 %4075
      %4077 = vrot.lane.b32.xlu0 %v3835, 20
      %v4078 = vpop.permute.xlu0 %4077
      %4079 = vrot.lane.b32.xlu0 %v3836, 20
      %v4080 = vpop.permute.xlu0 %4079
      %4081 = vrot.lane.b32.xlu0 %v3837, 20
      %v4082 = vpop.permute.xlu0 %4081
      %4083 = vrot.lane.b32.xlu0 %v3838, 20
      %v4084 = vpop.permute.xlu0 %4083
      %4085 = vrot.lane.b32.xlu0 %v3839, 20
      %v4086 = vpop.permute.xlu0 %4085
      %4087 = vrot.lane.b32.xlu0 %v3840, 20
      %v4088 = vpop.permute.xlu0 %4087
      %4089 = vrot.lane.b32.xlu0 %v3841, 20
      %v4090 = vpop.permute.xlu0 %4089
      %4091 = vrot.lane.b32.xlu0 %v3842, 20
      %v4092 = vpop.permute.xlu0 %4091
      %4093 = vrot.lane.b32.xlu0 %v3843, 20
      %v4094 = vpop.permute.xlu0 %4093
      %4095 = vrot.lane.b32.xlu0 %v3844, 20
      %v4096 = vpop.permute.xlu0 %4095
      %4097 = vrot.lane.b32.xlu0 %v3845, 20
      %v4098 = vpop.permute.xlu0 %4097
      %4099 = vrot.lane.b32.xlu0 %v3846, 20
      %v4100 = vpop.permute.xlu0 %4099
      %4101 = vrot.lane.b32.xlu0 %v3847, 20
      %v4102 = vpop.permute.xlu0 %4101
      %4103 = vrot.lane.b32.xlu0 %v3848, 20
      %v4104 = vpop.permute.xlu0 %4103
      %4105 = vrot.lane.b32.xlu0 %v3849, 20
      %v4106 = vpop.permute.xlu0 %4105
      %4107 = vrot.lane.b32.xlu0 %v3850, 20
      %v4108 = vpop.permute.xlu0 %4107
      %4109 = vrot.lane.b32.xlu0 %v3851, 20
      %v4110 = vpop.permute.xlu0 %4109
      %4111 = vrot.lane.b32.xlu0 %v3852, 20
      %v4112 = vpop.permute.xlu0 %4111
      %4113 = vrot.lane.b32.xlu0 %v3853, 20
      %v4114 = vpop.permute.xlu0 %4113
      %4115 = vrot.lane.b32.xlu0 %v3854, 20
      %v4116 = vpop.permute.xlu0 %4115
      %4117 = vrot.lane.b32.xlu0 %v3855, 20
      %v4118 = vpop.permute.xlu0 %4117
      %4119 = vrot.lane.b32.xlu0 %v3856, 20
      %v4120 = vpop.permute.xlu0 %4119
      %4121 = vrot.lane.b32.xlu0 %v3857, 20
      %v4122 = vpop.permute.xlu0 %4121
      %4123 = vrot.lane.b32.xlu0 %v3858, 20
      %v4124 = vpop.permute.xlu0 %4123
      %4125 = vrot.lane.b32.xlu0 %v3859, 20
      %v4126 = vpop.permute.xlu0 %4125
      %4127 = vrot.lane.b32.xlu0 %v3860, 20
      %v4128 = vpop.permute.xlu0 %4127
      %4129 = vrot.lane.b32.xlu0 %v3861, 20
      %v4130 = vpop.permute.xlu0 %4129
      %4131 = vrot.lane.b32.xlu0 %v3862, 20
      %v4132 = vpop.permute.xlu0 %4131
      %4133 = vrot.lane.b32.xlu0 %v3863, 20
      %v4134 = vpop.permute.xlu0 %4133
      %4135 = vrot.lane.b32.xlu0 %v3864, 20
      %v4136 = vpop.permute.xlu0 %4135
      %4137 = vrot.lane.b32.xlu0 %v3865, 20
      %v4138 = vpop.permute.xlu0 %4137
      %4139 = vrot.lane.b32.xlu0 %v3866, 20
      %v4140 = vpop.permute.xlu0 %4139
      %4141 = vrot.lane.b32.xlu0 %v3867, 20
      %v4142 = vpop.permute.xlu0 %4141
      %4143 = vrot.lane.b32.xlu0 %v3868, 20
      %v4144 = vpop.permute.xlu0 %4143
      %4145 = vrot.lane.b32.xlu0 %v3869, 20
      %v4146 = vpop.permute.xlu0 %4145
      %4147 = vrot.lane.b32.xlu0 %v3870, 20
      %v4148 = vpop.permute.xlu0 %4147
      %4149 = vrot.lane.b32.xlu0 %v3871, 20
      %v4150 = vpop.permute.xlu0 %4149
      %4151 = vrot.lane.b32.xlu0 %v3872, 20
      %v4152 = vpop.permute.xlu0 %4151
      %4153 = vrot.lane.b32.xlu0 %v3873, 20
      %v4154 = vpop.permute.xlu0 %4153
      %4155 = vrot.lane.b32.xlu0 %v3874, 20
      %v4156 = vpop.permute.xlu0 %4155
      %4157 = vrot.lane.b32.xlu0 %v3875, 20
      %v4158 = vpop.permute.xlu0 %4157
      %4159 = vrot.lane.b32.xlu0 %v3876, 20
      %v4160 = vpop.permute.xlu0 %4159
      %4161 = vrot.lane.b32.xlu0 %v3877, 20
      %v4162 = vpop.permute.xlu0 %4161
      %4163 = vrot.lane.b32.xlu0 %v3878, 20
      %v4164 = vpop.permute.xlu0 %4163
      %4165 = vrot.lane.b32.xlu0 %v3879, 20
      %v4166 = vpop.permute.xlu0 %4165
      %4167 = vrot.lane.b32.xlu0 %v3880, 20
      %v4168 = vpop.permute.xlu0 %4167
      %4169 = vrot.lane.b32.xlu0 %v3881, 20
      %v4170 = vpop.permute.xlu0 %4169
      %4171 = vrot.lane.b32.xlu0 %v3882, 20
      %v4172 = vpop.permute.xlu0 %4171
      %4173 = vrot.lane.b32.xlu0 %v3883, 20
      %v4174 = vpop.permute.xlu0 %4173
      %4175 = vrot.lane.b32.xlu0 %v3884, 20
      %v4176 = vpop.permute.xlu0 %4175
      %4177 = vrot.lane.b32.xlu0 %v3885, 20
      %v4178 = vpop.permute.xlu0 %4177
      %4179 = vrot.lane.b32.xlu0 %v3886, 20
      %v4180 = vpop.permute.xlu0 %4179
      %4181 = vrot.lane.b32.xlu0 %v3887, 20
      %v4182 = vpop.permute.xlu0 %4181
      %4183 = vrot.lane.b32.xlu0 %v3888, 20
      %v4184 = vpop.permute.xlu0 %4183
      %4185 = vrot.lane.b32.xlu0 %v3889, 20
      %v4186 = vpop.permute.xlu0 %4185
      %4187 = vrot.lane.b32.xlu0 %v3890, 20
      %v4188 = vpop.permute.xlu0 %4187
      %4189 = vrot.lane.b32.xlu0 %v3891, 20
      %v4190 = vpop.permute.xlu0 %4189
      %4191 = vrot.lane.b32.xlu0 %v3892, 20
      %v4192 = vpop.permute.xlu0 %4191
      %4193 = vrot.lane.b32.xlu0 %v3893, 20
      %v4194 = vpop.permute.xlu0 %4193
      %4195 = vrot.lane.b32.xlu0 %v3894, 20
      %v4196 = vpop.permute.xlu0 %4195
      %4197 = vrot.lane.b32.xlu0 %v3895, 20
      %v4198 = vpop.permute.xlu0 %4197
      %4199 = vrot.lane.b32.xlu0 %v3896, 20
      %v4200 = vpop.permute.xlu0 %4199
      %4201 = vrot.lane.b32.xlu0 %v3897, 20
      %v4202 = vpop.permute.xlu0 %4201
      %4203 = vrot.lane.b32.xlu0 %v3898, 20
      %v4204 = vpop.permute.xlu0 %4203
      %4205 = vrot.lane.b32.xlu0 %v3899, 20
      %v4206 = vpop.permute.xlu0 %4205
      %4207 = vrot.lane.b32.xlu0 %v3900, 20
      %v4208 = vpop.permute.xlu0 %4207
      %4209 = vrot.lane.b32.xlu0 %v3901, 20
      %v4210 = vpop.permute.xlu0 %4209
      %4211 = vrot.lane.b32.xlu0 %v3902, 20
      %v4212 = vpop.permute.xlu0 %4211
      %4213 = vrot.lane.b32.xlu0 %v3903, 20
      %v4214 = vpop.permute.xlu0 %4213
      %4215 = vrot.lane.b32.xlu0 %v3904, 20
      %v4216 = vpop.permute.xlu0 %4215
      %4217 = vrot.lane.b32.xlu0 %v3905, 20
      %v4218 = vpop.permute.xlu0 %4217
      %4219 = vrot.lane.b32.xlu0 %v3906, 20
      %v4220 = vpop.permute.xlu0 %4219
      %4221 = vrot.lane.b32.xlu0 %v3907, 20
      %v4222 = vpop.permute.xlu0 %4221
      %4223 = vrot.lane.b32.xlu0 %v3908, 20
      %v4224 = vpop.permute.xlu0 %4223
      %4225 = vrot.lane.b32.xlu0 %v3909, 20
      %v4226 = vpop.permute.xlu0 %4225
      %4227 = vrot.lane.b32.xlu0 %v3910, 20
      %v4228 = vpop.permute.xlu0 %4227
      %4229 = vrot.lane.b32.xlu0 %v3911, 20
      %v4230 = vpop.permute.xlu0 %4229
      %4231 = vrot.lane.b32.xlu0 %v3912, 20
      %v4232 = vpop.permute.xlu0 %4231
      %4233 = vrot.lane.b32.xlu0 %v3913, 20
      %v4234 = vpop.permute.xlu0 %4233
      %4235 = vrot.lane.b32.xlu0 %v3914, 20
      %v4236 = vpop.permute.xlu0 %4235
      %4237 = vrot.lane.b32.xlu0 %v3915, 20
      %v4238 = vpop.permute.xlu0 %4237
      %4239 = vrot.lane.b32.xlu0 %v3916, 20
      %v4240 = vpop.permute.xlu0 %4239
      %4241 = vrot.lane.b32.xlu0 %v3917, 20
      %v4242 = vpop.permute.xlu0 %4241
      %4243 = vrot.lane.b32.xlu0 %v3918, 20
      %v4244 = vpop.permute.xlu0 %4243
      %4245 = vrot.lane.b32.xlu0 %v3919, 20
      %v4246 = vpop.permute.xlu0 %4245
      %4247 = vrot.lane.b32.xlu0 %v3920, 20
      %v4248 = vpop.permute.xlu0 %4247
      %4249 = vrot.lane.b32.xlu0 %v3921, 20
      %v4250 = vpop.permute.xlu0 %4249
      %4251 = vrot.lane.b32.xlu0 %v3922, 20
      %v4252 = vpop.permute.xlu0 %4251
      %4253 = vrot.lane.b32.xlu0 %v3923, 20
      %v4254 = vpop.permute.xlu0 %4253
      %4255 = vrot.lane.b32.xlu0 %v3924, 20
      %v4256 = vpop.permute.xlu0 %4255
      %4257 = vrot.lane.b32.xlu0 %v3925, 20
      %v4258 = vpop.permute.xlu0 %4257
      %4259 = vrot.lane.b32.xlu0 %v3926, 20
      %v4260 = vpop.permute.xlu0 %4259
      %4261 = vrot.lane.b32.xlu0 %v3927, 20
      %v4262 = vpop.permute.xlu0 %4261
      %4263 = vrot.lane.b32.xlu0 %v3928, 20
      %v4264 = vpop.permute.xlu0 %4263
      %4265 = vrot.lane.b32.xlu0 %v3929, 20
      %v4266 = vpop.permute.xlu0 %4265
      %4267 = vrot.lane.b32.xlu0 %v3930, 20
      %v4268 = vpop.permute.xlu0 %4267
      %4269 = vrot.lane.b32.xlu0 %v3931, 20
      %v4270 = vpop.permute.xlu0 %4269
      %4271 = vrot.lane.b32.xlu0 %v3932, 20
      %v4272 = vpop.permute.xlu0 %4271
      %4273 = vrot.lane.b32.xlu0 %v3933, 20
      %v4274 = vpop.permute.xlu0 %4273
      %4275 = vrot.lane.b32.xlu0 %v3934, 20
      %v4276 = vpop.permute.xlu0 %4275
      %4277 = vrot.lane.b32.xlu0 %v3935, 20
      %v4278 = vpop.permute.xlu0 %4277
      %4279 = vrot.lane.b32.xlu0 %v3936, 20
      %v4280 = vpop.permute.xlu0 %4279
      %4281 = vrot.lane.b32.xlu0 %v3937, 20
      %v4282 = vpop.permute.xlu0 %4281
      %4283 = vrot.lane.b32.xlu0 %v3938, 20
      %v4284 = vpop.permute.xlu0 %4283
      %4285 = vrot.lane.b32.xlu0 %v3939, 20
      %v4286 = vpop.permute.xlu0 %4285
      %4287 = vrot.lane.b32.xlu0 %v3940, 20
      %v4288 = vpop.permute.xlu0 %4287
      %4289 = vrot.lane.b32.xlu0 %v3941, 20
      %v4290 = vpop.permute.xlu0 %4289
      %4291 = vrot.lane.b32.xlu0 %v3942, 20
      %v4292 = vpop.permute.xlu0 %4291
      %4293 = vrot.lane.b32.xlu0 %v3943, 20
      %v4294 = vpop.permute.xlu0 %4293
      %4295 = vrot.lane.b32.xlu0 %v3944, 20
      %v4296 = vpop.permute.xlu0 %4295
      %4297 = vrot.lane.b32.xlu0 %v3945, 20
      %v4298 = vpop.permute.xlu0 %4297
      %4299 = vrot.lane.b32.xlu0 %v3946, 20
      %v4300 = vpop.permute.xlu0 %4299
      %4301 = vrot.lane.b32.xlu0 %v3947, 20
      %v4302 = vpop.permute.xlu0 %4301
      %4303 = vrot.lane.b32.xlu0 %v3948, 20
      %v4304 = vpop.permute.xlu0 %4303
      %4305 = vrot.lane.b32.xlu0 %v3949, 20
      %v4306 = vpop.permute.xlu0 %4305
      %4307 = vrot.lane.b32.xlu0 %v3950, 20
      %v4308 = vpop.permute.xlu0 %4307
      %4309 = vrot.lane.b32.xlu0 %v3951, 20
      %v4310 = vpop.permute.xlu0 %4309
      %4311 = vrot.lane.b32.xlu0 %v3952, 20
      %v4312 = vpop.permute.xlu0 %4311
      %vm4433 = vcmask 195744
      %4434 = vst.msk [vmem:[#allocation5] sm:$0xff] %vm4433, %v4074
      %4435 = vst.msk [vmem:[#allocation5 + $0x8] sm:$0xff] %vm4433, %v4076
      %4436 = vst.msk [vmem:[#allocation5 + $0x10] sm:$0xff] %vm4433, %v4078
      %4437 = vst.msk [vmem:[#allocation5 + $0x18] sm:$0xff] %vm4433, %v4080
      %4438 = vst.msk [vmem:[#allocation5 + $0x20] sm:$0xff] %vm4433, %v4082
      %4439 = vst.msk [vmem:[#allocation5 + $0x28] sm:$0xff] %vm4433, %v4084
      %4440 = vst.msk [vmem:[#allocation5 + $0x30] sm:$0xff] %vm4433, %v4086
      %4441 = vst.msk [vmem:[#allocation5 + $0x38] sm:$0xff] %vm4433, %v4088
      %4442 = vst.msk [vmem:[#allocation5 + $0x40] sm:$0xff] %vm4433, %v4090
      %4443 = vst.msk [vmem:[#allocation5 + $0x48] sm:$0xff] %vm4433, %v4092
      %4444 = vst.msk [vmem:[#allocation5 + $0x50] sm:$0xff] %vm4433, %v4094
      %4445 = vst.msk [vmem:[#allocation5 + $0x58] sm:$0xff] %vm4433, %v4096
      %4446 = vst.msk [vmem:[#allocation5 + $0x60] sm:$0xff] %vm4433, %v4098
      %4447 = vst.msk [vmem:[#allocation5 + $0x68] sm:$0xff] %vm4433, %v4100
      %4448 = vst.msk [vmem:[#allocation5 + $0x70] sm:$0xff] %vm4433, %v4102
      %4449 = vst.msk [vmem:[#allocation5 + $0x78] sm:$0xff] %vm4433, %v4104
      %4450 = vst.msk [vmem:[#allocation5 + $0x80] sm:$0xff] %vm4433, %v4106
      %4451 = vst.msk [vmem:[#allocation5 + $0x88] sm:$0xff] %vm4433, %v4108
      %4452 = vst.msk [vmem:[#allocation5 + $0x90] sm:$0xff] %vm4433, %v4110
      %4453 = vst.msk [vmem:[#allocation5 + $0x98] sm:$0xff] %vm4433, %v4112
      %4454 = vst.msk [vmem:[#allocation5 + $0xa0] sm:$0xff] %vm4433, %v4114
      %4455 = vst.msk [vmem:[#allocation5 + $0xa8] sm:$0xff] %vm4433, %v4116
      %4456 = vst.msk [vmem:[#allocation5 + $0xb0] sm:$0xff] %vm4433, %v4118
      %4457 = vst.msk [vmem:[#allocation5 + $0xb8] sm:$0xff] %vm4433, %v4120
      %4458 = vst.msk [vmem:[#allocation5 + $0xc0] sm:$0xff] %vm4433, %v4122
      %4459 = vst.msk [vmem:[#allocation5 + $0xc8] sm:$0xff] %vm4433, %v4124
      %4460 = vst.msk [vmem:[#allocation5 + $0xd0] sm:$0xff] %vm4433, %v4126
      %4461 = vst.msk [vmem:[#allocation5 + $0xd8] sm:$0xff] %vm4433, %v4128
      %4462 = vst.msk [vmem:[#allocation5 + $0xe0] sm:$0xff] %vm4433, %v4130
      %4463 = vst.msk [vmem:[#allocation5 + $0xe8] sm:$0xff] %vm4433, %v4132
      %4464 = vst.msk [vmem:[#allocation5 + $0xf0] sm:$0xff] %vm4433, %v4134
      %4465 = vst.msk [vmem:[#allocation5 + $0xf8] sm:$0xff] %vm4433, %v4136
      %4466 = vst.msk [vmem:[#allocation5 + $0x100] sm:$0xff] %vm4433, %v4138
      %4467 = vst.msk [vmem:[#allocation5 + $0x108] sm:$0xff] %vm4433, %v4140
      %4468 = vst.msk [vmem:[#allocation5 + $0x110] sm:$0xff] %vm4433, %v4142
      %4469 = vst.msk [vmem:[#allocation5 + $0x118] sm:$0xff] %vm4433, %v4144
      %4470 = vst.msk [vmem:[#allocation5 + $0x120] sm:$0xff] %vm4433, %v4146
      %4471 = vst.msk [vmem:[#allocation5 + $0x128] sm:$0xff] %vm4433, %v4148
      %4472 = vst.msk [vmem:[#allocation5 + $0x130] sm:$0xff] %vm4433, %v4150
      %4473 = vst.msk [vmem:[#allocation5 + $0x138] sm:$0xff] %vm4433, %v4152
      %4474 = vst.msk [vmem:[#allocation5 + $0x140] sm:$0xff] %vm4433, %v4154
      %4475 = vst.msk [vmem:[#allocation5 + $0x148] sm:$0xff] %vm4433, %v4156
      %4476 = vst.msk [vmem:[#allocation5 + $0x150] sm:$0xff] %vm4433, %v4158
      %4477 = vst.msk [vmem:[#allocation5 + $0x158] sm:$0xff] %vm4433, %v4160
      %4478 = vst.msk [vmem:[#allocation5 + $0x160] sm:$0xff] %vm4433, %v4162
      %4479 = vst.msk [vmem:[#allocation5 + $0x168] sm:$0xff] %vm4433, %v4164
      %4480 = vst.msk [vmem:[#allocation5 + $0x170] sm:$0xff] %vm4433, %v4166
      %4481 = vst.msk [vmem:[#allocation5 + $0x178] sm:$0xff] %vm4433, %v4168
      %4482 = vst.msk [vmem:[#allocation5 + $0x180] sm:$0xff] %vm4433, %v4170
      %4483 = vst.msk [vmem:[#allocation5 + $0x188] sm:$0xff] %vm4433, %v4172
      %4484 = vst.msk [vmem:[#allocation5 + $0x190] sm:$0xff] %vm4433, %v4174
      %4485 = vst.msk [vmem:[#allocation5 + $0x198] sm:$0xff] %vm4433, %v4176
      %4486 = vst.msk [vmem:[#allocation5 + $0x1a0] sm:$0xff] %vm4433, %v4178
      %4487 = vst.msk [vmem:[#allocation5 + $0x1a8] sm:$0xff] %vm4433, %v4180
      %4488 = vst.msk [vmem:[#allocation5 + $0x1b0] sm:$0xff] %vm4433, %v4182
      %4489 = vst.msk [vmem:[#allocation5 + $0x1b8] sm:$0xff] %vm4433, %v4184
      %4490 = vst.msk [vmem:[#allocation5 + $0x1c0] sm:$0xff] %vm4433, %v4186
      %4491 = vst.msk [vmem:[#allocation5 + $0x1c8] sm:$0xff] %vm4433, %v4188
      %4492 = vst.msk [vmem:[#allocation5 + $0x1d0] sm:$0xff] %vm4433, %v4190
      %4493 = vst.msk [vmem:[#allocation5 + $0x1d8] sm:$0xff] %vm4433, %v4192
      %4494 = vst.msk [vmem:[#allocation5 + $0x1e0] sm:$0xff] %vm4433, %v4194
      %4495 = vst.msk [vmem:[#allocation5 + $0x1e8] sm:$0xff] %vm4433, %v4196
      %4496 = vst.msk [vmem:[#allocation5 + $0x1f0] sm:$0xff] %vm4433, %v4198
      %4497 = vst.msk [vmem:[#allocation5 + $0x1f8] sm:$0xff] %vm4433, %v4200
      %4498 = vst.msk [vmem:[#allocation5 + $0x200] sm:$0xff] %vm4433, %v4202
      %4499 = vst.msk [vmem:[#allocation5 + $0x208] sm:$0xff] %vm4433, %v4204
      %4500 = vst.msk [vmem:[#allocation5 + $0x210] sm:$0xff] %vm4433, %v4206
      %4501 = vst.msk [vmem:[#allocation5 + $0x218] sm:$0xff] %vm4433, %v4208
      %4502 = vst.msk [vmem:[#allocation5 + $0x220] sm:$0xff] %vm4433, %v4210
      %4503 = vst.msk [vmem:[#allocation5 + $0x228] sm:$0xff] %vm4433, %v4212
      %4504 = vst.msk [vmem:[#allocation5 + $0x230] sm:$0xff] %vm4433, %v4214
      %4505 = vst.msk [vmem:[#allocation5 + $0x238] sm:$0xff] %vm4433, %v4216
      %4506 = vst.msk [vmem:[#allocation5 + $0x240] sm:$0xff] %vm4433, %v4218
      %4507 = vst.msk [vmem:[#allocation5 + $0x248] sm:$0xff] %vm4433, %v4220
      %4508 = vst.msk [vmem:[#allocation5 + $0x250] sm:$0xff] %vm4433, %v4222
      %4509 = vst.msk [vmem:[#allocation5 + $0x258] sm:$0xff] %vm4433, %v4224
      %4510 = vst.msk [vmem:[#allocation5 + $0x260] sm:$0xff] %vm4433, %v4226
      %4511 = vst.msk [vmem:[#allocation5 + $0x268] sm:$0xff] %vm4433, %v4228
      %4512 = vst.msk [vmem:[#allocation5 + $0x270] sm:$0xff] %vm4433, %v4230
      %4513 = vst.msk [vmem:[#allocation5 + $0x278] sm:$0xff] %vm4433, %v4232
      %4514 = vst.msk [vmem:[#allocation5 + $0x280] sm:$0xff] %vm4433, %v4234
      %4515 = vst.msk [vmem:[#allocation5 + $0x288] sm:$0xff] %vm4433, %v4236
      %4516 = vst.msk [vmem:[#allocation5 + $0x290] sm:$0xff] %vm4433, %v4238
      %4517 = vst.msk [vmem:[#allocation5 + $0x298] sm:$0xff] %vm4433, %v4240
      %4518 = vst.msk [vmem:[#allocation5 + $0x2a0] sm:$0xff] %vm4433, %v4242
      %4519 = vst.msk [vmem:[#allocation5 + $0x2a8] sm:$0xff] %vm4433, %v4244
      %4520 = vst.msk [vmem:[#allocation5 + $0x2b0] sm:$0xff] %vm4433, %v4246
      %4521 = vst.msk [vmem:[#allocation5 + $0x2b8] sm:$0xff] %vm4433, %v4248
      %4522 = vst.msk [vmem:[#allocation5 + $0x2c0] sm:$0xff] %vm4433, %v4250
      %4523 = vst.msk [vmem:[#allocation5 + $0x2c8] sm:$0xff] %vm4433, %v4252
      %4524 = vst.msk [vmem:[#allocation5 + $0x2d0] sm:$0xff] %vm4433, %v4254
      %4525 = vst.msk [vmem:[#allocation5 + $0x2d8] sm:$0xff] %vm4433, %v4256
      %4526 = vst.msk [vmem:[#allocation5 + $0x2e0] sm:$0xff] %vm4433, %v4258
      %4527 = vst.msk [vmem:[#allocation5 + $0x2e8] sm:$0xff] %vm4433, %v4260
      %4528 = vst.msk [vmem:[#allocation5 + $0x2f0] sm:$0xff] %vm4433, %v4262
      %4529 = vst.msk [vmem:[#allocation5 + $0x2f8] sm:$0xff] %vm4433, %v4264
      %4530 = vst.msk [vmem:[#allocation5 + $0x300] sm:$0xff] %vm4433, %v4266
      %4531 = vst.msk [vmem:[#allocation5 + $0x308] sm:$0xff] %vm4433, %v4268
      %4532 = vst.msk [vmem:[#allocation5 + $0x310] sm:$0xff] %vm4433, %v4270
      %4533 = vst.msk [vmem:[#allocation5 + $0x318] sm:$0xff] %vm4433, %v4272
      %4534 = vst.msk [vmem:[#allocation5 + $0x320] sm:$0xff] %vm4433, %v4274
      %4535 = vst.msk [vmem:[#allocation5 + $0x328] sm:$0xff] %vm4433, %v4276
      %4536 = vst.msk [vmem:[#allocation5 + $0x330] sm:$0xff] %vm4433, %v4278
      %4537 = vst.msk [vmem:[#allocation5 + $0x338] sm:$0xff] %vm4433, %v4280
      %4538 = vst.msk [vmem:[#allocation5 + $0x340] sm:$0xff] %vm4433, %v4282
      %4539 = vst.msk [vmem:[#allocation5 + $0x348] sm:$0xff] %vm4433, %v4284
      %4540 = vst.msk [vmem:[#allocation5 + $0x350] sm:$0xff] %vm4433, %v4286
      %4541 = vst.msk [vmem:[#allocation5 + $0x358] sm:$0xff] %vm4433, %v4288
      %4542 = vst.msk [vmem:[#allocation5 + $0x360] sm:$0xff] %vm4433, %v4290
      %4543 = vst.msk [vmem:[#allocation5 + $0x368] sm:$0xff] %vm4433, %v4292
      %4544 = vst.msk [vmem:[#allocation5 + $0x370] sm:$0xff] %vm4433, %v4294
      %4545 = vst.msk [vmem:[#allocation5 + $0x378] sm:$0xff] %vm4433, %v4296
      %4546 = vst.msk [vmem:[#allocation5 + $0x380] sm:$0xff] %vm4433, %v4298
      %4547 = vst.msk [vmem:[#allocation5 + $0x388] sm:$0xff] %vm4433, %v4300
      %4548 = vst.msk [vmem:[#allocation5 + $0x390] sm:$0xff] %vm4433, %v4302
      %4549 = vst.msk [vmem:[#allocation5 + $0x398] sm:$0xff] %vm4433, %v4304
      %4550 = vst.msk [vmem:[#allocation5 + $0x3a0] sm:$0xff] %vm4433, %v4306
      %4551 = vst.msk [vmem:[#allocation5 + $0x3a8] sm:$0xff] %vm4433, %v4308
      %4552 = vst.msk [vmem:[#allocation5 + $0x3b0] sm:$0xff] %vm4433, %v4310
      %4553 = vst.msk [vmem:[#allocation5 + $0x3b8] sm:$0xff] %vm4433, %v4312
      %v4554 = vld [vmem:[#allocation2 + $0x2] sm:$0xff]
      %v4555 = vld [vmem:[#allocation2 + $0xa] sm:$0xff]
      %v4556 = vld [vmem:[#allocation2 + $0x1a] sm:$0xff]
      %v4557 = vld [vmem:[#allocation2 + $0x22] sm:$0xff]
      %v4558 = vld [vmem:[#allocation2 + $0x32] sm:$0xff]
      %v4559 = vld [vmem:[#allocation2 + $0x3a] sm:$0xff]
      %v4560 = vld [vmem:[#allocation2 + $0x4a] sm:$0xff]
      %v4561 = vld [vmem:[#allocation2 + $0x52] sm:$0xff]
      %v4562 = vld [vmem:[#allocation2 + $0x62] sm:$0xff]
      %v4563 = vld [vmem:[#allocation2 + $0x6a] sm:$0xff]
      %v4564 = vld [vmem:[#allocation2 + $0x7a] sm:$0xff]
      %v4565 = vld [vmem:[#allocation2 + $0x82] sm:$0xff]
      %v4566 = vld [vmem:[#allocation2 + $0x92] sm:$0xff]
      %v4567 = vld [vmem:[#allocation2 + $0x9a] sm:$0xff]
      %v4568 = vld [vmem:[#allocation2 + $0xaa] sm:$0xff]
      %v4569 = vld [vmem:[#allocation2 + $0xb2] sm:$0xff]
      %v4570 = vld [vmem:[#allocation2 + $0xc2] sm:$0xff]
      %v4571 = vld [vmem:[#allocation2 + $0xca] sm:$0xff]
      %v4572 = vld [vmem:[#allocation2 + $0xda] sm:$0xff]
      %v4573 = vld [vmem:[#allocation2 + $0xe2] sm:$0xff]
      %v4574 = vld [vmem:[#allocation2 + $0xf2] sm:$0xff]
      %v4575 = vld [vmem:[#allocation2 + $0xfa] sm:$0xff]
      %v4576 = vld [vmem:[#allocation2 + $0x10a] sm:$0xff]
      %v4577 = vld [vmem:[#allocation2 + $0x112] sm:$0xff]
      %v4578 = vld [vmem:[#allocation2 + $0x122] sm:$0xff]
      %v4579 = vld [vmem:[#allocation2 + $0x12a] sm:$0xff]
      %v4580 = vld [vmem:[#allocation2 + $0x13a] sm:$0xff]
      %v4581 = vld [vmem:[#allocation2 + $0x142] sm:$0xff]
      %v4582 = vld [vmem:[#allocation2 + $0x152] sm:$0xff]
      %v4583 = vld [vmem:[#allocation2 + $0x15a] sm:$0xff]
      %v4584 = vld [vmem:[#allocation2 + $0x16a] sm:$0xff]
      %v4585 = vld [vmem:[#allocation2 + $0x172] sm:$0xff]
      %v4586 = vld [vmem:[#allocation2 + $0x182] sm:$0xff]
      %v4587 = vld [vmem:[#allocation2 + $0x18a] sm:$0xff]
      %v4588 = vld [vmem:[#allocation2 + $0x19a] sm:$0xff]
      %v4589 = vld [vmem:[#allocation2 + $0x1a2] sm:$0xff]
      %v4590 = vld [vmem:[#allocation2 + $0x1b2] sm:$0xff]
      %v4591 = vld [vmem:[#allocation2 + $0x1ba] sm:$0xff]
      %v4592 = vld [vmem:[#allocation2 + $0x1ca] sm:$0xff]
      %v4593 = vld [vmem:[#allocation2 + $0x1d2] sm:$0xff]
      %v4594 = vld [vmem:[#allocation2 + $0x1e2] sm:$0xff]
      %v4595 = vld [vmem:[#allocation2 + $0x1ea] sm:$0xff]
      %v4596 = vld [vmem:[#allocation2 + $0x1fa] sm:$0xff]
      %v4597 = vld [vmem:[#allocation2 + $0x202] sm:$0xff]
      %v4598 = vld [vmem:[#allocation2 + $0x212] sm:$0xff]
      %v4599 = vld [vmem:[#allocation2 + $0x21a] sm:$0xff]
      %v4600 = vld [vmem:[#allocation2 + $0x22a] sm:$0xff]
      %v4601 = vld [vmem:[#allocation2 + $0x232] sm:$0xff]
      %v4602 = vld [vmem:[#allocation2 + $0x242] sm:$0xff]
      %v4603 = vld [vmem:[#allocation2 + $0x24a] sm:$0xff]
      %v4604 = vld [vmem:[#allocation2 + $0x25a] sm:$0xff]
      %v4605 = vld [vmem:[#allocation2 + $0x262] sm:$0xff]
      %v4606 = vld [vmem:[#allocation2 + $0x272] sm:$0xff]
      %v4607 = vld [vmem:[#allocation2 + $0x27a] sm:$0xff]
      %v4608 = vld [vmem:[#allocation2 + $0x28a] sm:$0xff]
      %v4609 = vld [vmem:[#allocation2 + $0x292] sm:$0xff]
      %v4610 = vld [vmem:[#allocation2 + $0x2a2] sm:$0xff]
      %v4611 = vld [vmem:[#allocation2 + $0x2aa] sm:$0xff]
      %v4612 = vld [vmem:[#allocation2 + $0x2ba] sm:$0xff]
      %v4613 = vld [vmem:[#allocation2 + $0x2c2] sm:$0xff]
      %v4614 = vld [vmem:[#allocation2 + $0x2d2] sm:$0xff]
      %v4615 = vld [vmem:[#allocation2 + $0x2da] sm:$0xff]
      %v4616 = vld [vmem:[#allocation2 + $0x2ea] sm:$0xff]
      %v4617 = vld [vmem:[#allocation2 + $0x2f2] sm:$0xff]
      %v4618 = vld [vmem:[#allocation2 + $0x302] sm:$0xff]
      %v4619 = vld [vmem:[#allocation2 + $0x30a] sm:$0xff]
      %v4620 = vld [vmem:[#allocation2 + $0x31a] sm:$0xff]
      %v4621 = vld [vmem:[#allocation2 + $0x322] sm:$0xff]
      %v4622 = vld [vmem:[#allocation2 + $0x332] sm:$0xff]
      %v4623 = vld [vmem:[#allocation2 + $0x33a] sm:$0xff]
      %v4624 = vld [vmem:[#allocation2 + $0x34a] sm:$0xff]
      %v4625 = vld [vmem:[#allocation2 + $0x352] sm:$0xff]
      %v4626 = vld [vmem:[#allocation2 + $0x362] sm:$0xff]
      %v4627 = vld [vmem:[#allocation2 + $0x36a] sm:$0xff]
      %v4628 = vld [vmem:[#allocation2 + $0x37a] sm:$0xff]
      %v4629 = vld [vmem:[#allocation2 + $0x382] sm:$0xff]
      %v4630 = vld [vmem:[#allocation2 + $0x392] sm:$0xff]
      %v4631 = vld [vmem:[#allocation2 + $0x39a] sm:$0xff]
      %v4632 = vld [vmem:[#allocation2 + $0x3aa] sm:$0xff]
      %v4633 = vld [vmem:[#allocation2 + $0x3b2] sm:$0xff]
      %v4634 = vld [vmem:[#allocation2 + $0x3c2] sm:$0xff]
      %v4635 = vld [vmem:[#allocation2 + $0x3ca] sm:$0xff]
      %v4636 = vld [vmem:[#allocation2 + $0x3da] sm:$0xff]
      %v4637 = vld [vmem:[#allocation2 + $0x3e2] sm:$0xff]
      %v4638 = vld [vmem:[#allocation2 + $0x3f2] sm:$0xff]
      %v4639 = vld [vmem:[#allocation2 + $0x3fa] sm:$0xff]
      %v4640 = vld [vmem:[#allocation2 + $0x40a] sm:$0xff]
      %v4641 = vld [vmem:[#allocation2 + $0x412] sm:$0xff]
      %v4642 = vld [vmem:[#allocation2 + $0x422] sm:$0xff]
      %v4643 = vld [vmem:[#allocation2 + $0x42a] sm:$0xff]
      %v4644 = vld [vmem:[#allocation2 + $0x43a] sm:$0xff]
      %v4645 = vld [vmem:[#allocation2 + $0x442] sm:$0xff]
      %v4646 = vld [vmem:[#allocation2 + $0x452] sm:$0xff]
      %v4647 = vld [vmem:[#allocation2 + $0x45a] sm:$0xff]
      %v4648 = vld [vmem:[#allocation2 + $0x46a] sm:$0xff]
      %v4649 = vld [vmem:[#allocation2 + $0x472] sm:$0xff]
      %v4650 = vld [vmem:[#allocation2 + $0x482] sm:$0xff]
      %v4651 = vld [vmem:[#allocation2 + $0x48a] sm:$0xff]
      %v4652 = vld [vmem:[#allocation2 + $0x49a] sm:$0xff]
      %v4653 = vld [vmem:[#allocation2 + $0x4a2] sm:$0xff]
      %v4654 = vld [vmem:[#allocation2 + $0x4b2] sm:$0xff]
      %v4655 = vld [vmem:[#allocation2 + $0x4ba] sm:$0xff]
      %v4656 = vld [vmem:[#allocation2 + $0x4ca] sm:$0xff]
      %v4657 = vld [vmem:[#allocation2 + $0x4d2] sm:$0xff]
      %v4658 = vld [vmem:[#allocation2 + $0x4e2] sm:$0xff]
      %v4659 = vld [vmem:[#allocation2 + $0x4ea] sm:$0xff]
      %v4660 = vld [vmem:[#allocation2 + $0x4fa] sm:$0xff]
      %v4661 = vld [vmem:[#allocation2 + $0x502] sm:$0xff]
      %v4662 = vld [vmem:[#allocation2 + $0x512] sm:$0xff]
      %v4663 = vld [vmem:[#allocation2 + $0x51a] sm:$0xff]
      %v4664 = vld [vmem:[#allocation2 + $0x52a] sm:$0xff]
      %v4665 = vld [vmem:[#allocation2 + $0x532] sm:$0xff]
      %v4666 = vld [vmem:[#allocation2 + $0x542] sm:$0xff]
      %v4667 = vld [vmem:[#allocation2 + $0x54a] sm:$0xff]
      %v4668 = vld [vmem:[#allocation2 + $0x55a] sm:$0xff]
      %v4669 = vld [vmem:[#allocation2 + $0x562] sm:$0xff]
      %v4670 = vld [vmem:[#allocation2 + $0x572] sm:$0xff]
      %v4671 = vld [vmem:[#allocation2 + $0x57a] sm:$0xff]
      %v4672 = vld [vmem:[#allocation2 + $0x58a] sm:$0xff]
      %v4673 = vld [vmem:[#allocation2 + $0x592] sm:$0xff]
      %4794 = vrot.lane.b32.xlu0 %v4554, 24
      %v4795 = vpop.permute.xlu0 %4794
      %4796 = vrot.lane.b32.xlu0 %v4555, 24
      %v4797 = vpop.permute.xlu0 %4796
      %4798 = vrot.lane.b32.xlu0 %v4556, 24
      %v4799 = vpop.permute.xlu0 %4798
      %4800 = vrot.lane.b32.xlu0 %v4557, 24
      %v4801 = vpop.permute.xlu0 %4800
      %4802 = vrot.lane.b32.xlu0 %v4558, 24
      %v4803 = vpop.permute.xlu0 %4802
      %4804 = vrot.lane.b32.xlu0 %v4559, 24
      %v4805 = vpop.permute.xlu0 %4804
      %4806 = vrot.lane.b32.xlu0 %v4560, 24
      %v4807 = vpop.permute.xlu0 %4806
      %4808 = vrot.lane.b32.xlu0 %v4561, 24
      %v4809 = vpop.permute.xlu0 %4808
      %4810 = vrot.lane.b32.xlu0 %v4562, 24
      %v4811 = vpop.permute.xlu0 %4810
      %4812 = vrot.lane.b32.xlu0 %v4563, 24
      %v4813 = vpop.permute.xlu0 %4812
      %4814 = vrot.lane.b32.xlu0 %v4564, 24
      %v4815 = vpop.permute.xlu0 %4814
      %4816 = vrot.lane.b32.xlu0 %v4565, 24
      %v4817 = vpop.permute.xlu0 %4816
      %4818 = vrot.lane.b32.xlu0 %v4566, 24
      %v4819 = vpop.permute.xlu0 %4818
      %4820 = vrot.lane.b32.xlu0 %v4567, 24
      %v4821 = vpop.permute.xlu0 %4820
      %4822 = vrot.lane.b32.xlu0 %v4568, 24
      %v4823 = vpop.permute.xlu0 %4822
      %4824 = vrot.lane.b32.xlu0 %v4569, 24
      %v4825 = vpop.permute.xlu0 %4824
      %4826 = vrot.lane.b32.xlu0 %v4570, 24
      %v4827 = vpop.permute.xlu0 %4826
      %4828 = vrot.lane.b32.xlu0 %v4571, 24
      %v4829 = vpop.permute.xlu0 %4828
      %4830 = vrot.lane.b32.xlu0 %v4572, 24
      %v4831 = vpop.permute.xlu0 %4830
      %4832 = vrot.lane.b32.xlu0 %v4573, 24
      %v4833 = vpop.permute.xlu0 %4832
      %4834 = vrot.lane.b32.xlu0 %v4574, 24
      %v4835 = vpop.permute.xlu0 %4834
      %4836 = vrot.lane.b32.xlu0 %v4575, 24
      %v4837 = vpop.permute.xlu0 %4836
      %4838 = vrot.lane.b32.xlu0 %v4576, 24
      %v4839 = vpop.permute.xlu0 %4838
      %4840 = vrot.lane.b32.xlu0 %v4577, 24
      %v4841 = vpop.permute.xlu0 %4840
      %4842 = vrot.lane.b32.xlu0 %v4578, 24
      %v4843 = vpop.permute.xlu0 %4842
      %4844 = vrot.lane.b32.xlu0 %v4579, 24
      %v4845 = vpop.permute.xlu0 %4844
      %4846 = vrot.lane.b32.xlu0 %v4580, 24
      %v4847 = vpop.permute.xlu0 %4846
      %4848 = vrot.lane.b32.xlu0 %v4581, 24
      %v4849 = vpop.permute.xlu0 %4848
      %4850 = vrot.lane.b32.xlu0 %v4582, 24
      %v4851 = vpop.permute.xlu0 %4850
      %4852 = vrot.lane.b32.xlu0 %v4583, 24
      %v4853 = vpop.permute.xlu0 %4852
      %4854 = vrot.lane.b32.xlu0 %v4584, 24
      %v4855 = vpop.permute.xlu0 %4854
      %4856 = vrot.lane.b32.xlu0 %v4585, 24
      %v4857 = vpop.permute.xlu0 %4856
      %4858 = vrot.lane.b32.xlu0 %v4586, 24
      %v4859 = vpop.permute.xlu0 %4858
      %4860 = vrot.lane.b32.xlu0 %v4587, 24
      %v4861 = vpop.permute.xlu0 %4860
      %4862 = vrot.lane.b32.xlu0 %v4588, 24
      %v4863 = vpop.permute.xlu0 %4862
      %4864 = vrot.lane.b32.xlu0 %v4589, 24
      %v4865 = vpop.permute.xlu0 %4864
      %4866 = vrot.lane.b32.xlu0 %v4590, 24
      %v4867 = vpop.permute.xlu0 %4866
      %4868 = vrot.lane.b32.xlu0 %v4591, 24
      %v4869 = vpop.permute.xlu0 %4868
      %4870 = vrot.lane.b32.xlu0 %v4592, 24
      %v4871 = vpop.permute.xlu0 %4870
      %4872 = vrot.lane.b32.xlu0 %v4593, 24
      %v4873 = vpop.permute.xlu0 %4872
      %4874 = vrot.lane.b32.xlu0 %v4594, 24
      %v4875 = vpop.permute.xlu0 %4874
      %4876 = vrot.lane.b32.xlu0 %v4595, 24
      %v4877 = vpop.permute.xlu0 %4876
      %4878 = vrot.lane.b32.xlu0 %v4596, 24
      %v4879 = vpop.permute.xlu0 %4878
      %4880 = vrot.lane.b32.xlu0 %v4597, 24
      %v4881 = vpop.permute.xlu0 %4880
      %4882 = vrot.lane.b32.xlu0 %v4598, 24
      %v4883 = vpop.permute.xlu0 %4882
      %4884 = vrot.lane.b32.xlu0 %v4599, 24
      %v4885 = vpop.permute.xlu0 %4884
      %4886 = vrot.lane.b32.xlu0 %v4600, 24
      %v4887 = vpop.permute.xlu0 %4886
      %4888 = vrot.lane.b32.xlu0 %v4601, 24
      %v4889 = vpop.permute.xlu0 %4888
      %4890 = vrot.lane.b32.xlu0 %v4602, 24
      %v4891 = vpop.permute.xlu0 %4890
      %4892 = vrot.lane.b32.xlu0 %v4603, 24
      %v4893 = vpop.permute.xlu0 %4892
      %4894 = vrot.lane.b32.xlu0 %v4604, 24
      %v4895 = vpop.permute.xlu0 %4894
      %4896 = vrot.lane.b32.xlu0 %v4605, 24
      %v4897 = vpop.permute.xlu0 %4896
      %4898 = vrot.lane.b32.xlu0 %v4606, 24
      %v4899 = vpop.permute.xlu0 %4898
      %4900 = vrot.lane.b32.xlu0 %v4607, 24
      %v4901 = vpop.permute.xlu0 %4900
      %4902 = vrot.lane.b32.xlu0 %v4608, 24
      %v4903 = vpop.permute.xlu0 %4902
      %4904 = vrot.lane.b32.xlu0 %v4609, 24
      %v4905 = vpop.permute.xlu0 %4904
      %4906 = vrot.lane.b32.xlu0 %v4610, 24
      %v4907 = vpop.permute.xlu0 %4906
      %4908 = vrot.lane.b32.xlu0 %v4611, 24
      %v4909 = vpop.permute.xlu0 %4908
      %4910 = vrot.lane.b32.xlu0 %v4612, 24
      %v4911 = vpop.permute.xlu0 %4910
      %4912 = vrot.lane.b32.xlu0 %v4613, 24
      %v4913 = vpop.permute.xlu0 %4912
      %4914 = vrot.lane.b32.xlu0 %v4614, 24
      %v4915 = vpop.permute.xlu0 %4914
      %4916 = vrot.lane.b32.xlu0 %v4615, 24
      %v4917 = vpop.permute.xlu0 %4916
      %4918 = vrot.lane.b32.xlu0 %v4616, 24
      %v4919 = vpop.permute.xlu0 %4918
      %4920 = vrot.lane.b32.xlu0 %v4617, 24
      %v4921 = vpop.permute.xlu0 %4920
      %4922 = vrot.lane.b32.xlu0 %v4618, 24
      %v4923 = vpop.permute.xlu0 %4922
      %4924 = vrot.lane.b32.xlu0 %v4619, 24
      %v4925 = vpop.permute.xlu0 %4924
      %4926 = vrot.lane.b32.xlu0 %v4620, 24
      %v4927 = vpop.permute.xlu0 %4926
      %4928 = vrot.lane.b32.xlu0 %v4621, 24
      %v4929 = vpop.permute.xlu0 %4928
      %4930 = vrot.lane.b32.xlu0 %v4622, 24
      %v4931 = vpop.permute.xlu0 %4930
      %4932 = vrot.lane.b32.xlu0 %v4623, 24
      %v4933 = vpop.permute.xlu0 %4932
      %4934 = vrot.lane.b32.xlu0 %v4624, 24
      %v4935 = vpop.permute.xlu0 %4934
      %4936 = vrot.lane.b32.xlu0 %v4625, 24
      %v4937 = vpop.permute.xlu0 %4936
      %4938 = vrot.lane.b32.xlu0 %v4626, 24
      %v4939 = vpop.permute.xlu0 %4938
      %4940 = vrot.lane.b32.xlu0 %v4627, 24
      %v4941 = vpop.permute.xlu0 %4940
      %4942 = vrot.lane.b32.xlu0 %v4628, 24
      %v4943 = vpop.permute.xlu0 %4942
      %4944 = vrot.lane.b32.xlu0 %v4629, 24
      %v4945 = vpop.permute.xlu0 %4944
      %4946 = vrot.lane.b32.xlu0 %v4630, 24
      %v4947 = vpop.permute.xlu0 %4946
      %4948 = vrot.lane.b32.xlu0 %v4631, 24
      %v4949 = vpop.permute.xlu0 %4948
      %4950 = vrot.lane.b32.xlu0 %v4632, 24
      %v4951 = vpop.permute.xlu0 %4950
      %4952 = vrot.lane.b32.xlu0 %v4633, 24
      %v4953 = vpop.permute.xlu0 %4952
      %4954 = vrot.lane.b32.xlu0 %v4634, 24
      %v4955 = vpop.permute.xlu0 %4954
      %4956 = vrot.lane.b32.xlu0 %v4635, 24
      %v4957 = vpop.permute.xlu0 %4956
      %4958 = vrot.lane.b32.xlu0 %v4636, 24
      %v4959 = vpop.permute.xlu0 %4958
      %4960 = vrot.lane.b32.xlu0 %v4637, 24
      %v4961 = vpop.permute.xlu0 %4960
      %4962 = vrot.lane.b32.xlu0 %v4638, 24
      %v4963 = vpop.permute.xlu0 %4962
      %4964 = vrot.lane.b32.xlu0 %v4639, 24
      %v4965 = vpop.permute.xlu0 %4964
      %4966 = vrot.lane.b32.xlu0 %v4640, 24
      %v4967 = vpop.permute.xlu0 %4966
      %4968 = vrot.lane.b32.xlu0 %v4641, 24
      %v4969 = vpop.permute.xlu0 %4968
      %4970 = vrot.lane.b32.xlu0 %v4642, 24
      %v4971 = vpop.permute.xlu0 %4970
      %4972 = vrot.lane.b32.xlu0 %v4643, 24
      %v4973 = vpop.permute.xlu0 %4972
      %4974 = vrot.lane.b32.xlu0 %v4644, 24
      %v4975 = vpop.permute.xlu0 %4974
      %4976 = vrot.lane.b32.xlu0 %v4645, 24
      %v4977 = vpop.permute.xlu0 %4976
      %4978 = vrot.lane.b32.xlu0 %v4646, 24
      %v4979 = vpop.permute.xlu0 %4978
      %4980 = vrot.lane.b32.xlu0 %v4647, 24
      %v4981 = vpop.permute.xlu0 %4980
      %4982 = vrot.lane.b32.xlu0 %v4648, 24
      %v4983 = vpop.permute.xlu0 %4982
      %4984 = vrot.lane.b32.xlu0 %v4649, 24
      %v4985 = vpop.permute.xlu0 %4984
      %4986 = vrot.lane.b32.xlu0 %v4650, 24
      %v4987 = vpop.permute.xlu0 %4986
      %4988 = vrot.lane.b32.xlu0 %v4651, 24
      %v4989 = vpop.permute.xlu0 %4988
      %4990 = vrot.lane.b32.xlu0 %v4652, 24
      %v4991 = vpop.permute.xlu0 %4990
      %4992 = vrot.lane.b32.xlu0 %v4653, 24
      %v4993 = vpop.permute.xlu0 %4992
      %4994 = vrot.lane.b32.xlu0 %v4654, 24
      %v4995 = vpop.permute.xlu0 %4994
      %4996 = vrot.lane.b32.xlu0 %v4655, 24
      %v4997 = vpop.permute.xlu0 %4996
      %4998 = vrot.lane.b32.xlu0 %v4656, 24
      %v4999 = vpop.permute.xlu0 %4998
      %5000 = vrot.lane.b32.xlu0 %v4657, 24
      %v5001 = vpop.permute.xlu0 %5000
      %5002 = vrot.lane.b32.xlu0 %v4658, 24
      %v5003 = vpop.permute.xlu0 %5002
      %5004 = vrot.lane.b32.xlu0 %v4659, 24
      %v5005 = vpop.permute.xlu0 %5004
      %5006 = vrot.lane.b32.xlu0 %v4660, 24
      %v5007 = vpop.permute.xlu0 %5006
      %5008 = vrot.lane.b32.xlu0 %v4661, 24
      %v5009 = vpop.permute.xlu0 %5008
      %5010 = vrot.lane.b32.xlu0 %v4662, 24
      %v5011 = vpop.permute.xlu0 %5010
      %5012 = vrot.lane.b32.xlu0 %v4663, 24
      %v5013 = vpop.permute.xlu0 %5012
      %5014 = vrot.lane.b32.xlu0 %v4664, 24
      %v5015 = vpop.permute.xlu0 %5014
      %5016 = vrot.lane.b32.xlu0 %v4665, 24
      %v5017 = vpop.permute.xlu0 %5016
      %5018 = vrot.lane.b32.xlu0 %v4666, 24
      %v5019 = vpop.permute.xlu0 %5018
      %5020 = vrot.lane.b32.xlu0 %v4667, 24
      %v5021 = vpop.permute.xlu0 %5020
      %5022 = vrot.lane.b32.xlu0 %v4668, 24
      %v5023 = vpop.permute.xlu0 %5022
      %5024 = vrot.lane.b32.xlu0 %v4669, 24
      %v5025 = vpop.permute.xlu0 %5024
      %5026 = vrot.lane.b32.xlu0 %v4670, 24
      %v5027 = vpop.permute.xlu0 %5026
      %5028 = vrot.lane.b32.xlu0 %v4671, 24
      %v5029 = vpop.permute.xlu0 %5028
      %5030 = vrot.lane.b32.xlu0 %v4672, 24
      %v5031 = vpop.permute.xlu0 %5030
      %5032 = vrot.lane.b32.xlu0 %v4673, 24
      %v5033 = vpop.permute.xlu0 %5032
      %vm5154 = vcmask 228544
      %5155 = vst.msk [vmem:[#allocation5] sm:$0xff] %vm5154, %v4795
      %5156 = vst.msk [vmem:[#allocation5 + $0x8] sm:$0xff] %vm5154, %v4797
      %5157 = vst.msk [vmem:[#allocation5 + $0x10] sm:$0xff] %vm5154, %v4799
      %5158 = vst.msk [vmem:[#allocation5 + $0x18] sm:$0xff] %vm5154, %v4801
      %5159 = vst.msk [vmem:[#allocation5 + $0x20] sm:$0xff] %vm5154, %v4803
      %5160 = vst.msk [vmem:[#allocation5 + $0x28] sm:$0xff] %vm5154, %v4805
      %5161 = vst.msk [vmem:[#allocation5 + $0x30] sm:$0xff] %vm5154, %v4807
      %5162 = vst.msk [vmem:[#allocation5 + $0x38] sm:$0xff] %vm5154, %v4809
      %5163 = vst.msk [vmem:[#allocation5 + $0x40] sm:$0xff] %vm5154, %v4811
      %5164 = vst.msk [vmem:[#allocation5 + $0x48] sm:$0xff] %vm5154, %v4813
      %5165 = vst.msk [vmem:[#allocation5 + $0x50] sm:$0xff] %vm5154, %v4815
      %5166 = vst.msk [vmem:[#allocation5 + $0x58] sm:$0xff] %vm5154, %v4817
      %5167 = vst.msk [vmem:[#allocation5 + $0x60] sm:$0xff] %vm5154, %v4819
      %5168 = vst.msk [vmem:[#allocation5 + $0x68] sm:$0xff] %vm5154, %v4821
      %5169 = vst.msk [vmem:[#allocation5 + $0x70] sm:$0xff] %vm5154, %v4823
      %5170 = vst.msk [vmem:[#allocation5 + $0x78] sm:$0xff] %vm5154, %v4825
      %5171 = vst.msk [vmem:[#allocation5 + $0x80] sm:$0xff] %vm5154, %v4827
      %5172 = vst.msk [vmem:[#allocation5 + $0x88] sm:$0xff] %vm5154, %v4829
      %5173 = vst.msk [vmem:[#allocation5 + $0x90] sm:$0xff] %vm5154, %v4831
      %5174 = vst.msk [vmem:[#allocation5 + $0x98] sm:$0xff] %vm5154, %v4833
      %5175 = vst.msk [vmem:[#allocation5 + $0xa0] sm:$0xff] %vm5154, %v4835
      %5176 = vst.msk [vmem:[#allocation5 + $0xa8] sm:$0xff] %vm5154, %v4837
      %5177 = vst.msk [vmem:[#allocation5 + $0xb0] sm:$0xff] %vm5154, %v4839
      %5178 = vst.msk [vmem:[#allocation5 + $0xb8] sm:$0xff] %vm5154, %v4841
      %5179 = vst.msk [vmem:[#allocation5 + $0xc0] sm:$0xff] %vm5154, %v4843
      %5180 = vst.msk [vmem:[#allocation5 + $0xc8] sm:$0xff] %vm5154, %v4845
      %5181 = vst.msk [vmem:[#allocation5 + $0xd0] sm:$0xff] %vm5154, %v4847
      %5182 = vst.msk [vmem:[#allocation5 + $0xd8] sm:$0xff] %vm5154, %v4849
      %5183 = vst.msk [vmem:[#allocation5 + $0xe0] sm:$0xff] %vm5154, %v4851
      %5184 = vst.msk [vmem:[#allocation5 + $0xe8] sm:$0xff] %vm5154, %v4853
      %5185 = vst.msk [vmem:[#allocation5 + $0xf0] sm:$0xff] %vm5154, %v4855
      %5186 = vst.msk [vmem:[#allocation5 + $0xf8] sm:$0xff] %vm5154, %v4857
      %5187 = vst.msk [vmem:[#allocation5 + $0x100] sm:$0xff] %vm5154, %v4859
      %5188 = vst.msk [vmem:[#allocation5 + $0x108] sm:$0xff] %vm5154, %v4861
      %5189 = vst.msk [vmem:[#allocation5 + $0x110] sm:$0xff] %vm5154, %v4863
      %5190 = vst.msk [vmem:[#allocation5 + $0x118] sm:$0xff] %vm5154, %v4865
      %5191 = vst.msk [vmem:[#allocation5 + $0x120] sm:$0xff] %vm5154, %v4867
      %5192 = vst.msk [vmem:[#allocation5 + $0x128] sm:$0xff] %vm5154, %v4869
      %5193 = vst.msk [vmem:[#allocation5 + $0x130] sm:$0xff] %vm5154, %v4871
      %5194 = vst.msk [vmem:[#allocation5 + $0x138] sm:$0xff] %vm5154, %v4873
      %5195 = vst.msk [vmem:[#allocation5 + $0x140] sm:$0xff] %vm5154, %v4875
      %5196 = vst.msk [vmem:[#allocation5 + $0x148] sm:$0xff] %vm5154, %v4877
      %5197 = vst.msk [vmem:[#allocation5 + $0x150] sm:$0xff] %vm5154, %v4879
      %5198 = vst.msk [vmem:[#allocation5 + $0x158] sm:$0xff] %vm5154, %v4881
      %5199 = vst.msk [vmem:[#allocation5 + $0x160] sm:$0xff] %vm5154, %v4883
      %5200 = vst.msk [vmem:[#allocation5 + $0x168] sm:$0xff] %vm5154, %v4885
      %5201 = vst.msk [vmem:[#allocation5 + $0x170] sm:$0xff] %vm5154, %v4887
      %5202 = vst.msk [vmem:[#allocation5 + $0x178] sm:$0xff] %vm5154, %v4889
      %5203 = vst.msk [vmem:[#allocation5 + $0x180] sm:$0xff] %vm5154, %v4891
      %5204 = vst.msk [vmem:[#allocation5 + $0x188] sm:$0xff] %vm5154, %v4893
      %5205 = vst.msk [vmem:[#allocation5 + $0x190] sm:$0xff] %vm5154, %v4895
      %5206 = vst.msk [vmem:[#allocation5 + $0x198] sm:$0xff] %vm5154, %v4897
      %5207 = vst.msk [vmem:[#allocation5 + $0x1a0] sm:$0xff] %vm5154, %v4899
      %5208 = vst.msk [vmem:[#allocation5 + $0x1a8] sm:$0xff] %vm5154, %v4901
      %5209 = vst.msk [vmem:[#allocation5 + $0x1b0] sm:$0xff] %vm5154, %v4903
      %5210 = vst.msk [vmem:[#allocation5 + $0x1b8] sm:$0xff] %vm5154, %v4905
      %5211 = vst.msk [vmem:[#allocation5 + $0x1c0] sm:$0xff] %vm5154, %v4907
      %5212 = vst.msk [vmem:[#allocation5 + $0x1c8] sm:$0xff] %vm5154, %v4909
      %5213 = vst.msk [vmem:[#allocation5 + $0x1d0] sm:$0xff] %vm5154, %v4911
      %5214 = vst.msk [vmem:[#allocation5 + $0x1d8] sm:$0xff] %vm5154, %v4913
      %5215 = vst.msk [vmem:[#allocation5 + $0x1e0] sm:$0xff] %vm5154, %v4915
      %5216 = vst.msk [vmem:[#allocation5 + $0x1e8] sm:$0xff] %vm5154, %v4917
      %5217 = vst.msk [vmem:[#allocation5 + $0x1f0] sm:$0xff] %vm5154, %v4919
      %5218 = vst.msk [vmem:[#allocation5 + $0x1f8] sm:$0xff] %vm5154, %v4921
      %5219 = vst.msk [vmem:[#allocation5 + $0x200] sm:$0xff] %vm5154, %v4923
      %5220 = vst.msk [vmem:[#allocation5 + $0x208] sm:$0xff] %vm5154, %v4925
      %5221 = vst.msk [vmem:[#allocation5 + $0x210] sm:$0xff] %vm5154, %v4927
      %5222 = vst.msk [vmem:[#allocation5 + $0x218] sm:$0xff] %vm5154, %v4929
      %5223 = vst.msk [vmem:[#allocation5 + $0x220] sm:$0xff] %vm5154, %v4931
      %5224 = vst.msk [vmem:[#allocation5 + $0x228] sm:$0xff] %vm5154, %v4933
      %5225 = vst.msk [vmem:[#allocation5 + $0x230] sm:$0xff] %vm5154, %v4935
      %5226 = vst.msk [vmem:[#allocation5 + $0x238] sm:$0xff] %vm5154, %v4937
      %5227 = vst.msk [vmem:[#allocation5 + $0x240] sm:$0xff] %vm5154, %v4939
      %5228 = vst.msk [vmem:[#allocation5 + $0x248] sm:$0xff] %vm5154, %v4941
      %5229 = vst.msk [vmem:[#allocation5 + $0x250] sm:$0xff] %vm5154, %v4943
      %5230 = vst.msk [vmem:[#allocation5 + $0x258] sm:$0xff] %vm5154, %v4945
      %5231 = vst.msk [vmem:[#allocation5 + $0x260] sm:$0xff] %vm5154, %v4947
      %5232 = vst.msk [vmem:[#allocation5 + $0x268] sm:$0xff] %vm5154, %v4949
      %5233 = vst.msk [vmem:[#allocation5 + $0x270] sm:$0xff] %vm5154, %v4951
      %5234 = vst.msk [vmem:[#allocation5 + $0x278] sm:$0xff] %vm5154, %v4953
      %5235 = vst.msk [vmem:[#allocation5 + $0x280] sm:$0xff] %vm5154, %v4955
      %5236 = vst.msk [vmem:[#allocation5 + $0x288] sm:$0xff] %vm5154, %v4957
      %5237 = vst.msk [vmem:[#allocation5 + $0x290] sm:$0xff] %vm5154, %v4959
      %5238 = vst.msk [vmem:[#allocation5 + $0x298] sm:$0xff] %vm5154, %v4961
      %5239 = vst.msk [vmem:[#allocation5 + $0x2a0] sm:$0xff] %vm5154, %v4963
      %5240 = vst.msk [vmem:[#allocation5 + $0x2a8] sm:$0xff] %vm5154, %v4965
      %5241 = vst.msk [vmem:[#allocation5 + $0x2b0] sm:$0xff] %vm5154, %v4967
      %5242 = vst.msk [vmem:[#allocation5 + $0x2b8] sm:$0xff] %vm5154, %v4969
      %5243 = vst.msk [vmem:[#allocation5 + $0x2c0] sm:$0xff] %vm5154, %v4971
      %5244 = vst.msk [vmem:[#allocation5 + $0x2c8] sm:$0xff] %vm5154, %v4973
      %5245 = vst.msk [vmem:[#allocation5 + $0x2d0] sm:$0xff] %vm5154, %v4975
      %5246 = vst.msk [vmem:[#allocation5 + $0x2d8] sm:$0xff] %vm5154, %v4977
      %5247 = vst.msk [vmem:[#allocation5 + $0x2e0] sm:$0xff] %vm5154, %v4979
      %5248 = vst.msk [vmem:[#allocation5 + $0x2e8] sm:$0xff] %vm5154, %v4981
      %5249 = vst.msk [vmem:[#allocation5 + $0x2f0] sm:$0xff] %vm5154, %v4983
      %5250 = vst.msk [vmem:[#allocation5 + $0x2f8] sm:$0xff] %vm5154, %v4985
      %5251 = vst.msk [vmem:[#allocation5 + $0x300] sm:$0xff] %vm5154, %v4987
      %5252 = vst.msk [vmem:[#allocation5 + $0x308] sm:$0xff] %vm5154, %v4989
      %5253 = vst.msk [vmem:[#allocation5 + $0x310] sm:$0xff] %vm5154, %v4991
      %5254 = vst.msk [vmem:[#allocation5 + $0x318] sm:$0xff] %vm5154, %v4993
      %5255 = vst.msk [vmem:[#allocation5 + $0x320] sm:$0xff] %vm5154, %v4995
      %5256 = vst.msk [vmem:[#allocation5 + $0x328] sm:$0xff] %vm5154, %v4997
      %5257 = vst.msk [vmem:[#allocation5 + $0x330] sm:$0xff] %vm5154, %v4999
      %5258 = vst.msk [vmem:[#allocation5 + $0x338] sm:$0xff] %vm5154, %v5001
      %5259 = vst.msk [vmem:[#allocation5 + $0x340] sm:$0xff] %vm5154, %v5003
      %5260 = vst.msk [vmem:[#allocation5 + $0x348] sm:$0xff] %vm5154, %v5005
      %5261 = vst.msk [vmem:[#allocation5 + $0x350] sm:$0xff] %vm5154, %v5007
      %5262 = vst.msk [vmem:[#allocation5 + $0x358] sm:$0xff] %vm5154, %v5009
      %5263 = vst.msk [vmem:[#allocation5 + $0x360] sm:$0xff] %vm5154, %v5011
      %5264 = vst.msk [vmem:[#allocation5 + $0x368] sm:$0xff] %vm5154, %v5013
      %5265 = vst.msk [vmem:[#allocation5 + $0x370] sm:$0xff] %vm5154, %v5015
      %5266 = vst.msk [vmem:[#allocation5 + $0x378] sm:$0xff] %vm5154, %v5017
      %5267 = vst.msk [vmem:[#allocation5 + $0x380] sm:$0xff] %vm5154, %v5019
      %5268 = vst.msk [vmem:[#allocation5 + $0x388] sm:$0xff] %vm5154, %v5021
      %5269 = vst.msk [vmem:[#allocation5 + $0x390] sm:$0xff] %vm5154, %v5023
      %5270 = vst.msk [vmem:[#allocation5 + $0x398] sm:$0xff] %vm5154, %v5025
      %5271 = vst.msk [vmem:[#allocation5 + $0x3a0] sm:$0xff] %vm5154, %v5027
      %5272 = vst.msk [vmem:[#allocation5 + $0x3a8] sm:$0xff] %vm5154, %v5029
      %5273 = vst.msk [vmem:[#allocation5 + $0x3b0] sm:$0xff] %vm5154, %v5031
      %5274 = vst.msk [vmem:[#allocation5 + $0x3b8] sm:$0xff] %vm5154, %v5033
      %v5275 = vld [vmem:[%s587 + $0x2] sm:$0xff]
      %v5276 = vld [vmem:[%s587 + $0xa] sm:$0xff]
      %v5277 = vld [vmem:[%s587 + $0x1a] sm:$0xff]
      %v5278 = vld [vmem:[%s587 + $0x22] sm:$0xff]
      %v5279 = vld [vmem:[%s587 + $0x32] sm:$0xff]
      %v5280 = vld [vmem:[%s587 + $0x3a] sm:$0xff]
      %v5281 = vld [vmem:[%s587 + $0x4a] sm:$0xff]
      %v5282 = vld [vmem:[%s587 + $0x52] sm:$0xff]
      %v5283 = vld [vmem:[%s587 + $0x62] sm:$0xff]
      %v5284 = vld [vmem:[%s587 + $0x6a] sm:$0xff]
      %v5285 = vld [vmem:[%s587 + $0x7a] sm:$0xff]
      %v5286 = vld [vmem:[%s587 + $0x82] sm:$0xff]
      %v5287 = vld [vmem:[%s587 + $0x92] sm:$0xff]
      %v5288 = vld [vmem:[%s587 + $0x9a] sm:$0xff]
      %v5289 = vld [vmem:[%s587 + $0xaa] sm:$0xff]
      %v5290 = vld [vmem:[%s587 + $0xb2] sm:$0xff]
      %v5291 = vld [vmem:[%s587 + $0xc2] sm:$0xff]
      %v5292 = vld [vmem:[%s587 + $0xca] sm:$0xff]
      %v5293 = vld [vmem:[%s587 + $0xda] sm:$0xff]
      %v5294 = vld [vmem:[%s587 + $0xe2] sm:$0xff]
      %v5295 = vld [vmem:[%s587 + $0xf2] sm:$0xff]
      %v5296 = vld [vmem:[%s587 + $0xfa] sm:$0xff]
      %v5297 = vld [vmem:[%s587 + $0x10a] sm:$0xff]
      %v5298 = vld [vmem:[%s587 + $0x112] sm:$0xff]
      %v5299 = vld [vmem:[%s587 + $0x122] sm:$0xff]
      %v5300 = vld [vmem:[%s587 + $0x12a] sm:$0xff]
      %v5301 = vld [vmem:[%s587 + $0x13a] sm:$0xff]
      %v5302 = vld [vmem:[%s587 + $0x142] sm:$0xff]
      %v5303 = vld [vmem:[%s587 + $0x152] sm:$0xff]
      %v5304 = vld [vmem:[%s587 + $0x15a] sm:$0xff]
      %v5305 = vld [vmem:[%s587 + $0x16a] sm:$0xff]
      %v5306 = vld [vmem:[%s587 + $0x172] sm:$0xff]
      %v5307 = vld [vmem:[%s587 + $0x182] sm:$0xff]
      %v5308 = vld [vmem:[%s587 + $0x18a] sm:$0xff]
      %v5309 = vld [vmem:[%s587 + $0x19a] sm:$0xff]
      %v5310 = vld [vmem:[%s587 + $0x1a2] sm:$0xff]
      %v5311 = vld [vmem:[%s587 + $0x1b2] sm:$0xff]
      %v5312 = vld [vmem:[%s587 + $0x1ba] sm:$0xff]
      %v5313 = vld [vmem:[%s587 + $0x1ca] sm:$0xff]
      %v5314 = vld [vmem:[%s587 + $0x1d2] sm:$0xff]
      %v5315 = vld [vmem:[%s587 + $0x1e2] sm:$0xff]
      %v5316 = vld [vmem:[%s587 + $0x1ea] sm:$0xff]
      %v5317 = vld [vmem:[%s587 + $0x1fa] sm:$0xff]
      %v5318 = vld [vmem:[%s587 + $0x202] sm:$0xff]
      %v5319 = vld [vmem:[%s587 + $0x212] sm:$0xff]
      %v5320 = vld [vmem:[%s587 + $0x21a] sm:$0xff]
      %v5321 = vld [vmem:[%s587 + $0x22a] sm:$0xff]
      %v5322 = vld [vmem:[%s587 + $0x232] sm:$0xff]
      %v5323 = vld [vmem:[%s587 + $0x242] sm:$0xff]
      %v5324 = vld [vmem:[%s587 + $0x24a] sm:$0xff]
      %v5325 = vld [vmem:[%s587 + $0x25a] sm:$0xff]
      %v5326 = vld [vmem:[%s587 + $0x262] sm:$0xff]
      %v5327 = vld [vmem:[%s587 + $0x272] sm:$0xff]
      %v5328 = vld [vmem:[%s587 + $0x27a] sm:$0xff]
      %v5329 = vld [vmem:[%s587 + $0x28a] sm:$0xff]
      %v5330 = vld [vmem:[%s587 + $0x292] sm:$0xff]
      %v5331 = vld [vmem:[%s587 + $0x2a2] sm:$0xff]
      %v5332 = vld [vmem:[%s587 + $0x2aa] sm:$0xff]
      %v5333 = vld [vmem:[%s587 + $0x2ba] sm:$0xff]
      %v5334 = vld [vmem:[%s587 + $0x2c2] sm:$0xff]
      %v5335 = vld [vmem:[%s587 + $0x2d2] sm:$0xff]
      %v5336 = vld [vmem:[%s587 + $0x2da] sm:$0xff]
      %v5337 = vld [vmem:[%s587 + $0x2ea] sm:$0xff]
      %v5338 = vld [vmem:[%s587 + $0x2f2] sm:$0xff]
      %v5339 = vld [vmem:[%s587 + $0x302] sm:$0xff]
      %v5340 = vld [vmem:[%s587 + $0x30a] sm:$0xff]
      %v5341 = vld [vmem:[%s587 + $0x31a] sm:$0xff]
      %v5342 = vld [vmem:[%s587 + $0x322] sm:$0xff]
      %v5343 = vld [vmem:[%s587 + $0x332] sm:$0xff]
      %v5344 = vld [vmem:[%s587 + $0x33a] sm:$0xff]
      %v5345 = vld [vmem:[%s587 + $0x34a] sm:$0xff]
      %v5346 = vld [vmem:[%s587 + $0x352] sm:$0xff]
      %v5347 = vld [vmem:[%s587 + $0x362] sm:$0xff]
      %v5348 = vld [vmem:[%s587 + $0x36a] sm:$0xff]
      %v5349 = vld [vmem:[%s587 + $0x37a] sm:$0xff]
      %v5350 = vld [vmem:[%s587 + $0x382] sm:$0xff]
      %v5351 = vld [vmem:[%s587 + $0x392] sm:$0xff]
      %v5352 = vld [vmem:[%s587 + $0x39a] sm:$0xff]
      %v5353 = vld [vmem:[%s587 + $0x3aa] sm:$0xff]
      %v5354 = vld [vmem:[%s587 + $0x3b2] sm:$0xff]
      %v5355 = vld [vmem:[%s587 + $0x3c2] sm:$0xff]
      %v5356 = vld [vmem:[%s587 + $0x3ca] sm:$0xff]
      %v5357 = vld [vmem:[%s587 + $0x3da] sm:$0xff]
      %v5358 = vld [vmem:[%s587 + $0x3e2] sm:$0xff]
      %v5359 = vld [vmem:[%s587 + $0x3f2] sm:$0xff]
      %v5360 = vld [vmem:[%s587 + $0x3fa] sm:$0xff]
      %v5361 = vld [vmem:[%s587 + $0x40a] sm:$0xff]
      %v5362 = vld [vmem:[%s587 + $0x412] sm:$0xff]
      %v5363 = vld [vmem:[%s587 + $0x422] sm:$0xff]
      %v5364 = vld [vmem:[%s587 + $0x42a] sm:$0xff]
      %v5365 = vld [vmem:[%s587 + $0x43a] sm:$0xff]
      %v5366 = vld [vmem:[%s587 + $0x442] sm:$0xff]
      %v5367 = vld [vmem:[%s587 + $0x452] sm:$0xff]
      %v5368 = vld [vmem:[%s587 + $0x45a] sm:$0xff]
      %v5369 = vld [vmem:[%s587 + $0x46a] sm:$0xff]
      %v5370 = vld [vmem:[%s587 + $0x472] sm:$0xff]
      %v5371 = vld [vmem:[%s587 + $0x482] sm:$0xff]
      %v5372 = vld [vmem:[%s587 + $0x48a] sm:$0xff]
      %v5373 = vld [vmem:[%s587 + $0x49a] sm:$0xff]
      %v5374 = vld [vmem:[%s587 + $0x4a2] sm:$0xff]
      %v5375 = vld [vmem:[%s587 + $0x4b2] sm:$0xff]
      %v5376 = vld [vmem:[%s587 + $0x4ba] sm:$0xff]
      %v5377 = vld [vmem:[%s587 + $0x4ca] sm:$0xff]
      %v5378 = vld [vmem:[%s587 + $0x4d2] sm:$0xff]
      %v5379 = vld [vmem:[%s587 + $0x4e2] sm:$0xff]
      %v5380 = vld [vmem:[%s587 + $0x4ea] sm:$0xff]
      %v5381 = vld [vmem:[%s587 + $0x4fa] sm:$0xff]
      %v5382 = vld [vmem:[%s587 + $0x502] sm:$0xff]
      %v5383 = vld [vmem:[%s587 + $0x512] sm:$0xff]
      %v5384 = vld [vmem:[%s587 + $0x51a] sm:$0xff]
      %v5385 = vld [vmem:[%s587 + $0x52a] sm:$0xff]
      %v5386 = vld [vmem:[%s587 + $0x532] sm:$0xff]
      %v5387 = vld [vmem:[%s587 + $0x542] sm:$0xff]
      %v5388 = vld [vmem:[%s587 + $0x54a] sm:$0xff]
      %v5389 = vld [vmem:[%s587 + $0x55a] sm:$0xff]
      %v5390 = vld [vmem:[%s587 + $0x562] sm:$0xff]
      %v5391 = vld [vmem:[%s587 + $0x572] sm:$0xff]
      %v5392 = vld [vmem:[%s587 + $0x57a] sm:$0xff]
      %v5393 = vld [vmem:[%s587 + $0x58a] sm:$0xff]
      %v5394 = vld [vmem:[%s587 + $0x592] sm:$0xff]
      %5515 = vrot.lane.b32.xlu0 %v5275, 28
      %v5516 = vpop.permute.xlu0 %5515
      %5517 = vrot.lane.b32.xlu0 %v5276, 28
      %v5518 = vpop.permute.xlu0 %5517
      %5519 = vrot.lane.b32.xlu0 %v5277, 28
      %v5520 = vpop.permute.xlu0 %5519
      %5521 = vrot.lane.b32.xlu0 %v5278, 28
      %v5522 = vpop.permute.xlu0 %5521
      %5523 = vrot.lane.b32.xlu0 %v5279, 28
      %v5524 = vpop.permute.xlu0 %5523
      %5525 = vrot.lane.b32.xlu0 %v5280, 28
      %v5526 = vpop.permute.xlu0 %5525
      %5527 = vrot.lane.b32.xlu0 %v5281, 28
      %v5528 = vpop.permute.xlu0 %5527
      %5529 = vrot.lane.b32.xlu0 %v5282, 28
      %v5530 = vpop.permute.xlu0 %5529
      %5531 = vrot.lane.b32.xlu0 %v5283, 28
      %v5532 = vpop.permute.xlu0 %5531
      %5533 = vrot.lane.b32.xlu0 %v5284, 28
      %v5534 = vpop.permute.xlu0 %5533
      %5535 = vrot.lane.b32.xlu0 %v5285, 28
      %v5536 = vpop.permute.xlu0 %5535
      %5537 = vrot.lane.b32.xlu0 %v5286, 28
      %v5538 = vpop.permute.xlu0 %5537
      %5539 = vrot.lane.b32.xlu0 %v5287, 28
      %v5540 = vpop.permute.xlu0 %5539
      %5541 = vrot.lane.b32.xlu0 %v5288, 28
      %v5542 = vpop.permute.xlu0 %5541
      %5543 = vrot.lane.b32.xlu0 %v5289, 28
      %v5544 = vpop.permute.xlu0 %5543
      %5545 = vrot.lane.b32.xlu0 %v5290, 28
      %v5546 = vpop.permute.xlu0 %5545
      %5547 = vrot.lane.b32.xlu0 %v5291, 28
      %v5548 = vpop.permute.xlu0 %5547
      %5549 = vrot.lane.b32.xlu0 %v5292, 28
      %v5550 = vpop.permute.xlu0 %5549
      %5551 = vrot.lane.b32.xlu0 %v5293, 28
      %v5552 = vpop.permute.xlu0 %5551
      %5553 = vrot.lane.b32.xlu0 %v5294, 28
      %v5554 = vpop.permute.xlu0 %5553
      %5555 = vrot.lane.b32.xlu0 %v5295, 28
      %v5556 = vpop.permute.xlu0 %5555
      %5557 = vrot.lane.b32.xlu0 %v5296, 28
      %v5558 = vpop.permute.xlu0 %5557
      %5559 = vrot.lane.b32.xlu0 %v5297, 28
      %v5560 = vpop.permute.xlu0 %5559
      %5561 = vrot.lane.b32.xlu0 %v5298, 28
      %v5562 = vpop.permute.xlu0 %5561
      %5563 = vrot.lane.b32.xlu0 %v5299, 28
      %v5564 = vpop.permute.xlu0 %5563
      %5565 = vrot.lane.b32.xlu0 %v5300, 28
      %v5566 = vpop.permute.xlu0 %5565
      %5567 = vrot.lane.b32.xlu0 %v5301, 28
      %v5568 = vpop.permute.xlu0 %5567
      %5569 = vrot.lane.b32.xlu0 %v5302, 28
      %v5570 = vpop.permute.xlu0 %5569
      %5571 = vrot.lane.b32.xlu0 %v5303, 28
      %v5572 = vpop.permute.xlu0 %5571
      %5573 = vrot.lane.b32.xlu0 %v5304, 28
      %v5574 = vpop.permute.xlu0 %5573
      %5575 = vrot.lane.b32.xlu0 %v5305, 28
      %v5576 = vpop.permute.xlu0 %5575
      %5577 = vrot.lane.b32.xlu0 %v5306, 28
      %v5578 = vpop.permute.xlu0 %5577
      %5579 = vrot.lane.b32.xlu0 %v5307, 28
      %v5580 = vpop.permute.xlu0 %5579
      %5581 = vrot.lane.b32.xlu0 %v5308, 28
      %v5582 = vpop.permute.xlu0 %5581
      %5583 = vrot.lane.b32.xlu0 %v5309, 28
      %v5584 = vpop.permute.xlu0 %5583
      %5585 = vrot.lane.b32.xlu0 %v5310, 28
      %v5586 = vpop.permute.xlu0 %5585
      %5587 = vrot.lane.b32.xlu0 %v5311, 28
      %v5588 = vpop.permute.xlu0 %5587
      %5589 = vrot.lane.b32.xlu0 %v5312, 28
      %v5590 = vpop.permute.xlu0 %5589
      %5591 = vrot.lane.b32.xlu0 %v5313, 28
      %v5592 = vpop.permute.xlu0 %5591
      %5593 = vrot.lane.b32.xlu0 %v5314, 28
      %v5594 = vpop.permute.xlu0 %5593
      %5595 = vrot.lane.b32.xlu0 %v5315, 28
      %v5596 = vpop.permute.xlu0 %5595
      %5597 = vrot.lane.b32.xlu0 %v5316, 28
      %v5598 = vpop.permute.xlu0 %5597
      %5599 = vrot.lane.b32.xlu0 %v5317, 28
      %v5600 = vpop.permute.xlu0 %5599
      %5601 = vrot.lane.b32.xlu0 %v5318, 28
      %v5602 = vpop.permute.xlu0 %5601
      %5603 = vrot.lane.b32.xlu0 %v5319, 28
      %v5604 = vpop.permute.xlu0 %5603
      %5605 = vrot.lane.b32.xlu0 %v5320, 28
      %v5606 = vpop.permute.xlu0 %5605
      %5607 = vrot.lane.b32.xlu0 %v5321, 28
      %v5608 = vpop.permute.xlu0 %5607
      %5609 = vrot.lane.b32.xlu0 %v5322, 28
      %v5610 = vpop.permute.xlu0 %5609
      %5611 = vrot.lane.b32.xlu0 %v5323, 28
      %v5612 = vpop.permute.xlu0 %5611
      %5613 = vrot.lane.b32.xlu0 %v5324, 28
      %v5614 = vpop.permute.xlu0 %5613
      %5615 = vrot.lane.b32.xlu0 %v5325, 28
      %v5616 = vpop.permute.xlu0 %5615
      %5617 = vrot.lane.b32.xlu0 %v5326, 28
      %v5618 = vpop.permute.xlu0 %5617
      %5619 = vrot.lane.b32.xlu0 %v5327, 28
      %v5620 = vpop.permute.xlu0 %5619
      %5621 = vrot.lane.b32.xlu0 %v5328, 28
      %v5622 = vpop.permute.xlu0 %5621
      %5623 = vrot.lane.b32.xlu0 %v5329, 28
      %v5624 = vpop.permute.xlu0 %5623
      %5625 = vrot.lane.b32.xlu0 %v5330, 28
      %v5626 = vpop.permute.xlu0 %5625
      %5627 = vrot.lane.b32.xlu0 %v5331, 28
      %v5628 = vpop.permute.xlu0 %5627
      %5629 = vrot.lane.b32.xlu0 %v5332, 28
      %v5630 = vpop.permute.xlu0 %5629
      %5631 = vrot.lane.b32.xlu0 %v5333, 28
      %v5632 = vpop.permute.xlu0 %5631
      %5633 = vrot.lane.b32.xlu0 %v5334, 28
      %v5634 = vpop.permute.xlu0 %5633
      %5635 = vrot.lane.b32.xlu0 %v5335, 28
      %v5636 = vpop.permute.xlu0 %5635
      %5637 = vrot.lane.b32.xlu0 %v5336, 28
      %v5638 = vpop.permute.xlu0 %5637
      %5639 = vrot.lane.b32.xlu0 %v5337, 28
      %v5640 = vpop.permute.xlu0 %5639
      %5641 = vrot.lane.b32.xlu0 %v5338, 28
      %v5642 = vpop.permute.xlu0 %5641
      %5643 = vrot.lane.b32.xlu0 %v5339, 28
      %v5644 = vpop.permute.xlu0 %5643
      %5645 = vrot.lane.b32.xlu0 %v5340, 28
      %v5646 = vpop.permute.xlu0 %5645
      %5647 = vrot.lane.b32.xlu0 %v5341, 28
      %v5648 = vpop.permute.xlu0 %5647
      %5649 = vrot.lane.b32.xlu0 %v5342, 28
      %v5650 = vpop.permute.xlu0 %5649
      %5651 = vrot.lane.b32.xlu0 %v5343, 28
      %v5652 = vpop.permute.xlu0 %5651
      %5653 = vrot.lane.b32.xlu0 %v5344, 28
      %v5654 = vpop.permute.xlu0 %5653
      %5655 = vrot.lane.b32.xlu0 %v5345, 28
      %v5656 = vpop.permute.xlu0 %5655
      %5657 = vrot.lane.b32.xlu0 %v5346, 28
      %v5658 = vpop.permute.xlu0 %5657
      %5659 = vrot.lane.b32.xlu0 %v5347, 28
      %v5660 = vpop.permute.xlu0 %5659
      %5661 = vrot.lane.b32.xlu0 %v5348, 28
      %v5662 = vpop.permute.xlu0 %5661
      %5663 = vrot.lane.b32.xlu0 %v5349, 28
      %v5664 = vpop.permute.xlu0 %5663
      %5665 = vrot.lane.b32.xlu0 %v5350, 28
      %v5666 = vpop.permute.xlu0 %5665
      %5667 = vrot.lane.b32.xlu0 %v5351, 28
      %v5668 = vpop.permute.xlu0 %5667
      %5669 = vrot.lane.b32.xlu0 %v5352, 28
      %v5670 = vpop.permute.xlu0 %5669
      %5671 = vrot.lane.b32.xlu0 %v5353, 28
      %v5672 = vpop.permute.xlu0 %5671
      %5673 = vrot.lane.b32.xlu0 %v5354, 28
      %v5674 = vpop.permute.xlu0 %5673
      %5675 = vrot.lane.b32.xlu0 %v5355, 28
      %v5676 = vpop.permute.xlu0 %5675
      %5677 = vrot.lane.b32.xlu0 %v5356, 28
      %v5678 = vpop.permute.xlu0 %5677
      %5679 = vrot.lane.b32.xlu0 %v5357, 28
      %v5680 = vpop.permute.xlu0 %5679
      %5681 = vrot.lane.b32.xlu0 %v5358, 28
      %v5682 = vpop.permute.xlu0 %5681
      %5683 = vrot.lane.b32.xlu0 %v5359, 28
      %v5684 = vpop.permute.xlu0 %5683
      %5685 = vrot.lane.b32.xlu0 %v5360, 28
      %v5686 = vpop.permute.xlu0 %5685
      %5687 = vrot.lane.b32.xlu0 %v5361, 28
      %v5688 = vpop.permute.xlu0 %5687
      %5689 = vrot.lane.b32.xlu0 %v5362, 28
      %v5690 = vpop.permute.xlu0 %5689
      %5691 = vrot.lane.b32.xlu0 %v5363, 28
      %v5692 = vpop.permute.xlu0 %5691
      %5693 = vrot.lane.b32.xlu0 %v5364, 28
      %v5694 = vpop.permute.xlu0 %5693
      %5695 = vrot.lane.b32.xlu0 %v5365, 28
      %v5696 = vpop.permute.xlu0 %5695
      %5697 = vrot.lane.b32.xlu0 %v5366, 28
      %v5698 = vpop.permute.xlu0 %5697
      %5699 = vrot.lane.b32.xlu0 %v5367, 28
      %v5700 = vpop.permute.xlu0 %5699
      %5701 = vrot.lane.b32.xlu0 %v5368, 28
      %v5702 = vpop.permute.xlu0 %5701
      %5703 = vrot.lane.b32.xlu0 %v5369, 28
      %v5704 = vpop.permute.xlu0 %5703
      %5705 = vrot.lane.b32.xlu0 %v5370, 28
      %v5706 = vpop.permute.xlu0 %5705
      %5707 = vrot.lane.b32.xlu0 %v5371, 28
      %v5708 = vpop.permute.xlu0 %5707
      %5709 = vrot.lane.b32.xlu0 %v5372, 28
      %v5710 = vpop.permute.xlu0 %5709
      %5711 = vrot.lane.b32.xlu0 %v5373, 28
      %v5712 = vpop.permute.xlu0 %5711
      %5713 = vrot.lane.b32.xlu0 %v5374, 28
      %v5714 = vpop.permute.xlu0 %5713
      %5715 = vrot.lane.b32.xlu0 %v5375, 28
      %v5716 = vpop.permute.xlu0 %5715
      %5717 = vrot.lane.b32.xlu0 %v5376, 28
      %v5718 = vpop.permute.xlu0 %5717
      %5719 = vrot.lane.b32.xlu0 %v5377, 28
      %v5720 = vpop.permute.xlu0 %5719
      %5721 = vrot.lane.b32.xlu0 %v5378, 28
      %v5722 = vpop.permute.xlu0 %5721
      %5723 = vrot.lane.b32.xlu0 %v5379, 28
      %v5724 = vpop.permute.xlu0 %5723
      %5725 = vrot.lane.b32.xlu0 %v5380, 28
      %v5726 = vpop.permute.xlu0 %5725
      %5727 = vrot.lane.b32.xlu0 %v5381, 28
      %v5728 = vpop.permute.xlu0 %5727
      %5729 = vrot.lane.b32.xlu0 %v5382, 28
      %v5730 = vpop.permute.xlu0 %5729
      %5731 = vrot.lane.b32.xlu0 %v5383, 28
      %v5732 = vpop.permute.xlu0 %5731
      %5733 = vrot.lane.b32.xlu0 %v5384, 28
      %v5734 = vpop.permute.xlu0 %5733
      %5735 = vrot.lane.b32.xlu0 %v5385, 28
      %v5736 = vpop.permute.xlu0 %5735
      %5737 = vrot.lane.b32.xlu0 %v5386, 28
      %v5738 = vpop.permute.xlu0 %5737
      %5739 = vrot.lane.b32.xlu0 %v5387, 28
      %v5740 = vpop.permute.xlu0 %5739
      %5741 = vrot.lane.b32.xlu0 %v5388, 28
      %v5742 = vpop.permute.xlu0 %5741
      %5743 = vrot.lane.b32.xlu0 %v5389, 28
      %v5744 = vpop.permute.xlu0 %5743
      %5745 = vrot.lane.b32.xlu0 %v5390, 28
      %v5746 = vpop.permute.xlu0 %5745
      %5747 = vrot.lane.b32.xlu0 %v5391, 28
      %v5748 = vpop.permute.xlu0 %5747
      %5749 = vrot.lane.b32.xlu0 %v5392, 28
      %v5750 = vpop.permute.xlu0 %5749
      %5751 = vrot.lane.b32.xlu0 %v5393, 28
      %v5752 = vpop.permute.xlu0 %5751
      %5753 = vrot.lane.b32.xlu0 %v5394, 28
      %v5754 = vpop.permute.xlu0 %5753
      %vm5875 = vcmask 261344
      %5876 = vst.msk [vmem:[#allocation5] sm:$0xff] %vm5875, %v5516
      %5877 = vst.msk [vmem:[#allocation5 + $0x8] sm:$0xff] %vm5875, %v5518
      %5878 = vst.msk [vmem:[#allocation5 + $0x10] sm:$0xff] %vm5875, %v5520
      %5879 = vst.msk [vmem:[#allocation5 + $0x18] sm:$0xff] %vm5875, %v5522
      %5880 = vst.msk [vmem:[#allocation5 + $0x20] sm:$0xff] %vm5875, %v5524
      %5881 = vst.msk [vmem:[#allocation5 + $0x28] sm:$0xff] %vm5875, %v5526
      %5882 = vst.msk [vmem:[#allocation5 + $0x30] sm:$0xff] %vm5875, %v5528
      %5883 = vst.msk [vmem:[#allocation5 + $0x38] sm:$0xff] %vm5875, %v5530
      %5884 = vst.msk [vmem:[#allocation5 + $0x40] sm:$0xff] %vm5875, %v5532
      %5885 = vst.msk [vmem:[#allocation5 + $0x48] sm:$0xff] %vm5875, %v5534
      %5886 = vst.msk [vmem:[#allocation5 + $0x50] sm:$0xff] %vm5875, %v5536
      %5887 = vst.msk [vmem:[#allocation5 + $0x58] sm:$0xff] %vm5875, %v5538
      %5888 = vst.msk [vmem:[#allocation5 + $0x60] sm:$0xff] %vm5875, %v5540
      %5889 = vst.msk [vmem:[#allocation5 + $0x68] sm:$0xff] %vm5875, %v5542
      %5890 = vst.msk [vmem:[#allocation5 + $0x70] sm:$0xff] %vm5875, %v5544
      %5891 = vst.msk [vmem:[#allocation5 + $0x78] sm:$0xff] %vm5875, %v5546
      %5892 = vst.msk [vmem:[#allocation5 + $0x80] sm:$0xff] %vm5875, %v5548
      %5893 = vst.msk [vmem:[#allocation5 + $0x88] sm:$0xff] %vm5875, %v5550
      %5894 = vst.msk [vmem:[#allocation5 + $0x90] sm:$0xff] %vm5875, %v5552
      %5895 = vst.msk [vmem:[#allocation5 + $0x98] sm:$0xff] %vm5875, %v5554
      %5896 = vst.msk [vmem:[#allocation5 + $0xa0] sm:$0xff] %vm5875, %v5556
      %5897 = vst.msk [vmem:[#allocation5 + $0xa8] sm:$0xff] %vm5875, %v5558
      %5898 = vst.msk [vmem:[#allocation5 + $0xb0] sm:$0xff] %vm5875, %v5560
      %5899 = vst.msk [vmem:[#allocation5 + $0xb8] sm:$0xff] %vm5875, %v5562
      %5900 = vst.msk [vmem:[#allocation5 + $0xc0] sm:$0xff] %vm5875, %v5564
      %5901 = vst.msk [vmem:[#allocation5 + $0xc8] sm:$0xff] %vm5875, %v5566
      %5902 = vst.msk [vmem:[#allocation5 + $0xd0] sm:$0xff] %vm5875, %v5568
      %5903 = vst.msk [vmem:[#allocation5 + $0xd8] sm:$0xff] %vm5875, %v5570
      %5904 = vst.msk [vmem:[#allocation5 + $0xe0] sm:$0xff] %vm5875, %v5572
      %5905 = vst.msk [vmem:[#allocation5 + $0xe8] sm:$0xff] %vm5875, %v5574
      %5906 = vst.msk [vmem:[#allocation5 + $0xf0] sm:$0xff] %vm5875, %v5576
      %5907 = vst.msk [vmem:[#allocation5 + $0xf8] sm:$0xff] %vm5875, %v5578
      %5908 = vst.msk [vmem:[#allocation5 + $0x100] sm:$0xff] %vm5875, %v5580
      %5909 = vst.msk [vmem:[#allocation5 + $0x108] sm:$0xff] %vm5875, %v5582
      %5910 = vst.msk [vmem:[#allocation5 + $0x110] sm:$0xff] %vm5875, %v5584
      %5911 = vst.msk [vmem:[#allocation5 + $0x118] sm:$0xff] %vm5875, %v5586
      %5912 = vst.msk [vmem:[#allocation5 + $0x120] sm:$0xff] %vm5875, %v5588
      %5913 = vst.msk [vmem:[#allocation5 + $0x128] sm:$0xff] %vm5875, %v5590
      %5914 = vst.msk [vmem:[#allocation5 + $0x130] sm:$0xff] %vm5875, %v5592
      %5915 = vst.msk [vmem:[#allocation5 + $0x138] sm:$0xff] %vm5875, %v5594
      %5916 = vst.msk [vmem:[#allocation5 + $0x140] sm:$0xff] %vm5875, %v5596
      %5917 = vst.msk [vmem:[#allocation5 + $0x148] sm:$0xff] %vm5875, %v5598
      %5918 = vst.msk [vmem:[#allocation5 + $0x150] sm:$0xff] %vm5875, %v5600
      %5919 = vst.msk [vmem:[#allocation5 + $0x158] sm:$0xff] %vm5875, %v5602
      %5920 = vst.msk [vmem:[#allocation5 + $0x160] sm:$0xff] %vm5875, %v5604
      %5921 = vst.msk [vmem:[#allocation5 + $0x168] sm:$0xff] %vm5875, %v5606
      %5922 = vst.msk [vmem:[#allocation5 + $0x170] sm:$0xff] %vm5875, %v5608
      %5923 = vst.msk [vmem:[#allocation5 + $0x178] sm:$0xff] %vm5875, %v5610
      %5924 = vst.msk [vmem:[#allocation5 + $0x180] sm:$0xff] %vm5875, %v5612
      %5925 = vst.msk [vmem:[#allocation5 + $0x188] sm:$0xff] %vm5875, %v5614
      %5926 = vst.msk [vmem:[#allocation5 + $0x190] sm:$0xff] %vm5875, %v5616
      %5927 = vst.msk [vmem:[#allocation5 + $0x198] sm:$0xff] %vm5875, %v5618
      %5928 = vst.msk [vmem:[#allocation5 + $0x1a0] sm:$0xff] %vm5875, %v5620
      %5929 = vst.msk [vmem:[#allocation5 + $0x1a8] sm:$0xff] %vm5875, %v5622
      %5930 = vst.msk [vmem:[#allocation5 + $0x1b0] sm:$0xff] %vm5875, %v5624
      %5931 = vst.msk [vmem:[#allocation5 + $0x1b8] sm:$0xff] %vm5875, %v5626
      %5932 = vst.msk [vmem:[#allocation5 + $0x1c0] sm:$0xff] %vm5875, %v5628
      %5933 = vst.msk [vmem:[#allocation5 + $0x1c8] sm:$0xff] %vm5875, %v5630
      %5934 = vst.msk [vmem:[#allocation5 + $0x1d0] sm:$0xff] %vm5875, %v5632
      %5935 = vst.msk [vmem:[#allocation5 + $0x1d8] sm:$0xff] %vm5875, %v5634
      %5936 = vst.msk [vmem:[#allocation5 + $0x1e0] sm:$0xff] %vm5875, %v5636
      %5937 = vst.msk [vmem:[#allocation5 + $0x1e8] sm:$0xff] %vm5875, %v5638
      %5938 = vst.msk [vmem:[#allocation5 + $0x1f0] sm:$0xff] %vm5875, %v5640
      %5939 = vst.msk [vmem:[#allocation5 + $0x1f8] sm:$0xff] %vm5875, %v5642
      %5940 = vst.msk [vmem:[#allocation5 + $0x200] sm:$0xff] %vm5875, %v5644
      %5941 = vst.msk [vmem:[#allocation5 + $0x208] sm:$0xff] %vm5875, %v5646
      %5942 = vst.msk [vmem:[#allocation5 + $0x210] sm:$0xff] %vm5875, %v5648
      %5943 = vst.msk [vmem:[#allocation5 + $0x218] sm:$0xff] %vm5875, %v5650
      %5944 = vst.msk [vmem:[#allocation5 + $0x220] sm:$0xff] %vm5875, %v5652
      %5945 = vst.msk [vmem:[#allocation5 + $0x228] sm:$0xff] %vm5875, %v5654
      %5946 = vst.msk [vmem:[#allocation5 + $0x230] sm:$0xff] %vm5875, %v5656
      %5947 = vst.msk [vmem:[#allocation5 + $0x238] sm:$0xff] %vm5875, %v5658
      %5948 = vst.msk [vmem:[#allocation5 + $0x240] sm:$0xff] %vm5875, %v5660
      %5949 = vst.msk [vmem:[#allocation5 + $0x248] sm:$0xff] %vm5875, %v5662
      %5950 = vst.msk [vmem:[#allocation5 + $0x250] sm:$0xff] %vm5875, %v5664
      %5951 = vst.msk [vmem:[#allocation5 + $0x258] sm:$0xff] %vm5875, %v5666
      %5952 = vst.msk [vmem:[#allocation5 + $0x260] sm:$0xff] %vm5875, %v5668
      %5953 = vst.msk [vmem:[#allocation5 + $0x268] sm:$0xff] %vm5875, %v5670
      %5954 = vst.msk [vmem:[#allocation5 + $0x270] sm:$0xff] %vm5875, %v5672
      %5955 = vst.msk [vmem:[#allocation5 + $0x278] sm:$0xff] %vm5875, %v5674
      %5956 = vst.msk [vmem:[#allocation5 + $0x280] sm:$0xff] %vm5875, %v5676
      %5957 = vst.msk [vmem:[#allocation5 + $0x288] sm:$0xff] %vm5875, %v5678
      %5958 = vst.msk [vmem:[#allocation5 + $0x290] sm:$0xff] %vm5875, %v5680
      %5959 = vst.msk [vmem:[#allocation5 + $0x298] sm:$0xff] %vm5875, %v5682
      %5960 = vst.msk [vmem:[#allocation5 + $0x2a0] sm:$0xff] %vm5875, %v5684
      %5961 = vst.msk [vmem:[#allocation5 + $0x2a8] sm:$0xff] %vm5875, %v5686
      %5962 = vst.msk [vmem:[#allocation5 + $0x2b0] sm:$0xff] %vm5875, %v5688
      %5963 = vst.msk [vmem:[#allocation5 + $0x2b8] sm:$0xff] %vm5875, %v5690
      %5964 = vst.msk [vmem:[#allocation5 + $0x2c0] sm:$0xff] %vm5875, %v5692
      %5965 = vst.msk [vmem:[#allocation5 + $0x2c8] sm:$0xff] %vm5875, %v5694
      %5966 = vst.msk [vmem:[#allocation5 + $0x2d0] sm:$0xff] %vm5875, %v5696
      %5967 = vst.msk [vmem:[#allocation5 + $0x2d8] sm:$0xff] %vm5875, %v5698
      %5968 = vst.msk [vmem:[#allocation5 + $0x2e0] sm:$0xff] %vm5875, %v5700
      %5969 = vst.msk [vmem:[#allocation5 + $0x2e8] sm:$0xff] %vm5875, %v5702
      %5970 = vst.msk [vmem:[#allocation5 + $0x2f0] sm:$0xff] %vm5875, %v5704
      %5971 = vst.msk [vmem:[#allocation5 + $0x2f8] sm:$0xff] %vm5875, %v5706
      %5972 = vst.msk [vmem:[#allocation5 + $0x300] sm:$0xff] %vm5875, %v5708
      %5973 = vst.msk [vmem:[#allocation5 + $0x308] sm:$0xff] %vm5875, %v5710
      %5974 = vst.msk [vmem:[#allocation5 + $0x310] sm:$0xff] %vm5875, %v5712
      %5975 = vst.msk [vmem:[#allocation5 + $0x318] sm:$0xff] %vm5875, %v5714
      %5976 = vst.msk [vmem:[#allocation5 + $0x320] sm:$0xff] %vm5875, %v5716
      %5977 = vst.msk [vmem:[#allocation5 + $0x328] sm:$0xff] %vm5875, %v5718
      %5978 = vst.msk [vmem:[#allocation5 + $0x330] sm:$0xff] %vm5875, %v5720
      %5979 = vst.msk [vmem:[#allocation5 + $0x338] sm:$0xff] %vm5875, %v5722
      %5980 = vst.msk [vmem:[#allocation5 + $0x340] sm:$0xff] %vm5875, %v5724
      %5981 = vst.msk [vmem:[#allocation5 + $0x348] sm:$0xff] %vm5875, %v5726
      %5982 = vst.msk [vmem:[#allocation5 + $0x350] sm:$0xff] %vm5875, %v5728
      %5983 = vst.msk [vmem:[#allocation5 + $0x358] sm:$0xff] %vm5875, %v5730
      %5984 = vst.msk [vmem:[#allocation5 + $0x360] sm:$0xff] %vm5875, %v5732
      %5985 = vst.msk [vmem:[#allocation5 + $0x368] sm:$0xff] %vm5875, %v5734
      %5986 = vst.msk [vmem:[#allocation5 + $0x370] sm:$0xff] %vm5875, %v5736
      %5987 = vst.msk [vmem:[#allocation5 + $0x378] sm:$0xff] %vm5875, %v5738
      %5988 = vst.msk [vmem:[#allocation5 + $0x380] sm:$0xff] %vm5875, %v5740
      %5989 = vst.msk [vmem:[#allocation5 + $0x388] sm:$0xff] %vm5875, %v5742
      %5990 = vst.msk [vmem:[#allocation5 + $0x390] sm:$0xff] %vm5875, %v5744
      %5991 = vst.msk [vmem:[#allocation5 + $0x398] sm:$0xff] %vm5875, %v5746
      %5992 = vst.msk [vmem:[#allocation5 + $0x3a0] sm:$0xff] %vm5875, %v5748
      %5993 = vst.msk [vmem:[#allocation5 + $0x3a8] sm:$0xff] %vm5875, %v5750
      %5994 = vst.msk [vmem:[#allocation5 + $0x3b0] sm:$0xff] %vm5875, %v5752
      %5995 = vst.msk [vmem:[#allocation5 + $0x3b8] sm:$0xff] %vm5875, %v5754
      %v5996 = vld [vmem:[%s1669 + $0x2] sm:$0xff]
      %v5997 = vld [vmem:[%s1669 + $0xa] sm:$0xff]
      %v5998 = vld [vmem:[%s1669 + $0x1a] sm:$0xff]
      %v5999 = vld [vmem:[%s1669 + $0x22] sm:$0xff]
      %v6000 = vld [vmem:[%s1669 + $0x32] sm:$0xff]
      %v6001 = vld [vmem:[%s1669 + $0x3a] sm:$0xff]
      %v6002 = vld [vmem:[%s1669 + $0x4a] sm:$0xff]
      %v6003 = vld [vmem:[%s1669 + $0x52] sm:$0xff]
      %v6004 = vld [vmem:[%s1669 + $0x62] sm:$0xff]
      %v6005 = vld [vmem:[%s1669 + $0x6a] sm:$0xff]
      %v6006 = vld [vmem:[%s1669 + $0x7a] sm:$0xff]
      %v6007 = vld [vmem:[%s1669 + $0x82] sm:$0xff]
      %v6008 = vld [vmem:[%s1669 + $0x92] sm:$0xff]
      %v6009 = vld [vmem:[%s1669 + $0x9a] sm:$0xff]
      %v6010 = vld [vmem:[%s1669 + $0xaa] sm:$0xff]
      %v6011 = vld [vmem:[%s1669 + $0xb2] sm:$0xff]
      %v6012 = vld [vmem:[%s1669 + $0xc2] sm:$0xff]
      %v6013 = vld [vmem:[%s1669 + $0xca] sm:$0xff]
      %v6014 = vld [vmem:[%s1669 + $0xda] sm:$0xff]
      %v6015 = vld [vmem:[%s1669 + $0xe2] sm:$0xff]
      %v6016 = vld [vmem:[%s1669 + $0xf2] sm:$0xff]
      %v6017 = vld [vmem:[%s1669 + $0xfa] sm:$0xff]
      %v6018 = vld [vmem:[%s1669 + $0x10a] sm:$0xff]
      %v6019 = vld [vmem:[%s1669 + $0x112] sm:$0xff]
      %v6020 = vld [vmem:[%s1669 + $0x122] sm:$0xff]
      %v6021 = vld [vmem:[%s1669 + $0x12a] sm:$0xff]
      %v6022 = vld [vmem:[%s1669 + $0x13a] sm:$0xff]
      %v6023 = vld [vmem:[%s1669 + $0x142] sm:$0xff]
      %v6024 = vld [vmem:[%s1669 + $0x152] sm:$0xff]
      %v6025 = vld [vmem:[%s1669 + $0x15a] sm:$0xff]
      %v6026 = vld [vmem:[%s1669 + $0x16a] sm:$0xff]
      %v6027 = vld [vmem:[%s1669 + $0x172] sm:$0xff]
      %v6028 = vld [vmem:[%s1669 + $0x182] sm:$0xff]
      %v6029 = vld [vmem:[%s1669 + $0x18a] sm:$0xff]
      %v6030 = vld [vmem:[%s1669 + $0x19a] sm:$0xff]
      %v6031 = vld [vmem:[%s1669 + $0x1a2] sm:$0xff]
      %v6032 = vld [vmem:[%s1669 + $0x1b2] sm:$0xff]
      %v6033 = vld [vmem:[%s1669 + $0x1ba] sm:$0xff]
      %v6034 = vld [vmem:[%s1669 + $0x1ca] sm:$0xff]
      %v6035 = vld [vmem:[%s1669 + $0x1d2] sm:$0xff]
      %v6036 = vld [vmem:[%s1669 + $0x1e2] sm:$0xff]
      %v6037 = vld [vmem:[%s1669 + $0x1ea] sm:$0xff]
      %v6038 = vld [vmem:[%s1669 + $0x1fa] sm:$0xff]
      %v6039 = vld [vmem:[%s1669 + $0x202] sm:$0xff]
      %v6040 = vld [vmem:[%s1669 + $0x212] sm:$0xff]
      %v6041 = vld [vmem:[%s1669 + $0x21a] sm:$0xff]
      %v6042 = vld [vmem:[%s1669 + $0x22a] sm:$0xff]
      %v6043 = vld [vmem:[%s1669 + $0x232] sm:$0xff]
      %v6044 = vld [vmem:[%s1669 + $0x242] sm:$0xff]
      %v6045 = vld [vmem:[%s1669 + $0x24a] sm:$0xff]
      %v6046 = vld [vmem:[%s1669 + $0x25a] sm:$0xff]
      %v6047 = vld [vmem:[%s1669 + $0x262] sm:$0xff]
      %v6048 = vld [vmem:[%s1669 + $0x272] sm:$0xff]
      %v6049 = vld [vmem:[%s1669 + $0x27a] sm:$0xff]
      %v6050 = vld [vmem:[%s1669 + $0x28a] sm:$0xff]
      %v6051 = vld [vmem:[%s1669 + $0x292] sm:$0xff]
      %v6052 = vld [vmem:[%s1669 + $0x2a2] sm:$0xff]
      %v6053 = vld [vmem:[%s1669 + $0x2aa] sm:$0xff]
      %v6054 = vld [vmem:[%s1669 + $0x2ba] sm:$0xff]
      %v6055 = vld [vmem:[%s1669 + $0x2c2] sm:$0xff]
      %v6056 = vld [vmem:[%s1669 + $0x2d2] sm:$0xff]
      %v6057 = vld [vmem:[%s1669 + $0x2da] sm:$0xff]
      %v6058 = vld [vmem:[%s1669 + $0x2ea] sm:$0xff]
      %v6059 = vld [vmem:[%s1669 + $0x2f2] sm:$0xff]
      %v6060 = vld [vmem:[%s1669 + $0x302] sm:$0xff]
      %v6061 = vld [vmem:[%s1669 + $0x30a] sm:$0xff]
      %v6062 = vld [vmem:[%s1669 + $0x31a] sm:$0xff]
      %v6063 = vld [vmem:[%s1669 + $0x322] sm:$0xff]
      %v6064 = vld [vmem:[%s1669 + $0x332] sm:$0xff]
      %v6065 = vld [vmem:[%s1669 + $0x33a] sm:$0xff]
      %v6066 = vld [vmem:[%s1669 + $0x34a] sm:$0xff]
      %v6067 = vld [vmem:[%s1669 + $0x352] sm:$0xff]
      %v6068 = vld [vmem:[%s1669 + $0x362] sm:$0xff]
      %v6069 = vld [vmem:[%s1669 + $0x36a] sm:$0xff]
      %v6070 = vld [vmem:[%s1669 + $0x37a] sm:$0xff]
      %v6071 = vld [vmem:[%s1669 + $0x382] sm:$0xff]
      %v6072 = vld [vmem:[%s1669 + $0x392] sm:$0xff]
      %v6073 = vld [vmem:[%s1669 + $0x39a] sm:$0xff]
      %v6074 = vld [vmem:[%s1669 + $0x3aa] sm:$0xff]
      %v6075 = vld [vmem:[%s1669 + $0x3b2] sm:$0xff]
      %v6076 = vld [vmem:[%s1669 + $0x3c2] sm:$0xff]
      %v6077 = vld [vmem:[%s1669 + $0x3ca] sm:$0xff]
      %v6078 = vld [vmem:[%s1669 + $0x3da] sm:$0xff]
      %v6079 = vld [vmem:[%s1669 + $0x3e2] sm:$0xff]
      %v6080 = vld [vmem:[%s1669 + $0x3f2] sm:$0xff]
      %v6081 = vld [vmem:[%s1669 + $0x3fa] sm:$0xff]
      %v6082 = vld [vmem:[%s1669 + $0x40a] sm:$0xff]
      %v6083 = vld [vmem:[%s1669 + $0x412] sm:$0xff]
      %v6084 = vld [vmem:[%s1669 + $0x422] sm:$0xff]
      %v6085 = vld [vmem:[%s1669 + $0x42a] sm:$0xff]
      %v6086 = vld [vmem:[%s1669 + $0x43a] sm:$0xff]
      %v6087 = vld [vmem:[%s1669 + $0x442] sm:$0xff]
      %v6088 = vld [vmem:[%s1669 + $0x452] sm:$0xff]
      %v6089 = vld [vmem:[%s1669 + $0x45a] sm:$0xff]
      %v6090 = vld [vmem:[%s1669 + $0x46a] sm:$0xff]
      %v6091 = vld [vmem:[%s1669 + $0x472] sm:$0xff]
      %v6092 = vld [vmem:[%s1669 + $0x482] sm:$0xff]
      %v6093 = vld [vmem:[%s1669 + $0x48a] sm:$0xff]
      %v6094 = vld [vmem:[%s1669 + $0x49a] sm:$0xff]
      %v6095 = vld [vmem:[%s1669 + $0x4a2] sm:$0xff]
      %v6096 = vld [vmem:[%s1669 + $0x4b2] sm:$0xff]
      %v6097 = vld [vmem:[%s1669 + $0x4ba] sm:$0xff]
      %v6098 = vld [vmem:[%s1669 + $0x4ca] sm:$0xff]
      %v6099 = vld [vmem:[%s1669 + $0x4d2] sm:$0xff]
      %v6100 = vld [vmem:[%s1669 + $0x4e2] sm:$0xff]
      %v6101 = vld [vmem:[%s1669 + $0x4ea] sm:$0xff]
      %v6102 = vld [vmem:[%s1669 + $0x4fa] sm:$0xff]
      %v6103 = vld [vmem:[%s1669 + $0x502] sm:$0xff]
      %v6104 = vld [vmem:[%s1669 + $0x512] sm:$0xff]
      %v6105 = vld [vmem:[%s1669 + $0x51a] sm:$0xff]
      %v6106 = vld [vmem:[%s1669 + $0x52a] sm:$0xff]
      %v6107 = vld [vmem:[%s1669 + $0x532] sm:$0xff]
      %v6108 = vld [vmem:[%s1669 + $0x542] sm:$0xff]
      %v6109 = vld [vmem:[%s1669 + $0x54a] sm:$0xff]
      %v6110 = vld [vmem:[%s1669 + $0x55a] sm:$0xff]
      %v6111 = vld [vmem:[%s1669 + $0x562] sm:$0xff]
      %v6112 = vld [vmem:[%s1669 + $0x572] sm:$0xff]
      %v6113 = vld [vmem:[%s1669 + $0x57a] sm:$0xff]
      %v6114 = vld [vmem:[%s1669 + $0x58a] sm:$0xff]
      %v6115 = vld [vmem:[%s1669 + $0x592] sm:$0xff]
      %6236 = vrot.lane.b32.xlu0 %v5996, 32
      %v6237 = vpop.permute.xlu0 %6236
      %6238 = vrot.lane.b32.xlu0 %v5997, 32
      %v6239 = vpop.permute.xlu0 %6238
      %6240 = vrot.lane.b32.xlu0 %v5998, 32
      %v6241 = vpop.permute.xlu0 %6240
      %6242 = vrot.lane.b32.xlu0 %v5999, 32
      %v6243 = vpop.permute.xlu0 %6242
      %6244 = vrot.lane.b32.xlu0 %v6000, 32
      %v6245 = vpop.permute.xlu0 %6244
      %6246 = vrot.lane.b32.xlu0 %v6001, 32
      %v6247 = vpop.permute.xlu0 %6246
      %6248 = vrot.lane.b32.xlu0 %v6002, 32
      %v6249 = vpop.permute.xlu0 %6248
      %6250 = vrot.lane.b32.xlu0 %v6003, 32
      %v6251 = vpop.permute.xlu0 %6250
      %6252 = vrot.lane.b32.xlu0 %v6004, 32
      %v6253 = vpop.permute.xlu0 %6252
      %6254 = vrot.lane.b32.xlu0 %v6005, 32
      %v6255 = vpop.permute.xlu0 %6254
      %6256 = vrot.lane.b32.xlu0 %v6006, 32
      %v6257 = vpop.permute.xlu0 %6256
      %6258 = vrot.lane.b32.xlu0 %v6007, 32
      %v6259 = vpop.permute.xlu0 %6258
      %6260 = vrot.lane.b32.xlu0 %v6008, 32
      %v6261 = vpop.permute.xlu0 %6260
      %6262 = vrot.lane.b32.xlu0 %v6009, 32
      %v6263 = vpop.permute.xlu0 %6262
      %6264 = vrot.lane.b32.xlu0 %v6010, 32
      %v6265 = vpop.permute.xlu0 %6264
      %6266 = vrot.lane.b32.xlu0 %v6011, 32
      %v6267 = vpop.permute.xlu0 %6266
      %6268 = vrot.lane.b32.xlu0 %v6012, 32
      %v6269 = vpop.permute.xlu0 %6268
      %6270 = vrot.lane.b32.xlu0 %v6013, 32
      %v6271 = vpop.permute.xlu0 %6270
      %6272 = vrot.lane.b32.xlu0 %v6014, 32
      %v6273 = vpop.permute.xlu0 %6272
      %6274 = vrot.lane.b32.xlu0 %v6015, 32
      %v6275 = vpop.permute.xlu0 %6274
      %6276 = vrot.lane.b32.xlu0 %v6016, 32
      %v6277 = vpop.permute.xlu0 %6276
      %6278 = vrot.lane.b32.xlu0 %v6017, 32
      %v6279 = vpop.permute.xlu0 %6278
      %6280 = vrot.lane.b32.xlu0 %v6018, 32
      %v6281 = vpop.permute.xlu0 %6280
      %6282 = vrot.lane.b32.xlu0 %v6019, 32
      %v6283 = vpop.permute.xlu0 %6282
      %6284 = vrot.lane.b32.xlu0 %v6020, 32
      %v6285 = vpop.permute.xlu0 %6284
      %6286 = vrot.lane.b32.xlu0 %v6021, 32
      %v6287 = vpop.permute.xlu0 %6286
      %6288 = vrot.lane.b32.xlu0 %v6022, 32
      %v6289 = vpop.permute.xlu0 %6288
      %6290 = vrot.lane.b32.xlu0 %v6023, 32
      %v6291 = vpop.permute.xlu0 %6290
      %6292 = vrot.lane.b32.xlu0 %v6024, 32
      %v6293 = vpop.permute.xlu0 %6292
      %6294 = vrot.lane.b32.xlu0 %v6025, 32
      %v6295 = vpop.permute.xlu0 %6294
      %6296 = vrot.lane.b32.xlu0 %v6026, 32
      %v6297 = vpop.permute.xlu0 %6296
      %6298 = vrot.lane.b32.xlu0 %v6027, 32
      %v6299 = vpop.permute.xlu0 %6298
      %6300 = vrot.lane.b32.xlu0 %v6028, 32
      %v6301 = vpop.permute.xlu0 %6300
      %6302 = vrot.lane.b32.xlu0 %v6029, 32
      %v6303 = vpop.permute.xlu0 %6302
      %6304 = vrot.lane.b32.xlu0 %v6030, 32
      %v6305 = vpop.permute.xlu0 %6304
      %6306 = vrot.lane.b32.xlu0 %v6031, 32
      %v6307 = vpop.permute.xlu0 %6306
      %6308 = vrot.lane.b32.xlu0 %v6032, 32
      %v6309 = vpop.permute.xlu0 %6308
      %6310 = vrot.lane.b32.xlu0 %v6033, 32
      %v6311 = vpop.permute.xlu0 %6310
      %6312 = vrot.lane.b32.xlu0 %v6034, 32
      %v6313 = vpop.permute.xlu0 %6312
      %6314 = vrot.lane.b32.xlu0 %v6035, 32
      %v6315 = vpop.permute.xlu0 %6314
      %6316 = vrot.lane.b32.xlu0 %v6036, 32
      %v6317 = vpop.permute.xlu0 %6316
      %6318 = vrot.lane.b32.xlu0 %v6037, 32
      %v6319 = vpop.permute.xlu0 %6318
      %6320 = vrot.lane.b32.xlu0 %v6038, 32
      %v6321 = vpop.permute.xlu0 %6320
      %6322 = vrot.lane.b32.xlu0 %v6039, 32
      %v6323 = vpop.permute.xlu0 %6322
      %6324 = vrot.lane.b32.xlu0 %v6040, 32
      %v6325 = vpop.permute.xlu0 %6324
      %6326 = vrot.lane.b32.xlu0 %v6041, 32
      %v6327 = vpop.permute.xlu0 %6326
      %6328 = vrot.lane.b32.xlu0 %v6042, 32
      %v6329 = vpop.permute.xlu0 %6328
      %6330 = vrot.lane.b32.xlu0 %v6043, 32
      %v6331 = vpop.permute.xlu0 %6330
      %6332 = vrot.lane.b32.xlu0 %v6044, 32
      %v6333 = vpop.permute.xlu0 %6332
      %6334 = vrot.lane.b32.xlu0 %v6045, 32
      %v6335 = vpop.permute.xlu0 %6334
      %6336 = vrot.lane.b32.xlu0 %v6046, 32
      %v6337 = vpop.permute.xlu0 %6336
      %6338 = vrot.lane.b32.xlu0 %v6047, 32
      %v6339 = vpop.permute.xlu0 %6338
      %6340 = vrot.lane.b32.xlu0 %v6048, 32
      %v6341 = vpop.permute.xlu0 %6340
      %6342 = vrot.lane.b32.xlu0 %v6049, 32
      %v6343 = vpop.permute.xlu0 %6342
      %6344 = vrot.lane.b32.xlu0 %v6050, 32
      %v6345 = vpop.permute.xlu0 %6344
      %6346 = vrot.lane.b32.xlu0 %v6051, 32
      %v6347 = vpop.permute.xlu0 %6346
      %6348 = vrot.lane.b32.xlu0 %v6052, 32
      %v6349 = vpop.permute.xlu0 %6348
      %6350 = vrot.lane.b32.xlu0 %v6053, 32
      %v6351 = vpop.permute.xlu0 %6350
      %6352 = vrot.lane.b32.xlu0 %v6054, 32
      %v6353 = vpop.permute.xlu0 %6352
      %6354 = vrot.lane.b32.xlu0 %v6055, 32
      %v6355 = vpop.permute.xlu0 %6354
      %6356 = vrot.lane.b32.xlu0 %v6056, 32
      %v6357 = vpop.permute.xlu0 %6356
      %6358 = vrot.lane.b32.xlu0 %v6057, 32
      %v6359 = vpop.permute.xlu0 %6358
      %6360 = vrot.lane.b32.xlu0 %v6058, 32
      %v6361 = vpop.permute.xlu0 %6360
      %6362 = vrot.lane.b32.xlu0 %v6059, 32
      %v6363 = vpop.permute.xlu0 %6362
      %6364 = vrot.lane.b32.xlu0 %v6060, 32
      %v6365 = vpop.permute.xlu0 %6364
      %6366 = vrot.lane.b32.xlu0 %v6061, 32
      %v6367 = vpop.permute.xlu0 %6366
      %6368 = vrot.lane.b32.xlu0 %v6062, 32
      %v6369 = vpop.permute.xlu0 %6368
      %6370 = vrot.lane.b32.xlu0 %v6063, 32
      %v6371 = vpop.permute.xlu0 %6370
      %6372 = vrot.lane.b32.xlu0 %v6064, 32
      %v6373 = vpop.permute.xlu0 %6372
      %6374 = vrot.lane.b32.xlu0 %v6065, 32
      %v6375 = vpop.permute.xlu0 %6374
      %6376 = vrot.lane.b32.xlu0 %v6066, 32
      %v6377 = vpop.permute.xlu0 %6376
      %6378 = vrot.lane.b32.xlu0 %v6067, 32
      %v6379 = vpop.permute.xlu0 %6378
      %6380 = vrot.lane.b32.xlu0 %v6068, 32
      %v6381 = vpop.permute.xlu0 %6380
      %6382 = vrot.lane.b32.xlu0 %v6069, 32
      %v6383 = vpop.permute.xlu0 %6382
      %6384 = vrot.lane.b32.xlu0 %v6070, 32
      %v6385 = vpop.permute.xlu0 %6384
      %6386 = vrot.lane.b32.xlu0 %v6071, 32
      %v6387 = vpop.permute.xlu0 %6386
      %6388 = vrot.lane.b32.xlu0 %v6072, 32
      %v6389 = vpop.permute.xlu0 %6388
      %6390 = vrot.lane.b32.xlu0 %v6073, 32
      %v6391 = vpop.permute.xlu0 %6390
      %6392 = vrot.lane.b32.xlu0 %v6074, 32
      %v6393 = vpop.permute.xlu0 %6392
      %6394 = vrot.lane.b32.xlu0 %v6075, 32
      %v6395 = vpop.permute.xlu0 %6394
      %6396 = vrot.lane.b32.xlu0 %v6076, 32
      %v6397 = vpop.permute.xlu0 %6396
      %6398 = vrot.lane.b32.xlu0 %v6077, 32
      %v6399 = vpop.permute.xlu0 %6398
      %6400 = vrot.lane.b32.xlu0 %v6078, 32
      %v6401 = vpop.permute.xlu0 %6400
      %6402 = vrot.lane.b32.xlu0 %v6079, 32
      %v6403 = vpop.permute.xlu0 %6402
      %6404 = vrot.lane.b32.xlu0 %v6080, 32
      %v6405 = vpop.permute.xlu0 %6404
      %6406 = vrot.lane.b32.xlu0 %v6081, 32
      %v6407 = vpop.permute.xlu0 %6406
      %6408 = vrot.lane.b32.xlu0 %v6082, 32
      %v6409 = vpop.permute.xlu0 %6408
      %6410 = vrot.lane.b32.xlu0 %v6083, 32
      %v6411 = vpop.permute.xlu0 %6410
      %6412 = vrot.lane.b32.xlu0 %v6084, 32
      %v6413 = vpop.permute.xlu0 %6412
      %6414 = vrot.lane.b32.xlu0 %v6085, 32
      %v6415 = vpop.permute.xlu0 %6414
      %6416 = vrot.lane.b32.xlu0 %v6086, 32
      %v6417 = vpop.permute.xlu0 %6416
      %6418 = vrot.lane.b32.xlu0 %v6087, 32
      %v6419 = vpop.permute.xlu0 %6418
      %6420 = vrot.lane.b32.xlu0 %v6088, 32
      %v6421 = vpop.permute.xlu0 %6420
      %6422 = vrot.lane.b32.xlu0 %v6089, 32
      %v6423 = vpop.permute.xlu0 %6422
      %6424 = vrot.lane.b32.xlu0 %v6090, 32
      %v6425 = vpop.permute.xlu0 %6424
      %6426 = vrot.lane.b32.xlu0 %v6091, 32
      %v6427 = vpop.permute.xlu0 %6426
      %6428 = vrot.lane.b32.xlu0 %v6092, 32
      %v6429 = vpop.permute.xlu0 %6428
      %6430 = vrot.lane.b32.xlu0 %v6093, 32
      %v6431 = vpop.permute.xlu0 %6430
      %6432 = vrot.lane.b32.xlu0 %v6094, 32
      %v6433 = vpop.permute.xlu0 %6432
      %6434 = vrot.lane.b32.xlu0 %v6095, 32
      %v6435 = vpop.permute.xlu0 %6434
      %6436 = vrot.lane.b32.xlu0 %v6096, 32
      %v6437 = vpop.permute.xlu0 %6436
      %6438 = vrot.lane.b32.xlu0 %v6097, 32
      %v6439 = vpop.permute.xlu0 %6438
      %6440 = vrot.lane.b32.xlu0 %v6098, 32
      %v6441 = vpop.permute.xlu0 %6440
      %6442 = vrot.lane.b32.xlu0 %v6099, 32
      %v6443 = vpop.permute.xlu0 %6442
      %6444 = vrot.lane.b32.xlu0 %v6100, 32
      %v6445 = vpop.permute.xlu0 %6444
      %6446 = vrot.lane.b32.xlu0 %v6101, 32
      %v6447 = vpop.permute.xlu0 %6446
      %6448 = vrot.lane.b32.xlu0 %v6102, 32
      %v6449 = vpop.permute.xlu0 %6448
      %6450 = vrot.lane.b32.xlu0 %v6103, 32
      %v6451 = vpop.permute.xlu0 %6450
      %6452 = vrot.lane.b32.xlu0 %v6104, 32
      %v6453 = vpop.permute.xlu0 %6452
      %6454 = vrot.lane.b32.xlu0 %v6105, 32
      %v6455 = vpop.permute.xlu0 %6454
      %6456 = vrot.lane.b32.xlu0 %v6106, 32
      %v6457 = vpop.permute.xlu0 %6456
      %6458 = vrot.lane.b32.xlu0 %v6107, 32
      %v6459 = vpop.permute.xlu0 %6458
      %6460 = vrot.lane.b32.xlu0 %v6108, 32
      %v6461 = vpop.permute.xlu0 %6460
      %6462 = vrot.lane.b32.xlu0 %v6109, 32
      %v6463 = vpop.permute.xlu0 %6462
      %6464 = vrot.lane.b32.xlu0 %v6110, 32
      %v6465 = vpop.permute.xlu0 %6464
      %6466 = vrot.lane.b32.xlu0 %v6111, 32
      %v6467 = vpop.permute.xlu0 %6466
      %6468 = vrot.lane.b32.xlu0 %v6112, 32
      %v6469 = vpop.permute.xlu0 %6468
      %6470 = vrot.lane.b32.xlu0 %v6113, 32
      %v6471 = vpop.permute.xlu0 %6470
      %6472 = vrot.lane.b32.xlu0 %v6114, 32
      %v6473 = vpop.permute.xlu0 %6472
      %6474 = vrot.lane.b32.xlu0 %v6115, 32
      %v6475 = vpop.permute.xlu0 %6474
      %vm6596 = vcmask 294144
      %6597 = vst.msk [vmem:[#allocation5] sm:$0xff] %vm6596, %v6237
      %6598 = vst.msk [vmem:[#allocation5 + $0x8] sm:$0xff] %vm6596, %v6239
      %6599 = vst.msk [vmem:[#allocation5 + $0x10] sm:$0xff] %vm6596, %v6241
      %6600 = vst.msk [vmem:[#allocation5 + $0x18] sm:$0xff] %vm6596, %v6243
      %6601 = vst.msk [vmem:[#allocation5 + $0x20] sm:$0xff] %vm6596, %v6245
      %6602 = vst.msk [vmem:[#allocation5 + $0x28] sm:$0xff] %vm6596, %v6247
      %6603 = vst.msk [vmem:[#allocation5 + $0x30] sm:$0xff] %vm6596, %v6249
      %6604 = vst.msk [vmem:[#allocation5 + $0x38] sm:$0xff] %vm6596, %v6251
      %6605 = vst.msk [vmem:[#allocation5 + $0x40] sm:$0xff] %vm6596, %v6253
      %6606 = vst.msk [vmem:[#allocation5 + $0x48] sm:$0xff] %vm6596, %v6255
      %6607 = vst.msk [vmem:[#allocation5 + $0x50] sm:$0xff] %vm6596, %v6257
      %6608 = vst.msk [vmem:[#allocation5 + $0x58] sm:$0xff] %vm6596, %v6259
      %6609 = vst.msk [vmem:[#allocation5 + $0x60] sm:$0xff] %vm6596, %v6261
      %6610 = vst.msk [vmem:[#allocation5 + $0x68] sm:$0xff] %vm6596, %v6263
      %6611 = vst.msk [vmem:[#allocation5 + $0x70] sm:$0xff] %vm6596, %v6265
      %6612 = vst.msk [vmem:[#allocation5 + $0x78] sm:$0xff] %vm6596, %v6267
      %6613 = vst.msk [vmem:[#allocation5 + $0x80] sm:$0xff] %vm6596, %v6269
      %6614 = vst.msk [vmem:[#allocation5 + $0x88] sm:$0xff] %vm6596, %v6271
      %6615 = vst.msk [vmem:[#allocation5 + $0x90] sm:$0xff] %vm6596, %v6273
      %6616 = vst.msk [vmem:[#allocation5 + $0x98] sm:$0xff] %vm6596, %v6275
      %6617 = vst.msk [vmem:[#allocation5 + $0xa0] sm:$0xff] %vm6596, %v6277
      %6618 = vst.msk [vmem:[#allocation5 + $0xa8] sm:$0xff] %vm6596, %v6279
      %6619 = vst.msk [vmem:[#allocation5 + $0xb0] sm:$0xff] %vm6596, %v6281
      %6620 = vst.msk [vmem:[#allocation5 + $0xb8] sm:$0xff] %vm6596, %v6283
      %6621 = vst.msk [vmem:[#allocation5 + $0xc0] sm:$0xff] %vm6596, %v6285
      %6622 = vst.msk [vmem:[#allocation5 + $0xc8] sm:$0xff] %vm6596, %v6287
      %6623 = vst.msk [vmem:[#allocation5 + $0xd0] sm:$0xff] %vm6596, %v6289
      %6624 = vst.msk [vmem:[#allocation5 + $0xd8] sm:$0xff] %vm6596, %v6291
      %6625 = vst.msk [vmem:[#allocation5 + $0xe0] sm:$0xff] %vm6596, %v6293
      %6626 = vst.msk [vmem:[#allocation5 + $0xe8] sm:$0xff] %vm6596, %v6295
      %6627 = vst.msk [vmem:[#allocation5 + $0xf0] sm:$0xff] %vm6596, %v6297
      %6628 = vst.msk [vmem:[#allocation5 + $0xf8] sm:$0xff] %vm6596, %v6299
      %6629 = vst.msk [vmem:[#allocation5 + $0x100] sm:$0xff] %vm6596, %v6301
      %6630 = vst.msk [vmem:[#allocation5 + $0x108] sm:$0xff] %vm6596, %v6303
      %6631 = vst.msk [vmem:[#allocation5 + $0x110] sm:$0xff] %vm6596, %v6305
      %6632 = vst.msk [vmem:[#allocation5 + $0x118] sm:$0xff] %vm6596, %v6307
      %6633 = vst.msk [vmem:[#allocation5 + $0x120] sm:$0xff] %vm6596, %v6309
      %6634 = vst.msk [vmem:[#allocation5 + $0x128] sm:$0xff] %vm6596, %v6311
      %6635 = vst.msk [vmem:[#allocation5 + $0x130] sm:$0xff] %vm6596, %v6313
      %6636 = vst.msk [vmem:[#allocation5 + $0x138] sm:$0xff] %vm6596, %v6315
      %6637 = vst.msk [vmem:[#allocation5 + $0x140] sm:$0xff] %vm6596, %v6317
      %6638 = vst.msk [vmem:[#allocation5 + $0x148] sm:$0xff] %vm6596, %v6319
      %6639 = vst.msk [vmem:[#allocation5 + $0x150] sm:$0xff] %vm6596, %v6321
      %6640 = vst.msk [vmem:[#allocation5 + $0x158] sm:$0xff] %vm6596, %v6323
      %6641 = vst.msk [vmem:[#allocation5 + $0x160] sm:$0xff] %vm6596, %v6325
      %6642 = vst.msk [vmem:[#allocation5 + $0x168] sm:$0xff] %vm6596, %v6327
      %6643 = vst.msk [vmem:[#allocation5 + $0x170] sm:$0xff] %vm6596, %v6329
      %6644 = vst.msk [vmem:[#allocation5 + $0x178] sm:$0xff] %vm6596, %v6331
      %6645 = vst.msk [vmem:[#allocation5 + $0x180] sm:$0xff] %vm6596, %v6333
      %6646 = vst.msk [vmem:[#allocation5 + $0x188] sm:$0xff] %vm6596, %v6335
      %6647 = vst.msk [vmem:[#allocation5 + $0x190] sm:$0xff] %vm6596, %v6337
      %6648 = vst.msk [vmem:[#allocation5 + $0x198] sm:$0xff] %vm6596, %v6339
      %6649 = vst.msk [vmem:[#allocation5 + $0x1a0] sm:$0xff] %vm6596, %v6341
      %6650 = vst.msk [vmem:[#allocation5 + $0x1a8] sm:$0xff] %vm6596, %v6343
      %6651 = vst.msk [vmem:[#allocation5 + $0x1b0] sm:$0xff] %vm6596, %v6345
      %6652 = vst.msk [vmem:[#allocation5 + $0x1b8] sm:$0xff] %vm6596, %v6347
      %6653 = vst.msk [vmem:[#allocation5 + $0x1c0] sm:$0xff] %vm6596, %v6349
      %6654 = vst.msk [vmem:[#allocation5 + $0x1c8] sm:$0xff] %vm6596, %v6351
      %6655 = vst.msk [vmem:[#allocation5 + $0x1d0] sm:$0xff] %vm6596, %v6353
      %6656 = vst.msk [vmem:[#allocation5 + $0x1d8] sm:$0xff] %vm6596, %v6355
      %6657 = vst.msk [vmem:[#allocation5 + $0x1e0] sm:$0xff] %vm6596, %v6357
      %6658 = vst.msk [vmem:[#allocation5 + $0x1e8] sm:$0xff] %vm6596, %v6359
      %6659 = vst.msk [vmem:[#allocation5 + $0x1f0] sm:$0xff] %vm6596, %v6361
      %6660 = vst.msk [vmem:[#allocation5 + $0x1f8] sm:$0xff] %vm6596, %v6363
      %6661 = vst.msk [vmem:[#allocation5 + $0x200] sm:$0xff] %vm6596, %v6365
      %6662 = vst.msk [vmem:[#allocation5 + $0x208] sm:$0xff] %vm6596, %v6367
      %6663 = vst.msk [vmem:[#allocation5 + $0x210] sm:$0xff] %vm6596, %v6369
      %6664 = vst.msk [vmem:[#allocation5 + $0x218] sm:$0xff] %vm6596, %v6371
      %6665 = vst.msk [vmem:[#allocation5 + $0x220] sm:$0xff] %vm6596, %v6373
      %6666 = vst.msk [vmem:[#allocation5 + $0x228] sm:$0xff] %vm6596, %v6375
      %6667 = vst.msk [vmem:[#allocation5 + $0x230] sm:$0xff] %vm6596, %v6377
      %6668 = vst.msk [vmem:[#allocation5 + $0x238] sm:$0xff] %vm6596, %v6379
      %6669 = vst.msk [vmem:[#allocation5 + $0x240] sm:$0xff] %vm6596, %v6381
      %6670 = vst.msk [vmem:[#allocation5 + $0x248] sm:$0xff] %vm6596, %v6383
      %6671 = vst.msk [vmem:[#allocation5 + $0x250] sm:$0xff] %vm6596, %v6385
      %6672 = vst.msk [vmem:[#allocation5 + $0x258] sm:$0xff] %vm6596, %v6387
      %6673 = vst.msk [vmem:[#allocation5 + $0x260] sm:$0xff] %vm6596, %v6389
      %6674 = vst.msk [vmem:[#allocation5 + $0x268] sm:$0xff] %vm6596, %v6391
      %6675 = vst.msk [vmem:[#allocation5 + $0x270] sm:$0xff] %vm6596, %v6393
      %6676 = vst.msk [vmem:[#allocation5 + $0x278] sm:$0xff] %vm6596, %v6395
      %6677 = vst.msk [vmem:[#allocation5 + $0x280] sm:$0xff] %vm6596, %v6397
      %6678 = vst.msk [vmem:[#allocation5 + $0x288] sm:$0xff] %vm6596, %v6399
      %6679 = vst.msk [vmem:[#allocation5 + $0x290] sm:$0xff] %vm6596, %v6401
      %6680 = vst.msk [vmem:[#allocation5 + $0x298] sm:$0xff] %vm6596, %v6403
      %6681 = vst.msk [vmem:[#allocation5 + $0x2a0] sm:$0xff] %vm6596, %v6405
      %6682 = vst.msk [vmem:[#allocation5 + $0x2a8] sm:$0xff] %vm6596, %v6407
      %6683 = vst.msk [vmem:[#allocation5 + $0x2b0] sm:$0xff] %vm6596, %v6409
      %6684 = vst.msk [vmem:[#allocation5 + $0x2b8] sm:$0xff] %vm6596, %v6411
      %6685 = vst.msk [vmem:[#allocation5 + $0x2c0] sm:$0xff] %vm6596, %v6413
      %6686 = vst.msk [vmem:[#allocation5 + $0x2c8] sm:$0xff] %vm6596, %v6415
      %6687 = vst.msk [vmem:[#allocation5 + $0x2d0] sm:$0xff] %vm6596, %v6417
      %6688 = vst.msk [vmem:[#allocation5 + $0x2d8] sm:$0xff] %vm6596, %v6419
      %6689 = vst.msk [vmem:[#allocation5 + $0x2e0] sm:$0xff] %vm6596, %v6421
      %6690 = vst.msk [vmem:[#allocation5 + $0x2e8] sm:$0xff] %vm6596, %v6423
      %6691 = vst.msk [vmem:[#allocation5 + $0x2f0] sm:$0xff] %vm6596, %v6425
      %6692 = vst.msk [vmem:[#allocation5 + $0x2f8] sm:$0xff] %vm6596, %v6427
      %6693 = vst.msk [vmem:[#allocation5 + $0x300] sm:$0xff] %vm6596, %v6429
      %6694 = vst.msk [vmem:[#allocation5 + $0x308] sm:$0xff] %vm6596, %v6431
      %6695 = vst.msk [vmem:[#allocation5 + $0x310] sm:$0xff] %vm6596, %v6433
      %6696 = vst.msk [vmem:[#allocation5 + $0x318] sm:$0xff] %vm6596, %v6435
      %6697 = vst.msk [vmem:[#allocation5 + $0x320] sm:$0xff] %vm6596, %v6437
      %6698 = vst.msk [vmem:[#allocation5 + $0x328] sm:$0xff] %vm6596, %v6439
      %6699 = vst.msk [vmem:[#allocation5 + $0x330] sm:$0xff] %vm6596, %v6441
      %6700 = vst.msk [vmem:[#allocation5 + $0x338] sm:$0xff] %vm6596, %v6443
      %6701 = vst.msk [vmem:[#allocation5 + $0x340] sm:$0xff] %vm6596, %v6445
      %6702 = vst.msk [vmem:[#allocation5 + $0x348] sm:$0xff] %vm6596, %v6447
      %6703 = vst.msk [vmem:[#allocation5 + $0x350] sm:$0xff] %vm6596, %v6449
      %6704 = vst.msk [vmem:[#allocation5 + $0x358] sm:$0xff] %vm6596, %v6451
      %6705 = vst.msk [vmem:[#allocation5 + $0x360] sm:$0xff] %vm6596, %v6453
      %6706 = vst.msk [vmem:[#allocation5 + $0x368] sm:$0xff] %vm6596, %v6455
      %6707 = vst.msk [vmem:[#allocation5 + $0x370] sm:$0xff] %vm6596, %v6457
      %6708 = vst.msk [vmem:[#allocation5 + $0x378] sm:$0xff] %vm6596, %v6459
      %6709 = vst.msk [vmem:[#allocation5 + $0x380] sm:$0xff] %vm6596, %v6461
      %6710 = vst.msk [vmem:[#allocation5 + $0x388] sm:$0xff] %vm6596, %v6463
      %6711 = vst.msk [vmem:[#allocation5 + $0x390] sm:$0xff] %vm6596, %v6465
      %6712 = vst.msk [vmem:[#allocation5 + $0x398] sm:$0xff] %vm6596, %v6467
      %6713 = vst.msk [vmem:[#allocation5 + $0x3a0] sm:$0xff] %vm6596, %v6469
      %6714 = vst.msk [vmem:[#allocation5 + $0x3a8] sm:$0xff] %vm6596, %v6471
      %6715 = vst.msk [vmem:[#allocation5 + $0x3b0] sm:$0xff] %vm6596, %v6473
      %6716 = vst.msk [vmem:[#allocation5 + $0x3b8] sm:$0xff] %vm6596, %v6475
      %v6717 = vld [vmem:[#allocation5] sm:$0xff]
      %v6718 = vld [vmem:[#allocation5 + $0x8] sm:$0xff]
      %v6719 = vld [vmem:[#allocation5 + $0x10] sm:$0xff]
      %v6720 = vld [vmem:[#allocation5 + $0x18] sm:$0xff]
      %v6721 = vld [vmem:[#allocation5 + $0x20] sm:$0xff]
      %v6722 = vld [vmem:[#allocation5 + $0x28] sm:$0xff]
      %v6723 = vld [vmem:[#allocation5 + $0x30] sm:$0xff]
      %v6724 = vld [vmem:[#allocation5 + $0x38] sm:$0xff]
      %v6725 = vld [vmem:[#allocation5 + $0x40] sm:$0xff]
      %v6726 = vld [vmem:[#allocation5 + $0x48] sm:$0xff]
      %v6727 = vld [vmem:[#allocation5 + $0x50] sm:$0xff]
      %v6728 = vld [vmem:[#allocation5 + $0x58] sm:$0xff]
      %v6729 = vld [vmem:[#allocation5 + $0x60] sm:$0xff]
      %v6730 = vld [vmem:[#allocation5 + $0x68] sm:$0xff]
      %v6731 = vld [vmem:[#allocation5 + $0x70] sm:$0xff]
      %v6732 = vld [vmem:[#allocation5 + $0x78] sm:$0xff]
      %v6733 = vld [vmem:[#allocation5 + $0x80] sm:$0xff]
      %v6734 = vld [vmem:[#allocation5 + $0x88] sm:$0xff]
      %v6735 = vld [vmem:[#allocation5 + $0x90] sm:$0xff]
      %v6736 = vld [vmem:[#allocation5 + $0x98] sm:$0xff]
      %v6737 = vld [vmem:[#allocation5 + $0xa0] sm:$0xff]
      %v6738 = vld [vmem:[#allocation5 + $0xa8] sm:$0xff]
      %v6739 = vld [vmem:[#allocation5 + $0xb0] sm:$0xff]
      %v6740 = vld [vmem:[#allocation5 + $0xb8] sm:$0xff]
      %v6741 = vld [vmem:[#allocation5 + $0xc0] sm:$0xff]
      %v6742 = vld [vmem:[#allocation5 + $0xc8] sm:$0xff]
      %v6743 = vld [vmem:[#allocation5 + $0xd0] sm:$0xff]
      %v6744 = vld [vmem:[#allocation5 + $0xd8] sm:$0xff]
      %v6745 = vld [vmem:[#allocation5 + $0xe0] sm:$0xff]
      %v6746 = vld [vmem:[#allocation5 + $0xe8] sm:$0xff]
      %v6747 = vld [vmem:[#allocation5 + $0xf0] sm:$0xff]
      %v6748 = vld [vmem:[#allocation5 + $0xf8] sm:$0xff]
      %v6749 = vld [vmem:[#allocation5 + $0x100] sm:$0xff]
      %v6750 = vld [vmem:[#allocation5 + $0x108] sm:$0xff]
      %v6751 = vld [vmem:[#allocation5 + $0x110] sm:$0xff]
      %v6752 = vld [vmem:[#allocation5 + $0x118] sm:$0xff]
      %v6753 = vld [vmem:[#allocation5 + $0x120] sm:$0xff]
      %v6754 = vld [vmem:[#allocation5 + $0x128] sm:$0xff]
      %v6755 = vld [vmem:[#allocation5 + $0x130] sm:$0xff]
      %v6756 = vld [vmem:[#allocation5 + $0x138] sm:$0xff]
      %v6757 = vld [vmem:[#allocation5 + $0x140] sm:$0xff]
      %v6758 = vld [vmem:[#allocation5 + $0x148] sm:$0xff]
      %v6759 = vld [vmem:[#allocation5 + $0x150] sm:$0xff]
      %v6760 = vld [vmem:[#allocation5 + $0x158] sm:$0xff]
      %v6761 = vld [vmem:[#allocation5 + $0x160] sm:$0xff]
      %v6762 = vld [vmem:[#allocation5 + $0x168] sm:$0xff]
      %v6763 = vld [vmem:[#allocation5 + $0x170] sm:$0xff]
      %v6764 = vld [vmem:[#allocation5 + $0x178] sm:$0xff]
      %v6765 = vld [vmem:[#allocation5 + $0x180] sm:$0xff]
      %v6766 = vld [vmem:[#allocation5 + $0x188] sm:$0xff]
      %v6767 = vld [vmem:[#allocation5 + $0x190] sm:$0xff]
      %v6768 = vld [vmem:[#allocation5 + $0x198] sm:$0xff]
      %v6769 = vld [vmem:[#allocation5 + $0x1a0] sm:$0xff]
      %v6770 = vld [vmem:[#allocation5 + $0x1a8] sm:$0xff]
      %v6771 = vld [vmem:[#allocation5 + $0x1b0] sm:$0xff]
      %v6772 = vld [vmem:[#allocation5 + $0x1b8] sm:$0xff]
      %v6773 = vld [vmem:[#allocation5 + $0x1c0] sm:$0xff]
      %v6774 = vld [vmem:[#allocation5 + $0x1c8] sm:$0xff]
      %v6775 = vld [vmem:[#allocation5 + $0x1d0] sm:$0xff]
      %v6776 = vld [vmem:[#allocation5 + $0x1d8] sm:$0xff]
      %v6777 = vld [vmem:[#allocation5 + $0x1e0] sm:$0xff]
      %v6778 = vld [vmem:[#allocation5 + $0x1e8] sm:$0xff]
      %v6779 = vld [vmem:[#allocation5 + $0x1f0] sm:$0xff]
      %v6780 = vld [vmem:[#allocation5 + $0x1f8] sm:$0xff]
      %v6781 = vld [vmem:[#allocation5 + $0x200] sm:$0xff]
      %v6782 = vld [vmem:[#allocation5 + $0x208] sm:$0xff]
      %v6783 = vld [vmem:[#allocation5 + $0x210] sm:$0xff]
      %v6784 = vld [vmem:[#allocation5 + $0x218] sm:$0xff]
      %v6785 = vld [vmem:[#allocation5 + $0x220] sm:$0xff]
      %v6786 = vld [vmem:[#allocation5 + $0x228] sm:$0xff]
      %v6787 = vld [vmem:[#allocation5 + $0x230] sm:$0xff]
      %v6788 = vld [vmem:[#allocation5 + $0x238] sm:$0xff]
      %v6789 = vld [vmem:[#allocation5 + $0x240] sm:$0xff]
      %v6790 = vld [vmem:[#allocation5 + $0x248] sm:$0xff]
      %v6791 = vld [vmem:[#allocation5 + $0x250] sm:$0xff]
      %v6792 = vld [vmem:[#allocation5 + $0x258] sm:$0xff]
      %v6793 = vld [vmem:[#allocation5 + $0x260] sm:$0xff]
      %v6794 = vld [vmem:[#allocation5 + $0x268] sm:$0xff]
      %v6795 = vld [vmem:[#allocation5 + $0x270] sm:$0xff]
      %v6796 = vld [vmem:[#allocation5 + $0x278] sm:$0xff]
      %v6797 = vld [vmem:[#allocation5 + $0x280] sm:$0xff]
      %v6798 = vld [vmem:[#allocation5 + $0x288] sm:$0xff]
      %v6799 = vld [vmem:[#allocation5 + $0x290] sm:$0xff]
      %v6800 = vld [vmem:[#allocation5 + $0x298] sm:$0xff]
      %v6801 = vld [vmem:[#allocation5 + $0x2a0] sm:$0xff]
      %v6802 = vld [vmem:[#allocation5 + $0x2a8] sm:$0xff]
      %v6803 = vld [vmem:[#allocation5 + $0x2b0] sm:$0xff]
      %v6804 = vld [vmem:[#allocation5 + $0x2b8] sm:$0xff]
      %v6805 = vld [vmem:[#allocation5 + $0x2c0] sm:$0xff]
      %v6806 = vld [vmem:[#allocation5 + $0x2c8] sm:$0xff]
      %v6807 = vld [vmem:[#allocation5 + $0x2d0] sm:$0xff]
      %v6808 = vld [vmem:[#allocation5 + $0x2d8] sm:$0xff]
      %v6809 = vld [vmem:[#allocation5 + $0x2e0] sm:$0xff]
      %v6810 = vld [vmem:[#allocation5 + $0x2e8] sm:$0xff]
      %v6811 = vld [vmem:[#allocation5 + $0x2f0] sm:$0xff]
      %v6812 = vld [vmem:[#allocation5 + $0x2f8] sm:$0xff]
      %v6813 = vld [vmem:[#allocation5 + $0x300] sm:$0xff]
      %v6814 = vld [vmem:[#allocation5 + $0x308] sm:$0xff]
      %v6815 = vld [vmem:[#allocation5 + $0x310] sm:$0xff]
      %v6816 = vld [vmem:[#allocation5 + $0x318] sm:$0xff]
      %v6817 = vld [vmem:[#allocation5 + $0x320] sm:$0xff]
      %v6818 = vld [vmem:[#allocation5 + $0x328] sm:$0xff]
      %v6819 = vld [vmem:[#allocation5 + $0x330] sm:$0xff]
      %v6820 = vld [vmem:[#allocation5 + $0x338] sm:$0xff]
      %v6821 = vld [vmem:[#allocation5 + $0x340] sm:$0xff]
      %v6822 = vld [vmem:[#allocation5 + $0x348] sm:$0xff]
      %v6823 = vld [vmem:[#allocation5 + $0x350] sm:$0xff]
      %v6824 = vld [vmem:[#allocation5 + $0x358] sm:$0xff]
      %v6825 = vld [vmem:[#allocation5 + $0x360] sm:$0xff]
      %v6826 = vld [vmem:[#allocation5 + $0x368] sm:$0xff]
      %v6827 = vld [vmem:[#allocation5 + $0x370] sm:$0xff]
      %v6828 = vld [vmem:[#allocation5 + $0x378] sm:$0xff]
      %v6829 = vld [vmem:[#allocation5 + $0x380] sm:$0xff]
      %v6830 = vld [vmem:[#allocation5 + $0x388] sm:$0xff]
      %v6831 = vld [vmem:[#allocation5 + $0x390] sm:$0xff]
      %v6832 = vld [vmem:[#allocation5 + $0x398] sm:$0xff]
      %v6833 = vld [vmem:[#allocation5 + $0x3a0] sm:$0xff]
      %v6834 = vld [vmem:[#allocation5 + $0x3a8] sm:$0xff]
      %v6835 = vld [vmem:[#allocation5 + $0x3b0] sm:$0xff]
      %v6836 = vld [vmem:[#allocation5 + $0x3b8] sm:$0xff]
      %v6837 = vld [vmem:[%s1] sm:$0xff]
      %v6838 = vld [vmem:[%s1 + $0x8] sm:$0xff]
      %v6839 = vld [vmem:[%s1 + $0x10] sm:$0xff]
      %v6840 = vld [vmem:[%s1 + $0x18] sm:$0xff]
      %v6841 = vld [vmem:[%s1 + $0x20] sm:$0xf]
      %v6842 = vld [vmem:[%s2] sm:$0x1]
      %v6844 = vperm.slane %v6842, 0
      %vm6846 = vcmask 293888
      %v6848 = vsel %vm6846, %v6717, 0
      %v6851 = vsel %vm6846, %v6718, 0
      %v6854 = vsel %vm6846, %v6719, 0
      %v6857 = vsel %vm6846, %v6720, 0
      %v6860 = vsel %vm6846, %v6721, 0
      %v6863 = vsel %vm6846, %v6722, 0
      %v6866 = vsel %vm6846, %v6723, 0
      %v6869 = vsel %vm6846, %v6724, 0
      %v6872 = vsel %vm6846, %v6725, 0
      %v6875 = vsel %vm6846, %v6726, 0
      %v6878 = vsel %vm6846, %v6727, 0
      %v6881 = vsel %vm6846, %v6728, 0
      %v6884 = vsel %vm6846, %v6729, 0
      %v6887 = vsel %vm6846, %v6730, 0
      %v6890 = vsel %vm6846, %v6731, 0
      %v6893 = vsel %vm6846, %v6732, 0
      %v6896 = vsel %vm6846, %v6733, 0
      %v6899 = vsel %vm6846, %v6734, 0
      %v6902 = vsel %vm6846, %v6735, 0
      %v6905 = vsel %vm6846, %v6736, 0
      %v6908 = vsel %vm6846, %v6737, 0
      %v6911 = vsel %vm6846, %v6738, 0
      %v6914 = vsel %vm6846, %v6739, 0
      %v6917 = vsel %vm6846, %v6740, 0
      %v6920 = vsel %vm6846, %v6741, 0
      %v6923 = vsel %vm6846, %v6742, 0
      %v6926 = vsel %vm6846, %v6743, 0
      %v6929 = vsel %vm6846, %v6744, 0
      %v6932 = vsel %vm6846, %v6745, 0
      %v6935 = vsel %vm6846, %v6746, 0
      %v6938 = vsel %vm6846, %v6747, 0
      %v6941 = vsel %vm6846, %v6748, 0
      %v6944 = vsel %vm6846, %v6749, 0
      %v6947 = vsel %vm6846, %v6750, 0
      %v6950 = vsel %vm6846, %v6751, 0
      %v6953 = vsel %vm6846, %v6752, 0
      %v6956 = vsel %vm6846, %v6753, 0
      %v6959 = vsel %vm6846, %v6754, 0
      %v6962 = vsel %vm6846, %v6755, 0
      %v6965 = vsel %vm6846, %v6756, 0
      %v6968 = vsel %vm6846, %v6757, 0
      %v6971 = vsel %vm6846, %v6758, 0
      %v6974 = vsel %vm6846, %v6759, 0
      %v6977 = vsel %vm6846, %v6760, 0
      %v6980 = vsel %vm6846, %v6761, 0
      %v6983 = vsel %vm6846, %v6762, 0
      %v6986 = vsel %vm6846, %v6763, 0
      %v6989 = vsel %vm6846, %v6764, 0
      %v6992 = vsel %vm6846, %v6765, 0
      %v6995 = vsel %vm6846, %v6766, 0
      %v6998 = vsel %vm6846, %v6767, 0
      %v7001 = vsel %vm6846, %v6768, 0
      %v7004 = vsel %vm6846, %v6769, 0
      %v7007 = vsel %vm6846, %v6770, 0
      %v7010 = vsel %vm6846, %v6771, 0
      %v7013 = vsel %vm6846, %v6772, 0
      %v7016 = vsel %vm6846, %v6773, 0
      %v7019 = vsel %vm6846, %v6774, 0
      %v7022 = vsel %vm6846, %v6775, 0
      %v7025 = vsel %vm6846, %v6776, 0
      %v7028 = vsel %vm6846, %v6777, 0
      %v7031 = vsel %vm6846, %v6778, 0
      %v7034 = vsel %vm6846, %v6779, 0
      %v7037 = vsel %vm6846, %v6780, 0
      %v7040 = vsel %vm6846, %v6781, 0
      %v7043 = vsel %vm6846, %v6782, 0
      %v7046 = vsel %vm6846, %v6783, 0
      %v7049 = vsel %vm6846, %v6784, 0
      %v7052 = vsel %vm6846, %v6785, 0
      %v7055 = vsel %vm6846, %v6786, 0
      %v7058 = vsel %vm6846, %v6787, 0
      %v7061 = vsel %vm6846, %v6788, 0
      %v7064 = vsel %vm6846, %v6789, 0
      %v7067 = vsel %vm6846, %v6790, 0
      %v7070 = vsel %vm6846, %v6791, 0
      %v7073 = vsel %vm6846, %v6792, 0
      %v7076 = vsel %vm6846, %v6793, 0
      %v7079 = vsel %vm6846, %v6794, 0
      %v7082 = vsel %vm6846, %v6795, 0
      %v7085 = vsel %vm6846, %v6796, 0
      %v7088 = vsel %vm6846, %v6797, 0
      %v7091 = vsel %vm6846, %v6798, 0
      %v7094 = vsel %vm6846, %v6799, 0
      %v7097 = vsel %vm6846, %v6800, 0
      %v7100 = vsel %vm6846, %v6801, 0
      %v7103 = vsel %vm6846, %v6802, 0
      %v7106 = vsel %vm6846, %v6803, 0
      %v7109 = vsel %vm6846, %v6804, 0
      %v7112 = vsel %vm6846, %v6805, 0
      %v7115 = vsel %vm6846, %v6806, 0
      %v7118 = vsel %vm6846, %v6807, 0
      %v7121 = vsel %vm6846, %v6808, 0
      %v7124 = vsel %vm6846, %v6809, 0
      %v7127 = vsel %vm6846, %v6810, 0
      %v7130 = vsel %vm6846, %v6811, 0
      %v7133 = vsel %vm6846, %v6812, 0
      %v7136 = vsel %vm6846, %v6813, 0
      %v7139 = vsel %vm6846, %v6814, 0
      %v7142 = vsel %vm6846, %v6815, 0
      %v7145 = vsel %vm6846, %v6816, 0
      %v7148 = vsel %vm6846, %v6817, 0
      %v7151 = vsel %vm6846, %v6818, 0
      %v7154 = vsel %vm6846, %v6819, 0
      %v7157 = vsel %vm6846, %v6820, 0
      %v7160 = vsel %vm6846, %v6821, 0
      %v7163 = vsel %vm6846, %v6822, 0
      %v7166 = vsel %vm6846, %v6823, 0
      %v7169 = vsel %vm6846, %v6824, 0
      %v7172 = vsel %vm6846, %v6825, 0
      %v7175 = vsel %vm6846, %v6826, 0
      %v7178 = vsel %vm6846, %v6827, 0
      %v7181 = vsel %vm6846, %v6828, 0
      %v7184 = vsel %vm6846, %v6829, 0
      %v7187 = vsel %vm6846, %v6830, 0
      %v7190 = vsel %vm6846, %v6831, 0
      %v7193 = vsel %vm6846, %v6832, 0
      %v7196 = vsel %vm6846, %v6833, 0
      %v7199 = vsel %vm6846, %v6834, 0
      %v7202 = vsel %vm6846, %v6835, 0
      %v7205 = vsel %vm6846, %v6836, 0
      %vm7207 = vcmask 1043456
      %v7209 = vsel %vm7207, %v6841, 0
      %7211 = vmatpush.msra.mxu0 0.0
      %7212 = vmatpush.msra.mxu0 0.0
      %7213 = vmatpush.msra.mxu0 0.0
      %7214 = vmatpush.msra.mxu0 0.0
      %7215 = vmatpush.msra.mxu0 0.0
      %7216 = vmatpush.msra.mxu0 0.0
      %7217 = vmatpush.msra.mxu0 0.0
      %7218 = vmatpush.msra.mxu0 0.0
      %7219 = vmatpush.msra.mxu0 0.0
      %7220 = vmatpush.msra.mxu0 0.0
      %7221 = vmatpush.msra.mxu0 0.0
      %7222 = vmatpush.msra.mxu0 %v7209
      %7223 = vmatpush.msra.mxu0 %v6840
      %7224 = vmatpush.msra.mxu0 %v6839
      %7225 = vmatpush.msra.mxu0 %v6838
      %7226 = vmatpush.msra.mxu0 %v6837
      %7227 = vmatmul.f32.gmra.mxu0 %v6848
      %v7228 = vpop.f32.mrf.mxu0
      %v7229 = vadd.f32 %v6844, %v7228
      %7230 = vmatmul.f32.gmra.mxu0 %v6851
      %v7231 = vpop.f32.mrf.mxu0
      %v7232 = vadd.f32 %v6844, %v7231
      %7233 = vmatmul.f32.gmra.mxu0 %v6854
      %v7234 = vpop.f32.mrf.mxu0
      %v7235 = vadd.f32 %v6844, %v7234
      %7236 = vmatmul.f32.gmra.mxu0 %v6857
      %v7237 = vpop.f32.mrf.mxu0
      %v7238 = vadd.f32 %v6844, %v7237
      %7239 = vmatmul.f32.gmra.mxu0 %v6860
      %v7240 = vpop.f32.mrf.mxu0
      %v7241 = vadd.f32 %v6844, %v7240
      %7242 = vmatmul.f32.gmra.mxu0 %v6863
      %v7243 = vpop.f32.mrf.mxu0
      %v7244 = vadd.f32 %v6844, %v7243
      %7245 = vmatmul.f32.gmra.mxu0 %v6866
      %v7246 = vpop.f32.mrf.mxu0
      %v7247 = vadd.f32 %v6844, %v7246
      %7248 = vmatmul.f32.gmra.mxu0 %v6869
      %v7249 = vpop.f32.mrf.mxu0
      %v7250 = vadd.f32 %v6844, %v7249
      %7251 = vmatmul.f32.gmra.mxu0 %v6872
      %v7252 = vpop.f32.mrf.mxu0
      %v7253 = vadd.f32 %v6844, %v7252
      %7254 = vmatmul.f32.gmra.mxu0 %v6875
      %v7255 = vpop.f32.mrf.mxu0
      %v7256 = vadd.f32 %v6844, %v7255
      %7257 = vmatmul.f32.gmra.mxu0 %v6878
      %v7258 = vpop.f32.mrf.mxu0
      %v7259 = vadd.f32 %v6844, %v7258
      %7260 = vmatmul.f32.gmra.mxu0 %v6881
      %v7261 = vpop.f32.mrf.mxu0
      %v7262 = vadd.f32 %v6844, %v7261
      %7263 = vmatmul.f32.gmra.mxu0 %v6884
      %v7264 = vpop.f32.mrf.mxu0
      %v7265 = vadd.f32 %v6844, %v7264
      %7266 = vmatmul.f32.gmra.mxu0 %v6887
      %v7267 = vpop.f32.mrf.mxu0
      %v7268 = vadd.f32 %v6844, %v7267
      %7269 = vmatmul.f32.gmra.mxu0 %v6890
      %v7270 = vpop.f32.mrf.mxu0
      %v7271 = vadd.f32 %v6844, %v7270
      %7272 = vmatmul.f32.gmra.mxu0 %v6893
      %v7273 = vpop.f32.mrf.mxu0
      %v7274 = vadd.f32 %v6844, %v7273
      %7275 = vmatmul.f32.gmra.mxu0 %v6896
      %v7276 = vpop.f32.mrf.mxu0
      %v7277 = vadd.f32 %v6844, %v7276
      %7278 = vmatmul.f32.gmra.mxu0 %v6899
      %v7279 = vpop.f32.mrf.mxu0
      %v7280 = vadd.f32 %v6844, %v7279
      %7281 = vmatmul.f32.gmra.mxu0 %v6902
      %v7282 = vpop.f32.mrf.mxu0
      %v7283 = vadd.f32 %v6844, %v7282
      %7284 = vmatmul.f32.gmra.mxu0 %v6905
      %v7285 = vpop.f32.mrf.mxu0
      %v7286 = vadd.f32 %v6844, %v7285
      %7287 = vmatmul.f32.gmra.mxu0 %v6908
      %v7288 = vpop.f32.mrf.mxu0
      %v7289 = vadd.f32 %v6844, %v7288
      %7290 = vmatmul.f32.gmra.mxu0 %v6911
      %v7291 = vpop.f32.mrf.mxu0
      %v7292 = vadd.f32 %v6844, %v7291
      %7293 = vmatmul.f32.gmra.mxu0 %v6914
      %v7294 = vpop.f32.mrf.mxu0
      %v7295 = vadd.f32 %v6844, %v7294
      %7296 = vmatmul.f32.gmra.mxu0 %v6917
      %v7297 = vpop.f32.mrf.mxu0
      %v7298 = vadd.f32 %v6844, %v7297
      %7299 = vmatmul.f32.gmra.mxu0 %v6920
      %v7300 = vpop.f32.mrf.mxu0
      %v7301 = vadd.f32 %v6844, %v7300
      %7302 = vmatmul.f32.gmra.mxu0 %v6923
      %v7303 = vpop.f32.mrf.mxu0
      %v7304 = vadd.f32 %v6844, %v7303
      %7305 = vmatmul.f32.gmra.mxu0 %v6926
      %v7306 = vpop.f32.mrf.mxu0
      %v7307 = vadd.f32 %v6844, %v7306
      %7308 = vmatmul.f32.gmra.mxu0 %v6929
      %v7309 = vpop.f32.mrf.mxu0
      %v7310 = vadd.f32 %v6844, %v7309
      %7311 = vmatmul.f32.gmra.mxu0 %v6932
      %v7312 = vpop.f32.mrf.mxu0
      %v7313 = vadd.f32 %v6844, %v7312
      %7314 = vmatmul.f32.gmra.mxu0 %v6935
      %v7315 = vpop.f32.mrf.mxu0
      %v7316 = vadd.f32 %v6844, %v7315
      %7317 = vmatmul.f32.gmra.mxu0 %v6938
      %v7318 = vpop.f32.mrf.mxu0
      %v7319 = vadd.f32 %v6844, %v7318
      %7320 = vmatmul.f32.gmra.mxu0 %v6941
      %v7321 = vpop.f32.mrf.mxu0
      %v7322 = vadd.f32 %v6844, %v7321
      %7323 = vmatmul.f32.gmra.mxu0 %v6944
      %v7324 = vpop.f32.mrf.mxu0
      %v7325 = vadd.f32 %v6844, %v7324
      %7326 = vmatmul.f32.gmra.mxu0 %v6947
      %v7327 = vpop.f32.mrf.mxu0
      %v7328 = vadd.f32 %v6844, %v7327
      %7329 = vmatmul.f32.gmra.mxu0 %v6950
      %v7330 = vpop.f32.mrf.mxu0
      %v7331 = vadd.f32 %v6844, %v7330
      %7332 = vmatmul.f32.gmra.mxu0 %v6953
      %v7333 = vpop.f32.mrf.mxu0
      %v7334 = vadd.f32 %v6844, %v7333
      %7335 = vmatmul.f32.gmra.mxu0 %v6956
      %v7336 = vpop.f32.mrf.mxu0
      %v7337 = vadd.f32 %v6844, %v7336
      %7338 = vmatmul.f32.gmra.mxu0 %v6959
      %v7339 = vpop.f32.mrf.mxu0
      %v7340 = vadd.f32 %v6844, %v7339
      %7341 = vmatmul.f32.gmra.mxu0 %v6962
      %v7342 = vpop.f32.mrf.mxu0
      %v7343 = vadd.f32 %v6844, %v7342
      %7344 = vmatmul.f32.gmra.mxu0 %v6965
      %v7345 = vpop.f32.mrf.mxu0
      %v7346 = vadd.f32 %v6844, %v7345
      %7347 = vmatmul.f32.gmra.mxu0 %v6968
      %v7348 = vpop.f32.mrf.mxu0
      %v7349 = vadd.f32 %v6844, %v7348
      %7350 = vmatmul.f32.gmra.mxu0 %v6971
      %v7351 = vpop.f32.mrf.mxu0
      %v7352 = vadd.f32 %v6844, %v7351
      %7353 = vmatmul.f32.gmra.mxu0 %v6974
      %v7354 = vpop.f32.mrf.mxu0
      %v7355 = vadd.f32 %v6844, %v7354
      %7356 = vmatmul.f32.gmra.mxu0 %v6977
      %v7357 = vpop.f32.mrf.mxu0
      %v7358 = vadd.f32 %v6844, %v7357
      %7359 = vmatmul.f32.gmra.mxu0 %v6980
      %v7360 = vpop.f32.mrf.mxu0
      %v7361 = vadd.f32 %v6844, %v7360
      %7362 = vmatmul.f32.gmra.mxu0 %v6983
      %v7363 = vpop.f32.mrf.mxu0
      %v7364 = vadd.f32 %v6844, %v7363
      %7365 = vmatmul.f32.gmra.mxu0 %v6986
      %v7366 = vpop.f32.mrf.mxu0
      %v7367 = vadd.f32 %v6844, %v7366
      %7368 = vmatmul.f32.gmra.mxu0 %v6989
      %v7369 = vpop.f32.mrf.mxu0
      %v7370 = vadd.f32 %v6844, %v7369
      %7371 = vmatmul.f32.gmra.mxu0 %v6992
      %v7372 = vpop.f32.mrf.mxu0
      %v7373 = vadd.f32 %v6844, %v7372
      %7374 = vmatmul.f32.gmra.mxu0 %v6995
      %v7375 = vpop.f32.mrf.mxu0
      %v7376 = vadd.f32 %v6844, %v7375
      %7377 = vmatmul.f32.gmra.mxu0 %v6998
      %v7378 = vpop.f32.mrf.mxu0
      %v7379 = vadd.f32 %v6844, %v7378
      %7380 = vmatmul.f32.gmra.mxu0 %v7001
      %v7381 = vpop.f32.mrf.mxu0
      %v7382 = vadd.f32 %v6844, %v7381
      %7383 = vmatmul.f32.gmra.mxu0 %v7004
      %v7384 = vpop.f32.mrf.mxu0
      %v7385 = vadd.f32 %v6844, %v7384
      %7386 = vmatmul.f32.gmra.mxu0 %v7007
      %v7387 = vpop.f32.mrf.mxu0
      %v7388 = vadd.f32 %v6844, %v7387
      %7389 = vmatmul.f32.gmra.mxu0 %v7010
      %v7390 = vpop.f32.mrf.mxu0
      %v7391 = vadd.f32 %v6844, %v7390
      %7392 = vmatmul.f32.gmra.mxu0 %v7013
      %v7393 = vpop.f32.mrf.mxu0
      %v7394 = vadd.f32 %v6844, %v7393
      %7395 = vmatmul.f32.gmra.mxu0 %v7016
      %v7396 = vpop.f32.mrf.mxu0
      %v7397 = vadd.f32 %v6844, %v7396
      %7398 = vmatmul.f32.gmra.mxu0 %v7019
      %v7399 = vpop.f32.mrf.mxu0
      %v7400 = vadd.f32 %v6844, %v7399
      %7401 = vmatmul.f32.gmra.mxu0 %v7022
      %v7402 = vpop.f32.mrf.mxu0
      %v7403 = vadd.f32 %v6844, %v7402
      %7404 = vmatmul.f32.gmra.mxu0 %v7025
      %v7405 = vpop.f32.mrf.mxu0
      %v7406 = vadd.f32 %v6844, %v7405
      %7407 = vmatmul.f32.gmra.mxu0 %v7028
      %v7408 = vpop.f32.mrf.mxu0
      %v7409 = vadd.f32 %v6844, %v7408
      %7410 = vmatmul.f32.gmra.mxu0 %v7031
      %v7411 = vpop.f32.mrf.mxu0
      %v7412 = vadd.f32 %v6844, %v7411
      %7413 = vmatmul.f32.gmra.mxu0 %v7034
      %v7414 = vpop.f32.mrf.mxu0
      %v7415 = vadd.f32 %v6844, %v7414
      %7416 = vmatmul.f32.gmra.mxu0 %v7037
      %v7417 = vpop.f32.mrf.mxu0
      %v7418 = vadd.f32 %v6844, %v7417
      %7419 = vmatmul.f32.gmra.mxu0 %v7040
      %v7420 = vpop.f32.mrf.mxu0
      %v7421 = vadd.f32 %v6844, %v7420
      %7422 = vmatmul.f32.gmra.mxu0 %v7043
      %v7423 = vpop.f32.mrf.mxu0
      %v7424 = vadd.f32 %v6844, %v7423
      %7425 = vmatmul.f32.gmra.mxu0 %v7046
      %v7426 = vpop.f32.mrf.mxu0
      %v7427 = vadd.f32 %v6844, %v7426
      %7428 = vmatmul.f32.gmra.mxu0 %v7049
      %v7429 = vpop.f32.mrf.mxu0
      %v7430 = vadd.f32 %v6844, %v7429
      %7431 = vmatmul.f32.gmra.mxu0 %v7052
      %v7432 = vpop.f32.mrf.mxu0
      %v7433 = vadd.f32 %v6844, %v7432
      %7434 = vmatmul.f32.gmra.mxu0 %v7055
      %v7435 = vpop.f32.mrf.mxu0
      %v7436 = vadd.f32 %v6844, %v7435
      %7437 = vmatmul.f32.gmra.mxu0 %v7058
      %v7438 = vpop.f32.mrf.mxu0
      %v7439 = vadd.f32 %v6844, %v7438
      %7440 = vmatmul.f32.gmra.mxu0 %v7061
      %v7441 = vpop.f32.mrf.mxu0
      %v7442 = vadd.f32 %v6844, %v7441
      %7443 = vmatmul.f32.gmra.mxu0 %v7064
      %v7444 = vpop.f32.mrf.mxu0
      %v7445 = vadd.f32 %v6844, %v7444
      %7446 = vmatmul.f32.gmra.mxu0 %v7067
      %v7447 = vpop.f32.mrf.mxu0
      %v7448 = vadd.f32 %v6844, %v7447
      %7449 = vmatmul.f32.gmra.mxu0 %v7070
      %v7450 = vpop.f32.mrf.mxu0
      %v7451 = vadd.f32 %v6844, %v7450
      %7452 = vmatmul.f32.gmra.mxu0 %v7073
      %v7453 = vpop.f32.mrf.mxu0
      %v7454 = vadd.f32 %v6844, %v7453
      %7455 = vmatmul.f32.gmra.mxu0 %v7076
      %v7456 = vpop.f32.mrf.mxu0
      %v7457 = vadd.f32 %v6844, %v7456
      %7458 = vmatmul.f32.gmra.mxu0 %v7079
      %v7459 = vpop.f32.mrf.mxu0
      %v7460 = vadd.f32 %v6844, %v7459
      %7461 = vmatmul.f32.gmra.mxu0 %v7082
      %v7462 = vpop.f32.mrf.mxu0
      %v7463 = vadd.f32 %v6844, %v7462
      %7464 = vmatmul.f32.gmra.mxu0 %v7085
      %v7465 = vpop.f32.mrf.mxu0
      %v7466 = vadd.f32 %v6844, %v7465
      %7467 = vmatmul.f32.gmra.mxu0 %v7088
      %v7468 = vpop.f32.mrf.mxu0
      %v7469 = vadd.f32 %v6844, %v7468
      %7470 = vmatmul.f32.gmra.mxu0 %v7091
      %v7471 = vpop.f32.mrf.mxu0
      %v7472 = vadd.f32 %v6844, %v7471
      %7473 = vmatmul.f32.gmra.mxu0 %v7094
      %v7474 = vpop.f32.mrf.mxu0
      %v7475 = vadd.f32 %v6844, %v7474
      %7476 = vmatmul.f32.gmra.mxu0 %v7097
      %v7477 = vpop.f32.mrf.mxu0
      %v7478 = vadd.f32 %v6844, %v7477
      %7479 = vmatmul.f32.gmra.mxu0 %v7100
      %v7480 = vpop.f32.mrf.mxu0
      %v7481 = vadd.f32 %v6844, %v7480
      %7482 = vmatmul.f32.gmra.mxu0 %v7103
      %v7483 = vpop.f32.mrf.mxu0
      %v7484 = vadd.f32 %v6844, %v7483
      %7485 = vmatmul.f32.gmra.mxu0 %v7106
      %v7486 = vpop.f32.mrf.mxu0
      %v7487 = vadd.f32 %v6844, %v7486
      %7488 = vmatmul.f32.gmra.mxu0 %v7109
      %v7489 = vpop.f32.mrf.mxu0
      %v7490 = vadd.f32 %v6844, %v7489
      %7491 = vmatmul.f32.gmra.mxu0 %v7112
      %v7492 = vpop.f32.mrf.mxu0
      %v7493 = vadd.f32 %v6844, %v7492
      %7494 = vmatmul.f32.gmra.mxu0 %v7115
      %v7495 = vpop.f32.mrf.mxu0
      %v7496 = vadd.f32 %v6844, %v7495
      %7497 = vmatmul.f32.gmra.mxu0 %v7118
      %v7498 = vpop.f32.mrf.mxu0
      %v7499 = vadd.f32 %v6844, %v7498
      %7500 = vmatmul.f32.gmra.mxu0 %v7121
      %v7501 = vpop.f32.mrf.mxu0
      %v7502 = vadd.f32 %v6844, %v7501
      %7503 = vmatmul.f32.gmra.mxu0 %v7124
      %v7504 = vpop.f32.mrf.mxu0
      %v7505 = vadd.f32 %v6844, %v7504
      %7506 = vmatmul.f32.gmra.mxu0 %v7127
      %v7507 = vpop.f32.mrf.mxu0
      %v7508 = vadd.f32 %v6844, %v7507
      %7509 = vmatmul.f32.gmra.mxu0 %v7130
      %v7510 = vpop.f32.mrf.mxu0
      %v7511 = vadd.f32 %v6844, %v7510
      %7512 = vmatmul.f32.gmra.mxu0 %v7133
      %v7513 = vpop.f32.mrf.mxu0
      %v7514 = vadd.f32 %v6844, %v7513
      %7515 = vmatmul.f32.gmra.mxu0 %v7136
      %v7516 = vpop.f32.mrf.mxu0
      %v7517 = vadd.f32 %v6844, %v7516
      %7518 = vmatmul.f32.gmra.mxu0 %v7139
      %v7519 = vpop.f32.mrf.mxu0
      %v7520 = vadd.f32 %v6844, %v7519
      %7521 = vmatmul.f32.gmra.mxu0 %v7142
      %v7522 = vpop.f32.mrf.mxu0
      %v7523 = vadd.f32 %v6844, %v7522
      %7524 = vmatmul.f32.gmra.mxu0 %v7145
      %v7525 = vpop.f32.mrf.mxu0
      %v7526 = vadd.f32 %v6844, %v7525
      %7527 = vmatmul.f32.gmra.mxu0 %v7148
      %v7528 = vpop.f32.mrf.mxu0
      %v7529 = vadd.f32 %v6844, %v7528
      %7530 = vmatmul.f32.gmra.mxu0 %v7151
      %v7531 = vpop.f32.mrf.mxu0
      %v7532 = vadd.f32 %v6844, %v7531
      %7533 = vmatmul.f32.gmra.mxu0 %v7154
      %v7534 = vpop.f32.mrf.mxu0
      %v7535 = vadd.f32 %v6844, %v7534
      %7536 = vmatmul.f32.gmra.mxu0 %v7157
      %v7537 = vpop.f32.mrf.mxu0
      %v7538 = vadd.f32 %v6844, %v7537
      %7539 = vmatmul.f32.gmra.mxu0 %v7160
      %v7540 = vpop.f32.mrf.mxu0
      %v7541 = vadd.f32 %v6844, %v7540
      %7542 = vmatmul.f32.gmra.mxu0 %v7163
      %v7543 = vpop.f32.mrf.mxu0
      %v7544 = vadd.f32 %v6844, %v7543
      %7545 = vmatmul.f32.gmra.mxu0 %v7166
      %v7546 = vpop.f32.mrf.mxu0
      %v7547 = vadd.f32 %v6844, %v7546
      %7548 = vmatmul.f32.gmra.mxu0 %v7169
      %v7549 = vpop.f32.mrf.mxu0
      %v7550 = vadd.f32 %v6844, %v7549
      %7551 = vmatmul.f32.gmra.mxu0 %v7172
      %v7552 = vpop.f32.mrf.mxu0
      %v7553 = vadd.f32 %v6844, %v7552
      %7554 = vmatmul.f32.gmra.mxu0 %v7175
      %v7555 = vpop.f32.mrf.mxu0
      %v7556 = vadd.f32 %v6844, %v7555
      %7557 = vmatmul.f32.gmra.mxu0 %v7178
      %v7558 = vpop.f32.mrf.mxu0
      %v7559 = vadd.f32 %v6844, %v7558
      %7560 = vmatmul.f32.gmra.mxu0 %v7181
      %v7561 = vpop.f32.mrf.mxu0
      %v7562 = vadd.f32 %v6844, %v7561
      %7563 = vmatmul.f32.gmra.mxu0 %v7184
      %v7564 = vpop.f32.mrf.mxu0
      %v7565 = vadd.f32 %v6844, %v7564
      %7566 = vmatmul.f32.gmra.mxu0 %v7187
      %v7567 = vpop.f32.mrf.mxu0
      %v7568 = vadd.f32 %v6844, %v7567
      %7569 = vmatmul.f32.gmra.mxu0 %v7190
      %v7570 = vpop.f32.mrf.mxu0
      %v7571 = vadd.f32 %v6844, %v7570
      %7572 = vmatmul.f32.gmra.mxu0 %v7193
      %v7573 = vpop.f32.mrf.mxu0
      %v7574 = vadd.f32 %v6844, %v7573
      %7575 = vmatmul.f32.gmra.mxu0 %v7196
      %v7576 = vpop.f32.mrf.mxu0
      %v7577 = vadd.f32 %v6844, %v7576
      %7578 = vmatmul.f32.gmra.mxu0 %v7199
      %v7579 = vpop.f32.mrf.mxu0
      %v7580 = vadd.f32 %v6844, %v7579
      %7581 = vmatmul.f32.gmra.mxu0 %v7202
      %v7582 = vpop.f32.mrf.mxu0
      %v7583 = vadd.f32 %v6844, %v7582
      %7584 = vmatmul.f32.gmra.mxu0 %v7205
      %v7585 = vpop.f32.mrf.mxu0
      %v7586 = vadd.f32 %v6844, %v7585
      %7587 = vdwg.mxu0
      %v7588 = vmax.f32 %v7229, 0.0
      %v7589 = vmax.f32 %v7232, 0.0
      %v7590 = vmax.f32 %v7235, 0.0
      %v7591 = vmax.f32 %v7238, 0.0
      %v7592 = vmax.f32 %v7241, 0.0
      %v7593 = vmax.f32 %v7244, 0.0
      %v7594 = vmax.f32 %v7247, 0.0
      %v7595 = vmax.f32 %v7250, 0.0
      %v7596 = vmax.f32 %v7253, 0.0
      %v7597 = vmax.f32 %v7256, 0.0
      %v7598 = vmax.f32 %v7259, 0.0
      %v7599 = vmax.f32 %v7262, 0.0
      %v7600 = vmax.f32 %v7265, 0.0
      %v7601 = vmax.f32 %v7268, 0.0
      %v7602 = vmax.f32 %v7271, 0.0
      %v7603 = vmax.f32 %v7274, 0.0
      %v7604 = vmax.f32 %v7277, 0.0
      %v7605 = vmax.f32 %v7280, 0.0
      %v7606 = vmax.f32 %v7283, 0.0
      %v7607 = vmax.f32 %v7286, 0.0
      %v7608 = vmax.f32 %v7289, 0.0
      %v7609 = vmax.f32 %v7292, 0.0
      %v7610 = vmax.f32 %v7295, 0.0
      %v7611 = vmax.f32 %v7298, 0.0
      %v7612 = vmax.f32 %v7301, 0.0
      %v7613 = vmax.f32 %v7304, 0.0
      %v7614 = vmax.f32 %v7307, 0.0
      %v7615 = vmax.f32 %v7310, 0.0
      %v7616 = vmax.f32 %v7313, 0.0
      %v7617 = vmax.f32 %v7316, 0.0
      %v7618 = vmax.f32 %v7319, 0.0
      %v7619 = vmax.f32 %v7322, 0.0
      %v7620 = vmax.f32 %v7325, 0.0
      %v7621 = vmax.f32 %v7328, 0.0
      %v7622 = vmax.f32 %v7331, 0.0
      %v7623 = vmax.f32 %v7334, 0.0
      %v7624 = vmax.f32 %v7337, 0.0
      %v7625 = vmax.f32 %v7340, 0.0
      %v7626 = vmax.f32 %v7343, 0.0
      %v7627 = vmax.f32 %v7346, 0.0
      %v7628 = vmax.f32 %v7349, 0.0
      %v7629 = vmax.f32 %v7352, 0.0
      %v7630 = vmax.f32 %v7355, 0.0
      %v7631 = vmax.f32 %v7358, 0.0
      %v7632 = vmax.f32 %v7361, 0.0
      %v7633 = vmax.f32 %v7364, 0.0
      %v7634 = vmax.f32 %v7367, 0.0
      %v7635 = vmax.f32 %v7370, 0.0
      %v7636 = vmax.f32 %v7373, 0.0
      %v7637 = vmax.f32 %v7376, 0.0
      %v7638 = vmax.f32 %v7379, 0.0
      %v7639 = vmax.f32 %v7382, 0.0
      %v7640 = vmax.f32 %v7385, 0.0
      %v7641 = vmax.f32 %v7388, 0.0
      %v7642 = vmax.f32 %v7391, 0.0
      %v7643 = vmax.f32 %v7394, 0.0
      %v7644 = vmax.f32 %v7397, 0.0
      %v7645 = vmax.f32 %v7400, 0.0
      %v7646 = vmax.f32 %v7403, 0.0
      %v7647 = vmax.f32 %v7406, 0.0
      %v7648 = vmax.f32 %v7409, 0.0
      %v7649 = vmax.f32 %v7412, 0.0
      %v7650 = vmax.f32 %v7415, 0.0
      %v7651 = vmax.f32 %v7418, 0.0
      %v7652 = vmax.f32 %v7421, 0.0
      %v7653 = vmax.f32 %v7424, 0.0
      %v7654 = vmax.f32 %v7427, 0.0
      %v7655 = vmax.f32 %v7430, 0.0
      %v7656 = vmax.f32 %v7433, 0.0
      %v7657 = vmax.f32 %v7436, 0.0
      %v7658 = vmax.f32 %v7439, 0.0
      %v7659 = vmax.f32 %v7442, 0.0
      %v7660 = vmax.f32 %v7445, 0.0
      %v7661 = vmax.f32 %v7448, 0.0
      %v7662 = vmax.f32 %v7451, 0.0
      %v7663 = vmax.f32 %v7454, 0.0
      %v7664 = vmax.f32 %v7457, 0.0
      %v7665 = vmax.f32 %v7460, 0.0
      %v7666 = vmax.f32 %v7463, 0.0
      %v7667 = vmax.f32 %v7466, 0.0
      %v7668 = vmax.f32 %v7469, 0.0
      %v7669 = vmax.f32 %v7472, 0.0
      %v7670 = vmax.f32 %v7475, 0.0
      %v7671 = vmax.f32 %v7478, 0.0
      %v7672 = vmax.f32 %v7481, 0.0
      %v7673 = vmax.f32 %v7484, 0.0
      %v7674 = vmax.f32 %v7487, 0.0
      %v7675 = vmax.f32 %v7490, 0.0
      %v7676 = vmax.f32 %v7493, 0.0
      %v7677 = vmax.f32 %v7496, 0.0
      %v7678 = vmax.f32 %v7499, 0.0
      %v7679 = vmax.f32 %v7502, 0.0
      %v7680 = vmax.f32 %v7505, 0.0
      %v7681 = vmax.f32 %v7508, 0.0
      %v7682 = vmax.f32 %v7511, 0.0
      %v7683 = vmax.f32 %v7514, 0.0
      %v7684 = vmax.f32 %v7517, 0.0
      %v7685 = vmax.f32 %v7520, 0.0
      %v7686 = vmax.f32 %v7523, 0.0
      %v7687 = vmax.f32 %v7526, 0.0
      %v7688 = vmax.f32 %v7529, 0.0
      %v7689 = vmax.f32 %v7532, 0.0
      %v7690 = vmax.f32 %v7535, 0.0
      %v7691 = vmax.f32 %v7538, 0.0
      %v7692 = vmax.f32 %v7541, 0.0
      %v7693 = vmax.f32 %v7544, 0.0
      %v7694 = vmax.f32 %v7547, 0.0
      %v7695 = vmax.f32 %v7550, 0.0
      %v7696 = vmax.f32 %v7553, 0.0
      %v7697 = vmax.f32 %v7556, 0.0
      %v7698 = vmax.f32 %v7559, 0.0
      %v7699 = vmax.f32 %v7562, 0.0
      %v7700 = vmax.f32 %v7565, 0.0
      %v7701 = vmax.f32 %v7568, 0.0
      %v7702 = vmax.f32 %v7571, 0.0
      %v7703 = vmax.f32 %v7574, 0.0
      %v7704 = vmax.f32 %v7577, 0.0
      %v7705 = vmax.f32 %v7580, 0.0
      %v7706 = vmax.f32 %v7583, 0.0
      %v7707 = vmax.f32 %v7586, 0.0
      %v7708 = vmax.f32 %v7588, %v7590
      %v7709 = vmax.f32 %v7589, %v7591
      %v7710 = vmax.f32 %v7598, %v7600
      %v7711 = vmax.f32 %v7599, %v7601
      %v7712 = vmax.f32 %v7608, %v7610
      %v7713 = vmax.f32 %v7609, %v7611
      %v7714 = vmax.f32 %v7618, %v7620
      %v7715 = vmax.f32 %v7619, %v7621
      %v7716 = vmax.f32 %v7628, %v7630
      %v7717 = vmax.f32 %v7629, %v7631
      %v7718 = vmax.f32 %v7638, %v7640
      %v7719 = vmax.f32 %v7639, %v7641
      %v7720 = vmax.f32 %v7648, %v7650
      %v7721 = vmax.f32 %v7649, %v7651
      %v7722 = vmax.f32 %v7658, %v7660
      %v7723 = vmax.f32 %v7659, %v7661
      %v7724 = vmax.f32 %v7668, %v7670
      %v7725 = vmax.f32 %v7669, %v7671
      %v7726 = vmax.f32 %v7678, %v7680
      %v7727 = vmax.f32 %v7679, %v7681
      %v7728 = vmax.f32 %v7688, %v7690
      %v7729 = vmax.f32 %v7689, %v7691
      %v7730 = vmax.f32 %v7698, %v7700
      %v7731 = vmax.f32 %v7699, %v7701
      %v7732 = vmax.f32 %v7708, %v7592
      %v7733 = vmax.f32 %v7709, %v7593
      %v7734 = vmax.f32 %v7710, %v7602
      %v7735 = vmax.f32 %v7711, %v7603
      %v7736 = vmax.f32 %v7712, %v7612
      %v7737 = vmax.f32 %v7713, %v7613
      %v7738 = vmax.f32 %v7714, %v7622
      %v7739 = vmax.f32 %v7715, %v7623
      %v7740 = vmax.f32 %v7716, %v7632
      %v7741 = vmax.f32 %v7717, %v7633
      %v7742 = vmax.f32 %v7718, %v7642
      %v7743 = vmax.f32 %v7719, %v7643
      %v7744 = vmax.f32 %v7720, %v7652
      %v7745 = vmax.f32 %v7721, %v7653
      %v7746 = vmax.f32 %v7722, %v7662
      %v7747 = vmax.f32 %v7723, %v7663
      %v7748 = vmax.f32 %v7724, %v7672
      %v7749 = vmax.f32 %v7725, %v7673
      %v7750 = vmax.f32 %v7726, %v7682
      %v7751 = vmax.f32 %v7727, %v7683
      %v7752 = vmax.f32 %v7728, %v7692
      %v7753 = vmax.f32 %v7729, %v7693
      %v7754 = vmax.f32 %v7730, %v7702
      %v7755 = vmax.f32 %v7731, %v7703
      %v7756 = vmax.f32 %v7732, %v7594
      %v7757 = vmax.f32 %v7733, %v7595
      %v7758 = vmax.f32 %v7734, %v7604
      %v7759 = vmax.f32 %v7735, %v7605
      %v7760 = vmax.f32 %v7736, %v7614
      %v7761 = vmax.f32 %v7737, %v7615
      %v7762 = vmax.f32 %v7738, %v7624
      %v7763 = vmax.f32 %v7739, %v7625
      %v7764 = vmax.f32 %v7740, %v7634
      %v7765 = vmax.f32 %v7741, %v7635
      %v7766 = vmax.f32 %v7742, %v7644
      %v7767 = vmax.f32 %v7743, %v7645
      %v7768 = vmax.f32 %v7744, %v7654
      %v7769 = vmax.f32 %v7745, %v7655
      %v7770 = vmax.f32 %v7746, %v7664
      %v7771 = vmax.f32 %v7747, %v7665
      %v7772 = vmax.f32 %v7748, %v7674
      %v7773 = vmax.f32 %v7749, %v7675
      %v7774 = vmax.f32 %v7750, %v7684
      %v7775 = vmax.f32 %v7751, %v7685
      %v7776 = vmax.f32 %v7752, %v7694
      %v7777 = vmax.f32 %v7753, %v7695
      %v7778 = vmax.f32 %v7754, %v7704
      %v7779 = vmax.f32 %v7755, %v7705
      %v7780 = vmax.f32 %v7756, %v7596
      %v7781 = vmax.f32 %v7757, %v7597
      %v7782 = vmax.f32 %v7758, %v7606
      %v7783 = vmax.f32 %v7759, %v7607
      %v7784 = vmax.f32 %v7760, %v7616
      %v7785 = vmax.f32 %v7761, %v7617
      %v7786 = vmax.f32 %v7762, %v7626
      %v7787 = vmax.f32 %v7763, %v7627
      %v7788 = vmax.f32 %v7764, %v7636
      %v7789 = vmax.f32 %v7765, %v7637
      %v7790 = vmax.f32 %v7766, %v7646
      %v7791 = vmax.f32 %v7767, %v7647
      %v7792 = vmax.f32 %v7768, %v7656
      %v7793 = vmax.f32 %v7769, %v7657
      %v7794 = vmax.f32 %v7770, %v7666
      %v7795 = vmax.f32 %v7771, %v7667
      %v7796 = vmax.f32 %v7772, %v7676
      %v7797 = vmax.f32 %v7773, %v7677
      %v7798 = vmax.f32 %v7774, %v7686
      %v7799 = vmax.f32 %v7775, %v7687
      %v7800 = vmax.f32 %v7776, %v7696
      %v7801 = vmax.f32 %v7777, %v7697
      %v7802 = vmax.f32 %v7778, %v7706
      %v7803 = vmax.f32 %v7779, %v7707
      %vm7804 = vcmask 64512
      %7805 = vst.msk [vmem:[#allocation3] sm:$0xff] %vm7804, 0.0
      %7806 = vst.msk [vmem:[#allocation3 + $0x8] sm:$0xff] %vm7804, 0.0
      %vm7807 = vcmask 58368
      %7808 = vst.msk [vmem:[#allocation3 + $0x10] sm:$0x3] %vm7807, 0.0
      %7809 = vst.msk [vmem:[#allocation3 + $0x18] sm:$0xff] %vm7804, 0.0
      %7810 = vst.msk [vmem:[#allocation3 + $0x20] sm:$0xff] %vm7804, 0.0
      %7811 = vst.msk [vmem:[#allocation3 + $0x28] sm:$0x3] %vm7807, 0.0
      %7812 = vst.msk [vmem:[#allocation3 + $0x30] sm:$0xff] %vm7804, 0.0
      %7813 = vst.msk [vmem:[#allocation3 + $0x38] sm:$0xff] %vm7804, 0.0
      %7814 = vst.msk [vmem:[#allocation3 + $0x40] sm:$0x3] %vm7807, 0.0
      %7815 = vst.msk [vmem:[#allocation3 + $0x48] sm:$0xff] %vm7804, 0.0
      %7816 = vst.msk [vmem:[#allocation3 + $0x50] sm:$0xff] %vm7804, 0.0
      %7817 = vst.msk [vmem:[#allocation3 + $0x58] sm:$0x3] %vm7807, 0.0
      %7818 = vst.msk [vmem:[#allocation3 + $0x60] sm:$0xff] %vm7804, 0.0
      %7819 = vst.msk [vmem:[#allocation3 + $0x68] sm:$0xff] %vm7804, 0.0
      %7820 = vst.msk [vmem:[#allocation3 + $0x70] sm:$0x3] %vm7807, 0.0
      %7821 = vst.msk [vmem:[#allocation3 + $0x78] sm:$0xff] %vm7804, 0.0
      %7822 = vst.msk [vmem:[#allocation3 + $0x80] sm:$0xff] %vm7804, 0.0
      %7823 = vst.msk [vmem:[#allocation3 + $0x88] sm:$0x3] %vm7807, 0.0
      %7824 = vst.msk [vmem:[#allocation3 + $0x90] sm:$0xff] %vm7804, 0.0
      %7825 = vst.msk [vmem:[#allocation3 + $0x98] sm:$0xff] %vm7804, 0.0
      %7826 = vst.msk [vmem:[#allocation3 + $0xa0] sm:$0x3] %vm7807, 0.0
      %7827 = vst.msk [vmem:[#allocation3 + $0xa8] sm:$0xff] %vm7804, 0.0
      %7828 = vst.msk [vmem:[#allocation3 + $0xb0] sm:$0xff] %vm7804, 0.0
      %7829 = vst.msk [vmem:[#allocation3 + $0xb8] sm:$0x3] %vm7807, 0.0
      %7830 = vst.msk [vmem:[#allocation3 + $0xc0] sm:$0xff] %vm7804, 0.0
      %7831 = vst.msk [vmem:[#allocation3 + $0xc8] sm:$0xff] %vm7804, 0.0
      %7832 = vst.msk [vmem:[#allocation3 + $0xd0] sm:$0x3] %vm7807, 0.0
      %7833 = vst.msk [vmem:[#allocation3 + $0xd8] sm:$0xff] %vm7804, 0.0
      %7834 = vst.msk [vmem:[#allocation3 + $0xe0] sm:$0xff] %vm7804, 0.0
      %7835 = vst.msk [vmem:[#allocation3 + $0xe8] sm:$0x3] %vm7807, 0.0
      %7836 = vst.msk [vmem:[#allocation3 + $0xf0] sm:$0xff] %vm7804, 0.0
      %7837 = vst.msk [vmem:[#allocation3 + $0xf8] sm:$0xff] %vm7804, 0.0
      %7838 = vst.msk [vmem:[#allocation3 + $0x100] sm:$0x3] %vm7807, 0.0
      %7839 = vst.msk [vmem:[#allocation3 + $0x108] sm:$0xff] %vm7804, 0.0
      %7840 = vst.msk [vmem:[#allocation3 + $0x110] sm:$0xff] %vm7804, 0.0
      %7841 = vst.msk [vmem:[#allocation3 + $0x118] sm:$0x3] %vm7807, 0.0
      %7842 = vst.msk [vmem:[#allocation3 + $0x120] sm:$0xff] %vm7804, 0.0
      %7843 = vst.msk [vmem:[#allocation3 + $0x128] sm:$0xff] %vm7804, 0.0
      %7844 = vst.msk [vmem:[#allocation3 + $0x130] sm:$0x3] %vm7807, 0.0
      %7845 = vst.msk [vmem:[#allocation3 + $0x138] sm:$0xff] %vm7804, 0.0
      %7846 = vst.msk [vmem:[#allocation3 + $0x140] sm:$0xff] %vm7804, 0.0
      %7847 = vst.msk [vmem:[#allocation3 + $0x148] sm:$0x3] %vm7807, 0.0
      %s7848 = scalar_lea.vmem [#allocation3], 24
      %7849 = vst.msk [vmem:[%s7848 + $0x1] sm:$0xff] %vm7804, %v7780
      %7850 = vst.msk [vmem:[%s7848 + $0x9] sm:$0xff] %vm7804, %v7781
      %7851 = vst.msk [vmem:[%s7848 + $0x19] sm:$0xff] %vm7804, %v7782
      %7852 = vst.msk [vmem:[%s7848 + $0x21] sm:$0xff] %vm7804, %v7783
      %7853 = vst.msk [vmem:[%s7848 + $0x31] sm:$0xff] %vm7804, %v7784
      %7854 = vst.msk [vmem:[%s7848 + $0x39] sm:$0xff] %vm7804, %v7785
      %7855 = vst.msk [vmem:[%s7848 + $0x49] sm:$0xff] %vm7804, %v7786
      %7856 = vst.msk [vmem:[%s7848 + $0x51] sm:$0xff] %vm7804, %v7787
      %7857 = vst.msk [vmem:[%s7848 + $0x61] sm:$0xff] %vm7804, %v7788
      %7858 = vst.msk [vmem:[%s7848 + $0x69] sm:$0xff] %vm7804, %v7789
      %7859 = vst.msk [vmem:[%s7848 + $0x79] sm:$0xff] %vm7804, %v7790
      %7860 = vst.msk [vmem:[%s7848 + $0x81] sm:$0xff] %vm7804, %v7791
      %7861 = vst.msk [vmem:[%s7848 + $0x91] sm:$0xff] %vm7804, %v7792
      %7862 = vst.msk [vmem:[%s7848 + $0x99] sm:$0xff] %vm7804, %v7793
      %7863 = vst.msk [vmem:[%s7848 + $0xa9] sm:$0xff] %vm7804, %v7794
      %7864 = vst.msk [vmem:[%s7848 + $0xb1] sm:$0xff] %vm7804, %v7795
      %7865 = vst.msk [vmem:[%s7848 + $0xc1] sm:$0xff] %vm7804, %v7796
      %7866 = vst.msk [vmem:[%s7848 + $0xc9] sm:$0xff] %vm7804, %v7797
      %7867 = vst.msk [vmem:[%s7848 + $0xd9] sm:$0xff] %vm7804, %v7798
      %7868 = vst.msk [vmem:[%s7848 + $0xe1] sm:$0xff] %vm7804, %v7799
      %7869 = vst.msk [vmem:[%s7848 + $0xf1] sm:$0xff] %vm7804, %v7800
      %7870 = vst.msk [vmem:[%s7848 + $0xf9] sm:$0xff] %vm7804, %v7801
      %7871 = vst.msk [vmem:[%s7848 + $0x109] sm:$0xff] %vm7804, %v7802
      %7872 = vst.msk [vmem:[%s7848 + $0x111] sm:$0xff] %vm7804, %v7803
      %v7873 = vld [vmem:[#allocation3] sm:$0xff]
      %v7874 = vld [vmem:[#allocation3 + $0x8] sm:$0xff]
      %v7875 = vld [vmem:[#allocation3 + $0x18] sm:$0xff]
      %v7876 = vld [vmem:[#allocation3 + $0x20] sm:$0xff]
      %v7877 = vld [vmem:[#allocation3 + $0x30] sm:$0xff]
      %v7878 = vld [vmem:[#allocation3 + $0x38] sm:$0xff]
      %v7879 = vld [vmem:[#allocation3 + $0x48] sm:$0xff]
      %v7880 = vld [vmem:[#allocation3 + $0x50] sm:$0xff]
      %v7881 = vld [vmem:[#allocation3 + $0x60] sm:$0xff]
      %v7882 = vld [vmem:[#allocation3 + $0x68] sm:$0xff]
      %v7883 = vld [vmem:[#allocation3 + $0x78] sm:$0xff]
      %v7884 = vld [vmem:[#allocation3 + $0x80] sm:$0xff]
      %v7885 = vld [vmem:[#allocation3 + $0x90] sm:$0xff]
      %v7886 = vld [vmem:[#allocation3 + $0x98] sm:$0xff]
      %v7887 = vld [vmem:[#allocation3 + $0xa8] sm:$0xff]
      %v7888 = vld [vmem:[#allocation3 + $0xb0] sm:$0xff]
      %v7889 = vld [vmem:[#allocation3 + $0xc0] sm:$0xff]
      %v7890 = vld [vmem:[#allocation3 + $0xc8] sm:$0xff]
      %v7891 = vld [vmem:[#allocation3 + $0xd8] sm:$0xff]
      %v7892 = vld [vmem:[#allocation3 + $0xe0] sm:$0xff]
      %v7893 = vld [vmem:[#allocation3 + $0xf0] sm:$0xff]
      %v7894 = vld [vmem:[#allocation3 + $0xf8] sm:$0xff]
      %v7895 = vld [vmem:[#allocation3 + $0x108] sm:$0xff]
      %v7896 = vld [vmem:[#allocation3 + $0x110] sm:$0xff]
      %7897 = vst.msk [vmem:[#allocation5] sm:$0xff] %vm7804, %v7873
      %7898 = vst.msk [vmem:[#allocation5 + $0x8] sm:$0xff] %vm7804, %v7874
      %7899 = vst.msk [vmem:[#allocation5 + $0x10] sm:$0xff] %vm7804, %v7875
      %7900 = vst.msk [vmem:[#allocation5 + $0x18] sm:$0xff] %vm7804, %v7876
      %7901 = vst.msk [vmem:[#allocation5 + $0x20] sm:$0xff] %vm7804, %v7877
      %7902 = vst.msk [vmem:[#allocation5 + $0x28] sm:$0xff] %vm7804, %v7878
      %7903 = vst.msk [vmem:[#allocation5 + $0x30] sm:$0xff] %vm7804, %v7879
      %7904 = vst.msk [vmem:[#allocation5 + $0x38] sm:$0xff] %vm7804, %v7880
      %7905 = vst.msk [vmem:[#allocation5 + $0x40] sm:$0xff] %vm7804, %v7881
      %7906 = vst.msk [vmem:[#allocation5 + $0x48] sm:$0xff] %vm7804, %v7882
      %7907 = vst.msk [vmem:[#allocation5 + $0x50] sm:$0xff] %vm7804, %v7883
      %7908 = vst.msk [vmem:[#allocation5 + $0x58] sm:$0xff] %vm7804, %v7884
      %7909 = vst.msk [vmem:[#allocation5 + $0x60] sm:$0xff] %vm7804, %v7885
      %7910 = vst.msk [vmem:[#allocation5 + $0x68] sm:$0xff] %vm7804, %v7886
      %7911 = vst.msk [vmem:[#allocation5 + $0x70] sm:$0xff] %vm7804, %v7887
      %7912 = vst.msk [vmem:[#allocation5 + $0x78] sm:$0xff] %vm7804, %v7888
      %7913 = vst.msk [vmem:[#allocation5 + $0x80] sm:$0xff] %vm7804, %v7889
      %7914 = vst.msk [vmem:[#allocation5 + $0x88] sm:$0xff] %vm7804, %v7890
      %7915 = vst.msk [vmem:[#allocation5 + $0x90] sm:$0xff] %vm7804, %v7891
      %7916 = vst.msk [vmem:[#allocation5 + $0x98] sm:$0xff] %vm7804, %v7892
      %7917 = vst.msk [vmem:[#allocation5 + $0xa0] sm:$0xff] %vm7804, %v7893
      %7918 = vst.msk [vmem:[#allocation5 + $0xa8] sm:$0xff] %vm7804, %v7894
      %7919 = vst.msk [vmem:[#allocation5 + $0xb0] sm:$0xff] %vm7804, %v7895
      %7920 = vst.msk [vmem:[#allocation5 + $0xb8] sm:$0xff] %vm7804, %v7896
      %v7921 = vld [vmem:[%s7848] sm:$0xff]
      %v7922 = vld [vmem:[%s7848 + $0x8] sm:$0xff]
      %v7923 = vld [vmem:[%s7848 + $0x18] sm:$0xff]
      %v7924 = vld [vmem:[%s7848 + $0x20] sm:$0xff]
      %v7925 = vld [vmem:[%s7848 + $0x30] sm:$0xff]
      %v7926 = vld [vmem:[%s7848 + $0x38] sm:$0xff]
      %v7927 = vld [vmem:[%s7848 + $0x48] sm:$0xff]
      %v7928 = vld [vmem:[%s7848 + $0x50] sm:$0xff]
      %v7929 = vld [vmem:[%s7848 + $0x60] sm:$0xff]
      %v7930 = vld [vmem:[%s7848 + $0x68] sm:$0xff]
      %v7931 = vld [vmem:[%s7848 + $0x78] sm:$0xff]
      %v7932 = vld [vmem:[%s7848 + $0x80] sm:$0xff]
      %v7933 = vld [vmem:[%s7848 + $0x90] sm:$0xff]
      %v7934 = vld [vmem:[%s7848 + $0x98] sm:$0xff]
      %v7935 = vld [vmem:[%s7848 + $0xa8] sm:$0xff]
      %v7936 = vld [vmem:[%s7848 + $0xb0] sm:$0xff]
      %v7937 = vld [vmem:[%s7848 + $0xc0] sm:$0xff]
      %v7938 = vld [vmem:[%s7848 + $0xc8] sm:$0xff]
      %v7939 = vld [vmem:[%s7848 + $0xd8] sm:$0xff]
      %v7940 = vld [vmem:[%s7848 + $0xe0] sm:$0xff]
      %v7941 = vld [vmem:[%s7848 + $0xf0] sm:$0xff]
      %v7942 = vld [vmem:[%s7848 + $0xf8] sm:$0xff]
      %v7943 = vld [vmem:[%s7848 + $0x108] sm:$0xff]
      %v7944 = vld [vmem:[%s7848 + $0x110] sm:$0xff]
      %7969 = vrot.lane.b32.xlu0 %v7921, 8
      %v7970 = vpop.permute.xlu0 %7969
      %7971 = vrot.lane.b32.xlu0 %v7922, 8
      %v7972 = vpop.permute.xlu0 %7971
      %7973 = vrot.lane.b32.xlu0 %v7923, 8
      %v7974 = vpop.permute.xlu0 %7973
      %7975 = vrot.lane.b32.xlu0 %v7924, 8
      %v7976 = vpop.permute.xlu0 %7975
      %7977 = vrot.lane.b32.xlu0 %v7925, 8
      %v7978 = vpop.permute.xlu0 %7977
      %7979 = vrot.lane.b32.xlu0 %v7926, 8
      %v7980 = vpop.permute.xlu0 %7979
      %7981 = vrot.lane.b32.xlu0 %v7927, 8
      %v7982 = vpop.permute.xlu0 %7981
      %7983 = vrot.lane.b32.xlu0 %v7928, 8
      %v7984 = vpop.permute.xlu0 %7983
      %7985 = vrot.lane.b32.xlu0 %v7929, 8
      %v7986 = vpop.permute.xlu0 %7985
      %7987 = vrot.lane.b32.xlu0 %v7930, 8
      %v7988 = vpop.permute.xlu0 %7987
      %7989 = vrot.lane.b32.xlu0 %v7931, 8
      %v7990 = vpop.permute.xlu0 %7989
      %7991 = vrot.lane.b32.xlu0 %v7932, 8
      %v7992 = vpop.permute.xlu0 %7991
      %7993 = vrot.lane.b32.xlu0 %v7933, 8
      %v7994 = vpop.permute.xlu0 %7993
      %7995 = vrot.lane.b32.xlu0 %v7934, 8
      %v7996 = vpop.permute.xlu0 %7995
      %7997 = vrot.lane.b32.xlu0 %v7935, 8
      %v7998 = vpop.permute.xlu0 %7997
      %7999 = vrot.lane.b32.xlu0 %v7936, 8
      %v8000 = vpop.permute.xlu0 %7999
      %8001 = vrot.lane.b32.xlu0 %v7937, 8
      %v8002 = vpop.permute.xlu0 %8001
      %8003 = vrot.lane.b32.xlu0 %v7938, 8
      %v8004 = vpop.permute.xlu0 %8003
      %8005 = vrot.lane.b32.xlu0 %v7939, 8
      %v8006 = vpop.permute.xlu0 %8005
      %8007 = vrot.lane.b32.xlu0 %v7940, 8
      %v8008 = vpop.permute.xlu0 %8007
      %8009 = vrot.lane.b32.xlu0 %v7941, 8
      %v8010 = vpop.permute.xlu0 %8009
      %8011 = vrot.lane.b32.xlu0 %v7942, 8
      %v8012 = vpop.permute.xlu0 %8011
      %8013 = vrot.lane.b32.xlu0 %v7943, 8
      %v8014 = vpop.permute.xlu0 %8013
      %8015 = vrot.lane.b32.xlu0 %v7944, 8
      %v8016 = vpop.permute.xlu0 %8015
      %vm8041 = vcmask 130112
      %8042 = vst.msk [vmem:[#allocation5] sm:$0xff] %vm8041, %v7970
      %8043 = vst.msk [vmem:[#allocation5 + $0x8] sm:$0xff] %vm8041, %v7972
      %8044 = vst.msk [vmem:[#allocation5 + $0x10] sm:$0xff] %vm8041, %v7974
      %8045 = vst.msk [vmem:[#allocation5 + $0x18] sm:$0xff] %vm8041, %v7976
      %8046 = vst.msk [vmem:[#allocation5 + $0x20] sm:$0xff] %vm8041, %v7978
      %8047 = vst.msk [vmem:[#allocation5 + $0x28] sm:$0xff] %vm8041, %v7980
      %8048 = vst.msk [vmem:[#allocation5 + $0x30] sm:$0xff] %vm8041, %v7982
      %8049 = vst.msk [vmem:[#allocation5 + $0x38] sm:$0xff] %vm8041, %v7984
      %8050 = vst.msk [vmem:[#allocation5 + $0x40] sm:$0xff] %vm8041, %v7986
      %8051 = vst.msk [vmem:[#allocation5 + $0x48] sm:$0xff] %vm8041, %v7988
      %8052 = vst.msk [vmem:[#allocation5 + $0x50] sm:$0xff] %vm8041, %v7990
      %8053 = vst.msk [vmem:[#allocation5 + $0x58] sm:$0xff] %vm8041, %v7992
      %8054 = vst.msk [vmem:[#allocation5 + $0x60] sm:$0xff] %vm8041, %v7994
      %8055 = vst.msk [vmem:[#allocation5 + $0x68] sm:$0xff] %vm8041, %v7996
      %8056 = vst.msk [vmem:[#allocation5 + $0x70] sm:$0xff] %vm8041, %v7998
      %8057 = vst.msk [vmem:[#allocation5 + $0x78] sm:$0xff] %vm8041, %v8000
      %8058 = vst.msk [vmem:[#allocation5 + $0x80] sm:$0xff] %vm8041, %v8002
      %8059 = vst.msk [vmem:[#allocation5 + $0x88] sm:$0xff] %vm8041, %v8004
      %8060 = vst.msk [vmem:[#allocation5 + $0x90] sm:$0xff] %vm8041, %v8006
      %8061 = vst.msk [vmem:[#allocation5 + $0x98] sm:$0xff] %vm8041, %v8008
      %8062 = vst.msk [vmem:[#allocation5 + $0xa0] sm:$0xff] %vm8041, %v8010
      %8063 = vst.msk [vmem:[#allocation5 + $0xa8] sm:$0xff] %vm8041, %v8012
      %8064 = vst.msk [vmem:[#allocation5 + $0xb0] sm:$0xff] %vm8041, %v8014
      %8065 = vst.msk [vmem:[#allocation5 + $0xb8] sm:$0xff] %vm8041, %v8016
      %s8066 = scalar_lea.vmem [#allocation3], 48
      %v8067 = vld [vmem:[%s8066] sm:$0xff]
      %v8068 = vld [vmem:[%s8066 + $0x8] sm:$0xff]
      %v8069 = vld [vmem:[%s8066 + $0x18] sm:$0xff]
      %v8070 = vld [vmem:[%s8066 + $0x20] sm:$0xff]
      %v8071 = vld [vmem:[%s8066 + $0x30] sm:$0xff]
      %v8072 = vld [vmem:[%s8066 + $0x38] sm:$0xff]
      %v8073 = vld [vmem:[%s8066 + $0x48] sm:$0xff]
      %v8074 = vld [vmem:[%s8066 + $0x50] sm:$0xff]
      %v8075 = vld [vmem:[%s8066 + $0x60] sm:$0xff]
      %v8076 = vld [vmem:[%s8066 + $0x68] sm:$0xff]
      %v8077 = vld [vmem:[%s8066 + $0x78] sm:$0xff]
      %v8078 = vld [vmem:[%s8066 + $0x80] sm:$0xff]
      %v8079 = vld [vmem:[%s8066 + $0x90] sm:$0xff]
      %v8080 = vld [vmem:[%s8066 + $0x98] sm:$0xff]
      %v8081 = vld [vmem:[%s8066 + $0xa8] sm:$0xff]
      %v8082 = vld [vmem:[%s8066 + $0xb0] sm:$0xff]
      %v8083 = vld [vmem:[%s8066 + $0xc0] sm:$0xff]
      %v8084 = vld [vmem:[%s8066 + $0xc8] sm:$0xff]
      %v8085 = vld [vmem:[%s8066 + $0xd8] sm:$0xff]
      %v8086 = vld [vmem:[%s8066 + $0xe0] sm:$0xff]
      %v8087 = vld [vmem:[%s8066 + $0xf0] sm:$0xff]
      %v8088 = vld [vmem:[%s8066 + $0xf8] sm:$0xff]
      %v8089 = vld [vmem:[%s8066 + $0x108] sm:$0xff]
      %v8090 = vld [vmem:[%s8066 + $0x110] sm:$0xff]
      %8115 = vrot.lane.b32.xlu0 %v8067, 16
      %v8116 = vpop.permute.xlu0 %8115
      %8117 = vrot.lane.b32.xlu0 %v8068, 16
      %v8118 = vpop.permute.xlu0 %8117
      %8119 = vrot.lane.b32.xlu0 %v8069, 16
      %v8120 = vpop.permute.xlu0 %8119
      %8121 = vrot.lane.b32.xlu0 %v8070, 16
      %v8122 = vpop.permute.xlu0 %8121
      %8123 = vrot.lane.b32.xlu0 %v8071, 16
      %v8124 = vpop.permute.xlu0 %8123
      %8125 = vrot.lane.b32.xlu0 %v8072, 16
      %v8126 = vpop.permute.xlu0 %8125
      %8127 = vrot.lane.b32.xlu0 %v8073, 16
      %v8128 = vpop.permute.xlu0 %8127
      %8129 = vrot.lane.b32.xlu0 %v8074, 16
      %v8130 = vpop.permute.xlu0 %8129
      %8131 = vrot.lane.b32.xlu0 %v8075, 16
      %v8132 = vpop.permute.xlu0 %8131
      %8133 = vrot.lane.b32.xlu0 %v8076, 16
      %v8134 = vpop.permute.xlu0 %8133
      %8135 = vrot.lane.b32.xlu0 %v8077, 16
      %v8136 = vpop.permute.xlu0 %8135
      %8137 = vrot.lane.b32.xlu0 %v8078, 16
      %v8138 = vpop.permute.xlu0 %8137
      %8139 = vrot.lane.b32.xlu0 %v8079, 16
      %v8140 = vpop.permute.xlu0 %8139
      %8141 = vrot.lane.b32.xlu0 %v8080, 16
      %v8142 = vpop.permute.xlu0 %8141
      %8143 = vrot.lane.b32.xlu0 %v8081, 16
      %v8144 = vpop.permute.xlu0 %8143
      %8145 = vrot.lane.b32.xlu0 %v8082, 16
      %v8146 = vpop.permute.xlu0 %8145
      %8147 = vrot.lane.b32.xlu0 %v8083, 16
      %v8148 = vpop.permute.xlu0 %8147
      %8149 = vrot.lane.b32.xlu0 %v8084, 16
      %v8150 = vpop.permute.xlu0 %8149
      %8151 = vrot.lane.b32.xlu0 %v8085, 16
      %v8152 = vpop.permute.xlu0 %8151
      %8153 = vrot.lane.b32.xlu0 %v8086, 16
      %v8154 = vpop.permute.xlu0 %8153
      %8155 = vrot.lane.b32.xlu0 %v8087, 16
      %v8156 = vpop.permute.xlu0 %8155
      %8157 = vrot.lane.b32.xlu0 %v8088, 16
      %v8158 = vpop.permute.xlu0 %8157
      %8159 = vrot.lane.b32.xlu0 %v8089, 16
      %v8160 = vpop.permute.xlu0 %8159
      %8161 = vrot.lane.b32.xlu0 %v8090, 16
      %v8162 = vpop.permute.xlu0 %8161
      %vm8187 = vcmask 195712
      %8188 = vst.msk [vmem:[#allocation5] sm:$0xff] %vm8187, %v8116
      %8189 = vst.msk [vmem:[#allocation5 + $0x8] sm:$0xff] %vm8187, %v8118
      %8190 = vst.msk [vmem:[#allocation5 + $0x10] sm:$0xff] %vm8187, %v8120
      %8191 = vst.msk [vmem:[#allocation5 + $0x18] sm:$0xff] %vm8187, %v8122
      %8192 = vst.msk [vmem:[#allocation5 + $0x20] sm:$0xff] %vm8187, %v8124
      %8193 = vst.msk [vmem:[#allocation5 + $0x28] sm:$0xff] %vm8187, %v8126
      %8194 = vst.msk [vmem:[#allocation5 + $0x30] sm:$0xff] %vm8187, %v8128
      %8195 = vst.msk [vmem:[#allocation5 + $0x38] sm:$0xff] %vm8187, %v8130
      %8196 = vst.msk [vmem:[#allocation5 + $0x40] sm:$0xff] %vm8187, %v8132
      %8197 = vst.msk [vmem:[#allocation5 + $0x48] sm:$0xff] %vm8187, %v8134
      %8198 = vst.msk [vmem:[#allocation5 + $0x50] sm:$0xff] %vm8187, %v8136
      %8199 = vst.msk [vmem:[#allocation5 + $0x58] sm:$0xff] %vm8187, %v8138
      %8200 = vst.msk [vmem:[#allocation5 + $0x60] sm:$0xff] %vm8187, %v8140
      %8201 = vst.msk [vmem:[#allocation5 + $0x68] sm:$0xff] %vm8187, %v8142
      %8202 = vst.msk [vmem:[#allocation5 + $0x70] sm:$0xff] %vm8187, %v8144
      %8203 = vst.msk [vmem:[#allocation5 + $0x78] sm:$0xff] %vm8187, %v8146
      %8204 = vst.msk [vmem:[#allocation5 + $0x80] sm:$0xff] %vm8187, %v8148
      %8205 = vst.msk [vmem:[#allocation5 + $0x88] sm:$0xff] %vm8187, %v8150
      %8206 = vst.msk [vmem:[#allocation5 + $0x90] sm:$0xff] %vm8187, %v8152
      %8207 = vst.msk [vmem:[#allocation5 + $0x98] sm:$0xff] %vm8187, %v8154
      %8208 = vst.msk [vmem:[#allocation5 + $0xa0] sm:$0xff] %vm8187, %v8156
      %8209 = vst.msk [vmem:[#allocation5 + $0xa8] sm:$0xff] %vm8187, %v8158
      %8210 = vst.msk [vmem:[#allocation5 + $0xb0] sm:$0xff] %vm8187, %v8160
      %8211 = vst.msk [vmem:[#allocation5 + $0xb8] sm:$0xff] %vm8187, %v8162
      %v8212 = vld [vmem:[#allocation3 + $0x1] sm:$0xff]
      %v8213 = vld [vmem:[#allocation3 + $0x9] sm:$0xff]
      %v8214 = vld [vmem:[#allocation3 + $0x19] sm:$0xff]
      %v8215 = vld [vmem:[#allocation3 + $0x21] sm:$0xff]
      %v8216 = vld [vmem:[#allocation3 + $0x31] sm:$0xff]
      %v8217 = vld [vmem:[#allocation3 + $0x39] sm:$0xff]
      %v8218 = vld [vmem:[#allocation3 + $0x49] sm:$0xff]
      %v8219 = vld [vmem:[#allocation3 + $0x51] sm:$0xff]
      %v8220 = vld [vmem:[#allocation3 + $0x61] sm:$0xff]
      %v8221 = vld [vmem:[#allocation3 + $0x69] sm:$0xff]
      %v8222 = vld [vmem:[#allocation3 + $0x79] sm:$0xff]
      %v8223 = vld [vmem:[#allocation3 + $0x81] sm:$0xff]
      %v8224 = vld [vmem:[#allocation3 + $0x91] sm:$0xff]
      %v8225 = vld [vmem:[#allocation3 + $0x99] sm:$0xff]
      %v8226 = vld [vmem:[#allocation3 + $0xa9] sm:$0xff]
      %v8227 = vld [vmem:[#allocation3 + $0xb1] sm:$0xff]
      %v8228 = vld [vmem:[#allocation3 + $0xc1] sm:$0xff]
      %v8229 = vld [vmem:[#allocation3 + $0xc9] sm:$0xff]
      %v8230 = vld [vmem:[#allocation3 + $0xd9] sm:$0xff]
      %v8231 = vld [vmem:[#allocation3 + $0xe1] sm:$0xff]
      %v8232 = vld [vmem:[#allocation3 + $0xf1] sm:$0xff]
      %v8233 = vld [vmem:[#allocation3 + $0xf9] sm:$0xff]
      %v8234 = vld [vmem:[#allocation3 + $0x109] sm:$0xff]
      %v8235 = vld [vmem:[#allocation3 + $0x111] sm:$0xff]
      %8260 = vrot.lane.b32.xlu0 %v8212, 24
      %v8261 = vpop.permute.xlu0 %8260
      %8262 = vrot.lane.b32.xlu0 %v8213, 24
      %v8263 = vpop.permute.xlu0 %8262
      %8264 = vrot.lane.b32.xlu0 %v8214, 24
      %v8265 = vpop.permute.xlu0 %8264
      %8266 = vrot.lane.b32.xlu0 %v8215, 24
      %v8267 = vpop.permute.xlu0 %8266
      %8268 = vrot.lane.b32.xlu0 %v8216, 24
      %v8269 = vpop.permute.xlu0 %8268
      %8270 = vrot.lane.b32.xlu0 %v8217, 24
      %v8271 = vpop.permute.xlu0 %8270
      %8272 = vrot.lane.b32.xlu0 %v8218, 24
      %v8273 = vpop.permute.xlu0 %8272
      %8274 = vrot.lane.b32.xlu0 %v8219, 24
      %v8275 = vpop.permute.xlu0 %8274
      %8276 = vrot.lane.b32.xlu0 %v8220, 24
      %v8277 = vpop.permute.xlu0 %8276
      %8278 = vrot.lane.b32.xlu0 %v8221, 24
      %v8279 = vpop.permute.xlu0 %8278
      %8280 = vrot.lane.b32.xlu0 %v8222, 24
      %v8281 = vpop.permute.xlu0 %8280
      %8282 = vrot.lane.b32.xlu0 %v8223, 24
      %v8283 = vpop.permute.xlu0 %8282
      %8284 = vrot.lane.b32.xlu0 %v8224, 24
      %v8285 = vpop.permute.xlu0 %8284
      %8286 = vrot.lane.b32.xlu0 %v8225, 24
      %v8287 = vpop.permute.xlu0 %8286
      %8288 = vrot.lane.b32.xlu0 %v8226, 24
      %v8289 = vpop.permute.xlu0 %8288
      %8290 = vrot.lane.b32.xlu0 %v8227, 24
      %v8291 = vpop.permute.xlu0 %8290
      %8292 = vrot.lane.b32.xlu0 %v8228, 24
      %v8293 = vpop.permute.xlu0 %8292
      %8294 = vrot.lane.b32.xlu0 %v8229, 24
      %v8295 = vpop.permute.xlu0 %8294
      %8296 = vrot.lane.b32.xlu0 %v8230, 24
      %v8297 = vpop.permute.xlu0 %8296
      %8298 = vrot.lane.b32.xlu0 %v8231, 24
      %v8299 = vpop.permute.xlu0 %8298
      %8300 = vrot.lane.b32.xlu0 %v8232, 24
      %v8301 = vpop.permute.xlu0 %8300
      %8302 = vrot.lane.b32.xlu0 %v8233, 24
      %v8303 = vpop.permute.xlu0 %8302
      %8304 = vrot.lane.b32.xlu0 %v8234, 24
      %v8305 = vpop.permute.xlu0 %8304
      %8306 = vrot.lane.b32.xlu0 %v8235, 24
      %v8307 = vpop.permute.xlu0 %8306
      %vm8332 = vcmask 261312
      %8333 = vst.msk [vmem:[#allocation5] sm:$0xff] %vm8332, %v8261
      %8334 = vst.msk [vmem:[#allocation5 + $0x8] sm:$0xff] %vm8332, %v8263
      %8335 = vst.msk [vmem:[#allocation5 + $0x10] sm:$0xff] %vm8332, %v8265
      %8336 = vst.msk [vmem:[#allocation5 + $0x18] sm:$0xff] %vm8332, %v8267
      %8337 = vst.msk [vmem:[#allocation5 + $0x20] sm:$0xff] %vm8332, %v8269
      %8338 = vst.msk [vmem:[#allocation5 + $0x28] sm:$0xff] %vm8332, %v8271
      %8339 = vst.msk [vmem:[#allocation5 + $0x30] sm:$0xff] %vm8332, %v8273
      %8340 = vst.msk [vmem:[#allocation5 + $0x38] sm:$0xff] %vm8332, %v8275
      %8341 = vst.msk [vmem:[#allocation5 + $0x40] sm:$0xff] %vm8332, %v8277
      %8342 = vst.msk [vmem:[#allocation5 + $0x48] sm:$0xff] %vm8332, %v8279
      %8343 = vst.msk [vmem:[#allocation5 + $0x50] sm:$0xff] %vm8332, %v8281
      %8344 = vst.msk [vmem:[#allocation5 + $0x58] sm:$0xff] %vm8332, %v8283
      %8345 = vst.msk [vmem:[#allocation5 + $0x60] sm:$0xff] %vm8332, %v8285
      %8346 = vst.msk [vmem:[#allocation5 + $0x68] sm:$0xff] %vm8332, %v8287
      %8347 = vst.msk [vmem:[#allocation5 + $0x70] sm:$0xff] %vm8332, %v8289
      %8348 = vst.msk [vmem:[#allocation5 + $0x78] sm:$0xff] %vm8332, %v8291
      %8349 = vst.msk [vmem:[#allocation5 + $0x80] sm:$0xff] %vm8332, %v8293
      %8350 = vst.msk [vmem:[#allocation5 + $0x88] sm:$0xff] %vm8332, %v8295
      %8351 = vst.msk [vmem:[#allocation5 + $0x90] sm:$0xff] %vm8332, %v8297
      %8352 = vst.msk [vmem:[#allocation5 + $0x98] sm:$0xff] %vm8332, %v8299
      %8353 = vst.msk [vmem:[#allocation5 + $0xa0] sm:$0xff] %vm8332, %v8301
      %8354 = vst.msk [vmem:[#allocation5 + $0xa8] sm:$0xff] %vm8332, %v8303
      %8355 = vst.msk [vmem:[#allocation5 + $0xb0] sm:$0xff] %vm8332, %v8305
      %8356 = vst.msk [vmem:[#allocation5 + $0xb8] sm:$0xff] %vm8332, %v8307
      %v8357 = vld [vmem:[%s7848 + $0x1] sm:$0xff]
      %v8358 = vld [vmem:[%s7848 + $0x9] sm:$0xff]
      %v8359 = vld [vmem:[%s7848 + $0x19] sm:$0xff]
      %v8360 = vld [vmem:[%s7848 + $0x21] sm:$0xff]
      %v8361 = vld [vmem:[%s7848 + $0x31] sm:$0xff]
      %v8362 = vld [vmem:[%s7848 + $0x39] sm:$0xff]
      %v8363 = vld [vmem:[%s7848 + $0x49] sm:$0xff]
      %v8364 = vld [vmem:[%s7848 + $0x51] sm:$0xff]
      %v8365 = vld [vmem:[%s7848 + $0x61] sm:$0xff]
      %v8366 = vld [vmem:[%s7848 + $0x69] sm:$0xff]
      %v8367 = vld [vmem:[%s7848 + $0x79] sm:$0xff]
      %v8368 = vld [vmem:[%s7848 + $0x81] sm:$0xff]
      %v8369 = vld [vmem:[%s7848 + $0x91] sm:$0xff]
      %v8370 = vld [vmem:[%s7848 + $0x99] sm:$0xff]
      %v8371 = vld [vmem:[%s7848 + $0xa9] sm:$0xff]
      %v8372 = vld [vmem:[%s7848 + $0xb1] sm:$0xff]
      %v8373 = vld [vmem:[%s7848 + $0xc1] sm:$0xff]
      %v8374 = vld [vmem:[%s7848 + $0xc9] sm:$0xff]
      %v8375 = vld [vmem:[%s7848 + $0xd9] sm:$0xff]
      %v8376 = vld [vmem:[%s7848 + $0xe1] sm:$0xff]
      %v8377 = vld [vmem:[%s7848 + $0xf1] sm:$0xff]
      %v8378 = vld [vmem:[%s7848 + $0xf9] sm:$0xff]
      %v8379 = vld [vmem:[%s7848 + $0x109] sm:$0xff]
      %v8380 = vld [vmem:[%s7848 + $0x111] sm:$0xff]
      %8405 = vrot.lane.b32.xlu0 %v8357, 32
      %v8406 = vpop.permute.xlu0 %8405
      %8407 = vrot.lane.b32.xlu0 %v8358, 32
      %v8408 = vpop.permute.xlu0 %8407
      %8409 = vrot.lane.b32.xlu0 %v8359, 32
      %v8410 = vpop.permute.xlu0 %8409
      %8411 = vrot.lane.b32.xlu0 %v8360, 32
      %v8412 = vpop.permute.xlu0 %8411
      %8413 = vrot.lane.b32.xlu0 %v8361, 32
      %v8414 = vpop.permute.xlu0 %8413
      %8415 = vrot.lane.b32.xlu0 %v8362, 32
      %v8416 = vpop.permute.xlu0 %8415
      %8417 = vrot.lane.b32.xlu0 %v8363, 32
      %v8418 = vpop.permute.xlu0 %8417
      %8419 = vrot.lane.b32.xlu0 %v8364, 32
      %v8420 = vpop.permute.xlu0 %8419
      %8421 = vrot.lane.b32.xlu0 %v8365, 32
      %v8422 = vpop.permute.xlu0 %8421
      %8423 = vrot.lane.b32.xlu0 %v8366, 32
      %v8424 = vpop.permute.xlu0 %8423
      %8425 = vrot.lane.b32.xlu0 %v8367, 32
      %v8426 = vpop.permute.xlu0 %8425
      %8427 = vrot.lane.b32.xlu0 %v8368, 32
      %v8428 = vpop.permute.xlu0 %8427
      %8429 = vrot.lane.b32.xlu0 %v8369, 32
      %v8430 = vpop.permute.xlu0 %8429
      %8431 = vrot.lane.b32.xlu0 %v8370, 32
      %v8432 = vpop.permute.xlu0 %8431
      %8433 = vrot.lane.b32.xlu0 %v8371, 32
      %v8434 = vpop.permute.xlu0 %8433
      %8435 = vrot.lane.b32.xlu0 %v8372, 32
      %v8436 = vpop.permute.xlu0 %8435
      %8437 = vrot.lane.b32.xlu0 %v8373, 32
      %v8438 = vpop.permute.xlu0 %8437
      %8439 = vrot.lane.b32.xlu0 %v8374, 32
      %v8440 = vpop.permute.xlu0 %8439
      %8441 = vrot.lane.b32.xlu0 %v8375, 32
      %v8442 = vpop.permute.xlu0 %8441
      %8443 = vrot.lane.b32.xlu0 %v8376, 32
      %v8444 = vpop.permute.xlu0 %8443
      %8445 = vrot.lane.b32.xlu0 %v8377, 32
      %v8446 = vpop.permute.xlu0 %8445
      %8447 = vrot.lane.b32.xlu0 %v8378, 32
      %v8448 = vpop.permute.xlu0 %8447
      %8449 = vrot.lane.b32.xlu0 %v8379, 32
      %v8450 = vpop.permute.xlu0 %8449
      %8451 = vrot.lane.b32.xlu0 %v8380, 32
      %v8452 = vpop.permute.xlu0 %8451
      %vm8477 = vcmask 326912
      %8478 = vst.msk [vmem:[#allocation5] sm:$0xff] %vm8477, %v8406
      %8479 = vst.msk [vmem:[#allocation5 + $0x8] sm:$0xff] %vm8477, %v8408
      %8480 = vst.msk [vmem:[#allocation5 + $0x10] sm:$0xff] %vm8477, %v8410
      %8481 = vst.msk [vmem:[#allocation5 + $0x18] sm:$0xff] %vm8477, %v8412
      %8482 = vst.msk [vmem:[#allocation5 + $0x20] sm:$0xff] %vm8477, %v8414
      %8483 = vst.msk [vmem:[#allocation5 + $0x28] sm:$0xff] %vm8477, %v8416
      %8484 = vst.msk [vmem:[#allocation5 + $0x30] sm:$0xff] %vm8477, %v8418
      %8485 = vst.msk [vmem:[#allocation5 + $0x38] sm:$0xff] %vm8477, %v8420
      %8486 = vst.msk [vmem:[#allocation5 + $0x40] sm:$0xff] %vm8477, %v8422
      %8487 = vst.msk [vmem:[#allocation5 + $0x48] sm:$0xff] %vm8477, %v8424
      %8488 = vst.msk [vmem:[#allocation5 + $0x50] sm:$0xff] %vm8477, %v8426
      %8489 = vst.msk [vmem:[#allocation5 + $0x58] sm:$0xff] %vm8477, %v8428
      %8490 = vst.msk [vmem:[#allocation5 + $0x60] sm:$0xff] %vm8477, %v8430
      %8491 = vst.msk [vmem:[#allocation5 + $0x68] sm:$0xff] %vm8477, %v8432
      %8492 = vst.msk [vmem:[#allocation5 + $0x70] sm:$0xff] %vm8477, %v8434
      %8493 = vst.msk [vmem:[#allocation5 + $0x78] sm:$0xff] %vm8477, %v8436
      %8494 = vst.msk [vmem:[#allocation5 + $0x80] sm:$0xff] %vm8477, %v8438
      %8495 = vst.msk [vmem:[#allocation5 + $0x88] sm:$0xff] %vm8477, %v8440
      %8496 = vst.msk [vmem:[#allocation5 + $0x90] sm:$0xff] %vm8477, %v8442
      %8497 = vst.msk [vmem:[#allocation5 + $0x98] sm:$0xff] %vm8477, %v8444
      %8498 = vst.msk [vmem:[#allocation5 + $0xa0] sm:$0xff] %vm8477, %v8446
      %8499 = vst.msk [vmem:[#allocation5 + $0xa8] sm:$0xff] %vm8477, %v8448
      %8500 = vst.msk [vmem:[#allocation5 + $0xb0] sm:$0xff] %vm8477, %v8450
      %8501 = vst.msk [vmem:[#allocation5 + $0xb8] sm:$0xff] %vm8477, %v8452
      %v8502 = vld [vmem:[%s8066 + $0x1] sm:$0xff]
      %v8503 = vld [vmem:[%s8066 + $0x9] sm:$0xff]
      %v8504 = vld [vmem:[%s8066 + $0x19] sm:$0xff]
      %v8505 = vld [vmem:[%s8066 + $0x21] sm:$0xff]
      %v8506 = vld [vmem:[%s8066 + $0x31] sm:$0xff]
      %v8507 = vld [vmem:[%s8066 + $0x39] sm:$0xff]
      %v8508 = vld [vmem:[%s8066 + $0x49] sm:$0xff]
      %v8509 = vld [vmem:[%s8066 + $0x51] sm:$0xff]
      %v8510 = vld [vmem:[%s8066 + $0x61] sm:$0xff]
      %v8511 = vld [vmem:[%s8066 + $0x69] sm:$0xff]
      %v8512 = vld [vmem:[%s8066 + $0x79] sm:$0xff]
      %v8513 = vld [vmem:[%s8066 + $0x81] sm:$0xff]
      %v8514 = vld [vmem:[%s8066 + $0x91] sm:$0xff]
      %v8515 = vld [vmem:[%s8066 + $0x99] sm:$0xff]
      %v8516 = vld [vmem:[%s8066 + $0xa9] sm:$0xff]
      %v8517 = vld [vmem:[%s8066 + $0xb1] sm:$0xff]
      %v8518 = vld [vmem:[%s8066 + $0xc1] sm:$0xff]
      %v8519 = vld [vmem:[%s8066 + $0xc9] sm:$0xff]
      %v8520 = vld [vmem:[%s8066 + $0xd9] sm:$0xff]
      %v8521 = vld [vmem:[%s8066 + $0xe1] sm:$0xff]
      %v8522 = vld [vmem:[%s8066 + $0xf1] sm:$0xff]
      %v8523 = vld [vmem:[%s8066 + $0xf9] sm:$0xff]
      %v8524 = vld [vmem:[%s8066 + $0x109] sm:$0xff]
      %v8525 = vld [vmem:[%s8066 + $0x111] sm:$0xff]
      %8550 = vrot.lane.b32.xlu0 %v8502, 40
      %v8551 = vpop.permute.xlu0 %8550
      %8552 = vrot.lane.b32.xlu0 %v8503, 40
      %v8553 = vpop.permute.xlu0 %8552
      %8554 = vrot.lane.b32.xlu0 %v8504, 40
      %v8555 = vpop.permute.xlu0 %8554
      %8556 = vrot.lane.b32.xlu0 %v8505, 40
      %v8557 = vpop.permute.xlu0 %8556
      %8558 = vrot.lane.b32.xlu0 %v8506, 40
      %v8559 = vpop.permute.xlu0 %8558
      %8560 = vrot.lane.b32.xlu0 %v8507, 40
      %v8561 = vpop.permute.xlu0 %8560
      %8562 = vrot.lane.b32.xlu0 %v8508, 40
      %v8563 = vpop.permute.xlu0 %8562
      %8564 = vrot.lane.b32.xlu0 %v8509, 40
      %v8565 = vpop.permute.xlu0 %8564
      %8566 = vrot.lane.b32.xlu0 %v8510, 40
      %v8567 = vpop.permute.xlu0 %8566
      %8568 = vrot.lane.b32.xlu0 %v8511, 40
      %v8569 = vpop.permute.xlu0 %8568
      %8570 = vrot.lane.b32.xlu0 %v8512, 40
      %v8571 = vpop.permute.xlu0 %8570
      %8572 = vrot.lane.b32.xlu0 %v8513, 40
      %v8573 = vpop.permute.xlu0 %8572
      %8574 = vrot.lane.b32.xlu0 %v8514, 40
      %v8575 = vpop.permute.xlu0 %8574
      %8576 = vrot.lane.b32.xlu0 %v8515, 40
      %v8577 = vpop.permute.xlu0 %8576
      %8578 = vrot.lane.b32.xlu0 %v8516, 40
      %v8579 = vpop.permute.xlu0 %8578
      %8580 = vrot.lane.b32.xlu0 %v8517, 40
      %v8581 = vpop.permute.xlu0 %8580
      %8582 = vrot.lane.b32.xlu0 %v8518, 40
      %v8583 = vpop.permute.xlu0 %8582
      %8584 = vrot.lane.b32.xlu0 %v8519, 40
      %v8585 = vpop.permute.xlu0 %8584
      %8586 = vrot.lane.b32.xlu0 %v8520, 40
      %v8587 = vpop.permute.xlu0 %8586
      %8588 = vrot.lane.b32.xlu0 %v8521, 40
      %v8589 = vpop.permute.xlu0 %8588
      %8590 = vrot.lane.b32.xlu0 %v8522, 40
      %v8591 = vpop.permute.xlu0 %8590
      %8592 = vrot.lane.b32.xlu0 %v8523, 40
      %v8593 = vpop.permute.xlu0 %8592
      %8594 = vrot.lane.b32.xlu0 %v8524, 40
      %v8595 = vpop.permute.xlu0 %8594
      %8596 = vrot.lane.b32.xlu0 %v8525, 40
      %v8597 = vpop.permute.xlu0 %8596
      %vm8622 = vcmask 392512
      %8623 = vst.msk [vmem:[#allocation5] sm:$0xff] %vm8622, %v8551
      %8624 = vst.msk [vmem:[#allocation5 + $0x8] sm:$0xff] %vm8622, %v8553
      %8625 = vst.msk [vmem:[#allocation5 + $0x10] sm:$0xff] %vm8622, %v8555
      %8626 = vst.msk [vmem:[#allocation5 + $0x18] sm:$0xff] %vm8622, %v8557
      %8627 = vst.msk [vmem:[#allocation5 + $0x20] sm:$0xff] %vm8622, %v8559
      %8628 = vst.msk [vmem:[#allocation5 + $0x28] sm:$0xff] %vm8622, %v8561
      %8629 = vst.msk [vmem:[#allocation5 + $0x30] sm:$0xff] %vm8622, %v8563
      %8630 = vst.msk [vmem:[#allocation5 + $0x38] sm:$0xff] %vm8622, %v8565
      %8631 = vst.msk [vmem:[#allocation5 + $0x40] sm:$0xff] %vm8622, %v8567
      %8632 = vst.msk [vmem:[#allocation5 + $0x48] sm:$0xff] %vm8622, %v8569
      %8633 = vst.msk [vmem:[#allocation5 + $0x50] sm:$0xff] %vm8622, %v8571
      %8634 = vst.msk [vmem:[#allocation5 + $0x58] sm:$0xff] %vm8622, %v8573
      %8635 = vst.msk [vmem:[#allocation5 + $0x60] sm:$0xff] %vm8622, %v8575
      %8636 = vst.msk [vmem:[#allocation5 + $0x68] sm:$0xff] %vm8622, %v8577
      %8637 = vst.msk [vmem:[#allocation5 + $0x70] sm:$0xff] %vm8622, %v8579
      %8638 = vst.msk [vmem:[#allocation5 + $0x78] sm:$0xff] %vm8622, %v8581
      %8639 = vst.msk [vmem:[#allocation5 + $0x80] sm:$0xff] %vm8622, %v8583
      %8640 = vst.msk [vmem:[#allocation5 + $0x88] sm:$0xff] %vm8622, %v8585
      %8641 = vst.msk [vmem:[#allocation5 + $0x90] sm:$0xff] %vm8622, %v8587
      %8642 = vst.msk [vmem:[#allocation5 + $0x98] sm:$0xff] %vm8622, %v8589
      %8643 = vst.msk [vmem:[#allocation5 + $0xa0] sm:$0xff] %vm8622, %v8591
      %8644 = vst.msk [vmem:[#allocation5 + $0xa8] sm:$0xff] %vm8622, %v8593
      %8645 = vst.msk [vmem:[#allocation5 + $0xb0] sm:$0xff] %vm8622, %v8595
      %8646 = vst.msk [vmem:[#allocation5 + $0xb8] sm:$0xff] %vm8622, %v8597
      %v8647 = vld [vmem:[#allocation3 + $0x2] sm:$0xff]
      %v8648 = vld [vmem:[#allocation3 + $0xa] sm:$0xff]
      %v8649 = vld [vmem:[#allocation3 + $0x1a] sm:$0xff]
      %v8650 = vld [vmem:[#allocation3 + $0x22] sm:$0xff]
      %v8651 = vld [vmem:[#allocation3 + $0x32] sm:$0xff]
      %v8652 = vld [vmem:[#allocation3 + $0x3a] sm:$0xff]
      %v8653 = vld [vmem:[#allocation3 + $0x4a] sm:$0xff]
      %v8654 = vld [vmem:[#allocation3 + $0x52] sm:$0xff]
      %v8655 = vld [vmem:[#allocation3 + $0x62] sm:$0xff]
      %v8656 = vld [vmem:[#allocation3 + $0x6a] sm:$0xff]
      %v8657 = vld [vmem:[#allocation3 + $0x7a] sm:$0xff]
      %v8658 = vld [vmem:[#allocation3 + $0x82] sm:$0xff]
      %v8659 = vld [vmem:[#allocation3 + $0x92] sm:$0xff]
      %v8660 = vld [vmem:[#allocation3 + $0x9a] sm:$0xff]
      %v8661 = vld [vmem:[#allocation3 + $0xaa] sm:$0xff]
      %v8662 = vld [vmem:[#allocation3 + $0xb2] sm:$0xff]
      %v8663 = vld [vmem:[#allocation3 + $0xc2] sm:$0xff]
      %v8664 = vld [vmem:[#allocation3 + $0xca] sm:$0xff]
      %v8665 = vld [vmem:[#allocation3 + $0xda] sm:$0xff]
      %v8666 = vld [vmem:[#allocation3 + $0xe2] sm:$0xff]
      %v8667 = vld [vmem:[#allocation3 + $0xf2] sm:$0xff]
      %v8668 = vld [vmem:[#allocation3 + $0xfa] sm:$0xff]
      %v8669 = vld [vmem:[#allocation3 + $0x10a] sm:$0xff]
      %v8670 = vld [vmem:[#allocation3 + $0x112] sm:$0xff]
      %8695 = vrot.lane.b32.xlu0 %v8647, 48
      %v8696 = vpop.permute.xlu0 %8695
      %8697 = vrot.lane.b32.xlu0 %v8648, 48
      %v8698 = vpop.permute.xlu0 %8697
      %8699 = vrot.lane.b32.xlu0 %v8649, 48
      %v8700 = vpop.permute.xlu0 %8699
      %8701 = vrot.lane.b32.xlu0 %v8650, 48
      %v8702 = vpop.permute.xlu0 %8701
      %8703 = vrot.lane.b32.xlu0 %v8651, 48
      %v8704 = vpop.permute.xlu0 %8703
      %8705 = vrot.lane.b32.xlu0 %v8652, 48
      %v8706 = vpop.permute.xlu0 %8705
      %8707 = vrot.lane.b32.xlu0 %v8653, 48
      %v8708 = vpop.permute.xlu0 %8707
      %8709 = vrot.lane.b32.xlu0 %v8654, 48
      %v8710 = vpop.permute.xlu0 %8709
      %8711 = vrot.lane.b32.xlu0 %v8655, 48
      %v8712 = vpop.permute.xlu0 %8711
      %8713 = vrot.lane.b32.xlu0 %v8656, 48
      %v8714 = vpop.permute.xlu0 %8713
      %8715 = vrot.lane.b32.xlu0 %v8657, 48
      %v8716 = vpop.permute.xlu0 %8715
      %8717 = vrot.lane.b32.xlu0 %v8658, 48
      %v8718 = vpop.permute.xlu0 %8717
      %8719 = vrot.lane.b32.xlu0 %v8659, 48
      %v8720 = vpop.permute.xlu0 %8719
      %8721 = vrot.lane.b32.xlu0 %v8660, 48
      %v8722 = vpop.permute.xlu0 %8721
      %8723 = vrot.lane.b32.xlu0 %v8661, 48
      %v8724 = vpop.permute.xlu0 %8723
      %8725 = vrot.lane.b32.xlu0 %v8662, 48
      %v8726 = vpop.permute.xlu0 %8725
      %8727 = vrot.lane.b32.xlu0 %v8663, 48
      %v8728 = vpop.permute.xlu0 %8727
      %8729 = vrot.lane.b32.xlu0 %v8664, 48
      %v8730 = vpop.permute.xlu0 %8729
      %8731 = vrot.lane.b32.xlu0 %v8665, 48
      %v8732 = vpop.permute.xlu0 %8731
      %8733 = vrot.lane.b32.xlu0 %v8666, 48
      %v8734 = vpop.permute.xlu0 %8733
      %8735 = vrot.lane.b32.xlu0 %v8667, 48
      %v8736 = vpop.permute.xlu0 %8735
      %8737 = vrot.lane.b32.xlu0 %v8668, 48
      %v8738 = vpop.permute.xlu0 %8737
      %8739 = vrot.lane.b32.xlu0 %v8669, 48
      %v8740 = vpop.permute.xlu0 %8739
      %8741 = vrot.lane.b32.xlu0 %v8670, 48
      %v8742 = vpop.permute.xlu0 %8741
      %vm8767 = vcmask 458112
      %8768 = vst.msk [vmem:[#allocation5] sm:$0xff] %vm8767, %v8696
      %8769 = vst.msk [vmem:[#allocation5 + $0x8] sm:$0xff] %vm8767, %v8698
      %8770 = vst.msk [vmem:[#allocation5 + $0x10] sm:$0xff] %vm8767, %v8700
      %8771 = vst.msk [vmem:[#allocation5 + $0x18] sm:$0xff] %vm8767, %v8702
      %8772 = vst.msk [vmem:[#allocation5 + $0x20] sm:$0xff] %vm8767, %v8704
      %8773 = vst.msk [vmem:[#allocation5 + $0x28] sm:$0xff] %vm8767, %v8706
      %8774 = vst.msk [vmem:[#allocation5 + $0x30] sm:$0xff] %vm8767, %v8708
      %8775 = vst.msk [vmem:[#allocation5 + $0x38] sm:$0xff] %vm8767, %v8710
      %8776 = vst.msk [vmem:[#allocation5 + $0x40] sm:$0xff] %vm8767, %v8712
      %8777 = vst.msk [vmem:[#allocation5 + $0x48] sm:$0xff] %vm8767, %v8714
      %8778 = vst.msk [vmem:[#allocation5 + $0x50] sm:$0xff] %vm8767, %v8716
      %8779 = vst.msk [vmem:[#allocation5 + $0x58] sm:$0xff] %vm8767, %v8718
      %8780 = vst.msk [vmem:[#allocation5 + $0x60] sm:$0xff] %vm8767, %v8720
      %8781 = vst.msk [vmem:[#allocation5 + $0x68] sm:$0xff] %vm8767, %v8722
      %8782 = vst.msk [vmem:[#allocation5 + $0x70] sm:$0xff] %vm8767, %v8724
      %8783 = vst.msk [vmem:[#allocation5 + $0x78] sm:$0xff] %vm8767, %v8726
      %8784 = vst.msk [vmem:[#allocation5 + $0x80] sm:$0xff] %vm8767, %v8728
      %8785 = vst.msk [vmem:[#allocation5 + $0x88] sm:$0xff] %vm8767, %v8730
      %8786 = vst.msk [vmem:[#allocation5 + $0x90] sm:$0xff] %vm8767, %v8732
      %8787 = vst.msk [vmem:[#allocation5 + $0x98] sm:$0xff] %vm8767, %v8734
      %8788 = vst.msk [vmem:[#allocation5 + $0xa0] sm:$0xff] %vm8767, %v8736
      %8789 = vst.msk [vmem:[#allocation5 + $0xa8] sm:$0xff] %vm8767, %v8738
      %8790 = vst.msk [vmem:[#allocation5 + $0xb0] sm:$0xff] %vm8767, %v8740
      %8791 = vst.msk [vmem:[#allocation5 + $0xb8] sm:$0xff] %vm8767, %v8742
      %v8792 = vld [vmem:[%s7848 + $0x2] sm:$0xff]
      %v8793 = vld [vmem:[%s7848 + $0xa] sm:$0xff]
      %v8794 = vld [vmem:[%s7848 + $0x1a] sm:$0xff]
      %v8795 = vld [vmem:[%s7848 + $0x22] sm:$0xff]
      %v8796 = vld [vmem:[%s7848 + $0x32] sm:$0xff]
      %v8797 = vld [vmem:[%s7848 + $0x3a] sm:$0xff]
      %v8798 = vld [vmem:[%s7848 + $0x4a] sm:$0xff]
      %v8799 = vld [vmem:[%s7848 + $0x52] sm:$0xff]
      %v8800 = vld [vmem:[%s7848 + $0x62] sm:$0xff]
      %v8801 = vld [vmem:[%s7848 + $0x6a] sm:$0xff]
      %v8802 = vld [vmem:[%s7848 + $0x7a] sm:$0xff]
      %v8803 = vld [vmem:[%s7848 + $0x82] sm:$0xff]
      %v8804 = vld [vmem:[%s7848 + $0x92] sm:$0xff]
      %v8805 = vld [vmem:[%s7848 + $0x9a] sm:$0xff]
      %v8806 = vld [vmem:[%s7848 + $0xaa] sm:$0xff]
      %v8807 = vld [vmem:[%s7848 + $0xb2] sm:$0xff]
      %v8808 = vld [vmem:[%s7848 + $0xc2] sm:$0xff]
      %v8809 = vld [vmem:[%s7848 + $0xca] sm:$0xff]
      %v8810 = vld [vmem:[%s7848 + $0xda] sm:$0xff]
      %v8811 = vld [vmem:[%s7848 + $0xe2] sm:$0xff]
      %v8812 = vld [vmem:[%s7848 + $0xf2] sm:$0xff]
      %v8813 = vld [vmem:[%s7848 + $0xfa] sm:$0xff]
      %v8814 = vld [vmem:[%s7848 + $0x10a] sm:$0xff]
      %v8815 = vld [vmem:[%s7848 + $0x112] sm:$0xff]
      %8840 = vrot.lane.b32.xlu0 %v8792, 56
      %v8841 = vpop.permute.xlu0 %8840
      %8842 = vrot.lane.b32.xlu0 %v8793, 56
      %v8843 = vpop.permute.xlu0 %8842
      %8844 = vrot.lane.b32.xlu0 %v8794, 56
      %v8845 = vpop.permute.xlu0 %8844
      %8846 = vrot.lane.b32.xlu0 %v8795, 56
      %v8847 = vpop.permute.xlu0 %8846
      %8848 = vrot.lane.b32.xlu0 %v8796, 56
      %v8849 = vpop.permute.xlu0 %8848
      %8850 = vrot.lane.b32.xlu0 %v8797, 56
      %v8851 = vpop.permute.xlu0 %8850
      %8852 = vrot.lane.b32.xlu0 %v8798, 56
      %v8853 = vpop.permute.xlu0 %8852
      %8854 = vrot.lane.b32.xlu0 %v8799, 56
      %v8855 = vpop.permute.xlu0 %8854
      %8856 = vrot.lane.b32.xlu0 %v8800, 56
      %v8857 = vpop.permute.xlu0 %8856
      %8858 = vrot.lane.b32.xlu0 %v8801, 56
      %v8859 = vpop.permute.xlu0 %8858
      %8860 = vrot.lane.b32.xlu0 %v8802, 56
      %v8861 = vpop.permute.xlu0 %8860
      %8862 = vrot.lane.b32.xlu0 %v8803, 56
      %v8863 = vpop.permute.xlu0 %8862
      %8864 = vrot.lane.b32.xlu0 %v8804, 56
      %v8865 = vpop.permute.xlu0 %8864
      %8866 = vrot.lane.b32.xlu0 %v8805, 56
      %v8867 = vpop.permute.xlu0 %8866
      %8868 = vrot.lane.b32.xlu0 %v8806, 56
      %v8869 = vpop.permute.xlu0 %8868
      %8870 = vrot.lane.b32.xlu0 %v8807, 56
      %v8871 = vpop.permute.xlu0 %8870
      %8872 = vrot.lane.b32.xlu0 %v8808, 56
      %v8873 = vpop.permute.xlu0 %8872
      %8874 = vrot.lane.b32.xlu0 %v8809, 56
      %v8875 = vpop.permute.xlu0 %8874
      %8876 = vrot.lane.b32.xlu0 %v8810, 56
      %v8877 = vpop.permute.xlu0 %8876
      %8878 = vrot.lane.b32.xlu0 %v8811, 56
      %v8879 = vpop.permute.xlu0 %8878
      %8880 = vrot.lane.b32.xlu0 %v8812, 56
      %v8881 = vpop.permute.xlu0 %8880
      %8882 = vrot.lane.b32.xlu0 %v8813, 56
      %v8883 = vpop.permute.xlu0 %8882
      %8884 = vrot.lane.b32.xlu0 %v8814, 56
      %v8885 = vpop.permute.xlu0 %8884
      %8886 = vrot.lane.b32.xlu0 %v8815, 56
      %v8887 = vpop.permute.xlu0 %8886
      %vm8912 = vcmask 523712
      %8913 = vst.msk [vmem:[#allocation5] sm:$0xff] %vm8912, %v8841
      %8914 = vst.msk [vmem:[#allocation5 + $0x8] sm:$0xff] %vm8912, %v8843
      %8915 = vst.msk [vmem:[#allocation5 + $0x10] sm:$0xff] %vm8912, %v8845
      %8916 = vst.msk [vmem:[#allocation5 + $0x18] sm:$0xff] %vm8912, %v8847
      %8917 = vst.msk [vmem:[#allocation5 + $0x20] sm:$0xff] %vm8912, %v8849
      %8918 = vst.msk [vmem:[#allocation5 + $0x28] sm:$0xff] %vm8912, %v8851
      %8919 = vst.msk [vmem:[#allocation5 + $0x30] sm:$0xff] %vm8912, %v8853
      %8920 = vst.msk [vmem:[#allocation5 + $0x38] sm:$0xff] %vm8912, %v8855
      %8921 = vst.msk [vmem:[#allocation5 + $0x40] sm:$0xff] %vm8912, %v8857
      %8922 = vst.msk [vmem:[#allocation5 + $0x48] sm:$0xff] %vm8912, %v8859
      %8923 = vst.msk [vmem:[#allocation5 + $0x50] sm:$0xff] %vm8912, %v8861
      %8924 = vst.msk [vmem:[#allocation5 + $0x58] sm:$0xff] %vm8912, %v8863
      %8925 = vst.msk [vmem:[#allocation5 + $0x60] sm:$0xff] %vm8912, %v8865
      %8926 = vst.msk [vmem:[#allocation5 + $0x68] sm:$0xff] %vm8912, %v8867
      %8927 = vst.msk [vmem:[#allocation5 + $0x70] sm:$0xff] %vm8912, %v8869
      %8928 = vst.msk [vmem:[#allocation5 + $0x78] sm:$0xff] %vm8912, %v8871
      %8929 = vst.msk [vmem:[#allocation5 + $0x80] sm:$0xff] %vm8912, %v8873
      %8930 = vst.msk [vmem:[#allocation5 + $0x88] sm:$0xff] %vm8912, %v8875
      %8931 = vst.msk [vmem:[#allocation5 + $0x90] sm:$0xff] %vm8912, %v8877
      %8932 = vst.msk [vmem:[#allocation5 + $0x98] sm:$0xff] %vm8912, %v8879
      %8933 = vst.msk [vmem:[#allocation5 + $0xa0] sm:$0xff] %vm8912, %v8881
      %8934 = vst.msk [vmem:[#allocation5 + $0xa8] sm:$0xff] %vm8912, %v8883
      %8935 = vst.msk [vmem:[#allocation5 + $0xb0] sm:$0xff] %vm8912, %v8885
      %8936 = vst.msk [vmem:[#allocation5 + $0xb8] sm:$0xff] %vm8912, %v8887
      %v8937 = vld [vmem:[%s8066 + $0x2] sm:$0xff]
      %v8938 = vld [vmem:[%s8066 + $0xa] sm:$0xff]
      %v8939 = vld [vmem:[%s8066 + $0x1a] sm:$0xff]
      %v8940 = vld [vmem:[%s8066 + $0x22] sm:$0xff]
      %v8941 = vld [vmem:[%s8066 + $0x32] sm:$0xff]
      %v8942 = vld [vmem:[%s8066 + $0x3a] sm:$0xff]
      %v8943 = vld [vmem:[%s8066 + $0x4a] sm:$0xff]
      %v8944 = vld [vmem:[%s8066 + $0x52] sm:$0xff]
      %v8945 = vld [vmem:[%s8066 + $0x62] sm:$0xff]
      %v8946 = vld [vmem:[%s8066 + $0x6a] sm:$0xff]
      %v8947 = vld [vmem:[%s8066 + $0x7a] sm:$0xff]
      %v8948 = vld [vmem:[%s8066 + $0x82] sm:$0xff]
      %v8949 = vld [vmem:[%s8066 + $0x92] sm:$0xff]
      %v8950 = vld [vmem:[%s8066 + $0x9a] sm:$0xff]
      %v8951 = vld [vmem:[%s8066 + $0xaa] sm:$0xff]
      %v8952 = vld [vmem:[%s8066 + $0xb2] sm:$0xff]
      %v8953 = vld [vmem:[%s8066 + $0xc2] sm:$0xff]
      %v8954 = vld [vmem:[%s8066 + $0xca] sm:$0xff]
      %v8955 = vld [vmem:[%s8066 + $0xda] sm:$0xff]
      %v8956 = vld [vmem:[%s8066 + $0xe2] sm:$0xff]
      %v8957 = vld [vmem:[%s8066 + $0xf2] sm:$0xff]
      %v8958 = vld [vmem:[%s8066 + $0xfa] sm:$0xff]
      %v8959 = vld [vmem:[%s8066 + $0x10a] sm:$0xff]
      %v8960 = vld [vmem:[%s8066 + $0x112] sm:$0xff]
      %8985 = vrot.lane.b32.xlu0 %v8937, 64
      %v8986 = vpop.permute.xlu0 %8985
      %8987 = vrot.lane.b32.xlu0 %v8938, 64
      %v8988 = vpop.permute.xlu0 %8987
      %8989 = vrot.lane.b32.xlu0 %v8939, 64
      %v8990 = vpop.permute.xlu0 %8989
      %8991 = vrot.lane.b32.xlu0 %v8940, 64
      %v8992 = vpop.permute.xlu0 %8991
      %8993 = vrot.lane.b32.xlu0 %v8941, 64
      %v8994 = vpop.permute.xlu0 %8993
      %8995 = vrot.lane.b32.xlu0 %v8942, 64
      %v8996 = vpop.permute.xlu0 %8995
      %8997 = vrot.lane.b32.xlu0 %v8943, 64
      %v8998 = vpop.permute.xlu0 %8997
      %8999 = vrot.lane.b32.xlu0 %v8944, 64
      %v9000 = vpop.permute.xlu0 %8999
      %9001 = vrot.lane.b32.xlu0 %v8945, 64
      %v9002 = vpop.permute.xlu0 %9001
      %9003 = vrot.lane.b32.xlu0 %v8946, 64
      %v9004 = vpop.permute.xlu0 %9003
      %9005 = vrot.lane.b32.xlu0 %v8947, 64
      %v9006 = vpop.permute.xlu0 %9005
      %9007 = vrot.lane.b32.xlu0 %v8948, 64
      %v9008 = vpop.permute.xlu0 %9007
      %9009 = vrot.lane.b32.xlu0 %v8949, 64
      %v9010 = vpop.permute.xlu0 %9009
      %9011 = vrot.lane.b32.xlu0 %v8950, 64
      %v9012 = vpop.permute.xlu0 %9011
      %9013 = vrot.lane.b32.xlu0 %v8951, 64
      %v9014 = vpop.permute.xlu0 %9013
      %9015 = vrot.lane.b32.xlu0 %v8952, 64
      %v9016 = vpop.permute.xlu0 %9015
      %9017 = vrot.lane.b32.xlu0 %v8953, 64
      %v9018 = vpop.permute.xlu0 %9017
      %9019 = vrot.lane.b32.xlu0 %v8954, 64
      %v9020 = vpop.permute.xlu0 %9019
      %9021 = vrot.lane.b32.xlu0 %v8955, 64
      %v9022 = vpop.permute.xlu0 %9021
      %9023 = vrot.lane.b32.xlu0 %v8956, 64
      %v9024 = vpop.permute.xlu0 %9023
      %9025 = vrot.lane.b32.xlu0 %v8957, 64
      %v9026 = vpop.permute.xlu0 %9025
      %9027 = vrot.lane.b32.xlu0 %v8958, 64
      %v9028 = vpop.permute.xlu0 %9027
      %9029 = vrot.lane.b32.xlu0 %v8959, 64
      %v9030 = vpop.permute.xlu0 %9029
      %9031 = vrot.lane.b32.xlu0 %v8960, 64
      %v9032 = vpop.permute.xlu0 %9031
      %vm9057 = vcmask 589312
      %9058 = vst.msk [vmem:[#allocation5] sm:$0xff] %vm9057, %v8986
      %9059 = vst.msk [vmem:[#allocation5 + $0x8] sm:$0xff] %vm9057, %v8988
      %9060 = vst.msk [vmem:[#allocation5 + $0x10] sm:$0xff] %vm9057, %v8990
      %9061 = vst.msk [vmem:[#allocation5 + $0x18] sm:$0xff] %vm9057, %v8992
      %9062 = vst.msk [vmem:[#allocation5 + $0x20] sm:$0xff] %vm9057, %v8994
      %9063 = vst.msk [vmem:[#allocation5 + $0x28] sm:$0xff] %vm9057, %v8996
      %9064 = vst.msk [vmem:[#allocation5 + $0x30] sm:$0xff] %vm9057, %v8998
      %9065 = vst.msk [vmem:[#allocation5 + $0x38] sm:$0xff] %vm9057, %v9000
      %9066 = vst.msk [vmem:[#allocation5 + $0x40] sm:$0xff] %vm9057, %v9002
      %9067 = vst.msk [vmem:[#allocation5 + $0x48] sm:$0xff] %vm9057, %v9004
      %9068 = vst.msk [vmem:[#allocation5 + $0x50] sm:$0xff] %vm9057, %v9006
      %9069 = vst.msk [vmem:[#allocation5 + $0x58] sm:$0xff] %vm9057, %v9008
      %9070 = vst.msk [vmem:[#allocation5 + $0x60] sm:$0xff] %vm9057, %v9010
      %9071 = vst.msk [vmem:[#allocation5 + $0x68] sm:$0xff] %vm9057, %v9012
      %9072 = vst.msk [vmem:[#allocation5 + $0x70] sm:$0xff] %vm9057, %v9014
      %9073 = vst.msk [vmem:[#allocation5 + $0x78] sm:$0xff] %vm9057, %v9016
      %9074 = vst.msk [vmem:[#allocation5 + $0x80] sm:$0xff] %vm9057, %v9018
      %9075 = vst.msk [vmem:[#allocation5 + $0x88] sm:$0xff] %vm9057, %v9020
      %9076 = vst.msk [vmem:[#allocation5 + $0x90] sm:$0xff] %vm9057, %v9022
      %9077 = vst.msk [vmem:[#allocation5 + $0x98] sm:$0xff] %vm9057, %v9024
      %9078 = vst.msk [vmem:[#allocation5 + $0xa0] sm:$0xff] %vm9057, %v9026
      %9079 = vst.msk [vmem:[#allocation5 + $0xa8] sm:$0xff] %vm9057, %v9028
      %9080 = vst.msk [vmem:[#allocation5 + $0xb0] sm:$0xff] %vm9057, %v9030
      %9081 = vst.msk [vmem:[#allocation5 + $0xb8] sm:$0xff] %vm9057, %v9032
      %v9082 = vld [vmem:[#allocation5] sm:$0xff]
      %v9083 = vld [vmem:[#allocation5 + $0x8] sm:$0xff]
      %v9084 = vld [vmem:[#allocation5 + $0x10] sm:$0xff]
      %v9085 = vld [vmem:[#allocation5 + $0x18] sm:$0xff]
      %v9086 = vld [vmem:[#allocation5 + $0x20] sm:$0xff]
      %v9087 = vld [vmem:[#allocation5 + $0x28] sm:$0xff]
      %v9088 = vld [vmem:[#allocation5 + $0x30] sm:$0xff]
      %v9089 = vld [vmem:[#allocation5 + $0x38] sm:$0xff]
      %v9090 = vld [vmem:[#allocation5 + $0x40] sm:$0xff]
      %v9091 = vld [vmem:[#allocation5 + $0x48] sm:$0xff]
      %v9092 = vld [vmem:[#allocation5 + $0x50] sm:$0xff]
      %v9093 = vld [vmem:[#allocation5 + $0x58] sm:$0xff]
      %v9094 = vld [vmem:[#allocation5 + $0x60] sm:$0xff]
      %v9095 = vld [vmem:[#allocation5 + $0x68] sm:$0xff]
      %v9096 = vld [vmem:[#allocation5 + $0x70] sm:$0xff]
      %v9097 = vld [vmem:[#allocation5 + $0x78] sm:$0xff]
      %v9098 = vld [vmem:[#allocation5 + $0x80] sm:$0xff]
      %v9099 = vld [vmem:[#allocation5 + $0x88] sm:$0xff]
      %v9100 = vld [vmem:[#allocation5 + $0x90] sm:$0xff]
      %v9101 = vld [vmem:[#allocation5 + $0x98] sm:$0xff]
      %v9102 = vld [vmem:[#allocation5 + $0xa0] sm:$0xff]
      %v9103 = vld [vmem:[#allocation5 + $0xa8] sm:$0xff]
      %v9104 = vld [vmem:[#allocation5 + $0xb0] sm:$0xff]
      %v9105 = vld [vmem:[#allocation5 + $0xb8] sm:$0xff]
      %v9106 = vld [vmem:[%s3] sm:$0xff]
      %v9107 = vld [vmem:[%s3 + $0x8] sm:$0xff]
      %v9108 = vld [vmem:[%s3 + $0x10] sm:$0xff]
      %v9109 = vld [vmem:[%s3 + $0x18] sm:$0xff]
      %v9110 = vld [vmem:[%s3 + $0x20] sm:$0xff]
      %v9111 = vld [vmem:[%s3 + $0x28] sm:$0xff]
      %v9112 = vld [vmem:[%s3 + $0x30] sm:$0xff]
      %v9113 = vld [vmem:[%s3 + $0x38] sm:$0xff]
      %v9114 = vld [vmem:[%s3 + $0x40] sm:$0xff]
      %v9115 = vld [vmem:[%s4] sm:$0x1]
      %v9117 = vperm.slane %v9115, 0
      %vm9119 = vcmask 588800
      %v9121 = vsel %vm9119, %v9082, 0
      %v9124 = vsel %vm9119, %v9083, 0
      %v9127 = vsel %vm9119, %v9084, 0
      %v9130 = vsel %vm9119, %v9085, 0
      %v9133 = vsel %vm9119, %v9086, 0
      %v9136 = vsel %vm9119, %v9087, 0
      %v9139 = vsel %vm9119, %v9088, 0
      %v9142 = vsel %vm9119, %v9089, 0
      %v9145 = vsel %vm9119, %v9090, 0
      %v9148 = vsel %vm9119, %v9091, 0
      %v9151 = vsel %vm9119, %v9092, 0
      %v9154 = vsel %vm9119, %v9093, 0
      %v9157 = vsel %vm9119, %v9094, 0
      %v9160 = vsel %vm9119, %v9095, 0
      %v9163 = vsel %vm9119, %v9096, 0
      %v9166 = vsel %vm9119, %v9097, 0
      %v9169 = vsel %vm9119, %v9098, 0
      %v9172 = vsel %vm9119, %v9099, 0
      %v9175 = vsel %vm9119, %v9100, 0
      %v9178 = vsel %vm9119, %v9101, 0
      %v9181 = vsel %vm9119, %v9102, 0
      %v9184 = vsel %vm9119, %v9103, 0
      %v9187 = vsel %vm9119, %v9104, 0
      %v9190 = vsel %vm9119, %v9105, 0
      %9192 = vmatpush.msra.mxu0 0.0
      %9193 = vmatpush.msra.mxu0 0.0
      %9194 = vmatpush.msra.mxu0 0.0
      %9195 = vmatpush.msra.mxu0 0.0
      %9196 = vmatpush.msra.mxu0 0.0
      %9197 = vmatpush.msra.mxu0 0.0
      %9198 = vmatpush.msra.mxu0 0.0
      %9199 = vmatpush.msra.mxu0 %v9114
      %9200 = vmatpush.msra.mxu0 %v9113
      %9201 = vmatpush.msra.mxu0 %v9112
      %9202 = vmatpush.msra.mxu0 %v9111
      %9203 = vmatpush.msra.mxu0 %v9110
      %9204 = vmatpush.msra.mxu0 %v9109
      %9205 = vmatpush.msra.mxu0 %v9108
      %9206 = vmatpush.msra.mxu0 %v9107
      %9207 = vmatpush.msra.mxu0 %v9106
      %9208 = vmatmul.f32.gmra.mxu0 %v9121
      %v9209 = vpop.f32.mrf.mxu0
      %v9210 = vadd.f32 %v9117, %v9209
      %9211 = vmatmul.f32.gmra.mxu0 %v9124
      %v9212 = vpop.f32.mrf.mxu0
      %v9213 = vadd.f32 %v9117, %v9212
      %9214 = vmatmul.f32.gmra.mxu0 %v9127
      %v9215 = vpop.f32.mrf.mxu0
      %v9216 = vadd.f32 %v9117, %v9215
      %9217 = vmatmul.f32.gmra.mxu0 %v9130
      %v9218 = vpop.f32.mrf.mxu0
      %v9219 = vadd.f32 %v9117, %v9218
      %9220 = vmatmul.f32.gmra.mxu0 %v9133
      %v9221 = vpop.f32.mrf.mxu0
      %v9222 = vadd.f32 %v9117, %v9221
      %9223 = vmatmul.f32.gmra.mxu0 %v9136
      %v9224 = vpop.f32.mrf.mxu0
      %v9225 = vadd.f32 %v9117, %v9224
      %9226 = vmatmul.f32.gmra.mxu0 %v9139
      %v9227 = vpop.f32.mrf.mxu0
      %v9228 = vadd.f32 %v9117, %v9227
      %9229 = vmatmul.f32.gmra.mxu0 %v9142
      %v9230 = vpop.f32.mrf.mxu0
      %v9231 = vadd.f32 %v9117, %v9230
      %9232 = vmatmul.f32.gmra.mxu0 %v9145
      %v9233 = vpop.f32.mrf.mxu0
      %v9234 = vadd.f32 %v9117, %v9233
      %9235 = vmatmul.f32.gmra.mxu0 %v9148
      %v9236 = vpop.f32.mrf.mxu0
      %v9237 = vadd.f32 %v9117, %v9236
      %9238 = vmatmul.f32.gmra.mxu0 %v9151
      %v9239 = vpop.f32.mrf.mxu0
      %v9240 = vadd.f32 %v9117, %v9239
      %9241 = vmatmul.f32.gmra.mxu0 %v9154
      %v9242 = vpop.f32.mrf.mxu0
      %v9243 = vadd.f32 %v9117, %v9242
      %9244 = vmatmul.f32.gmra.mxu0 %v9157
      %v9245 = vpop.f32.mrf.mxu0
      %v9246 = vadd.f32 %v9117, %v9245
      %9247 = vmatmul.f32.gmra.mxu0 %v9160
      %v9248 = vpop.f32.mrf.mxu0
      %v9249 = vadd.f32 %v9117, %v9248
      %9250 = vmatmul.f32.gmra.mxu0 %v9163
      %v9251 = vpop.f32.mrf.mxu0
      %v9252 = vadd.f32 %v9117, %v9251
      %9253 = vmatmul.f32.gmra.mxu0 %v9166
      %v9254 = vpop.f32.mrf.mxu0
      %v9255 = vadd.f32 %v9117, %v9254
      %9256 = vmatmul.f32.gmra.mxu0 %v9169
      %v9257 = vpop.f32.mrf.mxu0
      %v9258 = vadd.f32 %v9117, %v9257
      %9259 = vmatmul.f32.gmra.mxu0 %v9172
      %v9260 = vpop.f32.mrf.mxu0
      %v9261 = vadd.f32 %v9117, %v9260
      %9262 = vmatmul.f32.gmra.mxu0 %v9175
      %v9263 = vpop.f32.mrf.mxu0
      %v9264 = vadd.f32 %v9117, %v9263
      %9265 = vmatmul.f32.gmra.mxu0 %v9178
      %v9266 = vpop.f32.mrf.mxu0
      %v9267 = vadd.f32 %v9117, %v9266
      %9268 = vmatmul.f32.gmra.mxu0 %v9181
      %v9269 = vpop.f32.mrf.mxu0
      %v9270 = vadd.f32 %v9117, %v9269
      %9271 = vmatmul.f32.gmra.mxu0 %v9184
      %v9272 = vpop.f32.mrf.mxu0
      %v9273 = vadd.f32 %v9117, %v9272
      %9274 = vmatmul.f32.gmra.mxu0 %v9187
      %v9275 = vpop.f32.mrf.mxu0
      %v9276 = vadd.f32 %v9117, %v9275
      %9277 = vmatmul.f32.gmra.mxu0 %v9190
      %v9278 = vpop.f32.mrf.mxu0
      %v9279 = vadd.f32 %v9117, %v9278
      %9280 = vdwg.mxu0
      %v9281 = vmax.f32 %v9210, 0.0
      %v9282 = vmax.f32 %v9213, 0.0
      %v9283 = vmax.f32 %v9216, 0.0
      %v9284 = vmax.f32 %v9219, 0.0
      %v9285 = vmax.f32 %v9222, 0.0
      %v9286 = vmax.f32 %v9225, 0.0
      %v9287 = vmax.f32 %v9228, 0.0
      %v9288 = vmax.f32 %v9231, 0.0
      %v9289 = vmax.f32 %v9234, 0.0
      %v9290 = vmax.f32 %v9237, 0.0
      %v9291 = vmax.f32 %v9240, 0.0
      %v9292 = vmax.f32 %v9243, 0.0
      %v9293 = vmax.f32 %v9246, 0.0
      %v9294 = vmax.f32 %v9249, 0.0
      %v9295 = vmax.f32 %v9252, 0.0
      %v9296 = vmax.f32 %v9255, 0.0
      %v9297 = vmax.f32 %v9258, 0.0
      %v9298 = vmax.f32 %v9261, 0.0
      %v9299 = vmax.f32 %v9264, 0.0
      %v9300 = vmax.f32 %v9267, 0.0
      %v9301 = vmax.f32 %v9270, 0.0
      %v9302 = vmax.f32 %v9273, 0.0
      %v9303 = vmax.f32 %v9276, 0.0
      %v9304 = vmax.f32 %v9279, 0.0
      %v9305 = vmax.f32 %v9281, %v9283
      %v9306 = vmax.f32 %v9282, %v9284
      %v9307 = vmax.f32 %v9285, %v9287
      %v9308 = vmax.f32 %v9286, %v9288
      %v9309 = vmax.f32 %v9289, %v9291
      %v9310 = vmax.f32 %v9290, %v9292
      %v9311 = vmax.f32 %v9293, %v9295
      %v9312 = vmax.f32 %v9294, %v9296
      %v9313 = vmax.f32 %v9297, %v9299
      %v9314 = vmax.f32 %v9298, %v9300
      %v9315 = vmax.f32 %v9301, %v9303
      %v9316 = vmax.f32 %v9302, %v9304
      %9317 = vst.msk [vmem:[#allocation4] sm:$0xff] %vm7804, 0.0
      %9318 = vst.msk [vmem:[#allocation4 + $0x8] sm:$0xff] %vm7804, 0.0
      %9319 = vst.msk [vmem:[#allocation4 + $0x10] sm:$0x3] %vm7807, 0.0
      %9320 = vst.msk [vmem:[#allocation4 + $0x18] sm:$0xff] %vm7804, 0.0
      %9321 = vst.msk [vmem:[#allocation4 + $0x20] sm:$0xff] %vm7804, 0.0
      %9322 = vst.msk [vmem:[#allocation4 + $0x28] sm:$0x3] %vm7807, 0.0
      %9323 = vst.msk [vmem:[#allocation4 + $0x30] sm:$0xff] %vm7804, 0.0
      %9324 = vst.msk [vmem:[#allocation4 + $0x38] sm:$0xff] %vm7804, 0.0
      %9325 = vst.msk [vmem:[#allocation4 + $0x40] sm:$0x3] %vm7807, 0.0
      %9326 = vst.msk [vmem:[#allocation4 + $0x48] sm:$0xff] %vm7804, 0.0
      %9327 = vst.msk [vmem:[#allocation4 + $0x50] sm:$0xff] %vm7804, 0.0
      %9328 = vst.msk [vmem:[#allocation4 + $0x58] sm:$0x3] %vm7807, 0.0
      %9329 = vst.msk [vmem:[#allocation4 + $0x60] sm:$0xff] %vm7804, 0.0
      %9330 = vst.msk [vmem:[#allocation4 + $0x68] sm:$0xff] %vm7804, 0.0
      %9331 = vst.msk [vmem:[#allocation4 + $0x70] sm:$0x3] %vm7807, 0.0
      %9332 = vst.msk [vmem:[#allocation4 + $0x78] sm:$0xff] %vm7804, 0.0
      %9333 = vst.msk [vmem:[#allocation4 + $0x80] sm:$0xff] %vm7804, 0.0
      %9334 = vst.msk [vmem:[#allocation4 + $0x88] sm:$0x3] %vm7807, 0.0
      %9335 = vst.msk [vmem:[#allocation4 + $0x90] sm:$0xff] %vm7804, 0.0
      %9336 = vst.msk [vmem:[#allocation4 + $0x98] sm:$0xff] %vm7804, 0.0
      %9337 = vst.msk [vmem:[#allocation4 + $0xa0] sm:$0x3] %vm7807, 0.0
      %9338 = vst.msk [vmem:[#allocation4 + $0xa8] sm:$0xff] %vm7804, 0.0
      %9339 = vst.msk [vmem:[#allocation4 + $0xb0] sm:$0xff] %vm7804, 0.0
      %9340 = vst.msk [vmem:[#allocation4 + $0xb8] sm:$0x3] %vm7807, 0.0
      %s9341 = scalar_lea.vmem [#allocation4], 24
      %9342 = vst.msk [vmem:[%s9341 + $0x1] sm:$0xff] %vm7804, %v9305
      %9343 = vst.msk [vmem:[%s9341 + $0x9] sm:$0xff] %vm7804, %v9306
      %9344 = vst.msk [vmem:[%s9341 + $0x19] sm:$0xff] %vm7804, %v9307
      %9345 = vst.msk [vmem:[%s9341 + $0x21] sm:$0xff] %vm7804, %v9308
      %9346 = vst.msk [vmem:[%s9341 + $0x31] sm:$0xff] %vm7804, %v9309
      %9347 = vst.msk [vmem:[%s9341 + $0x39] sm:$0xff] %vm7804, %v9310
      %9348 = vst.msk [vmem:[%s9341 + $0x49] sm:$0xff] %vm7804, %v9311
      %9349 = vst.msk [vmem:[%s9341 + $0x51] sm:$0xff] %vm7804, %v9312
      %9350 = vst.msk [vmem:[%s9341 + $0x61] sm:$0xff] %vm7804, %v9313
      %9351 = vst.msk [vmem:[%s9341 + $0x69] sm:$0xff] %vm7804, %v9314
      %9352 = vst.msk [vmem:[%s9341 + $0x79] sm:$0xff] %vm7804, %v9315
      %9353 = vst.msk [vmem:[%s9341 + $0x81] sm:$0xff] %vm7804, %v9316
      %v9354 = vld [vmem:[#allocation4] sm:$0xff]
      %v9355 = vld [vmem:[#allocation4 + $0x8] sm:$0xff]
      %v9356 = vld [vmem:[#allocation4 + $0x18] sm:$0xff]
      %v9357 = vld [vmem:[#allocation4 + $0x20] sm:$0xff]
      %v9358 = vld [vmem:[#allocation4 + $0x30] sm:$0xff]
      %v9359 = vld [vmem:[#allocation4 + $0x38] sm:$0xff]
      %v9360 = vld [vmem:[#allocation4 + $0x48] sm:$0xff]
      %v9361 = vld [vmem:[#allocation4 + $0x50] sm:$0xff]
      %v9362 = vld [vmem:[#allocation4 + $0x60] sm:$0xff]
      %v9363 = vld [vmem:[#allocation4 + $0x68] sm:$0xff]
      %v9364 = vld [vmem:[#allocation4 + $0x78] sm:$0xff]
      %v9365 = vld [vmem:[#allocation4 + $0x80] sm:$0xff]
      %9366 = vst.msk [vmem:[#allocation5] sm:$0xff] %vm7804, %v9354
      %9367 = vst.msk [vmem:[#allocation5 + $0x8] sm:$0xff] %vm7804, %v9355
      %9368 = vst.msk [vmem:[#allocation5 + $0x10] sm:$0xff] %vm7804, %v9356
      %9369 = vst.msk [vmem:[#allocation5 + $0x18] sm:$0xff] %vm7804, %v9357
      %9370 = vst.msk [vmem:[#allocation5 + $0x20] sm:$0xff] %vm7804, %v9358
      %9371 = vst.msk [vmem:[#allocation5 + $0x28] sm:$0xff] %vm7804, %v9359
      %9372 = vst.msk [vmem:[#allocation5 + $0x30] sm:$0xff] %vm7804, %v9360
      %9373 = vst.msk [vmem:[#allocation5 + $0x38] sm:$0xff] %vm7804, %v9361
      %9374 = vst.msk [vmem:[#allocation5 + $0x40] sm:$0xff] %vm7804, %v9362
      %9375 = vst.msk [vmem:[#allocation5 + $0x48] sm:$0xff] %vm7804, %v9363
      %9376 = vst.msk [vmem:[#allocation5 + $0x50] sm:$0xff] %vm7804, %v9364
      %9377 = vst.msk [vmem:[#allocation5 + $0x58] sm:$0xff] %vm7804, %v9365
      %v9378 = vld [vmem:[%s9341] sm:$0xff]
      %v9379 = vld [vmem:[%s9341 + $0x8] sm:$0xff]
      %v9380 = vld [vmem:[%s9341 + $0x18] sm:$0xff]
      %v9381 = vld [vmem:[%s9341 + $0x20] sm:$0xff]
      %v9382 = vld [vmem:[%s9341 + $0x30] sm:$0xff]
      %v9383 = vld [vmem:[%s9341 + $0x38] sm:$0xff]
      %v9384 = vld [vmem:[%s9341 + $0x48] sm:$0xff]
      %v9385 = vld [vmem:[%s9341 + $0x50] sm:$0xff]
      %v9386 = vld [vmem:[%s9341 + $0x60] sm:$0xff]
      %v9387 = vld [vmem:[%s9341 + $0x68] sm:$0xff]
      %v9388 = vld [vmem:[%s9341 + $0x78] sm:$0xff]
      %v9389 = vld [vmem:[%s9341 + $0x80] sm:$0xff]
      %9402 = vrot.lane.b32.xlu0 %v9378, 8
      %v9403 = vpop.permute.xlu0 %9402
      %9404 = vrot.lane.b32.xlu0 %v9379, 8
      %v9405 = vpop.permute.xlu0 %9404
      %9406 = vrot.lane.b32.xlu0 %v9380, 8
      %v9407 = vpop.permute.xlu0 %9406
      %9408 = vrot.lane.b32.xlu0 %v9381, 8
      %v9409 = vpop.permute.xlu0 %9408
      %9410 = vrot.lane.b32.xlu0 %v9382, 8
      %v9411 = vpop.permute.xlu0 %9410
      %9412 = vrot.lane.b32.xlu0 %v9383, 8
      %v9413 = vpop.permute.xlu0 %9412
      %9414 = vrot.lane.b32.xlu0 %v9384, 8
      %v9415 = vpop.permute.xlu0 %9414
      %9416 = vrot.lane.b32.xlu0 %v9385, 8
      %v9417 = vpop.permute.xlu0 %9416
      %9418 = vrot.lane.b32.xlu0 %v9386, 8
      %v9419 = vpop.permute.xlu0 %9418
      %9420 = vrot.lane.b32.xlu0 %v9387, 8
      %v9421 = vpop.permute.xlu0 %9420
      %9422 = vrot.lane.b32.xlu0 %v9388, 8
      %v9423 = vpop.permute.xlu0 %9422
      %9424 = vrot.lane.b32.xlu0 %v9389, 8
      %v9425 = vpop.permute.xlu0 %9424
      %9438 = vst.msk [vmem:[#allocation5] sm:$0xff] %vm8041, %v9403
      %9439 = vst.msk [vmem:[#allocation5 + $0x8] sm:$0xff] %vm8041, %v9405
      %9440 = vst.msk [vmem:[#allocation5 + $0x10] sm:$0xff] %vm8041, %v9407
      %9441 = vst.msk [vmem:[#allocation5 + $0x18] sm:$0xff] %vm8041, %v9409
      %9442 = vst.msk [vmem:[#allocation5 + $0x20] sm:$0xff] %vm8041, %v9411
      %9443 = vst.msk [vmem:[#allocation5 + $0x28] sm:$0xff] %vm8041, %v9413
      %9444 = vst.msk [vmem:[#allocation5 + $0x30] sm:$0xff] %vm8041, %v9415
      %9445 = vst.msk [vmem:[#allocation5 + $0x38] sm:$0xff] %vm8041, %v9417
      %9446 = vst.msk [vmem:[#allocation5 + $0x40] sm:$0xff] %vm8041, %v9419
      %9447 = vst.msk [vmem:[#allocation5 + $0x48] sm:$0xff] %vm8041, %v9421
      %9448 = vst.msk [vmem:[#allocation5 + $0x50] sm:$0xff] %vm8041, %v9423
      %9449 = vst.msk [vmem:[#allocation5 + $0x58] sm:$0xff] %vm8041, %v9425
      %s9450 = scalar_lea.vmem [#allocation4], 48
      %v9451 = vld [vmem:[%s9450] sm:$0xff]
      %v9452 = vld [vmem:[%s9450 + $0x8] sm:$0xff]
      %v9453 = vld [vmem:[%s9450 + $0x18] sm:$0xff]
      %v9454 = vld [vmem:[%s9450 + $0x20] sm:$0xff]
      %v9455 = vld [vmem:[%s9450 + $0x30] sm:$0xff]
      %v9456 = vld [vmem:[%s9450 + $0x38] sm:$0xff]
      %v9457 = vld [vmem:[%s9450 + $0x48] sm:$0xff]
      %v9458 = vld [vmem:[%s9450 + $0x50] sm:$0xff]
      %v9459 = vld [vmem:[%s9450 + $0x60] sm:$0xff]
      %v9460 = vld [vmem:[%s9450 + $0x68] sm:$0xff]
      %v9461 = vld [vmem:[%s9450 + $0x78] sm:$0xff]
      %v9462 = vld [vmem:[%s9450 + $0x80] sm:$0xff]
      %9475 = vrot.lane.b32.xlu0 %v9451, 16
      %v9476 = vpop.permute.xlu0 %9475
      %9477 = vrot.lane.b32.xlu0 %v9452, 16
      %v9478 = vpop.permute.xlu0 %9477
      %9479 = vrot.lane.b32.xlu0 %v9453, 16
      %v9480 = vpop.permute.xlu0 %9479
      %9481 = vrot.lane.b32.xlu0 %v9454, 16
      %v9482 = vpop.permute.xlu0 %9481
      %9483 = vrot.lane.b32.xlu0 %v9455, 16
      %v9484 = vpop.permute.xlu0 %9483
      %9485 = vrot.lane.b32.xlu0 %v9456, 16
      %v9486 = vpop.permute.xlu0 %9485
      %9487 = vrot.lane.b32.xlu0 %v9457, 16
      %v9488 = vpop.permute.xlu0 %9487
      %9489 = vrot.lane.b32.xlu0 %v9458, 16
      %v9490 = vpop.permute.xlu0 %9489
      %9491 = vrot.lane.b32.xlu0 %v9459, 16
      %v9492 = vpop.permute.xlu0 %9491
      %9493 = vrot.lane.b32.xlu0 %v9460, 16
      %v9494 = vpop.permute.xlu0 %9493
      %9495 = vrot.lane.b32.xlu0 %v9461, 16
      %v9496 = vpop.permute.xlu0 %9495
      %9497 = vrot.lane.b32.xlu0 %v9462, 16
      %v9498 = vpop.permute.xlu0 %9497
      %9511 = vst.msk [vmem:[#allocation5] sm:$0xff] %vm8187, %v9476
      %9512 = vst.msk [vmem:[#allocation5 + $0x8] sm:$0xff] %vm8187, %v9478
      %9513 = vst.msk [vmem:[#allocation5 + $0x10] sm:$0xff] %vm8187, %v9480
      %9514 = vst.msk [vmem:[#allocation5 + $0x18] sm:$0xff] %vm8187, %v9482
      %9515 = vst.msk [vmem:[#allocation5 + $0x20] sm:$0xff] %vm8187, %v9484
      %9516 = vst.msk [vmem:[#allocation5 + $0x28] sm:$0xff] %vm8187, %v9486
      %9517 = vst.msk [vmem:[#allocation5 + $0x30] sm:$0xff] %vm8187, %v9488
      %9518 = vst.msk [vmem:[#allocation5 + $0x38] sm:$0xff] %vm8187, %v9490
      %9519 = vst.msk [vmem:[#allocation5 + $0x40] sm:$0xff] %vm8187, %v9492
      %9520 = vst.msk [vmem:[#allocation5 + $0x48] sm:$0xff] %vm8187, %v9494
      %9521 = vst.msk [vmem:[#allocation5 + $0x50] sm:$0xff] %vm8187, %v9496
      %9522 = vst.msk [vmem:[#allocation5 + $0x58] sm:$0xff] %vm8187, %v9498
      %v9523 = vld [vmem:[#allocation4 + $0x1] sm:$0xff]
      %v9524 = vld [vmem:[#allocation4 + $0x9] sm:$0xff]
      %v9525 = vld [vmem:[#allocation4 + $0x19] sm:$0xff]
      %v9526 = vld [vmem:[#allocation4 + $0x21] sm:$0xff]
      %v9527 = vld [vmem:[#allocation4 + $0x31] sm:$0xff]
      %v9528 = vld [vmem:[#allocation4 + $0x39] sm:$0xff]
      %v9529 = vld [vmem:[#allocation4 + $0x49] sm:$0xff]
      %v9530 = vld [vmem:[#allocation4 + $0x51] sm:$0xff]
      %v9531 = vld [vmem:[#allocation4 + $0x61] sm:$0xff]
      %v9532 = vld [vmem:[#allocation4 + $0x69] sm:$0xff]
      %v9533 = vld [vmem:[#allocation4 + $0x79] sm:$0xff]
      %v9534 = vld [vmem:[#allocation4 + $0x81] sm:$0xff]
      %9547 = vrot.lane.b32.xlu0 %v9523, 24
      %v9548 = vpop.permute.xlu0 %9547
      %9549 = vrot.lane.b32.xlu0 %v9524, 24
      %v9550 = vpop.permute.xlu0 %9549
      %9551 = vrot.lane.b32.xlu0 %v9525, 24
      %v9552 = vpop.permute.xlu0 %9551
      %9553 = vrot.lane.b32.xlu0 %v9526, 24
      %v9554 = vpop.permute.xlu0 %9553
      %9555 = vrot.lane.b32.xlu0 %v9527, 24
      %v9556 = vpop.permute.xlu0 %9555
      %9557 = vrot.lane.b32.xlu0 %v9528, 24
      %v9558 = vpop.permute.xlu0 %9557
      %9559 = vrot.lane.b32.xlu0 %v9529, 24
      %v9560 = vpop.permute.xlu0 %9559
      %9561 = vrot.lane.b32.xlu0 %v9530, 24
      %v9562 = vpop.permute.xlu0 %9561
      %9563 = vrot.lane.b32.xlu0 %v9531, 24
      %v9564 = vpop.permute.xlu0 %9563
      %9565 = vrot.lane.b32.xlu0 %v9532, 24
      %v9566 = vpop.permute.xlu0 %9565
      %9567 = vrot.lane.b32.xlu0 %v9533, 24
      %v9568 = vpop.permute.xlu0 %9567
      %9569 = vrot.lane.b32.xlu0 %v9534, 24
      %v9570 = vpop.permute.xlu0 %9569
      %9583 = vst.msk [vmem:[#allocation5] sm:$0xff] %vm8332, %v9548
      %9584 = vst.msk [vmem:[#allocation5 + $0x8] sm:$0xff] %vm8332, %v9550
      %9585 = vst.msk [vmem:[#allocation5 + $0x10] sm:$0xff] %vm8332, %v9552
      %9586 = vst.msk [vmem:[#allocation5 + $0x18] sm:$0xff] %vm8332, %v9554
      %9587 = vst.msk [vmem:[#allocation5 + $0x20] sm:$0xff] %vm8332, %v9556
      %9588 = vst.msk [vmem:[#allocation5 + $0x28] sm:$0xff] %vm8332, %v9558
      %9589 = vst.msk [vmem:[#allocation5 + $0x30] sm:$0xff] %vm8332, %v9560
      %9590 = vst.msk [vmem:[#allocation5 + $0x38] sm:$0xff] %vm8332, %v9562
      %9591 = vst.msk [vmem:[#allocation5 + $0x40] sm:$0xff] %vm8332, %v9564
      %9592 = vst.msk [vmem:[#allocation5 + $0x48] sm:$0xff] %vm8332, %v9566
      %9593 = vst.msk [vmem:[#allocation5 + $0x50] sm:$0xff] %vm8332, %v9568
      %9594 = vst.msk [vmem:[#allocation5 + $0x58] sm:$0xff] %vm8332, %v9570
      %v9595 = vld [vmem:[%s9341 + $0x1] sm:$0xff]
      %v9596 = vld [vmem:[%s9341 + $0x9] sm:$0xff]
      %v9597 = vld [vmem:[%s9341 + $0x19] sm:$0xff]
      %v9598 = vld [vmem:[%s9341 + $0x21] sm:$0xff]
      %v9599 = vld [vmem:[%s9341 + $0x31] sm:$0xff]
      %v9600 = vld [vmem:[%s9341 + $0x39] sm:$0xff]
      %v9601 = vld [vmem:[%s9341 + $0x49] sm:$0xff]
      %v9602 = vld [vmem:[%s9341 + $0x51] sm:$0xff]
      %v9603 = vld [vmem:[%s9341 + $0x61] sm:$0xff]
      %v9604 = vld [vmem:[%s9341 + $0x69] sm:$0xff]
      %v9605 = vld [vmem:[%s9341 + $0x79] sm:$0xff]
      %v9606 = vld [vmem:[%s9341 + $0x81] sm:$0xff]
      %9619 = vrot.lane.b32.xlu0 %v9595, 32
      %v9620 = vpop.permute.xlu0 %9619
      %9621 = vrot.lane.b32.xlu0 %v9596, 32
      %v9622 = vpop.permute.xlu0 %9621
      %9623 = vrot.lane.b32.xlu0 %v9597, 32
      %v9624 = vpop.permute.xlu0 %9623
      %9625 = vrot.lane.b32.xlu0 %v9598, 32
      %v9626 = vpop.permute.xlu0 %9625
      %9627 = vrot.lane.b32.xlu0 %v9599, 32
      %v9628 = vpop.permute.xlu0 %9627
      %9629 = vrot.lane.b32.xlu0 %v9600, 32
      %v9630 = vpop.permute.xlu0 %9629
      %9631 = vrot.lane.b32.xlu0 %v9601, 32
      %v9632 = vpop.permute.xlu0 %9631
      %9633 = vrot.lane.b32.xlu0 %v9602, 32
      %v9634 = vpop.permute.xlu0 %9633
      %9635 = vrot.lane.b32.xlu0 %v9603, 32
      %v9636 = vpop.permute.xlu0 %9635
      %9637 = vrot.lane.b32.xlu0 %v9604, 32
      %v9638 = vpop.permute.xlu0 %9637
      %9639 = vrot.lane.b32.xlu0 %v9605, 32
      %v9640 = vpop.permute.xlu0 %9639
      %9641 = vrot.lane.b32.xlu0 %v9606, 32
      %v9642 = vpop.permute.xlu0 %9641
      %9655 = vst.msk [vmem:[#allocation5] sm:$0xff] %vm8477, %v9620
      %9656 = vst.msk [vmem:[#allocation5 + $0x8] sm:$0xff] %vm8477, %v9622
      %9657 = vst.msk [vmem:[#allocation5 + $0x10] sm:$0xff] %vm8477, %v9624
      %9658 = vst.msk [vmem:[#allocation5 + $0x18] sm:$0xff] %vm8477, %v9626
      %9659 = vst.msk [vmem:[#allocation5 + $0x20] sm:$0xff] %vm8477, %v9628
      %9660 = vst.msk [vmem:[#allocation5 + $0x28] sm:$0xff] %vm8477, %v9630
      %9661 = vst.msk [vmem:[#allocation5 + $0x30] sm:$0xff] %vm8477, %v9632
      %9662 = vst.msk [vmem:[#allocation5 + $0x38] sm:$0xff] %vm8477, %v9634
      %9663 = vst.msk [vmem:[#allocation5 + $0x40] sm:$0xff] %vm8477, %v9636
      %9664 = vst.msk [vmem:[#allocation5 + $0x48] sm:$0xff] %vm8477, %v9638
      %9665 = vst.msk [vmem:[#allocation5 + $0x50] sm:$0xff] %vm8477, %v9640
      %9666 = vst.msk [vmem:[#allocation5 + $0x58] sm:$0xff] %vm8477, %v9642
      %v9667 = vld [vmem:[%s9450 + $0x1] sm:$0xff]
      %v9668 = vld [vmem:[%s9450 + $0x9] sm:$0xff]
      %v9669 = vld [vmem:[%s9450 + $0x19] sm:$0xff]
      %v9670 = vld [vmem:[%s9450 + $0x21] sm:$0xff]
      %v9671 = vld [vmem:[%s9450 + $0x31] sm:$0xff]
      %v9672 = vld [vmem:[%s9450 + $0x39] sm:$0xff]
      %v9673 = vld [vmem:[%s9450 + $0x49] sm:$0xff]
      %v9674 = vld [vmem:[%s9450 + $0x51] sm:$0xff]
      %v9675 = vld [vmem:[%s9450 + $0x61] sm:$0xff]
      %v9676 = vld [vmem:[%s9450 + $0x69] sm:$0xff]
      %v9677 = vld [vmem:[%s9450 + $0x79] sm:$0xff]
      %v9678 = vld [vmem:[%s9450 + $0x81] sm:$0xff]
      %9691 = vrot.lane.b32.xlu0 %v9667, 40
      %v9692 = vpop.permute.xlu0 %9691
      %9693 = vrot.lane.b32.xlu0 %v9668, 40
      %v9694 = vpop.permute.xlu0 %9693
      %9695 = vrot.lane.b32.xlu0 %v9669, 40
      %v9696 = vpop.permute.xlu0 %9695
      %9697 = vrot.lane.b32.xlu0 %v9670, 40
      %v9698 = vpop.permute.xlu0 %9697
      %9699 = vrot.lane.b32.xlu0 %v9671, 40
      %v9700 = vpop.permute.xlu0 %9699
      %9701 = vrot.lane.b32.xlu0 %v9672, 40
      %v9702 = vpop.permute.xlu0 %9701
      %9703 = vrot.lane.b32.xlu0 %v9673, 40
      %v9704 = vpop.permute.xlu0 %9703
      %9705 = vrot.lane.b32.xlu0 %v9674, 40
      %v9706 = vpop.permute.xlu0 %9705
      %9707 = vrot.lane.b32.xlu0 %v9675, 40
      %v9708 = vpop.permute.xlu0 %9707
      %9709 = vrot.lane.b32.xlu0 %v9676, 40
      %v9710 = vpop.permute.xlu0 %9709
      %9711 = vrot.lane.b32.xlu0 %v9677, 40
      %v9712 = vpop.permute.xlu0 %9711
      %9713 = vrot.lane.b32.xlu0 %v9678, 40
      %v9714 = vpop.permute.xlu0 %9713
      %9727 = vst.msk [vmem:[#allocation5] sm:$0xff] %vm8622, %v9692
      %9728 = vst.msk [vmem:[#allocation5 + $0x8] sm:$0xff] %vm8622, %v9694
      %9729 = vst.msk [vmem:[#allocation5 + $0x10] sm:$0xff] %vm8622, %v9696
      %9730 = vst.msk [vmem:[#allocation5 + $0x18] sm:$0xff] %vm8622, %v9698
      %9731 = vst.msk [vmem:[#allocation5 + $0x20] sm:$0xff] %vm8622, %v9700
      %9732 = vst.msk [vmem:[#allocation5 + $0x28] sm:$0xff] %vm8622, %v9702
      %9733 = vst.msk [vmem:[#allocation5 + $0x30] sm:$0xff] %vm8622, %v9704
      %9734 = vst.msk [vmem:[#allocation5 + $0x38] sm:$0xff] %vm8622, %v9706
      %9735 = vst.msk [vmem:[#allocation5 + $0x40] sm:$0xff] %vm8622, %v9708
      %9736 = vst.msk [vmem:[#allocation5 + $0x48] sm:$0xff] %vm8622, %v9710
      %9737 = vst.msk [vmem:[#allocation5 + $0x50] sm:$0xff] %vm8622, %v9712
      %9738 = vst.msk [vmem:[#allocation5 + $0x58] sm:$0xff] %vm8622, %v9714
      %v9739 = vld [vmem:[#allocation4 + $0x2] sm:$0xff]
      %v9740 = vld [vmem:[#allocation4 + $0xa] sm:$0xff]
      %v9741 = vld [vmem:[#allocation4 + $0x1a] sm:$0xff]
      %v9742 = vld [vmem:[#allocation4 + $0x22] sm:$0xff]
      %v9743 = vld [vmem:[#allocation4 + $0x32] sm:$0xff]
      %v9744 = vld [vmem:[#allocation4 + $0x3a] sm:$0xff]
      %v9745 = vld [vmem:[#allocation4 + $0x4a] sm:$0xff]
      %v9746 = vld [vmem:[#allocation4 + $0x52] sm:$0xff]
      %v9747 = vld [vmem:[#allocation4 + $0x62] sm:$0xff]
      %v9748 = vld [vmem:[#allocation4 + $0x6a] sm:$0xff]
      %v9749 = vld [vmem:[#allocation4 + $0x7a] sm:$0xff]
      %v9750 = vld [vmem:[#allocation4 + $0x82] sm:$0xff]
      %9763 = vrot.lane.b32.xlu0 %v9739, 48
      %v9764 = vpop.permute.xlu0 %9763
      %9765 = vrot.lane.b32.xlu0 %v9740, 48
      %v9766 = vpop.permute.xlu0 %9765
      %9767 = vrot.lane.b32.xlu0 %v9741, 48
      %v9768 = vpop.permute.xlu0 %9767
      %9769 = vrot.lane.b32.xlu0 %v9742, 48
      %v9770 = vpop.permute.xlu0 %9769
      %9771 = vrot.lane.b32.xlu0 %v9743, 48
      %v9772 = vpop.permute.xlu0 %9771
      %9773 = vrot.lane.b32.xlu0 %v9744, 48
      %v9774 = vpop.permute.xlu0 %9773
      %9775 = vrot.lane.b32.xlu0 %v9745, 48
      %v9776 = vpop.permute.xlu0 %9775
      %9777 = vrot.lane.b32.xlu0 %v9746, 48
      %v9778 = vpop.permute.xlu0 %9777
      %9779 = vrot.lane.b32.xlu0 %v9747, 48
      %v9780 = vpop.permute.xlu0 %9779
      %9781 = vrot.lane.b32.xlu0 %v9748, 48
      %v9782 = vpop.permute.xlu0 %9781
      %9783 = vrot.lane.b32.xlu0 %v9749, 48
      %v9784 = vpop.permute.xlu0 %9783
      %9785 = vrot.lane.b32.xlu0 %v9750, 48
      %v9786 = vpop.permute.xlu0 %9785
      %9799 = vst.msk [vmem:[#allocation5] sm:$0xff] %vm8767, %v9764
      %9800 = vst.msk [vmem:[#allocation5 + $0x8] sm:$0xff] %vm8767, %v9766
      %9801 = vst.msk [vmem:[#allocation5 + $0x10] sm:$0xff] %vm8767, %v9768
      %9802 = vst.msk [vmem:[#allocation5 + $0x18] sm:$0xff] %vm8767, %v9770
      %9803 = vst.msk [vmem:[#allocation5 + $0x20] sm:$0xff] %vm8767, %v9772
      %9804 = vst.msk [vmem:[#allocation5 + $0x28] sm:$0xff] %vm8767, %v9774
      %9805 = vst.msk [vmem:[#allocation5 + $0x30] sm:$0xff] %vm8767, %v9776
      %9806 = vst.msk [vmem:[#allocation5 + $0x38] sm:$0xff] %vm8767, %v9778
      %9807 = vst.msk [vmem:[#allocation5 + $0x40] sm:$0xff] %vm8767, %v9780
      %9808 = vst.msk [vmem:[#allocation5 + $0x48] sm:$0xff] %vm8767, %v9782
      %9809 = vst.msk [vmem:[#allocation5 + $0x50] sm:$0xff] %vm8767, %v9784
      %9810 = vst.msk [vmem:[#allocation5 + $0x58] sm:$0xff] %vm8767, %v9786
      %v9811 = vld [vmem:[%s9341 + $0x2] sm:$0xff]
      %v9812 = vld [vmem:[%s9341 + $0xa] sm:$0xff]
      %v9813 = vld [vmem:[%s9341 + $0x1a] sm:$0xff]
      %v9814 = vld [vmem:[%s9341 + $0x22] sm:$0xff]
      %v9815 = vld [vmem:[%s9341 + $0x32] sm:$0xff]
      %v9816 = vld [vmem:[%s9341 + $0x3a] sm:$0xff]
      %v9817 = vld [vmem:[%s9341 + $0x4a] sm:$0xff]
      %v9818 = vld [vmem:[%s9341 + $0x52] sm:$0xff]
      %v9819 = vld [vmem:[%s9341 + $0x62] sm:$0xff]
      %v9820 = vld [vmem:[%s9341 + $0x6a] sm:$0xff]
      %v9821 = vld [vmem:[%s9341 + $0x7a] sm:$0xff]
      %v9822 = vld [vmem:[%s9341 + $0x82] sm:$0xff]
      %9835 = vrot.lane.b32.xlu0 %v9811, 56
      %v9836 = vpop.permute.xlu0 %9835
      %9837 = vrot.lane.b32.xlu0 %v9812, 56
      %v9838 = vpop.permute.xlu0 %9837
      %9839 = vrot.lane.b32.xlu0 %v9813, 56
      %v9840 = vpop.permute.xlu0 %9839
      %9841 = vrot.lane.b32.xlu0 %v9814, 56
      %v9842 = vpop.permute.xlu0 %9841
      %9843 = vrot.lane.b32.xlu0 %v9815, 56
      %v9844 = vpop.permute.xlu0 %9843
      %9845 = vrot.lane.b32.xlu0 %v9816, 56
      %v9846 = vpop.permute.xlu0 %9845
      %9847 = vrot.lane.b32.xlu0 %v9817, 56
      %v9848 = vpop.permute.xlu0 %9847
      %9849 = vrot.lane.b32.xlu0 %v9818, 56
      %v9850 = vpop.permute.xlu0 %9849
      %9851 = vrot.lane.b32.xlu0 %v9819, 56
      %v9852 = vpop.permute.xlu0 %9851
      %9853 = vrot.lane.b32.xlu0 %v9820, 56
      %v9854 = vpop.permute.xlu0 %9853
      %9855 = vrot.lane.b32.xlu0 %v9821, 56
      %v9856 = vpop.permute.xlu0 %9855
      %9857 = vrot.lane.b32.xlu0 %v9822, 56
      %v9858 = vpop.permute.xlu0 %9857
      %9871 = vst.msk [vmem:[#allocation5] sm:$0xff] %vm8912, %v9836
      %9872 = vst.msk [vmem:[#allocation5 + $0x8] sm:$0xff] %vm8912, %v9838
      %9873 = vst.msk [vmem:[#allocation5 + $0x10] sm:$0xff] %vm8912, %v9840
      %9874 = vst.msk [vmem:[#allocation5 + $0x18] sm:$0xff] %vm8912, %v9842
      %9875 = vst.msk [vmem:[#allocation5 + $0x20] sm:$0xff] %vm8912, %v9844
      %9876 = vst.msk [vmem:[#allocation5 + $0x28] sm:$0xff] %vm8912, %v9846
      %9877 = vst.msk [vmem:[#allocation5 + $0x30] sm:$0xff] %vm8912, %v9848
      %9878 = vst.msk [vmem:[#allocation5 + $0x38] sm:$0xff] %vm8912, %v9850
      %9879 = vst.msk [vmem:[#allocation5 + $0x40] sm:$0xff] %vm8912, %v9852
      %9880 = vst.msk [vmem:[#allocation5 + $0x48] sm:$0xff] %vm8912, %v9854
      %9881 = vst.msk [vmem:[#allocation5 + $0x50] sm:$0xff] %vm8912, %v9856
      %9882 = vst.msk [vmem:[#allocation5 + $0x58] sm:$0xff] %vm8912, %v9858
      %v9883 = vld [vmem:[%s9450 + $0x2] sm:$0xff]
      %v9884 = vld [vmem:[%s9450 + $0xa] sm:$0xff]
      %v9885 = vld [vmem:[%s9450 + $0x1a] sm:$0xff]
      %v9886 = vld [vmem:[%s9450 + $0x22] sm:$0xff]
      %v9887 = vld [vmem:[%s9450 + $0x32] sm:$0xff]
      %v9888 = vld [vmem:[%s9450 + $0x3a] sm:$0xff]
      %v9889 = vld [vmem:[%s9450 + $0x4a] sm:$0xff]
      %v9890 = vld [vmem:[%s9450 + $0x52] sm:$0xff]
      %v9891 = vld [vmem:[%s9450 + $0x62] sm:$0xff]
      %v9892 = vld [vmem:[%s9450 + $0x6a] sm:$0xff]
      %v9893 = vld [vmem:[%s9450 + $0x7a] sm:$0xff]
      %v9894 = vld [vmem:[%s9450 + $0x82] sm:$0xff]
      %9907 = vrot.lane.b32.xlu0 %v9883, 64
      %v9908 = vpop.permute.xlu0 %9907
      %9909 = vrot.lane.b32.xlu0 %v9884, 64
      %v9910 = vpop.permute.xlu0 %9909
      %9911 = vrot.lane.b32.xlu0 %v9885, 64
      %v9912 = vpop.permute.xlu0 %9911
      %9913 = vrot.lane.b32.xlu0 %v9886, 64
      %v9914 = vpop.permute.xlu0 %9913
      %9915 = vrot.lane.b32.xlu0 %v9887, 64
      %v9916 = vpop.permute.xlu0 %9915
      %9917 = vrot.lane.b32.xlu0 %v9888, 64
      %v9918 = vpop.permute.xlu0 %9917
      %9919 = vrot.lane.b32.xlu0 %v9889, 64
      %v9920 = vpop.permute.xlu0 %9919
      %9921 = vrot.lane.b32.xlu0 %v9890, 64
      %v9922 = vpop.permute.xlu0 %9921
      %9923 = vrot.lane.b32.xlu0 %v9891, 64
      %v9924 = vpop.permute.xlu0 %9923
      %9925 = vrot.lane.b32.xlu0 %v9892, 64
      %v9926 = vpop.permute.xlu0 %9925
      %9927 = vrot.lane.b32.xlu0 %v9893, 64
      %v9928 = vpop.permute.xlu0 %9927
      %9929 = vrot.lane.b32.xlu0 %v9894, 64
      %v9930 = vpop.permute.xlu0 %9929
      %9943 = vst.msk [vmem:[#allocation5] sm:$0xff] %vm9057, %v9908
      %9944 = vst.msk [vmem:[#allocation5 + $0x8] sm:$0xff] %vm9057, %v9910
      %9945 = vst.msk [vmem:[#allocation5 + $0x10] sm:$0xff] %vm9057, %v9912
      %9946 = vst.msk [vmem:[#allocation5 + $0x18] sm:$0xff] %vm9057, %v9914
      %9947 = vst.msk [vmem:[#allocation5 + $0x20] sm:$0xff] %vm9057, %v9916
      %9948 = vst.msk [vmem:[#allocation5 + $0x28] sm:$0xff] %vm9057, %v9918
      %9949 = vst.msk [vmem:[#allocation5 + $0x30] sm:$0xff] %vm9057, %v9920
      %9950 = vst.msk [vmem:[#allocation5 + $0x38] sm:$0xff] %vm9057, %v9922
      %9951 = vst.msk [vmem:[#allocation5 + $0x40] sm:$0xff] %vm9057, %v9924
      %9952 = vst.msk [vmem:[#allocation5 + $0x48] sm:$0xff] %vm9057, %v9926
      %9953 = vst.msk [vmem:[#allocation5 + $0x50] sm:$0xff] %vm9057, %v9928
      %9954 = vst.msk [vmem:[#allocation5 + $0x58] sm:$0xff] %vm9057, %v9930
      %v9955 = vld [vmem:[#allocation5] sm:$0xff]
      %v9956 = vld [vmem:[#allocation5 + $0x8] sm:$0xff]
      %v9957 = vld [vmem:[#allocation5 + $0x10] sm:$0xff]
      %v9958 = vld [vmem:[#allocation5 + $0x18] sm:$0xff]
      %v9959 = vld [vmem:[#allocation5 + $0x20] sm:$0xff]
      %v9960 = vld [vmem:[#allocation5 + $0x28] sm:$0xff]
      %v9961 = vld [vmem:[#allocation5 + $0x30] sm:$0xff]
      %v9962 = vld [vmem:[#allocation5 + $0x38] sm:$0xff]
      %v9963 = vld [vmem:[#allocation5 + $0x40] sm:$0xff]
      %v9964 = vld [vmem:[#allocation5 + $0x48] sm:$0xff]
      %v9965 = vld [vmem:[#allocation5 + $0x50] sm:$0xff]
      %v9966 = vld [vmem:[#allocation5 + $0x58] sm:$0xff]
      %v9967 = vld [vmem:[%s5] sm:$0xff]
      %v9968 = vld [vmem:[%s5 + $0x8] sm:$0xff]
      %v9969 = vld [vmem:[%s5 + $0x10] sm:$0xff]
      %v9970 = vld [vmem:[%s5 + $0x18] sm:$0xff]
      %v9971 = vld [vmem:[%s5 + $0x20] sm:$0xff]
      %v9972 = vld [vmem:[%s5 + $0x28] sm:$0xff]
      %v9973 = vld [vmem:[%s5 + $0x30] sm:$0xff]
      %v9974 = vld [vmem:[%s5 + $0x38] sm:$0xff]
      %v9975 = vld [vmem:[%s5 + $0x40] sm:$0xff]
      %v9976 = vld [vmem:[%s6] sm:$0x1]
      %v9978 = vperm.slane %v9976, 0
      %v9981 = vsel %vm9119, %v9955, 0
      %v9984 = vsel %vm9119, %v9956, 0
      %v9987 = vsel %vm9119, %v9957, 0
      %v9990 = vsel %vm9119, %v9958, 0
      %v9993 = vsel %vm9119, %v9959, 0
      %v9996 = vsel %vm9119, %v9960, 0
      %v9999 = vsel %vm9119, %v9961, 0
      %v10002 = vsel %vm9119, %v9962, 0
      %v10005 = vsel %vm9119, %v9963, 0
      %v10008 = vsel %vm9119, %v9964, 0
      %v10011 = vsel %vm9119, %v9965, 0
      %v10014 = vsel %vm9119, %v9966, 0
      %10016 = vmatpush.msra.mxu0 0.0
      %10017 = vmatpush.msra.mxu0 0.0
      %10018 = vmatpush.msra.mxu0 0.0
      %10019 = vmatpush.msra.mxu0 0.0
      %10020 = vmatpush.msra.mxu0 0.0
      %10021 = vmatpush.msra.mxu0 0.0
      %10022 = vmatpush.msra.mxu0 0.0
      %10023 = vmatpush.msra.mxu0 %v9975
      %10024 = vmatpush.msra.mxu0 %v9974
      %10025 = vmatpush.msra.mxu0 %v9973
      %10026 = vmatpush.msra.mxu0 %v9972
      %10027 = vmatpush.msra.mxu0 %v9971
      %10028 = vmatpush.msra.mxu0 %v9970
      %10029 = vmatpush.msra.mxu0 %v9969
      %10030 = vmatpush.msra.mxu0 %v9968
      %10031 = vmatpush.msra.mxu0 %v9967
      %10032 = vmatmul.f32.gmra.mxu0 %v9981
      %v10033 = vpop.f32.mrf.mxu0
      %v10034 = vadd.f32 %v9978, %v10033
      %10035 = vmatmul.f32.gmra.mxu0 %v9984
      %v10036 = vpop.f32.mrf.mxu0
      %v10037 = vadd.f32 %v9978, %v10036
      %10038 = vmatmul.f32.gmra.mxu0 %v9987
      %v10039 = vpop.f32.mrf.mxu0
      %v10040 = vadd.f32 %v9978, %v10039
      %10041 = vmatmul.f32.gmra.mxu0 %v9990
      %v10042 = vpop.f32.mrf.mxu0
      %v10043 = vadd.f32 %v9978, %v10042
      %10044 = vmatmul.f32.gmra.mxu0 %v9993
      %v10045 = vpop.f32.mrf.mxu0
      %v10046 = vadd.f32 %v9978, %v10045
      %10047 = vmatmul.f32.gmra.mxu0 %v9996
      %v10048 = vpop.f32.mrf.mxu0
      %v10049 = vadd.f32 %v9978, %v10048
      %10050 = vmatmul.f32.gmra.mxu0 %v9999
      %v10051 = vpop.f32.mrf.mxu0
      %v10052 = vadd.f32 %v9978, %v10051
      %10053 = vmatmul.f32.gmra.mxu0 %v10002
      %v10054 = vpop.f32.mrf.mxu0
      %v10055 = vadd.f32 %v9978, %v10054
      %10056 = vmatmul.f32.gmra.mxu0 %v10005
      %v10057 = vpop.f32.mrf.mxu0
      %v10058 = vadd.f32 %v9978, %v10057
      %10059 = vmatmul.f32.gmra.mxu0 %v10008
      %v10060 = vpop.f32.mrf.mxu0
      %v10061 = vadd.f32 %v9978, %v10060
      %10062 = vmatmul.f32.gmra.mxu0 %v10011
      %v10063 = vpop.f32.mrf.mxu0
      %v10064 = vadd.f32 %v9978, %v10063
      %10065 = vmatmul.f32.gmra.mxu0 %v10014
      %v10066 = vpop.f32.mrf.mxu0
      %v10067 = vadd.f32 %v9978, %v10066
      %10068 = vdwg.mxu0
      %v10069 = vmax.f32 %v10034, 0.0
      %v10070 = vmax.f32 %v10037, 0.0
      %v10071 = vmax.f32 %v10040, 0.0
      %v10072 = vmax.f32 %v10043, 0.0
      %v10073 = vmax.f32 %v10046, 0.0
      %v10074 = vmax.f32 %v10049, 0.0
      %v10075 = vmax.f32 %v10052, 0.0
      %v10076 = vmax.f32 %v10055, 0.0
      %v10077 = vmax.f32 %v10058, 0.0
      %v10078 = vmax.f32 %v10061, 0.0
      %v10079 = vmax.f32 %v10064, 0.0
      %v10080 = vmax.f32 %v10067, 0.0
      %v10081 = vmax.f32 %v10069, %v10071
      %v10082 = vmax.f32 %v10070, %v10072
      %v10083 = vmax.f32 %v10073, %v10075
      %v10084 = vmax.f32 %v10074, %v10076
      %v10085 = vmax.f32 %v10077, %v10079
      %v10086 = vmax.f32 %v10078, %v10080
      %10087 = vst.msk [vmem:[%s278] sm:$0xff] %vm7804, %v10081
      %10088 = vst.msk [vmem:[%s278 + $0x8] sm:$0xff] %vm7804, %v10082
      %10089 = vst.msk [vmem:[%s278 + $0x10] sm:$0xff] %vm7804, %v10083
      %10090 = vst.msk [vmem:[%s278 + $0x18] sm:$0xff] %vm7804, %v10084
      %10091 = vst.msk [vmem:[%s278 + $0x20] sm:$0xff] %vm7804, %v10085
      %10092 = vst.msk [vmem:[%s278 + $0x28] sm:$0xff] %vm7804, %v10086
      %p10093 = scmp.lt.s32.totalorder %s18, 1
      %s10094 = scalar_select %p10093, %s18, 1
      %s10095 = smul.addr %s10094, 6
      %s10096 = smul.addr %s10095, 8
      %s10097 = scalar_lea.vmem %s7, %s10096
      // Predicated region
      $region49: #{sed_crnn_forward.2} parent=47 // pred_check
        %p10098 = pneg %p188
      $region50: #{sed_crnn_forward.2} parent=47 // pred_check_branch
        %10100 = sbr.rel (%p10098) target = $region52
      $region51: #{sed_crnn_forward.2} parent=47 // pred_region
        _
      $region52: #{sed_crnn_forward.2} parent=47 // pred_fallthru
        _
    $region48: #{sed_crnn_forward.2} parent=5 // pred_fallthru
      _
    %p10101 = scmp.le.s32.totalorder 2, %s13
    // Predicated region
    $region53: #{sed_crnn_forward.2} parent=5 // pred_check
      %p10102 = pneg %p10101
    $region54: #{sed_crnn_forward.2} parent=5 // pred_check_branch
      %10104 = sbr.rel (%p10102) target = $region56
    $region55: #{sed_crnn_forward.2} parent=5 // pred_region
      %s10105 = ssub.s32 %s13, 2
      // Predicated region
      $region57: #{sed_crnn_forward.2} parent=55 // pred_check
        %p10106 = pneg %p194
      $region58: #{sed_crnn_forward.2} parent=55 // pred_check_branch
        %10108 = sbr.rel (%p10106) target = $region60
      $region59: #{sed_crnn_forward.2} parent=55 // pred_region
        %p10109 = scmp.lt.s32.totalorder %s19, 1
        %s10110 = scalar_select %p10109, %s19, 1
        %s10111 = smul.addr %s10110, 6
        %s10112 = smul.addr %s10111, 8
        %s10113 = scalar_lea.vmem %s7, %s10112
      $region60: #{sed_crnn_forward.2} parent=55 // pred_fallthru
        _
    $region56: #{sed_crnn_forward.2} parent=5 // pred_fallthru
      _
  $region6: #{sed_crnn_forward.2} parent=0 // loop_footer
    %s17 = sadd.s32 1, %s13
  $region7: #{sed_crnn_forward.2} parent=0 // loop_footer_branch
    %12 = sbr.rel target = $region3
  $region8: #{sed_crnn_forward.2} parent=0 // loop_exit
    _

</llo_original>
